<compile_context>
chip_gen: v7x
topology: tpu7x:2x2x1
jax: 0.10.0
libtpu: 0.0.40
codegen_flags: <defaults>
</compile_context>

<pallas_src>
import functools

import jax
import jax.numpy as jnp
import numpy as np
from jax.experimental import pallas as pl
from jax.experimental.pallas import tpu as pltpu


def autopad(k, p=None, d=1):
    """Pad to 'same' shape outputs (mirrors the PyTorch helper)."""
    if d > 1:
        k = d * (k - 1) + 1 if isinstance(k, int) else [d * (x - 1) + 1 for x in k]
    if p is None:
        p = k // 2 if isinstance(k, int) else [x // 2 for x in k]
    return p


def _round_up(x, m):
    return ((x + m - 1) // m) * m


def _vmem_capacity_bytes():
    try:
        info = pltpu.get_tpu_info()
        cap = getattr(info, "vmem_capacity_bytes", None)
        if cap:
            return int(cap)
    except Exception:
        pass
    return 128 * 1024 * 1024          # v5e / v6e default; v7x is detected above when available


def _fold_bn(weight, gamma, beta, running_mean, running_var, eps=1e-5):
    """Fold eval-mode BatchNorm into the conv weight. Returns (bf16 OIHW folded weight, f32 shift)."""
    scale = gamma.astype(jnp.float32) * jax.lax.rsqrt(running_var.astype(jnp.float32) + eps)
    shift = beta.astype(jnp.float32) - running_mean.astype(jnp.float32) * scale
    w_folded = (weight.astype(jnp.float32) * scale[:, None, None, None]).astype(jnp.bfloat16)
    return w_folded, shift


def _conv_bn_silu_kernel(x_ref, halo_ref, w_ref, shift_ref, o_ref, lhs_ref, *, k, wp):
    # x_ref:     (M, C1)    bf16 flattened main rows of this (batch, row-block)
    # halo_ref:  (Hh, C1)   bf16 flat halo (next (k-1) rows + flat margins)
    # w_ref:     (KC, tn)   bf16 BN-folded weights, rows = (tap, channel-slot)
    # shift_ref: (1, tn)    f32 BN shift
    # o_ref:     (M, tn)    bf16 output tile
    # lhs_ref:   (M, KC)    bf16 in-VMEM im2col scratch (persists across the c2 grid axis)
    m, c1 = x_ref.shape
    kc = lhs_ref.shape[1]
    slot = kc // (k * k)                                   # lane-aligned per-tap channel slot

    @pl.when(pl.program_id(2) == 0)                        # build once per (n, row-block)
    def _build_lhs():
        for dy in range(k):
            for dx in range(k):
                off = dy * wp + dx                         # static flat shift of this tap
                tap = dy * k + dx
                if off == 0:
                    piece = x_ref[...]
                else:
                    piece = jnp.concatenate(
                        [x_ref[off:m, :], halo_ref[0:off, :]], axis=0)     # (M, C1)
                if slot > c1:                              # zero-pad lanes so the padded weight
                    piece = jnp.concatenate(               # rows meet zeros (never garbage)
                        [piece, jnp.zeros((m, slot - c1), piece.dtype)], axis=1)
                lhs_ref[:, tap * slot:(tap + 1) * slot] = piece

    # Single fused MXU matmul over the whole 3x3 receptive field, f32 accumulation.
    y = jnp.dot(lhs_ref[...], w_ref[...], preferred_element_type=jnp.float32)
    y = y + shift_ref[...]
    sig = 0.5 * (jnp.tanh(0.5 * y) + 1.0)                  # sigmoid via EUP tanh (no VALU divide)
    o_ref[...] = (y * sig).astype(o_ref.dtype)


def conv_bn_silu(x, weight, gamma, beta, running_mean, running_var,
                 k=3, s=1, p=None, g=1, d=1, eps=1e-5, th=None,
                 in_format="NCHW", out_format="NCHW"):
    """Equivalent of Conv(c1, c2, k, s).forward(x): Conv2d(bias=False) + BatchNorm2d(eval) + SiLU."""
    pad = autopad(k, p, d)
    assert s == 1 and g == 1 and d == 1 and k % 2 == 1 and pad == k // 2, \
        "kernel specialized to stride-1, non-grouped, non-dilated, odd-k 'same' conv"

    if in_format == "NCHW":
        x_nhwc = jnp.transpose(x.astype(jnp.bfloat16), (0, 2, 3, 1))
    else:
        x_nhwc = x.astype(jnp.bfloat16)
    N, H, W, C1 = x_nhwc.shape
    C2 = weight.shape[0]

    LANE = 128
    C2p = _round_up(C2, LANE)                  # lane-dense output channels
    C1s = _round_up(C1, LANE)                  # lane-aligned per-tap channel slot
    KC = k * k * C1s                           # contraction dim of the fused matmul
    Wp = _round_up(W + 2 * pad, 8)             # sublane-aligned padded row width

    # ---- output-channel tile (bounds weight/output VMEM for wide layers) ----
    if C2p <= 512:
        tn = C2p
    else:
        tn = LANE
        for cand in (512, 384, 256):
            if C2p % cand == 0:
                tn = cand
                break
    nc2 = C2p // tn

    # ---- VMEM budget & row tile ----
    budget = max(32 * 1024 * 1024, int(_vmem_capacity_bytes() * 0.75))
    Hh = (k - 1) * Wp + 2 * pad                # flat halo length per row block
    if th is None:
        per_row = 2 * 2 * C1s + 2 * 2 * tn + 2 * KC                 # main(x2) + out(x2) + lhs
        fixed = 2 * KC * tn * 2 + 2 * _round_up(Hh, 16) * C1s * 2 + 4 * C2p * 4
        avail = max(int(0.8 * budget) - fixed, per_row * 8)
        m_cap = max(8, min(avail // per_row, 4096))                 # target M in [8, 4096]
        th = max(k, min(max(H, k), int(m_cap) // Wp))
    else:
        th = max(k, int(th))                   # need th >= k so tap shifts fit in main+halo
    nb = -(-H // th)
    Hq = nb * th
    M = th * Wp                                # flattened output rows per block (multiple of 8)

    # ---- parameters: fold BN scale into weights, lay out as (KC, C2p) ----
    w_folded, shift = _fold_bn(weight, gamma, beta, running_mean, running_var, eps)
    w_t = jnp.transpose(w_folded, (2, 3, 1, 0))                               # (k,k,C1,C2)
    w_t = jnp.pad(w_t, ((0, 0), (0, 0), (0, C1s - C1), (0, C2p - C2)))        # (k,k,C1s,C2p)
    w_mat = w_t.reshape(KC, C2p)                                              # bf16
    shift_p = jnp.pad(shift, (0, C2p - C2)).reshape(1, C2p)                   # f32

    # ---- activation: zero-pad, flatten rows, add flat margins (single copy, no slab stack) ----
    xb = jnp.pad(x_nhwc, ((0, 0), (pad, pad + (Hq - H)), (pad, Wp - W - pad), (0, 0)))
    xf = xb.reshape(N, (Hq + k - 1) * Wp, C1)
    xf = jnp.pad(xf, ((0, 0), (pad, pad), (0, 0)))                            # (N, Lf, C1)
    # tiny per-block halo ((k-1) rows + margins); main blocks are read straight from xf
    halos = jnp.stack([xf[:, (r + 1) * M:(r + 1) * M + Hh, :] for r in range(nb)],
                      axis=1)                                                 # (N, nb, Hh, C1)

    kernel = functools.partial(_conv_bn_silu_kernel, k=k, wp=Wp)

    fp = (2 * M * C1s * 2 + 2 * _round_up(Hh, 16) * C1s * 2 + 2 * KC * tn * 2
          + 2 * M * tn * 2 + M * KC * 2 + 4 * C2p * 4)
    vmem_limit = max(32 * 1024 * 1024, min(int(1.4 * fp), budget))

    cost = pl.CostEstimate(
        flops=2 * N * nb * M * KC * C2p,
        transcendentals=N * nb * M * C2p,
        bytes_accessed=int(xf.size * 2 + halos.size * 2 + w_mat.size * 2
                           + shift_p.size * 4 + N * nb * M * C2p * 2),
    )

    def _call(single_buffer_consts):
        if single_buffer_consts:
            w_spec = pl.BlockSpec((KC, tn), lambda n, r, c: (0, c),
                                  pipeline_mode=pl.Buffered(1))
            s_spec = pl.BlockSpec((1, tn), lambda n, r, c: (0, c),
                                  pipeline_mode=pl.Buffered(1))
        else:
            w_spec = pl.BlockSpec((KC, tn), lambda n, r, c: (0, c))
            s_spec = pl.BlockSpec((1, tn), lambda n, r, c: (0, c))
        return pl.pallas_call(
            kernel,
            out_shape=jax.ShapeDtypeStruct((N, nb, M, C2p), jnp.bfloat16),
            grid_spec=pltpu.PrefetchScalarGridSpec(
                num_scalar_prefetch=0,
                grid=(N, nb, nc2),
                in_specs=[
                    pl.BlockSpec((None, M, C1), lambda n, r, c: (n, r, 0)),          # main rows
                    pl.BlockSpec((None, None, Hh, C1), lambda n, r, c: (n, r, 0, 0)),  # halo
                    w_spec,                                                           # weights
                    s_spec,                                                           # BN shift
                ],
                out_specs=pl.BlockSpec((None, None, M, tn), lambda n, r, c: (n, r, 0, c)),
                scratch_shapes=[pltpu.VMEM((M, KC), jnp.bfloat16)],                   # im2col lhs
            ),
            compiler_params=pltpu.CompilerParams(
                dimension_semantics=("parallel", "parallel", "arbitrary"),
                vmem_limit_bytes=int(vmem_limit)),
            cost_estimate=cost,
        )(xf, halos, w_mat, shift_p)

    if nc2 == 1:
        try:
            out = _call(True)          # weights/shift grid-invariant -> single-buffer them
        except Exception:
            out = _call(False)         # fallback if Buffered(1) is unsupported by this lowering
    else:
        out = _call(False)

    # (N, nb, th*Wp, C2p) -> (N, Hq, Wp, C2p) -> keep valid rows / cols / channels (NHWC, bf16)
    out = out.reshape(N, Hq, Wp, C2p)[:, :H, pad:pad + W, :C2]
    if out_format == "NHWC":
        return out                                   # channels-last: cheapest for TPU consumers
    return jnp.transpose(out, (0, 3, 1, 2))          # NCHW at the API boundary (torch parity)


# ---------------- plain-JAX reference (same bf16 quantization of x / folded weights) ----------------
def _reference(x, weight, gamma, beta, running_mean, running_var, k, pad, eps=1e-5):
    w_folded, shift = _fold_bn(weight, gamma, beta, running_mean, running_var, eps)
    y = jax.lax.conv_general_dilated(
        x.astype(jnp.bfloat16), w_folded,
        window_strides=(1, 1), padding=[(pad, pad), (pad, pad)],
        dimension_numbers=("NCHW", "OIHW", "NCHW"),
        preferred_element_type=jnp.float32)
    y = y + shift[None, :, None, None]
    return y * jax.nn.sigmoid(y)


if __name__ == "__main__":
    key = jax.random.PRNGKey(0)
    # (N, C1, H, W, C2, th): first is the required small config (single row block);
    # the second forces nb > 1 row blocks and odd spatial dims to exercise the tiled path.
    configs = [(2, 4, 16, 16, 8, None), (1, 8, 13, 11, 16, 4)]
    for (N, C1, H, W, C2, th) in configs:
        key, kx, kw, kg, kb, km, kv = jax.random.split(key, 7)
        x = jax.random.normal(kx, (N, C1, H, W), dtype=jnp.float32)
        weight = 0.1 * jax.random.normal(kw, (C2, C1, 3, 3), dtype=jnp.float32)
        gamma = 1.0 + 0.1 * jax.random.normal(kg, (C2,), dtype=jnp.float32)
        beta = 0.1 * jax.random.normal(kb, (C2,), dtype=jnp.float32)
        running_mean = 0.1 * jax.random.normal(km, (C2,), dtype=jnp.float32)
        running_var = jnp.abs(1.0 + 0.1 * jax.random.normal(kv, (C2,), dtype=jnp.float32))

        out = conv_bn_silu(x, weight, gamma, beta, running_mean, running_var, k=3, s=1, th=th)
        out = jax.block_until_ready(out)

        ref = _reference(x, weight, gamma, beta, running_mean, running_var, 3, autopad(3))
        np.testing.assert_allclose(np.asarray(out.astype(jnp.float32)), np.asarray(ref),
                                   atol=2e-2, rtol=2e-2)   # bf16 output tolerance

    print("KERNEL_OK")
</pallas_src>

<mosaic_0001>
module attributes {stable_mosaic.version = 11 : i64} {
  func.func @_conv_bn_silu_kernel(%arg0: i32, %arg1: i32, %arg2: i32, %arg3: memref<1x384x4xbf16, #tpu.memory_space<vmem>>, %arg4: memref<1x1x50x4xbf16, #tpu.memory_space<vmem>>, %arg5: memref<1152x128xbf16, #tpu.memory_space<vmem>>, %arg6: memref<1x128xf32, #tpu.memory_space<vmem>>, %arg7: memref<1x1x384x128xbf16, #tpu.memory_space<vmem>>, %arg8: memref<384x1152xbf16, #tpu.memory_space<vmem>>) attributes {dimension_semantics = [#tpu.dimension_semantics<parallel>, #tpu.dimension_semantics<parallel>, #tpu.dimension_semantics<arbitrary>], iteration_bounds = array<i64: 2, 1, 1>, scalar_prefetch = 0 : i64, scratch_operands = 1 : i64, tpu.core_type = #tpu.core_type<tc>, window_params = [{transform_indices = @transform_0, window_bounds = array<i64: 1, 384, 4>}, {transform_indices = @transform_1, window_bounds = array<i64: 1, 1, 50, 4>}, {pipeline_mode = #tpu.pipeline_mode<synchronous>, transform_indices = @transform_2, window_bounds = array<i64: 1152, 128>}, {pipeline_mode = #tpu.pipeline_mode<synchronous>, transform_indices = @transform_3, window_bounds = array<i64: 1, 128>}, {transform_indices = @transform_4, window_bounds = array<i64: 1, 1, 384, 128>}]} {
    %c0_i32 = arith.constant 0 : i32
    %0 = arith.cmpi eq, %arg2, %c0_i32 : i32
    %1 = arith.extui %0 : i1 to i32
    %c0_i32_0 = arith.constant 0 : i32
    %2 = arith.cmpi ne, %1, %c0_i32_0 : i32
    scf.if %2 {
      %c0_13 = arith.constant 0 : index
      %c0_14 = arith.constant 0 : index
      %c0_15 = arith.constant 0 : index
      %21 = vector.load %arg3[%c0_13, %c0_14, %c0_15] : memref<1x384x4xbf16, #tpu.memory_space<vmem>>, vector<1x384x4xbf16>
      %22 = vector.shape_cast %21 : vector<1x384x4xbf16> to vector<384x4xbf16>
      %cst_16 = arith.constant 0.000000e+00 : bf16
      %23 = vector.broadcast %cst_16 : bf16 to vector<384x124xbf16>
      %24 = tpu.concatenate %22, %23 in 1 : vector<384x4xbf16>, vector<384x124xbf16> -> vector<384x128xbf16>
      %c0_17 = arith.constant 0 : index
      %c0_18 = arith.constant 0 : index
      %25 = vector.load %arg8[%c0_17, %c0_18] : memref<384x1152xbf16, #tpu.memory_space<vmem>>, vector<384x128xbf16>
      tpu.vector_store %arg8[%c0_17, %c0_18], %24 {strides = array<i32>} : memref<384x1152xbf16, #tpu.memory_space<vmem>>, vector<384x128xbf16>,
      %c0_19 = arith.constant 0 : index
      %c1 = arith.constant 1 : index
      %c0_20 = arith.constant 0 : index
      %26 = vector.load %arg3[%c0_19, %c1, %c0_20] : memref<1x384x4xbf16, #tpu.memory_space<vmem>>, vector<1x383x4xbf16>
      %27 = vector.shape_cast %26 : vector<1x383x4xbf16> to vector<383x4xbf16>
      %c0_21 = arith.constant 0 : index
      %c0_22 = arith.constant 0 : index
      %c0_23 = arith.constant 0 : index
      %c0_24 = arith.constant 0 : index
      %28 = vector.load %arg4[%c0_21, %c0_22, %c0_23, %c0_24] : memref<1x1x50x4xbf16, #tpu.memory_space<vmem>>, vector<1x1x1x4xbf16>
      %29 = vector.shape_cast %28 : vector<1x1x1x4xbf16> to vector<1x4xbf16>
      %30 = tpu.concatenate %27, %29 in 0 : vector<383x4xbf16>, vector<1x4xbf16> -> vector<384x4xbf16>
      %cst_25 = arith.constant 0.000000e+00 : bf16
      %31 = vector.broadcast %cst_25 : bf16 to vector<384x124xbf16>
      %32 = tpu.concatenate %30, %31 in 1 : vector<384x4xbf16>, vector<384x124xbf16> -> vector<384x128xbf16>
      %c0_26 = arith.constant 0 : index
      %c128 = arith.constant 128 : index
      %33 = vector.load %arg8[%c0_26, %c128] : memref<384x1152xbf16, #tpu.memory_space<vmem>>, vector<384x128xbf16>
      tpu.vector_store %arg8[%c0_26, %c128], %32 {strides = array<i32>} : memref<384x1152xbf16, #tpu.memory_space<vmem>>, vector<384x128xbf16>,
      %c0_27 = arith.constant 0 : index
      %c2 = arith.constant 2 : index
      %c0_28 = arith.constant 0 : index
      %34 = vector.load %arg3[%c0_27, %c2, %c0_28] : memref<1x384x4xbf16, #tpu.memory_space<vmem>>, vector<1x382x4xbf16>
      %35 = vector.shape_cast %34 : vector<1x382x4xbf16> to vector<382x4xbf16>
      %c0_29 = arith.constant 0 : index
      %c0_30 = arith.constant 0 : index
      %c0_31 = arith.constant 0 : index
      %c0_32 = arith.constant 0 : index
      %36 = vector.load %arg4[%c0_29, %c0_30, %c0_31, %c0_32] : memref<1x1x50x4xbf16, #tpu.memory_space<vmem>>, vector<1x1x2x4xbf16>
      %37 = vector.shape_cast %36 : vector<1x1x2x4xbf16> to vector<2x4xbf16>
      %38 = tpu.concatenate %35, %37 in 0 : vector<382x4xbf16>, vector<2x4xbf16> -> vector<384x4xbf16>
      %cst_33 = arith.constant 0.000000e+00 : bf16
      %39 = vector.broadcast %cst_33 : bf16 to vector<384x124xbf16>
      %40 = tpu.concatenate %38, %39 in 1 : vector<384x4xbf16>, vector<384x124xbf16> -> vector<384x128xbf16>
      %c0_34 = arith.constant 0 : index
      %c256 = arith.constant 256 : index
      %41 = vector.load %arg8[%c0_34, %c256] : memref<384x1152xbf16, #tpu.memory_space<vmem>>, vector<384x128xbf16>
      tpu.vector_store %arg8[%c0_34, %c256], %40 {strides = array<i32>} : memref<384x1152xbf16, #tpu.memory_space<vmem>>, vector<384x128xbf16>,
      %c0_35 = arith.constant 0 : index
      %c24 = arith.constant 24 : index
      %c0_36 = arith.constant 0 : index
      %42 = vector.load %arg3[%c0_35, %c24, %c0_36] : memref<1x384x4xbf16, #tpu.memory_space<vmem>>, vector<1x360x4xbf16>
      %43 = vector.shape_cast %42 : vector<1x360x4xbf16> to vector<360x4xbf16>
      %c0_37 = arith.constant 0 : index
      %c0_38 = arith.constant 0 : index
      %c0_39 = arith.constant 0 : index
      %c0_40 = arith.constant 0 : index
      %44 = vector.load %arg4[%c0_37, %c0_38, %c0_39, %c0_40] : memref<1x1x50x4xbf16, #tpu.memory_space<vmem>>, vector<1x1x24x4xbf16>
      %45 = vector.shape_cast %44 : vector<1x1x24x4xbf16> to vector<24x4xbf16>
      %46 = tpu.concatenate %43, %45 in 0 : vector<360x4xbf16>, vector<24x4xbf16> -> vector<384x4xbf16>
      %cst_41 = arith.constant 0.000000e+00 : bf16
      %47 = vector.broadcast %cst_41 : bf16 to vector<384x124xbf16>
      %48 = tpu.concatenate %46, %47 in 1 : vector<384x4xbf16>, vector<384x124xbf16> -> vector<384x128xbf16>
      %c0_42 = arith.constant 0 : index
      %c384 = arith.constant 384 : index
      %49 = vector.load %arg8[%c0_42, %c384] : memref<384x1152xbf16, #tpu.memory_space<vmem>>, vector<384x128xbf16>
      tpu.vector_store %arg8[%c0_42, %c384], %48 {strides = array<i32>} : memref<384x1152xbf16, #tpu.memory_space<vmem>>, vector<384x128xbf16>,
      %c0_43 = arith.constant 0 : index
      %c25 = arith.constant 25 : index
      %c0_44 = arith.constant 0 : index
      %50 = vector.load %arg3[%c0_43, %c25, %c0_44] : memref<1x384x4xbf16, #tpu.memory_space<vmem>>, vector<1x359x4xbf16>
      %51 = vector.shape_cast %50 : vector<1x359x4xbf16> to vector<359x4xbf16>
      %c0_45 = arith.constant 0 : index
      %c0_46 = arith.constant 0 : index
      %c0_47 = arith.constant 0 : index
      %c0_48 = arith.constant 0 : index
      %52 = vector.load %arg4[%c0_45, %c0_46, %c0_47, %c0_48] : memref<1x1x50x4xbf16, #tpu.memory_space<vmem>>, vector<1x1x25x4xbf16>
      %53 = vector.shape_cast %52 : vector<1x1x25x4xbf16> to vector<25x4xbf16>
      %54 = tpu.concatenate %51, %53 in 0 : vector<359x4xbf16>, vector<25x4xbf16> -> vector<384x4xbf16>
      %cst_49 = arith.constant 0.000000e+00 : bf16
      %55 = vector.broadcast %cst_49 : bf16 to vector<384x124xbf16>
      %56 = tpu.concatenate %54, %55 in 1 : vector<384x4xbf16>, vector<384x124xbf16> -> vector<384x128xbf16>
      %c0_50 = arith.constant 0 : index
      %c512 = arith.constant 512 : index
      %57 = vector.load %arg8[%c0_50, %c512] : memref<384x1152xbf16, #tpu.memory_space<vmem>>, vector<384x128xbf16>
      tpu.vector_store %arg8[%c0_50, %c512], %56 {strides = array<i32>} : memref<384x1152xbf16, #tpu.memory_space<vmem>>, vector<384x128xbf16>,
      %c0_51 = arith.constant 0 : index
      %c26 = arith.constant 26 : index
      %c0_52 = arith.constant 0 : index
      %58 = vector.load %arg3[%c0_51, %c26, %c0_52] : memref<1x384x4xbf16, #tpu.memory_space<vmem>>, vector<1x358x4xbf16>
      %59 = vector.shape_cast %58 : vector<1x358x4xbf16> to vector<358x4xbf16>
      %c0_53 = arith.constant 0 : index
      %c0_54 = arith.constant 0 : index
      %c0_55 = arith.constant 0 : index
      %c0_56 = arith.constant 0 : index
      %60 = vector.load %arg4[%c0_53, %c0_54, %c0_55, %c0_56] : memref<1x1x50x4xbf16, #tpu.memory_space<vmem>>, vector<1x1x26x4xbf16>
      %61 = vector.shape_cast %60 : vector<1x1x26x4xbf16> to vector<26x4xbf16>
      %62 = tpu.concatenate %59, %61 in 0 : vector<358x4xbf16>, vector<26x4xbf16> -> vector<384x4xbf16>
      %cst_57 = arith.constant 0.000000e+00 : bf16
      %63 = vector.broadcast %cst_57 : bf16 to vector<384x124xbf16>
      %64 = tpu.concatenate %62, %63 in 1 : vector<384x4xbf16>, vector<384x124xbf16> -> vector<384x128xbf16>
      %c0_58 = arith.constant 0 : index
      %c640 = arith.constant 640 : index
      %65 = vector.load %arg8[%c0_58, %c640] : memref<384x1152xbf16, #tpu.memory_space<vmem>>, vector<384x128xbf16>
      tpu.vector_store %arg8[%c0_58, %c640], %64 {strides = array<i32>} : memref<384x1152xbf16, #tpu.memory_space<vmem>>, vector<384x128xbf16>,
      %c0_59 = arith.constant 0 : index
      %c48 = arith.constant 48 : index
      %c0_60 = arith.constant 0 : index
      %66 = vector.load %arg3[%c0_59, %c48, %c0_60] : memref<1x384x4xbf16, #tpu.memory_space<vmem>>, vector<1x336x4xbf16>
      %67 = vector.shape_cast %66 : vector<1x336x4xbf16> to vector<336x4xbf16>
      %c0_61 = arith.constant 0 : index
      %c0_62 = arith.constant 0 : index
      %c0_63 = arith.constant 0 : index
      %c0_64 = arith.constant 0 : index
      %68 = vector.load %arg4[%c0_61, %c0_62, %c0_63, %c0_64] : memref<1x1x50x4xbf16, #tpu.memory_space<vmem>>, vector<1x1x48x4xbf16>
      %69 = vector.shape_cast %68 : vector<1x1x48x4xbf16> to vector<48x4xbf16>
      %70 = tpu.concatenate %67, %69 in 0 : vector<336x4xbf16>, vector<48x4xbf16> -> vector<384x4xbf16>
      %cst_65 = arith.constant 0.000000e+00 : bf16
      %71 = vector.broadcast %cst_65 : bf16 to vector<384x124xbf16>
      %72 = tpu.concatenate %70, %71 in 1 : vector<384x4xbf16>, vector<384x124xbf16> -> vector<384x128xbf16>
      %c0_66 = arith.constant 0 : index
      %c768 = arith.constant 768 : index
      %73 = vector.load %arg8[%c0_66, %c768] : memref<384x1152xbf16, #tpu.memory_space<vmem>>, vector<384x128xbf16>
      tpu.vector_store %arg8[%c0_66, %c768], %72 {strides = array<i32>} : memref<384x1152xbf16, #tpu.memory_space<vmem>>, vector<384x128xbf16>,
      %c0_67 = arith.constant 0 : index
      %c49 = arith.constant 49 : index
      %c0_68 = arith.constant 0 : index
      %74 = vector.load %arg3[%c0_67, %c49, %c0_68] : memref<1x384x4xbf16, #tpu.memory_space<vmem>>, vector<1x335x4xbf16>
      %75 = vector.shape_cast %74 : vector<1x335x4xbf16> to vector<335x4xbf16>
      %c0_69 = arith.constant 0 : index
      %c0_70 = arith.constant 0 : index
      %c0_71 = arith.constant 0 : index
      %c0_72 = arith.constant 0 : index
      %76 = vector.load %arg4[%c0_69, %c0_70, %c0_71, %c0_72] : memref<1x1x50x4xbf16, #tpu.memory_space<vmem>>, vector<1x1x49x4xbf16>
      %77 = vector.shape_cast %76 : vector<1x1x49x4xbf16> to vector<49x4xbf16>
      %78 = tpu.concatenate %75, %77 in 0 : vector<335x4xbf16>, vector<49x4xbf16> -> vector<384x4xbf16>
      %cst_73 = arith.constant 0.000000e+00 : bf16
      %79 = vector.broadcast %cst_73 : bf16 to vector<384x124xbf16>
      %80 = tpu.concatenate %78, %79 in 1 : vector<384x4xbf16>, vector<384x124xbf16> -> vector<384x128xbf16>
      %c0_74 = arith.constant 0 : index
      %c896 = arith.constant 896 : index
      %81 = vector.load %arg8[%c0_74, %c896] : memref<384x1152xbf16, #tpu.memory_space<vmem>>, vector<384x128xbf16>
      tpu.vector_store %arg8[%c0_74, %c896], %80 {strides = array<i32>} : memref<384x1152xbf16, #tpu.memory_space<vmem>>, vector<384x128xbf16>,
      %c0_75 = arith.constant 0 : index
      %c50 = arith.constant 50 : index
      %c0_76 = arith.constant 0 : index
      %82 = vector.load %arg3[%c0_75, %c50, %c0_76] : memref<1x384x4xbf16, #tpu.memory_space<vmem>>, vector<1x334x4xbf16>
      %83 = vector.shape_cast %82 : vector<1x334x4xbf16> to vector<334x4xbf16>
      %c0_77 = arith.constant 0 : index
      %c0_78 = arith.constant 0 : index
      %c0_79 = arith.constant 0 : index
      %c0_80 = arith.constant 0 : index
      %84 = vector.load %arg4[%c0_77, %c0_78, %c0_79, %c0_80] : memref<1x1x50x4xbf16, #tpu.memory_space<vmem>>, vector<1x1x50x4xbf16>
      %85 = vector.shape_cast %84 : vector<1x1x50x4xbf16> to vector<50x4xbf16>
      %86 = tpu.concatenate %83, %85 in 0 : vector<334x4xbf16>, vector<50x4xbf16> -> vector<384x4xbf16>
      %cst_81 = arith.constant 0.000000e+00 : bf16
      %87 = vector.broadcast %cst_81 : bf16 to vector<384x124xbf16>
      %88 = tpu.concatenate %86, %87 in 1 : vector<384x4xbf16>, vector<384x124xbf16> -> vector<384x128xbf16>
      %c0_82 = arith.constant 0 : index
      %c1024 = arith.constant 1024 : index
      %89 = vector.load %arg8[%c0_82, %c1024] : memref<384x1152xbf16, #tpu.memory_space<vmem>>, vector<384x128xbf16>
      tpu.vector_store %arg8[%c0_82, %c1024], %88 {strides = array<i32>} : memref<384x1152xbf16, #tpu.memory_space<vmem>>, vector<384x128xbf16>,
    } else {
    }
    %c0 = arith.constant 0 : index
    %c0_1 = arith.constant 0 : index
    %3 = vector.load %arg8[%c0, %c0_1] : memref<384x1152xbf16, #tpu.memory_space<vmem>>, vector<384x1152xbf16>
    %c0_2 = arith.constant 0 : index
    %c0_3 = arith.constant 0 : index
    %4 = vector.load %arg5[%c0_2, %c0_3] : memref<1152x128xbf16, #tpu.memory_space<vmem>>, vector<1152x128xbf16>
    %cst = arith.constant dense<0.000000e+00> : vector<384x128xf32>
    %5 = tpu.matmul %3, %4, %cst {dimension_numbers = #tpu.dot_dimension_numbers<[1], [0], [0], [1], [0, 0, 1, 1], [], []>} : vector<384x1152xbf16>, vector<1152x128xbf16>, vector<384x128xf32> -> vector<384x128xf32>
    %c0_4 = arith.constant 0 : index
    %c0_5 = arith.constant 0 : index
    %6 = vector.load %arg6[%c0_4, %c0_5] : memref<1x128xf32, #tpu.memory_space<vmem>>, vector<1x128xf32>
    %7 = vector.broadcast %6 : vector<1x128xf32> to vector<384x128xf32>
    %8 = arith.addf %5, %7 : vector<384x128xf32>
    %cst_6 = arith.constant 5.000000e-01 : f32
    %9 = vector.broadcast %cst_6 : f32 to vector<384x128xf32>
    %10 = arith.mulf %9, %8 : vector<384x128xf32>
    %11 = math.tanh %10 : vector<384x128xf32>
    %cst_7 = arith.constant 1.000000e+00 : f32
    %12 = vector.broadcast %cst_7 : f32 to vector<384x128xf32>
    %13 = arith.addf %11, %12 : vector<384x128xf32>
    %cst_8 = arith.constant 5.000000e-01 : f32
    %14 = vector.broadcast %cst_8 : f32 to vector<384x128xf32>
    %15 = arith.mulf %14, %13 : vector<384x128xf32>
    %16 = arith.mulf %8, %15 : vector<384x128xf32>
    %17 = arith.truncf %16 : vector<384x128xf32> to vector<384x128xbf16>
    %c0_9 = arith.constant 0 : index
    %c0_10 = arith.constant 0 : index
    %c0_11 = arith.constant 0 : index
    %c0_12 = arith.constant 0 : index
    %18 = vector.load %arg7[%c0_9, %c0_10, %c0_11, %c0_12] : memref<1x1x384x128xbf16, #tpu.memory_space<vmem>>, vector<1x1x384x128xbf16>
    %19 = vector.shape_cast %18 : vector<1x1x384x128xbf16> to vector<384x128xbf16>
    %20 = vector.shape_cast %17 : vector<384x128xbf16> to vector<1x1x384x128xbf16>
    tpu.vector_store %arg7[%c0_9, %c0_10, %c0_11, %c0_12], %20 {strides = array<i32>} : memref<1x1x384x128xbf16, #tpu.memory_space<vmem>>, vector<1x1x384x128xbf16>,
    return
  }
  func.func @transform_0(%arg0: i32, %arg1: i32, %arg2: i32) -> (i32, i32, i32) {
    %c0_i32 = arith.constant 0 : i32
    %c0_i32_0 = arith.constant 0 : i32
    return %arg0, %arg1, %c0_i32 : i32, i32, i32
  }
  func.func @transform_1(%arg0: i32, %arg1: i32, %arg2: i32) -> (i32, i32, i32, i32) {
    %c0_i32 = arith.constant 0 : i32
    %c0_i32_0 = arith.constant 0 : i32
    %c0_i32_1 = arith.constant 0 : i32
    return %arg0, %arg1, %c0_i32, %c0_i32_0 : i32, i32, i32, i32
  }
  func.func @transform_2(%arg0: i32, %arg1: i32, %arg2: i32) -> (i32, i32) {
    %c0_i32 = arith.constant 0 : i32
    %c0_i32_0 = arith.constant 0 : i32
    return %c0_i32, %arg2 : i32, i32
  }
  func.func @transform_3(%arg0: i32, %arg1: i32, %arg2: i32) -> (i32, i32) {
    %c0_i32 = arith.constant 0 : i32
    %c0_i32_0 = arith.constant 0 : i32
    return %c0_i32, %arg2 : i32, i32
  }
  func.func @transform_4(%arg0: i32, %arg1: i32, %arg2: i32) -> (i32, i32, i32, i32) {
    %c0_i32 = arith.constant 0 : i32
    %c0_i32_0 = arith.constant 0 : i32
    return %arg0, %arg1, %c0_i32, %arg2 : i32, i32, i32, i32
  }
}

module attributes {stable_mosaic.version = 11 : i64} {
  func.func @_conv_bn_silu_kernel(%arg0: i32, %arg1: i32, %arg2: i32, %arg3: memref<1x384x4xbf16, #tpu.memory_space<vmem>>, %arg4: memref<1x1x50x4xbf16, #tpu.memory_space<vmem>>, %arg5: memref<1152x128xbf16, #tpu.memory_space<vmem>>, %arg6: memref<1x128xf32, #tpu.memory_space<vmem>>, %arg7: memref<1x1x384x128xbf16, #tpu.memory_space<vmem>>, %arg8: memref<384x1152xbf16, #tpu.memory_space<vmem>>) attributes {dimension_semantics = [#tpu.dimension_semantics<parallel>, #tpu.dimension_semantics<parallel>, #tpu.dimension_semantics<arbitrary>], iteration_bounds = array<i64: 2, 1, 1>, scalar_prefetch = 0 : i64, scratch_operands = 1 : i64, tpu.core_type = #tpu.core_type<tc>, window_params = [{transform_indices = @transform_0, window_bounds = array<i64: 1, 384, 4>}, {transform_indices = @transform_1, window_bounds = array<i64: 1, 1, 50, 4>}, {transform_indices = @transform_2, window_bounds = array<i64: 1152, 128>}, {transform_indices = @transform_3, window_bounds = array<i64: 1, 128>}, {transform_indices = @transform_4, window_bounds = array<i64: 1, 1, 384, 128>}]} {
    %c0_i32 = arith.constant 0 : i32
    %0 = arith.cmpi eq, %arg2, %c0_i32 : i32
    %1 = arith.extui %0 : i1 to i32
    %c0_i32_0 = arith.constant 0 : i32
    %2 = arith.cmpi ne, %1, %c0_i32_0 : i32
    scf.if %2 {
      %c0_13 = arith.constant 0 : index
      %c0_14 = arith.constant 0 : index
      %c0_15 = arith.constant 0 : index
      %21 = vector.load %arg3[%c0_13, %c0_14, %c0_15] : memref<1x384x4xbf16, #tpu.memory_space<vmem>>, vector<1x384x4xbf16>
      %22 = vector.shape_cast %21 : vector<1x384x4xbf16> to vector<384x4xbf16>
      %cst_16 = arith.constant 0.000000e+00 : bf16
      %23 = vector.broadcast %cst_16 : bf16 to vector<384x124xbf16>
      %24 = tpu.concatenate %22, %23 in 1 : vector<384x4xbf16>, vector<384x124xbf16> -> vector<384x128xbf16>
      %c0_17 = arith.constant 0 : index
      %c0_18 = arith.constant 0 : index
      %25 = vector.load %arg8[%c0_17, %c0_18] : memref<384x1152xbf16, #tpu.memory_space<vmem>>, vector<384x128xbf16>
      tpu.vector_store %arg8[%c0_17, %c0_18], %24 {strides = array<i32>} : memref<384x1152xbf16, #tpu.memory_space<vmem>>, vector<384x128xbf16>,
      %c0_19 = arith.constant 0 : index
      %c1 = arith.constant 1 : index
      %c0_20 = arith.constant 0 : index
      %26 = vector.load %arg3[%c0_19, %c1, %c0_20] : memref<1x384x4xbf16, #tpu.memory_space<vmem>>, vector<1x383x4xbf16>
      %27 = vector.shape_cast %26 : vector<1x383x4xbf16> to vector<383x4xbf16>
      %c0_21 = arith.constant 0 : index
      %c0_22 = arith.constant 0 : index
      %c0_23 = arith.constant 0 : index
      %c0_24 = arith.constant 0 : index
      %28 = vector.load %arg4[%c0_21, %c0_22, %c0_23, %c0_24] : memref<1x1x50x4xbf16, #tpu.memory_space<vmem>>, vector<1x1x1x4xbf16>
      %29 = vector.shape_cast %28 : vector<1x1x1x4xbf16> to vector<1x4xbf16>
      %30 = tpu.concatenate %27, %29 in 0 : vector<383x4xbf16>, vector<1x4xbf16> -> vector<384x4xbf16>
      %cst_25 = arith.constant 0.000000e+00 : bf16
      %31 = vector.broadcast %cst_25 : bf16 to vector<384x124xbf16>
      %32 = tpu.concatenate %30, %31 in 1 : vector<384x4xbf16>, vector<384x124xbf16> -> vector<384x128xbf16>
      %c0_26 = arith.constant 0 : index
      %c128 = arith.constant 128 : index
      %33 = vector.load %arg8[%c0_26, %c128] : memref<384x1152xbf16, #tpu.memory_space<vmem>>, vector<384x128xbf16>
      tpu.vector_store %arg8[%c0_26, %c128], %32 {strides = array<i32>} : memref<384x1152xbf16, #tpu.memory_space<vmem>>, vector<384x128xbf16>,
      %c0_27 = arith.constant 0 : index
      %c2 = arith.constant 2 : index
      %c0_28 = arith.constant 0 : index
      %34 = vector.load %arg3[%c0_27, %c2, %c0_28] : memref<1x384x4xbf16, #tpu.memory_space<vmem>>, vector<1x382x4xbf16>
      %35 = vector.shape_cast %34 : vector<1x382x4xbf16> to vector<382x4xbf16>
      %c0_29 = arith.constant 0 : index
      %c0_30 = arith.constant 0 : index
      %c0_31 = arith.constant 0 : index
      %c0_32 = arith.constant 0 : index
      %36 = vector.load %arg4[%c0_29, %c0_30, %c0_31, %c0_32] : memref<1x1x50x4xbf16, #tpu.memory_space<vmem>>, vector<1x1x2x4xbf16>
      %37 = vector.shape_cast %36 : vector<1x1x2x4xbf16> to vector<2x4xbf16>
      %38 = tpu.concatenate %35, %37 in 0 : vector<382x4xbf16>, vector<2x4xbf16> -> vector<384x4xbf16>
      %cst_33 = arith.constant 0.000000e+00 : bf16
      %39 = vector.broadcast %cst_33 : bf16 to vector<384x124xbf16>
      %40 = tpu.concatenate %38, %39 in 1 : vector<384x4xbf16>, vector<384x124xbf16> -> vector<384x128xbf16>
      %c0_34 = arith.constant 0 : index
      %c256 = arith.constant 256 : index
      %41 = vector.load %arg8[%c0_34, %c256] : memref<384x1152xbf16, #tpu.memory_space<vmem>>, vector<384x128xbf16>
      tpu.vector_store %arg8[%c0_34, %c256], %40 {strides = array<i32>} : memref<384x1152xbf16, #tpu.memory_space<vmem>>, vector<384x128xbf16>,
      %c0_35 = arith.constant 0 : index
      %c24 = arith.constant 24 : index
      %c0_36 = arith.constant 0 : index
      %42 = vector.load %arg3[%c0_35, %c24, %c0_36] : memref<1x384x4xbf16, #tpu.memory_space<vmem>>, vector<1x360x4xbf16>
      %43 = vector.shape_cast %42 : vector<1x360x4xbf16> to vector<360x4xbf16>
      %c0_37 = arith.constant 0 : index
      %c0_38 = arith.constant 0 : index
      %c0_39 = arith.constant 0 : index
      %c0_40 = arith.constant 0 : index
      %44 = vector.load %arg4[%c0_37, %c0_38, %c0_39, %c0_40] : memref<1x1x50x4xbf16, #tpu.memory_space<vmem>>, vector<1x1x24x4xbf16>
      %45 = vector.shape_cast %44 : vector<1x1x24x4xbf16> to vector<24x4xbf16>
      %46 = tpu.concatenate %43, %45 in 0 : vector<360x4xbf16>, vector<24x4xbf16> -> vector<384x4xbf16>
      %cst_41 = arith.constant 0.000000e+00 : bf16
      %47 = vector.broadcast %cst_41 : bf16 to vector<384x124xbf16>
      %48 = tpu.concatenate %46, %47 in 1 : vector<384x4xbf16>, vector<384x124xbf16> -> vector<384x128xbf16>
      %c0_42 = arith.constant 0 : index
      %c384 = arith.constant 384 : index
      %49 = vector.load %arg8[%c0_42, %c384] : memref<384x1152xbf16, #tpu.memory_space<vmem>>, vector<384x128xbf16>
      tpu.vector_store %arg8[%c0_42, %c384], %48 {strides = array<i32>} : memref<384x1152xbf16, #tpu.memory_space<vmem>>, vector<384x128xbf16>,
      %c0_43 = arith.constant 0 : index
      %c25 = arith.constant 25 : index
      %c0_44 = arith.constant 0 : index
      %50 = vector.load %arg3[%c0_43, %c25, %c0_44] : memref<1x384x4xbf16, #tpu.memory_space<vmem>>, vector<1x359x4xbf16>
      %51 = vector.shape_cast %50 : vector<1x359x4xbf16> to vector<359x4xbf16>
      %c0_45 = arith.constant 0 : index
      %c0_46 = arith.constant 0 : index
      %c0_47 = arith.constant 0 : index
      %c0_48 = arith.constant 0 : index
      %52 = vector.load %arg4[%c0_45, %c0_46, %c0_47, %c0_48] : memref<1x1x50x4xbf16, #tpu.memory_space<vmem>>, vector<1x1x25x4xbf16>
      %53 = vector.shape_cast %52 : vector<1x1x25x4xbf16> to vector<25x4xbf16>
      %54 = tpu.concatenate %51, %53 in 0 : vector<359x4xbf16>, vector<25x4xbf16> -> vector<384x4xbf16>
      %cst_49 = arith.constant 0.000000e+00 : bf16
      %55 = vector.broadcast %cst_49 : bf16 to vector<384x124xbf16>
      %56 = tpu.concatenate %54, %55 in 1 : vector<384x4xbf16>, vector<384x124xbf16> -> vector<384x128xbf16>
      %c0_50 = arith.constant 0 : index
      %c512 = arith.constant 512 : index
      %57 = vector.load %arg8[%c0_50, %c512] : memref<384x1152xbf16, #tpu.memory_space<vmem>>, vector<384x128xbf16>
      tpu.vector_store %arg8[%c0_50, %c512], %56 {strides = array<i32>} : memref<384x1152xbf16, #tpu.memory_space<vmem>>, vector<384x128xbf16>,
      %c0_51 = arith.constant 0 : index
      %c26 = arith.constant 26 : index
      %c0_52 = arith.constant 0 : index
      %58 = vector.load %arg3[%c0_51, %c26, %c0_52] : memref<1x384x4xbf16, #tpu.memory_space<vmem>>, vector<1x358x4xbf16>
      %59 = vector.shape_cast %58 : vector<1x358x4xbf16> to vector<358x4xbf16>
      %c0_53 = arith.constant 0 : index
      %c0_54 = arith.constant 0 : index
      %c0_55 = arith.constant 0 : index
      %c0_56 = arith.constant 0 : index
      %60 = vector.load %arg4[%c0_53, %c0_54, %c0_55, %c0_56] : memref<1x1x50x4xbf16, #tpu.memory_space<vmem>>, vector<1x1x26x4xbf16>
      %61 = vector.shape_cast %60 : vector<1x1x26x4xbf16> to vector<26x4xbf16>
      %62 = tpu.concatenate %59, %61 in 0 : vector<358x4xbf16>, vector<26x4xbf16> -> vector<384x4xbf16>
      %cst_57 = arith.constant 0.000000e+00 : bf16
      %63 = vector.broadcast %cst_57 : bf16 to vector<384x124xbf16>
      %64 = tpu.concatenate %62, %63 in 1 : vector<384x4xbf16>, vector<384x124xbf16> -> vector<384x128xbf16>
      %c0_58 = arith.constant 0 : index
      %c640 = arith.constant 640 : index
      %65 = vector.load %arg8[%c0_58, %c640] : memref<384x1152xbf16, #tpu.memory_space<vmem>>, vector<384x128xbf16>
      tpu.vector_store %arg8[%c0_58, %c640], %64 {strides = array<i32>} : memref<384x1152xbf16, #tpu.memory_space<vmem>>, vector<384x128xbf16>,
      %c0_59 = arith.constant 0 : index
      %c48 = arith.constant 48 : index
      %c0_60 = arith.constant 0 : index
      %66 = vector.load %arg3[%c0_59, %c48, %c0_60] : memref<1x384x4xbf16, #tpu.memory_space<vmem>>, vector<1x336x4xbf16>
      %67 = vector.shape_cast %66 : vector<1x336x4xbf16> to vector<336x4xbf16>
      %c0_61 = arith.constant 0 : index
      %c0_62 = arith.constant 0 : index
      %c0_63 = arith.constant 0 : index
      %c0_64 = arith.constant 0 : index
      %68 = vector.load %arg4[%c0_61, %c0_62, %c0_63, %c0_64] : memref<1x1x50x4xbf16, #tpu.memory_space<vmem>>, vector<1x1x48x4xbf16>
      %69 = vector.shape_cast %68 : vector<1x1x48x4xbf16> to vector<48x4xbf16>
      %70 = tpu.concatenate %67, %69 in 0 : vector<336x4xbf16>, vector<48x4xbf16> -> vector<384x4xbf16>
      %cst_65 = arith.constant 0.000000e+00 : bf16
      %71 = vector.broadcast %cst_65 : bf16 to vector<384x124xbf16>
      %72 = tpu.concatenate %70, %71 in 1 : vector<384x4xbf16>, vector<384x124xbf16> -> vector<384x128xbf16>
      %c0_66 = arith.constant 0 : index
      %c768 = arith.constant 768 : index
      %73 = vector.load %arg8[%c0_66, %c768] : memref<384x1152xbf16, #tpu.memory_space<vmem>>, vector<384x128xbf16>
      tpu.vector_store %arg8[%c0_66, %c768], %72 {strides = array<i32>} : memref<384x1152xbf16, #tpu.memory_space<vmem>>, vector<384x128xbf16>,
      %c0_67 = arith.constant 0 : index
      %c49 = arith.constant 49 : index
      %c0_68 = arith.constant 0 : index
      %74 = vector.load %arg3[%c0_67, %c49, %c0_68] : memref<1x384x4xbf16, #tpu.memory_space<vmem>>, vector<1x335x4xbf16>
      %75 = vector.shape_cast %74 : vector<1x335x4xbf16> to vector<335x4xbf16>
      %c0_69 = arith.constant 0 : index
      %c0_70 = arith.constant 0 : index
      %c0_71 = arith.constant 0 : index
      %c0_72 = arith.constant 0 : index
      %76 = vector.load %arg4[%c0_69, %c0_70, %c0_71, %c0_72] : memref<1x1x50x4xbf16, #tpu.memory_space<vmem>>, vector<1x1x49x4xbf16>
      %77 = vector.shape_cast %76 : vector<1x1x49x4xbf16> to vector<49x4xbf16>
      %78 = tpu.concatenate %75, %77 in 0 : vector<335x4xbf16>, vector<49x4xbf16> -> vector<384x4xbf16>
      %cst_73 = arith.constant 0.000000e+00 : bf16
      %79 = vector.broadcast %cst_73 : bf16 to vector<384x124xbf16>
      %80 = tpu.concatenate %78, %79 in 1 : vector<384x4xbf16>, vector<384x124xbf16> -> vector<384x128xbf16>
      %c0_74 = arith.constant 0 : index
      %c896 = arith.constant 896 : index
      %81 = vector.load %arg8[%c0_74, %c896] : memref<384x1152xbf16, #tpu.memory_space<vmem>>, vector<384x128xbf16>
      tpu.vector_store %arg8[%c0_74, %c896], %80 {strides = array<i32>} : memref<384x1152xbf16, #tpu.memory_space<vmem>>, vector<384x128xbf16>,
      %c0_75 = arith.constant 0 : index
      %c50 = arith.constant 50 : index
      %c0_76 = arith.constant 0 : index
      %82 = vector.load %arg3[%c0_75, %c50, %c0_76] : memref<1x384x4xbf16, #tpu.memory_space<vmem>>, vector<1x334x4xbf16>
      %83 = vector.shape_cast %82 : vector<1x334x4xbf16> to vector<334x4xbf16>
      %c0_77 = arith.constant 0 : index
      %c0_78 = arith.constant 0 : index
      %c0_79 = arith.constant 0 : index
      %c0_80 = arith.constant 0 : index
      %84 = vector.load %arg4[%c0_77, %c0_78, %c0_79, %c0_80] : memref<1x1x50x4xbf16, #tpu.memory_space<vmem>>, vector<1x1x50x4xbf16>
      %85 = vector.shape_cast %84 : vector<1x1x50x4xbf16> to vector<50x4xbf16>
      %86 = tpu.concatenate %83, %85 in 0 : vector<334x4xbf16>, vector<50x4xbf16> -> vector<384x4xbf16>
      %cst_81 = arith.constant 0.000000e+00 : bf16
      %87 = vector.broadcast %cst_81 : bf16 to vector<384x124xbf16>
      %88 = tpu.concatenate %86, %87 in 1 : vector<384x4xbf16>, vector<384x124xbf16> -> vector<384x128xbf16>
      %c0_82 = arith.constant 0 : index
      %c1024 = arith.constant 1024 : index
      %89 = vector.load %arg8[%c0_82, %c1024] : memref<384x1152xbf16, #tpu.memory_space<vmem>>, vector<384x128xbf16>
      tpu.vector_store %arg8[%c0_82, %c1024], %88 {strides = array<i32>} : memref<384x1152xbf16, #tpu.memory_space<vmem>>, vector<384x128xbf16>,
    } else {
    }
    %c0 = arith.constant 0 : index
    %c0_1 = arith.constant 0 : index
    %3 = vector.load %arg8[%c0, %c0_1] : memref<384x1152xbf16, #tpu.memory_space<vmem>>, vector<384x1152xbf16>
    %c0_2 = arith.constant 0 : index
    %c0_3 = arith.constant 0 : index
    %4 = vector.load %arg5[%c0_2, %c0_3] : memref<1152x128xbf16, #tpu.memory_space<vmem>>, vector<1152x128xbf16>
    %cst = arith.constant dense<0.000000e+00> : vector<384x128xf32>
    %5 = tpu.matmul %3, %4, %cst {dimension_numbers = #tpu.dot_dimension_numbers<[1], [0], [0], [1], [0, 0, 1, 1], [], []>} : vector<384x1152xbf16>, vector<1152x128xbf16>, vector<384x128xf32> -> vector<384x128xf32>
    %c0_4 = arith.constant 0 : index
    %c0_5 = arith.constant 0 : index
    %6 = vector.load %arg6[%c0_4, %c0_5] : memref<1x128xf32, #tpu.memory_space<vmem>>, vector<1x128xf32>
    %7 = vector.broadcast %6 : vector<1x128xf32> to vector<384x128xf32>
    %8 = arith.addf %5, %7 : vector<384x128xf32>
    %cst_6 = arith.constant 5.000000e-01 : f32
    %9 = vector.broadcast %cst_6 : f32 to vector<384x128xf32>
    %10 = arith.mulf %9, %8 : vector<384x128xf32>
    %11 = math.tanh %10 : vector<384x128xf32>
    %cst_7 = arith.constant 1.000000e+00 : f32
    %12 = vector.broadcast %cst_7 : f32 to vector<384x128xf32>
    %13 = arith.addf %11, %12 : vector<384x128xf32>
    %cst_8 = arith.constant 5.000000e-01 : f32
    %14 = vector.broadcast %cst_8 : f32 to vector<384x128xf32>
    %15 = arith.mulf %14, %13 : vector<384x128xf32>
    %16 = arith.mulf %8, %15 : vector<384x128xf32>
    %17 = arith.truncf %16 : vector<384x128xf32> to vector<384x128xbf16>
    %c0_9 = arith.constant 0 : index
    %c0_10 = arith.constant 0 : index
    %c0_11 = arith.constant 0 : index
    %c0_12 = arith.constant 0 : index
    %18 = vector.load %arg7[%c0_9, %c0_10, %c0_11, %c0_12] : memref<1x1x384x128xbf16, #tpu.memory_space<vmem>>, vector<1x1x384x128xbf16>
    %19 = vector.shape_cast %18 : vector<1x1x384x128xbf16> to vector<384x128xbf16>
    %20 = vector.shape_cast %17 : vector<384x128xbf16> to vector<1x1x384x128xbf16>
    tpu.vector_store %arg7[%c0_9, %c0_10, %c0_11, %c0_12], %20 {strides = array<i32>} : memref<1x1x384x128xbf16, #tpu.memory_space<vmem>>, vector<1x1x384x128xbf16>,
    return
  }
  func.func @transform_0(%arg0: i32, %arg1: i32, %arg2: i32) -> (i32, i32, i32) {
    %c0_i32 = arith.constant 0 : i32
    %c0_i32_0 = arith.constant 0 : i32
    return %arg0, %arg1, %c0_i32 : i32, i32, i32
  }
  func.func @transform_1(%arg0: i32, %arg1: i32, %arg2: i32) -> (i32, i32, i32, i32) {
    %c0_i32 = arith.constant 0 : i32
    %c0_i32_0 = arith.constant 0 : i32
    %c0_i32_1 = arith.constant 0 : i32
    return %arg0, %arg1, %c0_i32, %c0_i32_0 : i32, i32, i32, i32
  }
  func.func @transform_2(%arg0: i32, %arg1: i32, %arg2: i32) -> (i32, i32) {
    %c0_i32 = arith.constant 0 : i32
    %c0_i32_0 = arith.constant 0 : i32
    return %c0_i32, %arg2 : i32, i32
  }
  func.func @transform_3(%arg0: i32, %arg1: i32, %arg2: i32) -> (i32, i32) {
    %c0_i32 = arith.constant 0 : i32
    %c0_i32_0 = arith.constant 0 : i32
    return %c0_i32, %arg2 : i32, i32
  }
  func.func @transform_4(%arg0: i32, %arg1: i32, %arg2: i32) -> (i32, i32, i32, i32) {
    %c0_i32 = arith.constant 0 : i32
    %c0_i32_0 = arith.constant 0 : i32
    return %arg0, %arg1, %c0_i32, %arg2 : i32, i32, i32, i32
  }
}

</mosaic_0001>

<llo_original>
// kernel: tpu_custom_call.1
$region0: #{tpu_custom_call.1}
  #allocation0 [shape = 'u32[]', space=smem, size = 0x4, offset = 0x4, fixed_abs, tag = 'smem constant byte address 0x4 - core index']
  #allocation1 [shape = 'u32[144,128]{1,0:T(1,128)}', space=vmem, size = 0x12000, scoped, tag = 'internal scratch']
  #allocation2 [shape = 'bf16[384,1152]{1,0:T(16,128)(2,1)}', space=vmem, size = 0xd8000, scoped, tag = 'scratch operand']
  %s0 = inlined_call_operand.vmem [shape: bf16[2,434,4], index: 0, kind: input, shape index: {}]
  %s1 = inlined_call_operand.vmem [shape: bf16[2,1,50,4], index: 1, kind: input, shape index: {}]
  %s2 = inlined_call_operand.hbm [shape: bf16[1152,128], index: 2, kind: input, shape index: {}]
  %s3 = inlined_call_operand.vmem [shape: f32[1,128], index: 3, kind: input, shape index: {}]
  %s4 = inlined_call_operand.hbm [shape: bf16[2,1,384,128], index: 4, kind: output, shape index: {}]
  %s5 = sld [smem:[#allocation0]]
  $region57: #{tpu_custom_call.1} parent=0
    _
  %s7 = ssub.s32 1, %s5
  %s8 = scalar_select 0, %s7, %s5
  $region1: #{tpu_custom_call.1} parent=0
    #allocation3 [shape = 'u8[294912]{0}', space=vmem, size = 0x48000, scoped, tag = 'input window, operand 2, single buffered']
    #allocation4 [shape = 's32[2]{0}', space=sflag, size = 0x8, scoped, tag = 'scoped memory for tpu_custom_call.1']
    #allocation5 [shape = 's32[2]{0}', space=sflag, size = 0x8, scoped, tag = 'scoped memory for tpu_custom_call.1']
    #allocation6 [shape = 'u8[196608]{0}', space=vmem, size = 0x30000, scoped, tag = 'output window, operand 0']
    %9 = vsyncpa [#allocation4], 0
    %10 = vsyncpa [#allocation5], 0
    %s11 = scalar_lea.sflag [#allocation5], 1
    %12 = vsyncpa %s11, 0
    loop: start=0, step=1, limit=4
    $region2: #{tpu_custom_call.1} parent=1 // loop_pre_header
      _
    $region3: #{tpu_custom_call.1} parent=1 // loop_header
      %s14 = sphi 0, %s18
      %p15 = scmp.ge.s32.totalorder %s14, 4
      %s21 = sphi 0, %s40
      %s22 = sphi 0, %s36
      %s23 = sphi 0, %s32
      %s24 = sphi 0, %s21
      %s25 = sphi 0, %s22
      %s26 = sphi 0, %s23
      %s27 = sphi 0, %s24
      %s28 = sphi 0, %s25
      %s29 = sphi 0, %s26
      %s45 = sphi 0, %s47
      %s48 = sphi 0, %s45
      %s49 = sphi 0, %s48
      %s65 = sphi 0, %s49
      %s73 = sphi 0, %s75
      %s76 = sphi 0, %s73
      %s77 = sphi 0, %s76
      %s93 = sphi 0, %s77
      %s99 = sphi 0, %s101
      %s102 = sphi 0, %s99
      %s103 = sphi 0, %s102
      %s119 = sphi 0, %s103
      %s125 = sphi 0, %s127
      %s128 = sphi 0, %s125
      %s129 = sphi 0, %s128
      %s145 = sphi 0, %s129
      %s155 = sphi 0, %s157
      %s158 = sphi 0, %s155
      %s159 = sphi 0, %s158
      %s175 = sphi 0, %s159
    $region4: #{tpu_custom_call.1} parent=1 // loop_header_branch
      %17 = sbr.rel (%p15) target = $region8
    $region5: #{tpu_custom_call.1} parent=1 // loop_body
      %s19 = ssub.s32 %s14, 1
      %s20 = ssub.s32 %s14, 2
      %s30 = sadd.s32 1, %s23
      %p31 = scmp.ge.s32.totalorder %s30, 1
      %s32 = scalar_select %p31, 0, %s30
      %s33 = sadd.s32 1, %s22
      %s34 = scalar_select %p31, %s33, %s22
      %p35 = scmp.ge.s32.totalorder %s34, 1
      %s36 = scalar_select %p35, 0, %s34
      %s37 = sadd.s32 1, %s21
      %s38 = scalar_select %p35, %s37, %s21
      %p39 = scmp.ge.s32.totalorder %s38, 2
      %s40 = scalar_select %p39, 0, %s38
      %s41 = ssub.s32 %s21, %s40
      %s42 = ssub.s32 %s22, %s36
      %s43 = sor.u32 %s41, %s42
      %p44 = scmp.eq.s32.totalorder %s43, 0
      %s46 = sadd.s32 %s45, 1
      %s47 = scalar_select %p44, %s45, %s46
      %p50 = pneg %p44
      %p51 = scmp.eq.s32.totalorder %s14, 1
      %p52 = por %p50, %p51
      %p53 = scmp.ne.s32.totalorder %s45, %s48
      %p54 = scmp.eq.s32.totalorder %s14, 0
      %p55 = por %p53, %p54
      %p56 = scmp.ne.s32.totalorder %s45, %s48
      %p57 = scmp.eq.s32.totalorder %s19, 1
      %p58 = por %p56, %p57
      %p59 = scmp.ne.s32.totalorder %s48, %s49
      %p60 = scmp.eq.s32.totalorder %s19, 0
      %p61 = por %p59, %p60
      %p62 = scmp.ne.s32.totalorder %s48, %s49
      %p63 = scmp.eq.s32.totalorder %s20, 1
      %p64 = por %p62, %p63
      %p66 = scmp.ne.s32.totalorder %s49, %s65
      %p67 = scmp.eq.s32.totalorder %s20, 0
      %p68 = por %p66, %p67
      %s69 = ssub.s32 %s21, %s40
      %s70 = ssub.s32 %s22, %s36
      %s71 = sor.u32 %s69, %s70
      %p72 = scmp.eq.s32.totalorder %s71, 0
      %s74 = sadd.s32 %s73, 1
      %s75 = scalar_select %p72, %s73, %s74
      %p78 = pneg %p72
      %p79 = scmp.eq.s32.totalorder %s14, 1
      %p80 = por %p78, %p79
      %p81 = scmp.ne.s32.totalorder %s73, %s76
      %p82 = scmp.eq.s32.totalorder %s14, 0
      %p83 = por %p81, %p82
      %p84 = scmp.ne.s32.totalorder %s73, %s76
      %p85 = scmp.eq.s32.totalorder %s19, 1
      %p86 = por %p84, %p85
      %p87 = scmp.ne.s32.totalorder %s76, %s77
      %p88 = scmp.eq.s32.totalorder %s19, 0
      %p89 = por %p87, %p88
      %p90 = scmp.ne.s32.totalorder %s76, %s77
      %p91 = scmp.eq.s32.totalorder %s20, 1
      %p92 = por %p90, %p91
      %p94 = scmp.ne.s32.totalorder %s77, %s93
      %p95 = scmp.eq.s32.totalorder %s20, 0
      %p96 = por %p94, %p95
      %s97 = ssub.s32 %s23, %s32
      %p98 = scmp.eq.s32.totalorder %s97, 0
      %s100 = sadd.s32 %s99, 1
      %s101 = scalar_select %p98, %s99, %s100
      %p104 = pneg %p98
      %p105 = scmp.eq.s32.totalorder %s14, 1
      %p106 = por %p104, %p105
      %p107 = scmp.ne.s32.totalorder %s99, %s102
      %p108 = scmp.eq.s32.totalorder %s14, 0
      %p109 = por %p107, %p108
      %p110 = scmp.ne.s32.totalorder %s99, %s102
      %p111 = scmp.eq.s32.totalorder %s19, 1
      %p112 = por %p110, %p111
      %p113 = scmp.ne.s32.totalorder %s102, %s103
      %p114 = scmp.eq.s32.totalorder %s19, 0
      %p115 = por %p113, %p114
      %p116 = scmp.ne.s32.totalorder %s102, %s103
      %p117 = scmp.eq.s32.totalorder %s20, 1
      %p118 = por %p116, %p117
      %p120 = scmp.ne.s32.totalorder %s103, %s119
      %p121 = scmp.eq.s32.totalorder %s20, 0
      %p122 = por %p120, %p121
      %s123 = ssub.s32 %s23, %s32
      %p124 = scmp.eq.s32.totalorder %s123, 0
      %s126 = sadd.s32 %s125, 1
      %s127 = scalar_select %p124, %s125, %s126
      %p130 = pneg %p124
      %p131 = scmp.eq.s32.totalorder %s14, 1
      %p132 = por %p130, %p131
      %p133 = scmp.ne.s32.totalorder %s125, %s128
      %p134 = scmp.eq.s32.totalorder %s14, 0
      %p135 = por %p133, %p134
      %p136 = scmp.ne.s32.totalorder %s125, %s128
      %p137 = scmp.eq.s32.totalorder %s19, 1
      %p138 = por %p136, %p137
      %p139 = scmp.ne.s32.totalorder %s128, %s129
      %p140 = scmp.eq.s32.totalorder %s19, 0
      %p141 = por %p139, %p140
      %p142 = scmp.ne.s32.totalorder %s128, %s129
      %p143 = scmp.eq.s32.totalorder %s20, 1
      %p144 = por %p142, %p143
      %p146 = scmp.ne.s32.totalorder %s129, %s145
      %p147 = scmp.eq.s32.totalorder %s20, 0
      %p148 = por %p146, %p147
      %s149 = ssub.s32 %s21, %s40
      %s150 = ssub.s32 %s22, %s36
      %s151 = sor.u32 %s149, %s150
      %s152 = ssub.s32 %s23, %s32
      %s153 = sor.u32 %s151, %s152
      %p154 = scmp.eq.s32.totalorder %s153, 0
      %s156 = sadd.s32 %s155, 1
      %s157 = scalar_select %p154, %s155, %s156
      %p160 = pneg %p154
      %p161 = scmp.eq.s32.totalorder %s14, 1
      %p162 = por %p160, %p161
      %p163 = scmp.ne.s32.totalorder %s155, %s158
      %p164 = scmp.eq.s32.totalorder %s14, 0
      %p165 = por %p163, %p164
      %p166 = scmp.ne.s32.totalorder %s155, %s158
      %p167 = scmp.eq.s32.totalorder %s19, 1
      %p168 = por %p166, %p167
      %p169 = scmp.ne.s32.totalorder %s158, %s159
      %p170 = scmp.eq.s32.totalorder %s19, 0
      %p171 = por %p169, %p170
      %p172 = scmp.ne.s32.totalorder %s158, %s159
      %p173 = scmp.eq.s32.totalorder %s20, 1
      %p174 = por %p172, %p173
      %p176 = scmp.ne.s32.totalorder %s159, %s175
      %p177 = scmp.eq.s32.totalorder %s20, 0
      %p178 = por %p176, %p177
      %p179 = scmp.le.s32.totalorder 1, %s14
      %p180 = scmp.lt.s32.totalorder %s14, 3
      %p181 = pnand %p179, %p180
      %p182 = pneg %p181
      // Predicated region
      $region9: #{tpu_custom_call.1} parent=5 // pred_check
        _
      $region10: #{tpu_custom_call.1} parent=5 // pred_check_branch
        %184 = sbr.rel (%p181) target = $region12
      $region11: #{tpu_custom_call.1} parent=5 // pred_region
        %s185 = ssub.s32 %s14, 1
        // Predicated region
        $region13: #{tpu_custom_call.1} parent=11 // pred_check
          %p186 = pneg %p115
        $region14: #{tpu_custom_call.1} parent=11 // pred_check_branch
          %188 = sbr.rel (%p186) target = $region16
        $region15: #{tpu_custom_call.1} parent=11 // pred_region
          %s190 = ssub.s32 9216, 9216
          %191 = vsyncadd [#allocation4], %s190
          %s192 = smul.addr %s26, 64
          %s193 = scalar_lea.hbm %s2, %s192
          %s194 = sshll.u32 [#allocation3], 4
          %s195 = int_to_ptr.vmem [resolvable:$true] %s194
          %200 = dma.hbm_to_vmem [thread:$0]  %s193, 9216, %s195, [#allocation4], 64, 64, 4
        $region16: #{tpu_custom_call.1} parent=11 // pred_fallthru
          _
        // Predicated region
        $region17: #{tpu_custom_call.1} parent=11 // pred_check
          %p201 = pneg %p141
        $region18: #{tpu_custom_call.1} parent=11 // pred_check_branch
          %203 = sbr.rel (%p201) target = $region20
        $region19: #{tpu_custom_call.1} parent=11 // pred_region
          %p204 = scmp.lt.s32.totalorder %s26, 0
          %s205 = scalar_select %p204, %s26, 0
          %s206 = scalar_lea.vmem %s3, %s205
        $region20: #{tpu_custom_call.1} parent=11 // pred_fallthru
          _
      $region12: #{tpu_custom_call.1} parent=5 // pred_fallthru
        _
      %p207 = scmp.lt.s32.totalorder %s14, 2
      // Predicated region
      $region21: #{tpu_custom_call.1} parent=5 // pred_check
        %p208 = pneg %p207
      $region22: #{tpu_custom_call.1} parent=5 // pred_check_branch
        %210 = sbr.rel (%p208) target = $region24
      $region23: #{tpu_custom_call.1} parent=5 // pred_region
        // Predicated region
        $region25: #{tpu_custom_call.1} parent=23 // pred_check
          %p211 = pneg %p55
        $region26: #{tpu_custom_call.1} parent=23 // pred_check_branch
          %213 = sbr.rel (%p211) target = $region28
        $region27: #{tpu_custom_call.1} parent=23 // pred_region
          %s214 = smul.u32 48, %s22
          %s215 = ssub.s32 55, %s214
          %p216 = scmp.lt.s32.totalorder %s215, 48
          %s217 = scalar_select %p216, %s215, 48
          %s218 = smul.u32 64, %s217
          %p219 = scmp.lt.s32.totalorder %s21, 1
          %s220 = scalar_select %p219, %s21, 1
          %p221 = scmp.lt.s32.totalorder %s214, 54
          %s222 = scalar_select %p221, %s214, 54
          %s223 = smul.addr %s220, 55
          %s224 = sadd.s32 %s222, %s223
          %s225 = smul.addr %s224, 4
          %s226 = scalar_lea.vmem %s0, %s225
          %s227 = smul.u32 48, %s22
          %s228 = ssub.s32 55, %s227
          %p229 = scmp.lt.s32.totalorder %s228, 48
          %s230 = scalar_select %p229, %s228, 48
          %s231 = smul.u32 64, %s230
        $region28: #{tpu_custom_call.1} parent=23 // pred_fallthru
          _
        // Predicated region
        $region29: #{tpu_custom_call.1} parent=23 // pred_check
          %p232 = pneg %p83
        $region30: #{tpu_custom_call.1} parent=23 // pred_check_branch
          %234 = sbr.rel (%p232) target = $region32
        $region31: #{tpu_custom_call.1} parent=23 // pred_region
          %p235 = scmp.lt.s32.totalorder %s21, 1
          %s236 = scalar_select %p235, %s21, 1
          %p237 = scmp.lt.s32.totalorder %s22, 0
          %s238 = scalar_select %p237, %s22, 0
          %s239 = smul.addr %s238, 7
          %s240 = smul.addr %s236, 7
          %s241 = sadd.s32 %s239, %s240
          %s242 = smul.addr %s241, 4
          %s243 = scalar_lea.vmem %s1, %s242
        $region32: #{tpu_custom_call.1} parent=23 // pred_fallthru
          _
      $region24: #{tpu_custom_call.1} parent=5 // pred_fallthru
        _
      %p244 = scmp.le.s32.totalorder 1, %s14
      %p245 = scmp.lt.s32.totalorder %s14, 3
      %p246 = pnand %p244, %p245
      %p247 = pneg %p246
      // Predicated region
      $region33: #{tpu_custom_call.1} parent=5 // pred_check
        _
      $region34: #{tpu_custom_call.1} parent=5 // pred_check_branch
        %249 = sbr.rel (%p246) target = $region36
      $region35: #{tpu_custom_call.1} parent=5 // pred_region
        %s250 = ssub.s32 %s14, 1
        // Predicated region
        $region37: #{tpu_custom_call.1} parent=35 // pred_check
          %p251 = pneg %p115
        $region38: #{tpu_custom_call.1} parent=35 // pred_check_branch
          %253 = sbr.rel (%p251) target = $region40
        $region39: #{tpu_custom_call.1} parent=35 // pred_region
          %254 = dma.done [#allocation4], 9216
        $region40: #{tpu_custom_call.1} parent=35 // pred_fallthru
          _
        %s255 = smul.u32 48, %s25
        %s256 = ssub.s32 55, %s255
        %p257 = scmp.lt.s32.totalorder %s256, 48
        %s258 = scalar_select %p257, %s256, 48
        %s259 = smul.u32 64, %s258
        %p260 = scmp.lt.s32.totalorder %s24, 1
        %s261 = scalar_select %p260, %s24, 1
        %p262 = scmp.lt.s32.totalorder %s255, 54
        %s263 = scalar_select %p262, %s255, 54
        %s264 = smul.addr %s261, 55
        %s265 = sadd.s32 %s263, %s264
        %s266 = smul.addr %s265, 4
        %s267 = scalar_lea.vmem %s0, %s266
        %p268 = pneg %p61
        %p269 = pneg %p58
        %p270 = scmp.lt.s32.totalorder %s24, 1
        %s271 = scalar_select %p270, %s24, 1
        %p272 = scmp.lt.s32.totalorder %s25, 0
        %s273 = scalar_select %p272, %s25, 0
        %s274 = smul.addr %s273, 7
        %s275 = smul.addr %s271, 7
        %s276 = sadd.s32 %s274, %s275
        %s277 = smul.addr %s276, 4
        %s278 = scalar_lea.vmem %s1, %s277
        %p279 = pneg %p89
        %p280 = pneg %p86
        %p281 = pneg %p115
        %p282 = pneg %p112
        %p283 = scmp.lt.s32.totalorder %s26, 0
        %s284 = scalar_select %p283, %s26, 0
        %s285 = scalar_lea.vmem %s3, %s284
        %p286 = pneg %p141
        %p287 = pneg %p138
        %p288 = pneg %p171
        %p289 = pneg %p168
        %s290 = sand.u32 %s158, 1
        %s291 = scalar_lea.sflag [#allocation5], %s290
        %s292 = sand.u32 %s158, 1
        %s293 = smul.addr %s292, 192
        %s294 = scalar_lea.vmem [#allocation6], %s293
        %s295 = smul.u32 48, %s25
        %s296 = ssub.s32 55, %s295
        %p297 = scmp.lt.s32.totalorder %s296, 48
        %s298 = scalar_select %p297, %s296, 48
        %s299 = smul.u32 64, %s298
        %p300 = scmp.lt.s32.totalorder %s24, 1
        %s301 = scalar_select %p300, %s24, 1
        %p302 = scmp.lt.s32.totalorder %s295, 54
        %s303 = scalar_select %p302, %s295, 54
        %s304 = smul.addr %s301, 55
        %s305 = sadd.s32 %s303, %s304
        %s306 = smul.addr %s305, 4
        %s307 = scalar_lea.vmem %s0, %s306
        %s308 = smul.u32 48, %s25
        %s309 = ssub.s32 55, %s308
        %p310 = scmp.lt.s32.totalorder %s309, 48
        %s311 = scalar_select %p310, %s309, 48
        %s312 = smul.u32 64, %s311
        %p313 = scmp.lt.s32.totalorder %s24, 1
        %s314 = scalar_select %p313, %s24, 1
        %p315 = scmp.lt.s32.totalorder %s25, 0
        %s316 = scalar_select %p315, %s25, 0
        %s317 = smul.addr %s316, 7
        %s318 = smul.addr %s314, 7
        %s319 = sadd.s32 %s317, %s318
        %s320 = smul.addr %s319, 4
        %s321 = scalar_lea.vmem %s1, %s320
        %p322 = scmp.lt.s32.totalorder %s26, 0
        %s323 = scalar_select %p322, %s26, 0
        %s324 = scalar_lea.vmem %s3, %s323
        %p326 = scmp.eq.s32.totalorder %s26, 0
        // Predicated region
        $region41: #{tpu_custom_call.1} parent=35 // pred_check
          %p327 = pneg %p326
        $region42: #{tpu_custom_call.1} parent=35 // pred_check_branch
          %329 = sbr.rel (%p327) target = $region44
        $region43: #{tpu_custom_call.1} parent=35 // pred_region
          %v330 = vld [vmem:[%s307] sm:$0xf]
          %v331 = vld [vmem:[%s307 + $0x4] sm:$0xf]
          %v332 = vld [vmem:[%s307 + $0x8] sm:$0xf]
          %v333 = vld [vmem:[%s307 + $0xc] sm:$0xf]
          %v334 = vld [vmem:[%s307 + $0x10] sm:$0xf]
          %v335 = vld [vmem:[%s307 + $0x14] sm:$0xf]
          %v336 = vld [vmem:[%s307 + $0x18] sm:$0xf]
          %v337 = vld [vmem:[%s307 + $0x1c] sm:$0xf]
          %v338 = vld [vmem:[%s307 + $0x20] sm:$0xf]
          %v339 = vld [vmem:[%s307 + $0x24] sm:$0xf]
          %v340 = vld [vmem:[%s307 + $0x28] sm:$0xf]
          %v341 = vld [vmem:[%s307 + $0x2c] sm:$0xf]
          %v342 = vld [vmem:[%s307 + $0x30] sm:$0xf]
          %v343 = vld [vmem:[%s307 + $0x34] sm:$0xf]
          %v344 = vld [vmem:[%s307 + $0x38] sm:$0xf]
          %v345 = vld [vmem:[%s307 + $0x3c] sm:$0xf]
          %v346 = vld [vmem:[%s307 + $0x40] sm:$0xf]
          %v347 = vld [vmem:[%s307 + $0x44] sm:$0xf]
          %v348 = vld [vmem:[%s307 + $0x48] sm:$0xf]
          %v349 = vld [vmem:[%s307 + $0x4c] sm:$0xf]
          %v350 = vld [vmem:[%s307 + $0x50] sm:$0xf]
          %v351 = vld [vmem:[%s307 + $0x54] sm:$0xf]
          %v352 = vld [vmem:[%s307 + $0x58] sm:$0xf]
          %v353 = vld [vmem:[%s307 + $0x5c] sm:$0xf]
          %v354 = vld [vmem:[%s307 + $0x60] sm:$0xf]
          %v355 = vld [vmem:[%s307 + $0x64] sm:$0xf]
          %v356 = vld [vmem:[%s307 + $0x68] sm:$0xf]
          %v357 = vld [vmem:[%s307 + $0x6c] sm:$0xf]
          %v358 = vld [vmem:[%s307 + $0x70] sm:$0xf]
          %v359 = vld [vmem:[%s307 + $0x74] sm:$0xf]
          %v360 = vld [vmem:[%s307 + $0x78] sm:$0xf]
          %v361 = vld [vmem:[%s307 + $0x7c] sm:$0xf]
          %v362 = vld [vmem:[%s307 + $0x80] sm:$0xf]
          %v363 = vld [vmem:[%s307 + $0x84] sm:$0xf]
          %v364 = vld [vmem:[%s307 + $0x88] sm:$0xf]
          %v365 = vld [vmem:[%s307 + $0x8c] sm:$0xf]
          %v366 = vld [vmem:[%s307 + $0x90] sm:$0xf]
          %v367 = vld [vmem:[%s307 + $0x94] sm:$0xf]
          %v368 = vld [vmem:[%s307 + $0x98] sm:$0xf]
          %v369 = vld [vmem:[%s307 + $0x9c] sm:$0xf]
          %v370 = vld [vmem:[%s307 + $0xa0] sm:$0xf]
          %v371 = vld [vmem:[%s307 + $0xa4] sm:$0xf]
          %v372 = vld [vmem:[%s307 + $0xa8] sm:$0xf]
          %v373 = vld [vmem:[%s307 + $0xac] sm:$0xf]
          %v374 = vld [vmem:[%s307 + $0xb0] sm:$0xf]
          %v375 = vld [vmem:[%s307 + $0xb4] sm:$0xf]
          %v376 = vld [vmem:[%s307 + $0xb8] sm:$0xf]
          %v377 = vld [vmem:[%s307 + $0xbc] sm:$0xf]
          %v426 = vunpack.c.l.b16 %v330
          %v427 = vunpack.c.l.b16 %v331
          %v428 = vunpack.c.l.b16 %v332
          %v429 = vunpack.c.l.b16 %v333
          %v430 = vunpack.c.l.b16 %v334
          %v431 = vunpack.c.l.b16 %v335
          %v432 = vunpack.c.l.b16 %v336
          %v433 = vunpack.c.l.b16 %v337
          %v434 = vunpack.c.l.b16 %v338
          %v435 = vunpack.c.l.b16 %v339
          %v436 = vunpack.c.l.b16 %v340
          %v437 = vunpack.c.l.b16 %v341
          %v438 = vunpack.c.l.b16 %v342
          %v439 = vunpack.c.l.b16 %v343
          %v440 = vunpack.c.l.b16 %v344
          %v441 = vunpack.c.l.b16 %v345
          %v442 = vunpack.c.l.b16 %v346
          %v443 = vunpack.c.l.b16 %v347
          %v444 = vunpack.c.l.b16 %v348
          %v445 = vunpack.c.l.b16 %v349
          %v446 = vunpack.c.l.b16 %v350
          %v447 = vunpack.c.l.b16 %v351
          %v448 = vunpack.c.l.b16 %v352
          %v449 = vunpack.c.l.b16 %v353
          %v450 = vunpack.c.l.b16 %v354
          %v451 = vunpack.c.l.b16 %v355
          %v452 = vunpack.c.l.b16 %v356
          %v453 = vunpack.c.l.b16 %v357
          %v454 = vunpack.c.l.b16 %v358
          %v455 = vunpack.c.l.b16 %v359
          %v456 = vunpack.c.l.b16 %v360
          %v457 = vunpack.c.l.b16 %v361
          %v458 = vunpack.c.l.b16 %v362
          %v459 = vunpack.c.l.b16 %v363
          %v460 = vunpack.c.l.b16 %v364
          %v461 = vunpack.c.l.b16 %v365
          %v462 = vunpack.c.l.b16 %v366
          %v463 = vunpack.c.l.b16 %v367
          %v464 = vunpack.c.l.b16 %v368
          %v465 = vunpack.c.l.b16 %v369
          %v466 = vunpack.c.l.b16 %v370
          %v467 = vunpack.c.l.b16 %v371
          %v468 = vunpack.c.l.b16 %v372
          %v469 = vunpack.c.l.b16 %v373
          %v470 = vunpack.c.l.b16 %v374
          %v471 = vunpack.c.l.b16 %v375
          %v472 = vunpack.c.l.b16 %v376
          %v473 = vunpack.c.l.b16 %v377
          %v474 = vpack.c.b16 %v427, %v426
          %v475 = vpack.c.b16 %v429, %v428
          %v476 = vpack.c.b16 %v431, %v430
          %v477 = vpack.c.b16 %v433, %v432
          %v478 = vpack.c.b16 %v435, %v434
          %v479 = vpack.c.b16 %v437, %v436
          %v480 = vpack.c.b16 %v439, %v438
          %v481 = vpack.c.b16 %v441, %v440
          %v482 = vpack.c.b16 %v443, %v442
          %v483 = vpack.c.b16 %v445, %v444
          %v484 = vpack.c.b16 %v447, %v446
          %v485 = vpack.c.b16 %v449, %v448
          %v486 = vpack.c.b16 %v451, %v450
          %v487 = vpack.c.b16 %v453, %v452
          %v488 = vpack.c.b16 %v455, %v454
          %v489 = vpack.c.b16 %v457, %v456
          %v490 = vpack.c.b16 %v459, %v458
          %v491 = vpack.c.b16 %v461, %v460
          %v492 = vpack.c.b16 %v463, %v462
          %v493 = vpack.c.b16 %v465, %v464
          %v494 = vpack.c.b16 %v467, %v466
          %v495 = vpack.c.b16 %v469, %v468
          %v496 = vpack.c.b16 %v471, %v470
          %v497 = vpack.c.b16 %v473, %v472
          %vm498 = vcmask 31744
          %v501 = vsel %vm498, %v474, 0
          %v504 = vsel %vm498, %v475, 0
          %v507 = vsel %vm498, %v476, 0
          %v510 = vsel %vm498, %v477, 0
          %v513 = vsel %vm498, %v478, 0
          %v516 = vsel %vm498, %v479, 0
          %v519 = vsel %vm498, %v480, 0
          %v522 = vsel %vm498, %v481, 0
          %v525 = vsel %vm498, %v482, 0
          %v528 = vsel %vm498, %v483, 0
          %v531 = vsel %vm498, %v484, 0
          %v534 = vsel %vm498, %v485, 0
          %v537 = vsel %vm498, %v486, 0
          %v540 = vsel %vm498, %v487, 0
          %v543 = vsel %vm498, %v488, 0
          %v546 = vsel %vm498, %v489, 0
          %v549 = vsel %vm498, %v490, 0
          %v552 = vsel %vm498, %v491, 0
          %v555 = vsel %vm498, %v492, 0
          %v558 = vsel %vm498, %v493, 0
          %v561 = vsel %vm498, %v494, 0
          %v564 = vsel %vm498, %v495, 0
          %v567 = vsel %vm498, %v496, 0
          %v570 = vsel %vm498, %v497, 0
          %572 = vst [vmem:[#allocation2] sm:$0xff] %v501
          %573 = vst [vmem:[#allocation2 + $0x48] sm:$0xff] %v504
          %574 = vst [vmem:[#allocation2 + $0x90] sm:$0xff] %v507
          %575 = vst [vmem:[#allocation2 + $0xd8] sm:$0xff] %v510
          %576 = vst [vmem:[#allocation2 + $0x120] sm:$0xff] %v513
          %577 = vst [vmem:[#allocation2 + $0x168] sm:$0xff] %v516
          %578 = vst [vmem:[#allocation2 + $0x1b0] sm:$0xff] %v519
          %579 = vst [vmem:[#allocation2 + $0x1f8] sm:$0xff] %v522
          %580 = vst [vmem:[#allocation2 + $0x240] sm:$0xff] %v525
          %581 = vst [vmem:[#allocation2 + $0x288] sm:$0xff] %v528
          %582 = vst [vmem:[#allocation2 + $0x2d0] sm:$0xff] %v531
          %583 = vst [vmem:[#allocation2 + $0x318] sm:$0xff] %v534
          %584 = vst [vmem:[#allocation2 + $0x360] sm:$0xff] %v537
          %585 = vst [vmem:[#allocation2 + $0x3a8] sm:$0xff] %v540
          %586 = vst [vmem:[#allocation2 + $0x3f0] sm:$0xff] %v543
          %587 = vst [vmem:[#allocation2 + $0x438] sm:$0xff] %v546
          %588 = vst [vmem:[#allocation2 + $0x480] sm:$0xff] %v549
          %589 = vst [vmem:[#allocation2 + $0x4c8] sm:$0xff] %v552
          %590 = vst [vmem:[#allocation2 + $0x510] sm:$0xff] %v555
          %591 = vst [vmem:[#allocation2 + $0x558] sm:$0xff] %v558
          %592 = vst [vmem:[#allocation2 + $0x5a0] sm:$0xff] %v561
          %593 = vst [vmem:[#allocation2 + $0x5e8] sm:$0xff] %v564
          %594 = vst [vmem:[#allocation2 + $0x630] sm:$0xff] %v567
          %595 = vst [vmem:[#allocation2 + $0x678] sm:$0xff] %v570
          %v596 = vld [vmem:[%s307] sm:$0xf]
          %v597 = vld [vmem:[%s307 + $0x4] sm:$0xf]
          %v598 = vld [vmem:[%s307 + $0x8] sm:$0xf]
          %v599 = vld [vmem:[%s307 + $0xc] sm:$0xf]
          %v600 = vld [vmem:[%s307 + $0x10] sm:$0xf]
          %v601 = vld [vmem:[%s307 + $0x14] sm:$0xf]
          %v602 = vld [vmem:[%s307 + $0x18] sm:$0xf]
          %v603 = vld [vmem:[%s307 + $0x1c] sm:$0xf]
          %v604 = vld [vmem:[%s307 + $0x20] sm:$0xf]
          %v605 = vld [vmem:[%s307 + $0x24] sm:$0xf]
          %v606 = vld [vmem:[%s307 + $0x28] sm:$0xf]
          %v607 = vld [vmem:[%s307 + $0x2c] sm:$0xf]
          %v608 = vld [vmem:[%s307 + $0x30] sm:$0xf]
          %v609 = vld [vmem:[%s307 + $0x34] sm:$0xf]
          %v610 = vld [vmem:[%s307 + $0x38] sm:$0xf]
          %v611 = vld [vmem:[%s307 + $0x3c] sm:$0xf]
          %v612 = vld [vmem:[%s307 + $0x40] sm:$0xf]
          %v613 = vld [vmem:[%s307 + $0x44] sm:$0xf]
          %v614 = vld [vmem:[%s307 + $0x48] sm:$0xf]
          %v615 = vld [vmem:[%s307 + $0x4c] sm:$0xf]
          %v616 = vld [vmem:[%s307 + $0x50] sm:$0xf]
          %v617 = vld [vmem:[%s307 + $0x54] sm:$0xf]
          %v618 = vld [vmem:[%s307 + $0x58] sm:$0xf]
          %v619 = vld [vmem:[%s307 + $0x5c] sm:$0xf]
          %v620 = vld [vmem:[%s307 + $0x60] sm:$0xf]
          %v621 = vld [vmem:[%s307 + $0x64] sm:$0xf]
          %v622 = vld [vmem:[%s307 + $0x68] sm:$0xf]
          %v623 = vld [vmem:[%s307 + $0x6c] sm:$0xf]
          %v624 = vld [vmem:[%s307 + $0x70] sm:$0xf]
          %v625 = vld [vmem:[%s307 + $0x74] sm:$0xf]
          %v626 = vld [vmem:[%s307 + $0x78] sm:$0xf]
          %v627 = vld [vmem:[%s307 + $0x7c] sm:$0xf]
          %v628 = vld [vmem:[%s307 + $0x80] sm:$0xf]
          %v629 = vld [vmem:[%s307 + $0x84] sm:$0xf]
          %v630 = vld [vmem:[%s307 + $0x88] sm:$0xf]
          %v631 = vld [vmem:[%s307 + $0x8c] sm:$0xf]
          %v632 = vld [vmem:[%s307 + $0x90] sm:$0xf]
          %v633 = vld [vmem:[%s307 + $0x94] sm:$0xf]
          %v634 = vld [vmem:[%s307 + $0x98] sm:$0xf]
          %v635 = vld [vmem:[%s307 + $0x9c] sm:$0xf]
          %v636 = vld [vmem:[%s307 + $0xa0] sm:$0xf]
          %v637 = vld [vmem:[%s307 + $0xa4] sm:$0xf]
          %v638 = vld [vmem:[%s307 + $0xa8] sm:$0xf]
          %v639 = vld [vmem:[%s307 + $0xac] sm:$0xf]
          %v640 = vld [vmem:[%s307 + $0xb0] sm:$0xf]
          %v641 = vld [vmem:[%s307 + $0xb4] sm:$0xf]
          %v642 = vld [vmem:[%s307 + $0xb8] sm:$0xf]
          %v643 = vld [vmem:[%s307 + $0xbc] sm:$0xf]
          %v644 = vld [vmem:[%s321] sm:$0x1]
          %v693 = vunpack.c.l.b16 %v596
          %v694 = vunpack.c.l.b16 %v597
          %v695 = vunpack.c.l.b16 %v598
          %v696 = vunpack.c.l.b16 %v599
          %v697 = vunpack.c.l.b16 %v600
          %v698 = vunpack.c.l.b16 %v601
          %v699 = vunpack.c.l.b16 %v602
          %v700 = vunpack.c.l.b16 %v603
          %v701 = vunpack.c.l.b16 %v604
          %v702 = vunpack.c.l.b16 %v605
          %v703 = vunpack.c.l.b16 %v606
          %v704 = vunpack.c.l.b16 %v607
          %v705 = vunpack.c.l.b16 %v608
          %v706 = vunpack.c.l.b16 %v609
          %v707 = vunpack.c.l.b16 %v610
          %v708 = vunpack.c.l.b16 %v611
          %v709 = vunpack.c.l.b16 %v612
          %v710 = vunpack.c.l.b16 %v613
          %v711 = vunpack.c.l.b16 %v614
          %v712 = vunpack.c.l.b16 %v615
          %v713 = vunpack.c.l.b16 %v616
          %v714 = vunpack.c.l.b16 %v617
          %v715 = vunpack.c.l.b16 %v618
          %v716 = vunpack.c.l.b16 %v619
          %v717 = vunpack.c.l.b16 %v620
          %v718 = vunpack.c.l.b16 %v621
          %v719 = vunpack.c.l.b16 %v622
          %v720 = vunpack.c.l.b16 %v623
          %v721 = vunpack.c.l.b16 %v624
          %v722 = vunpack.c.l.b16 %v625
          %v723 = vunpack.c.l.b16 %v626
          %v724 = vunpack.c.l.b16 %v627
          %v725 = vunpack.c.l.b16 %v628
          %v726 = vunpack.c.l.b16 %v629
          %v727 = vunpack.c.l.b16 %v630
          %v728 = vunpack.c.l.b16 %v631
          %v729 = vunpack.c.l.b16 %v632
          %v730 = vunpack.c.l.b16 %v633
          %v731 = vunpack.c.l.b16 %v634
          %v732 = vunpack.c.l.b16 %v635
          %v733 = vunpack.c.l.b16 %v636
          %v734 = vunpack.c.l.b16 %v637
          %v735 = vunpack.c.l.b16 %v638
          %v736 = vunpack.c.l.b16 %v639
          %v737 = vunpack.c.l.b16 %v640
          %v738 = vunpack.c.l.b16 %v641
          %v739 = vunpack.c.l.b16 %v642
          %v740 = vunpack.c.l.b16 %v643
          %v741 = vpack.c.b16 %v694, %v693
          %v742 = vpack.c.b16 %v696, %v695
          %v743 = vpack.c.b16 %v698, %v697
          %v744 = vpack.c.b16 %v700, %v699
          %v745 = vpack.c.b16 %v702, %v701
          %v746 = vpack.c.b16 %v704, %v703
          %v747 = vpack.c.b16 %v706, %v705
          %v748 = vpack.c.b16 %v708, %v707
          %v749 = vpack.c.b16 %v710, %v709
          %v750 = vpack.c.b16 %v712, %v711
          %v751 = vpack.c.b16 %v714, %v713
          %v752 = vpack.c.b16 %v716, %v715
          %v753 = vpack.c.b16 %v718, %v717
          %v754 = vpack.c.b16 %v720, %v719
          %v755 = vpack.c.b16 %v722, %v721
          %v756 = vpack.c.b16 %v724, %v723
          %v757 = vpack.c.b16 %v726, %v725
          %v758 = vpack.c.b16 %v728, %v727
          %v759 = vpack.c.b16 %v730, %v729
          %v760 = vpack.c.b16 %v732, %v731
          %v761 = vpack.c.b16 %v734, %v733
          %v762 = vpack.c.b16 %v736, %v735
          %v763 = vpack.c.b16 %v738, %v737
          %v764 = vpack.c.b16 %v740, %v739
          %vm765 = vsmask.f32 7424
          %v767 = vshrl.u32 %v741, 16
          %v769 = vshll.u32 %v741, 16
          %v771 = vrot.slane %v769, 1
          %v772 = vor.u32 %v767, %v771
          %v774 = vshll.u32 %v742, 16
          %v776 = vrot.slane %v774, 1
          %v777 = vsel %vm765, %v772, %v776
          %v778 = vshrl.u32 %v742, 16
          %v780 = vor.u32 %v778, %v776
          %v782 = vshll.u32 %v743, 16
          %v784 = vrot.slane %v782, 1
          %v785 = vsel %vm765, %v780, %v784
          %v786 = vshrl.u32 %v743, 16
          %v788 = vor.u32 %v786, %v784
          %v790 = vshll.u32 %v744, 16
          %v792 = vrot.slane %v790, 1
          %v793 = vsel %vm765, %v788, %v792
          %v794 = vshrl.u32 %v744, 16
          %v796 = vor.u32 %v794, %v792
          %v798 = vshll.u32 %v745, 16
          %v800 = vrot.slane %v798, 1
          %v801 = vsel %vm765, %v796, %v800
          %v802 = vshrl.u32 %v745, 16
          %v804 = vor.u32 %v802, %v800
          %v806 = vshll.u32 %v746, 16
          %v808 = vrot.slane %v806, 1
          %v809 = vsel %vm765, %v804, %v808
          %v810 = vshrl.u32 %v746, 16
          %v812 = vor.u32 %v810, %v808
          %v814 = vshll.u32 %v747, 16
          %v816 = vrot.slane %v814, 1
          %v817 = vsel %vm765, %v812, %v816
          %v818 = vshrl.u32 %v747, 16
          %v820 = vor.u32 %v818, %v816
          %v822 = vshll.u32 %v748, 16
          %v824 = vrot.slane %v822, 1
          %v825 = vsel %vm765, %v820, %v824
          %v826 = vshrl.u32 %v748, 16
          %v828 = vor.u32 %v826, %v824
          %v830 = vshll.u32 %v749, 16
          %v832 = vrot.slane %v830, 1
          %v833 = vsel %vm765, %v828, %v832
          %v834 = vshrl.u32 %v749, 16
          %v836 = vor.u32 %v834, %v832
          %v838 = vshll.u32 %v750, 16
          %v840 = vrot.slane %v838, 1
          %v841 = vsel %vm765, %v836, %v840
          %v842 = vshrl.u32 %v750, 16
          %v844 = vor.u32 %v842, %v840
          %v846 = vshll.u32 %v751, 16
          %v848 = vrot.slane %v846, 1
          %v849 = vsel %vm765, %v844, %v848
          %v850 = vshrl.u32 %v751, 16
          %v852 = vor.u32 %v850, %v848
          %v854 = vshll.u32 %v752, 16
          %v856 = vrot.slane %v854, 1
          %v857 = vsel %vm765, %v852, %v856
          %v858 = vshrl.u32 %v752, 16
          %v860 = vor.u32 %v858, %v856
          %v862 = vshll.u32 %v753, 16
          %v864 = vrot.slane %v862, 1
          %v865 = vsel %vm765, %v860, %v864
          %v866 = vshrl.u32 %v753, 16
          %v868 = vor.u32 %v866, %v864
          %v870 = vshll.u32 %v754, 16
          %v872 = vrot.slane %v870, 1
          %v873 = vsel %vm765, %v868, %v872
          %v874 = vshrl.u32 %v754, 16
          %v876 = vor.u32 %v874, %v872
          %v878 = vshll.u32 %v755, 16
          %v880 = vrot.slane %v878, 1
          %v881 = vsel %vm765, %v876, %v880
          %v882 = vshrl.u32 %v755, 16
          %v884 = vor.u32 %v882, %v880
          %v886 = vshll.u32 %v756, 16
          %v888 = vrot.slane %v886, 1
          %v889 = vsel %vm765, %v884, %v888
          %v890 = vshrl.u32 %v756, 16
          %v892 = vor.u32 %v890, %v888
          %v894 = vshll.u32 %v757, 16
          %v896 = vrot.slane %v894, 1
          %v897 = vsel %vm765, %v892, %v896
          %v898 = vshrl.u32 %v757, 16
          %v900 = vor.u32 %v898, %v896
          %v902 = vshll.u32 %v758, 16
          %v904 = vrot.slane %v902, 1
          %v905 = vsel %vm765, %v900, %v904
          %v906 = vshrl.u32 %v758, 16
          %v908 = vor.u32 %v906, %v904
          %v910 = vshll.u32 %v759, 16
          %v912 = vrot.slane %v910, 1
          %v913 = vsel %vm765, %v908, %v912
          %v914 = vshrl.u32 %v759, 16
          %v916 = vor.u32 %v914, %v912
          %v918 = vshll.u32 %v760, 16
          %v920 = vrot.slane %v918, 1
          %v921 = vsel %vm765, %v916, %v920
          %v922 = vshrl.u32 %v760, 16
          %v924 = vor.u32 %v922, %v920
          %v926 = vshll.u32 %v761, 16
          %v928 = vrot.slane %v926, 1
          %v929 = vsel %vm765, %v924, %v928
          %v930 = vshrl.u32 %v761, 16
          %v932 = vor.u32 %v930, %v928
          %v934 = vshll.u32 %v762, 16
          %v936 = vrot.slane %v934, 1
          %v937 = vsel %vm765, %v932, %v936
          %v938 = vshrl.u32 %v762, 16
          %v940 = vor.u32 %v938, %v936
          %v942 = vshll.u32 %v763, 16
          %v944 = vrot.slane %v942, 1
          %v945 = vsel %vm765, %v940, %v944
          %v946 = vshrl.u32 %v763, 16
          %v948 = vor.u32 %v946, %v944
          %v950 = vshll.u32 %v764, 16
          %v952 = vrot.slane %v950, 1
          %v953 = vsel %vm765, %v948, %v952
          %v954 = vshrl.u32 %v764, 16
          %v956 = vor.u32 %v954, %v952
          %v959 = vunpack.c.l.b16 %v644
          %v960 = vpack.c.b16 %v959, %v959
          %v962 = vshll.u32 %v960, 16
          %v964 = vrot.slane %v962, 1
          %vm966 = vcmask 1047552
          %vm967 = vmand %vm966, %vm765
          %v968 = vsel %vm967, %v956, %v964
          %v970 = vsel %vm498, %v777, 0
          %v973 = vsel %vm498, %v785, 0
          %v976 = vsel %vm498, %v793, 0
          %v979 = vsel %vm498, %v801, 0
          %v982 = vsel %vm498, %v809, 0
          %v985 = vsel %vm498, %v817, 0
          %v988 = vsel %vm498, %v825, 0
          %v991 = vsel %vm498, %v833, 0
          %v994 = vsel %vm498, %v841, 0
          %v997 = vsel %vm498, %v849, 0
          %v1000 = vsel %vm498, %v857, 0
          %v1003 = vsel %vm498, %v865, 0
          %v1006 = vsel %vm498, %v873, 0
          %v1009 = vsel %vm498, %v881, 0
          %v1012 = vsel %vm498, %v889, 0
          %v1015 = vsel %vm498, %v897, 0
          %v1018 = vsel %vm498, %v905, 0
          %v1021 = vsel %vm498, %v913, 0
          %v1024 = vsel %vm498, %v921, 0
          %v1027 = vsel %vm498, %v929, 0
          %v1030 = vsel %vm498, %v937, 0
          %v1033 = vsel %vm498, %v945, 0
          %v1036 = vsel %vm498, %v953, 0
          %v1039 = vsel %vm498, %v968, 0
          %1041 = vst [vmem:[#allocation2 + $0x8] sm:$0xff] %v970
          %1042 = vst [vmem:[#allocation2 + $0x50] sm:$0xff] %v973
          %1043 = vst [vmem:[#allocation2 + $0x98] sm:$0xff] %v976
          %1044 = vst [vmem:[#allocation2 + $0xe0] sm:$0xff] %v979
          %1045 = vst [vmem:[#allocation2 + $0x128] sm:$0xff] %v982
          %1046 = vst [vmem:[#allocation2 + $0x170] sm:$0xff] %v985
          %1047 = vst [vmem:[#allocation2 + $0x1b8] sm:$0xff] %v988
          %1048 = vst [vmem:[#allocation2 + $0x200] sm:$0xff] %v991
          %1049 = vst [vmem:[#allocation2 + $0x248] sm:$0xff] %v994
          %1050 = vst [vmem:[#allocation2 + $0x290] sm:$0xff] %v997
          %1051 = vst [vmem:[#allocation2 + $0x2d8] sm:$0xff] %v1000
          %1052 = vst [vmem:[#allocation2 + $0x320] sm:$0xff] %v1003
          %1053 = vst [vmem:[#allocation2 + $0x368] sm:$0xff] %v1006
          %1054 = vst [vmem:[#allocation2 + $0x3b0] sm:$0xff] %v1009
          %1055 = vst [vmem:[#allocation2 + $0x3f8] sm:$0xff] %v1012
          %1056 = vst [vmem:[#allocation2 + $0x440] sm:$0xff] %v1015
          %1057 = vst [vmem:[#allocation2 + $0x488] sm:$0xff] %v1018
          %1058 = vst [vmem:[#allocation2 + $0x4d0] sm:$0xff] %v1021
          %1059 = vst [vmem:[#allocation2 + $0x518] sm:$0xff] %v1024
          %1060 = vst [vmem:[#allocation2 + $0x560] sm:$0xff] %v1027
          %1061 = vst [vmem:[#allocation2 + $0x5a8] sm:$0xff] %v1030
          %1062 = vst [vmem:[#allocation2 + $0x5f0] sm:$0xff] %v1033
          %1063 = vst [vmem:[#allocation2 + $0x638] sm:$0xff] %v1036
          %1064 = vst [vmem:[#allocation2 + $0x680] sm:$0xff] %v1039
          %v1065 = vld [vmem:[%s307] sm:$0xe]
          %v1066 = vld [vmem:[%s307 + $0x4] sm:$0xf]
          %v1067 = vld [vmem:[%s307 + $0x8] sm:$0xf]
          %v1068 = vld [vmem:[%s307 + $0xc] sm:$0xf]
          %v1069 = vld [vmem:[%s307 + $0x10] sm:$0xf]
          %v1070 = vld [vmem:[%s307 + $0x14] sm:$0xf]
          %v1071 = vld [vmem:[%s307 + $0x18] sm:$0xf]
          %v1072 = vld [vmem:[%s307 + $0x1c] sm:$0xf]
          %v1073 = vld [vmem:[%s307 + $0x20] sm:$0xf]
          %v1074 = vld [vmem:[%s307 + $0x24] sm:$0xf]
          %v1075 = vld [vmem:[%s307 + $0x28] sm:$0xf]
          %v1076 = vld [vmem:[%s307 + $0x2c] sm:$0xf]
          %v1077 = vld [vmem:[%s307 + $0x30] sm:$0xf]
          %v1078 = vld [vmem:[%s307 + $0x34] sm:$0xf]
          %v1079 = vld [vmem:[%s307 + $0x38] sm:$0xf]
          %v1080 = vld [vmem:[%s307 + $0x3c] sm:$0xf]
          %v1081 = vld [vmem:[%s307 + $0x40] sm:$0xf]
          %v1082 = vld [vmem:[%s307 + $0x44] sm:$0xf]
          %v1083 = vld [vmem:[%s307 + $0x48] sm:$0xf]
          %v1084 = vld [vmem:[%s307 + $0x4c] sm:$0xf]
          %v1085 = vld [vmem:[%s307 + $0x50] sm:$0xf]
          %v1086 = vld [vmem:[%s307 + $0x54] sm:$0xf]
          %v1087 = vld [vmem:[%s307 + $0x58] sm:$0xf]
          %v1088 = vld [vmem:[%s307 + $0x5c] sm:$0xf]
          %v1089 = vld [vmem:[%s307 + $0x60] sm:$0xf]
          %v1090 = vld [vmem:[%s307 + $0x64] sm:$0xf]
          %v1091 = vld [vmem:[%s307 + $0x68] sm:$0xf]
          %v1092 = vld [vmem:[%s307 + $0x6c] sm:$0xf]
          %v1093 = vld [vmem:[%s307 + $0x70] sm:$0xf]
          %v1094 = vld [vmem:[%s307 + $0x74] sm:$0xf]
          %v1095 = vld [vmem:[%s307 + $0x78] sm:$0xf]
          %v1096 = vld [vmem:[%s307 + $0x7c] sm:$0xf]
          %v1097 = vld [vmem:[%s307 + $0x80] sm:$0xf]
          %v1098 = vld [vmem:[%s307 + $0x84] sm:$0xf]
          %v1099 = vld [vmem:[%s307 + $0x88] sm:$0xf]
          %v1100 = vld [vmem:[%s307 + $0x8c] sm:$0xf]
          %v1101 = vld [vmem:[%s307 + $0x90] sm:$0xf]
          %v1102 = vld [vmem:[%s307 + $0x94] sm:$0xf]
          %v1103 = vld [vmem:[%s307 + $0x98] sm:$0xf]
          %v1104 = vld [vmem:[%s307 + $0x9c] sm:$0xf]
          %v1105 = vld [vmem:[%s307 + $0xa0] sm:$0xf]
          %v1106 = vld [vmem:[%s307 + $0xa4] sm:$0xf]
          %v1107 = vld [vmem:[%s307 + $0xa8] sm:$0xf]
          %v1108 = vld [vmem:[%s307 + $0xac] sm:$0xf]
          %v1109 = vld [vmem:[%s307 + $0xb0] sm:$0xf]
          %v1110 = vld [vmem:[%s307 + $0xb4] sm:$0xf]
          %v1111 = vld [vmem:[%s307 + $0xb8] sm:$0xf]
          %v1112 = vld [vmem:[%s307 + $0xbc] sm:$0xf]
          %v1113 = vld [vmem:[%s321] sm:$0x1]
          %v1162 = vunpack.c.l.b16 %v1065
          %v1163 = vunpack.c.l.b16 %v1066
          %v1164 = vunpack.c.l.b16 %v1067
          %v1165 = vunpack.c.l.b16 %v1068
          %v1166 = vunpack.c.l.b16 %v1069
          %v1167 = vunpack.c.l.b16 %v1070
          %v1168 = vunpack.c.l.b16 %v1071
          %v1169 = vunpack.c.l.b16 %v1072
          %v1170 = vunpack.c.l.b16 %v1073
          %v1171 = vunpack.c.l.b16 %v1074
          %v1172 = vunpack.c.l.b16 %v1075
          %v1173 = vunpack.c.l.b16 %v1076
          %v1174 = vunpack.c.l.b16 %v1077
          %v1175 = vunpack.c.l.b16 %v1078
          %v1176 = vunpack.c.l.b16 %v1079
          %v1177 = vunpack.c.l.b16 %v1080
          %v1178 = vunpack.c.l.b16 %v1081
          %v1179 = vunpack.c.l.b16 %v1082
          %v1180 = vunpack.c.l.b16 %v1083
          %v1181 = vunpack.c.l.b16 %v1084
          %v1182 = vunpack.c.l.b16 %v1085
          %v1183 = vunpack.c.l.b16 %v1086
          %v1184 = vunpack.c.l.b16 %v1087
          %v1185 = vunpack.c.l.b16 %v1088
          %v1186 = vunpack.c.l.b16 %v1089
          %v1187 = vunpack.c.l.b16 %v1090
          %v1188 = vunpack.c.l.b16 %v1091
          %v1189 = vunpack.c.l.b16 %v1092
          %v1190 = vunpack.c.l.b16 %v1093
          %v1191 = vunpack.c.l.b16 %v1094
          %v1192 = vunpack.c.l.b16 %v1095
          %v1193 = vunpack.c.l.b16 %v1096
          %v1194 = vunpack.c.l.b16 %v1097
          %v1195 = vunpack.c.l.b16 %v1098
          %v1196 = vunpack.c.l.b16 %v1099
          %v1197 = vunpack.c.l.b16 %v1100
          %v1198 = vunpack.c.l.b16 %v1101
          %v1199 = vunpack.c.l.b16 %v1102
          %v1200 = vunpack.c.l.b16 %v1103
          %v1201 = vunpack.c.l.b16 %v1104
          %v1202 = vunpack.c.l.b16 %v1105
          %v1203 = vunpack.c.l.b16 %v1106
          %v1204 = vunpack.c.l.b16 %v1107
          %v1205 = vunpack.c.l.b16 %v1108
          %v1206 = vunpack.c.l.b16 %v1109
          %v1207 = vunpack.c.l.b16 %v1110
          %v1208 = vunpack.c.l.b16 %v1111
          %v1209 = vunpack.c.l.b16 %v1112
          %v1210 = vpack.c.b16 %v1163, %v1162
          %v1211 = vpack.c.b16 %v1165, %v1164
          %v1212 = vpack.c.b16 %v1167, %v1166
          %v1213 = vpack.c.b16 %v1169, %v1168
          %v1214 = vpack.c.b16 %v1171, %v1170
          %v1215 = vpack.c.b16 %v1173, %v1172
          %v1216 = vpack.c.b16 %v1175, %v1174
          %v1217 = vpack.c.b16 %v1177, %v1176
          %v1218 = vpack.c.b16 %v1179, %v1178
          %v1219 = vpack.c.b16 %v1181, %v1180
          %v1220 = vpack.c.b16 %v1183, %v1182
          %v1221 = vpack.c.b16 %v1185, %v1184
          %v1222 = vpack.c.b16 %v1187, %v1186
          %v1223 = vpack.c.b16 %v1189, %v1188
          %v1224 = vpack.c.b16 %v1191, %v1190
          %v1225 = vpack.c.b16 %v1193, %v1192
          %v1226 = vpack.c.b16 %v1195, %v1194
          %v1227 = vpack.c.b16 %v1197, %v1196
          %v1228 = vpack.c.b16 %v1199, %v1198
          %v1229 = vpack.c.b16 %v1201, %v1200
          %v1230 = vpack.c.b16 %v1203, %v1202
          %v1231 = vpack.c.b16 %v1205, %v1204
          %v1232 = vpack.c.b16 %v1207, %v1206
          %v1233 = vpack.c.b16 %v1209, %v1208
          %vm1234 = vcmask 1046528
          %v1235 = vrot.slane %v1210, 1
          %v1236 = vrot.slane %v1211, 1
          %v1237 = vsel %vm1234, %v1235, %v1236
          %v1238 = vrot.slane %v1212, 1
          %v1239 = vsel %vm1234, %v1236, %v1238
          %v1240 = vrot.slane %v1213, 1
          %v1241 = vsel %vm1234, %v1238, %v1240
          %v1242 = vrot.slane %v1214, 1
          %v1243 = vsel %vm1234, %v1240, %v1242
          %v1244 = vrot.slane %v1215, 1
          %v1245 = vsel %vm1234, %v1242, %v1244
          %v1246 = vrot.slane %v1216, 1
          %v1247 = vsel %vm1234, %v1244, %v1246
          %v1248 = vrot.slane %v1217, 1
          %v1249 = vsel %vm1234, %v1246, %v1248
          %v1250 = vrot.slane %v1218, 1
          %v1251 = vsel %vm1234, %v1248, %v1250
          %v1252 = vrot.slane %v1219, 1
          %v1253 = vsel %vm1234, %v1250, %v1252
          %v1254 = vrot.slane %v1220, 1
          %v1255 = vsel %vm1234, %v1252, %v1254
          %v1256 = vrot.slane %v1221, 1
          %v1257 = vsel %vm1234, %v1254, %v1256
          %v1258 = vrot.slane %v1222, 1
          %v1259 = vsel %vm1234, %v1256, %v1258
          %v1260 = vrot.slane %v1223, 1
          %v1261 = vsel %vm1234, %v1258, %v1260
          %v1262 = vrot.slane %v1224, 1
          %v1263 = vsel %vm1234, %v1260, %v1262
          %v1264 = vrot.slane %v1225, 1
          %v1265 = vsel %vm1234, %v1262, %v1264
          %v1266 = vrot.slane %v1226, 1
          %v1267 = vsel %vm1234, %v1264, %v1266
          %v1268 = vrot.slane %v1227, 1
          %v1269 = vsel %vm1234, %v1266, %v1268
          %v1270 = vrot.slane %v1228, 1
          %v1271 = vsel %vm1234, %v1268, %v1270
          %v1272 = vrot.slane %v1229, 1
          %v1273 = vsel %vm1234, %v1270, %v1272
          %v1274 = vrot.slane %v1230, 1
          %v1275 = vsel %vm1234, %v1272, %v1274
          %v1276 = vrot.slane %v1231, 1
          %v1277 = vsel %vm1234, %v1274, %v1276
          %v1278 = vrot.slane %v1232, 1
          %v1279 = vsel %vm1234, %v1276, %v1278
          %v1280 = vrot.slane %v1233, 1
          %v1281 = vsel %vm1234, %v1278, %v1280
          %v1283 = vunpack.c.l.b16 %v1113
          %v1284 = vpack.c.b16 %v1283, %v1283
          %v1285 = vrot.slane %v1284, 1
          %vm1286 = vcmask 1046528
          %v1289 = vsel %vm1286, %v1280, %v1285
          %v1291 = vsel %vm498, %v1237, 0
          %v1294 = vsel %vm498, %v1239, 0
          %v1297 = vsel %vm498, %v1241, 0
          %v1300 = vsel %vm498, %v1243, 0
          %v1303 = vsel %vm498, %v1245, 0
          %v1306 = vsel %vm498, %v1247, 0
          %v1309 = vsel %vm498, %v1249, 0
          %v1312 = vsel %vm498, %v1251, 0
          %v1315 = vsel %vm498, %v1253, 0
          %v1318 = vsel %vm498, %v1255, 0
          %v1321 = vsel %vm498, %v1257, 0
          %v1324 = vsel %vm498, %v1259, 0
          %v1327 = vsel %vm498, %v1261, 0
          %v1330 = vsel %vm498, %v1263, 0
          %v1333 = vsel %vm498, %v1265, 0
          %v1336 = vsel %vm498, %v1267, 0
          %v1339 = vsel %vm498, %v1269, 0
          %v1342 = vsel %vm498, %v1271, 0
          %v1345 = vsel %vm498, %v1273, 0
          %v1348 = vsel %vm498, %v1275, 0
          %v1351 = vsel %vm498, %v1277, 0
          %v1354 = vsel %vm498, %v1279, 0
          %v1357 = vsel %vm498, %v1281, 0
          %v1359 = vsel %vm498, %v1289, 0
          %1361 = vst [vmem:[#allocation2 + $0x10] sm:$0xff] %v1291
          %1362 = vst [vmem:[#allocation2 + $0x58] sm:$0xff] %v1294
          %1363 = vst [vmem:[#allocation2 + $0xa0] sm:$0xff] %v1297
          %1364 = vst [vmem:[#allocation2 + $0xe8] sm:$0xff] %v1300
          %1365 = vst [vmem:[#allocation2 + $0x130] sm:$0xff] %v1303
          %1366 = vst [vmem:[#allocation2 + $0x178] sm:$0xff] %v1306
          %1367 = vst [vmem:[#allocation2 + $0x1c0] sm:$0xff] %v1309
          %1368 = vst [vmem:[#allocation2 + $0x208] sm:$0xff] %v1312
          %1369 = vst [vmem:[#allocation2 + $0x250] sm:$0xff] %v1315
          %1370 = vst [vmem:[#allocation2 + $0x298] sm:$0xff] %v1318
          %1371 = vst [vmem:[#allocation2 + $0x2e0] sm:$0xff] %v1321
          %1372 = vst [vmem:[#allocation2 + $0x328] sm:$0xff] %v1324
          %1373 = vst [vmem:[#allocation2 + $0x370] sm:$0xff] %v1327
          %1374 = vst [vmem:[#allocation2 + $0x3b8] sm:$0xff] %v1330
          %1375 = vst [vmem:[#allocation2 + $0x400] sm:$0xff] %v1333
          %1376 = vst [vmem:[#allocation2 + $0x448] sm:$0xff] %v1336
          %1377 = vst [vmem:[#allocation2 + $0x490] sm:$0xff] %v1339
          %1378 = vst [vmem:[#allocation2 + $0x4d8] sm:$0xff] %v1342
          %1379 = vst [vmem:[#allocation2 + $0x520] sm:$0xff] %v1345
          %1380 = vst [vmem:[#allocation2 + $0x568] sm:$0xff] %v1348
          %1381 = vst [vmem:[#allocation2 + $0x5b0] sm:$0xff] %v1351
          %1382 = vst [vmem:[#allocation2 + $0x5f8] sm:$0xff] %v1354
          %1383 = vst [vmem:[#allocation2 + $0x640] sm:$0xff] %v1357
          %1384 = vst [vmem:[#allocation2 + $0x688] sm:$0xff] %v1359
          %v1385 = vld [vmem:[%s307 + $0xc] sm:$0xf]
          %v1386 = vld [vmem:[%s307 + $0x10] sm:$0xf]
          %v1387 = vld [vmem:[%s307 + $0x14] sm:$0xf]
          %v1388 = vld [vmem:[%s307 + $0x18] sm:$0xf]
          %v1389 = vld [vmem:[%s307 + $0x1c] sm:$0xf]
          %v1390 = vld [vmem:[%s307 + $0x20] sm:$0xf]
          %v1391 = vld [vmem:[%s307 + $0x24] sm:$0xf]
          %v1392 = vld [vmem:[%s307 + $0x28] sm:$0xf]
          %v1393 = vld [vmem:[%s307 + $0x2c] sm:$0xf]
          %v1394 = vld [vmem:[%s307 + $0x30] sm:$0xf]
          %v1395 = vld [vmem:[%s307 + $0x34] sm:$0xf]
          %v1396 = vld [vmem:[%s307 + $0x38] sm:$0xf]
          %v1397 = vld [vmem:[%s307 + $0x3c] sm:$0xf]
          %v1398 = vld [vmem:[%s307 + $0x40] sm:$0xf]
          %v1399 = vld [vmem:[%s307 + $0x44] sm:$0xf]
          %v1400 = vld [vmem:[%s307 + $0x48] sm:$0xf]
          %v1401 = vld [vmem:[%s307 + $0x4c] sm:$0xf]
          %v1402 = vld [vmem:[%s307 + $0x50] sm:$0xf]
          %v1403 = vld [vmem:[%s307 + $0x54] sm:$0xf]
          %v1404 = vld [vmem:[%s307 + $0x58] sm:$0xf]
          %v1405 = vld [vmem:[%s307 + $0x5c] sm:$0xf]
          %v1406 = vld [vmem:[%s307 + $0x60] sm:$0xf]
          %v1407 = vld [vmem:[%s307 + $0x64] sm:$0xf]
          %v1408 = vld [vmem:[%s307 + $0x68] sm:$0xf]
          %v1409 = vld [vmem:[%s307 + $0x6c] sm:$0xf]
          %v1410 = vld [vmem:[%s307 + $0x70] sm:$0xf]
          %v1411 = vld [vmem:[%s307 + $0x74] sm:$0xf]
          %v1412 = vld [vmem:[%s307 + $0x78] sm:$0xf]
          %v1413 = vld [vmem:[%s307 + $0x7c] sm:$0xf]
          %v1414 = vld [vmem:[%s307 + $0x80] sm:$0xf]
          %v1415 = vld [vmem:[%s307 + $0x84] sm:$0xf]
          %v1416 = vld [vmem:[%s307 + $0x88] sm:$0xf]
          %v1417 = vld [vmem:[%s307 + $0x8c] sm:$0xf]
          %v1418 = vld [vmem:[%s307 + $0x90] sm:$0xf]
          %v1419 = vld [vmem:[%s307 + $0x94] sm:$0xf]
          %v1420 = vld [vmem:[%s307 + $0x98] sm:$0xf]
          %v1421 = vld [vmem:[%s307 + $0x9c] sm:$0xf]
          %v1422 = vld [vmem:[%s307 + $0xa0] sm:$0xf]
          %v1423 = vld [vmem:[%s307 + $0xa4] sm:$0xf]
          %v1424 = vld [vmem:[%s307 + $0xa8] sm:$0xf]
          %v1425 = vld [vmem:[%s307 + $0xac] sm:$0xf]
          %v1426 = vld [vmem:[%s307 + $0xb0] sm:$0xf]
          %v1427 = vld [vmem:[%s307 + $0xb4] sm:$0xf]
          %v1428 = vld [vmem:[%s307 + $0xb8] sm:$0xf]
          %v1429 = vld [vmem:[%s307 + $0xbc] sm:$0xf]
          %v1430 = vld [vmem:[%s321] sm:$0xf]
          %v1431 = vld [vmem:[%s321 + $0x4] sm:$0xf]
          %v1432 = vld [vmem:[%s321 + $0x8] sm:$0xf]
          %v1478 = vunpack.c.l.b16 %v1385
          %v1479 = vunpack.c.l.b16 %v1386
          %v1480 = vunpack.c.l.b16 %v1387
          %v1481 = vunpack.c.l.b16 %v1388
          %v1482 = vunpack.c.l.b16 %v1389
          %v1483 = vunpack.c.l.b16 %v1390
          %v1484 = vunpack.c.l.b16 %v1391
          %v1485 = vunpack.c.l.b16 %v1392
          %v1486 = vunpack.c.l.b16 %v1393
          %v1487 = vunpack.c.l.b16 %v1394
          %v1488 = vunpack.c.l.b16 %v1395
          %v1489 = vunpack.c.l.b16 %v1396
          %v1490 = vunpack.c.l.b16 %v1397
          %v1491 = vunpack.c.l.b16 %v1398
          %v1492 = vunpack.c.l.b16 %v1399
          %v1493 = vunpack.c.l.b16 %v1400
          %v1494 = vunpack.c.l.b16 %v1401
          %v1495 = vunpack.c.l.b16 %v1402
          %v1496 = vunpack.c.l.b16 %v1403
          %v1497 = vunpack.c.l.b16 %v1404
          %v1498 = vunpack.c.l.b16 %v1405
          %v1499 = vunpack.c.l.b16 %v1406
          %v1500 = vunpack.c.l.b16 %v1407
          %v1501 = vunpack.c.l.b16 %v1408
          %v1502 = vunpack.c.l.b16 %v1409
          %v1503 = vunpack.c.l.b16 %v1410
          %v1504 = vunpack.c.l.b16 %v1411
          %v1505 = vunpack.c.l.b16 %v1412
          %v1506 = vunpack.c.l.b16 %v1413
          %v1507 = vunpack.c.l.b16 %v1414
          %v1508 = vunpack.c.l.b16 %v1415
          %v1509 = vunpack.c.l.b16 %v1416
          %v1510 = vunpack.c.l.b16 %v1417
          %v1511 = vunpack.c.l.b16 %v1418
          %v1512 = vunpack.c.l.b16 %v1419
          %v1513 = vunpack.c.l.b16 %v1420
          %v1514 = vunpack.c.l.b16 %v1421
          %v1515 = vunpack.c.l.b16 %v1422
          %v1516 = vunpack.c.l.b16 %v1423
          %v1517 = vunpack.c.l.b16 %v1424
          %v1518 = vunpack.c.l.b16 %v1425
          %v1519 = vunpack.c.l.b16 %v1426
          %v1520 = vunpack.c.l.b16 %v1427
          %v1521 = vunpack.c.l.b16 %v1428
          %v1522 = vunpack.c.l.b16 %v1429
          %v1523 = vpack.c.b16 %v1479, %v1478
          %v1524 = vpack.c.b16 %v1481, %v1480
          %v1525 = vpack.c.b16 %v1483, %v1482
          %v1526 = vpack.c.b16 %v1485, %v1484
          %v1527 = vpack.c.b16 %v1487, %v1486
          %v1528 = vpack.c.b16 %v1489, %v1488
          %v1529 = vpack.c.b16 %v1491, %v1490
          %v1530 = vpack.c.b16 %v1493, %v1492
          %v1531 = vpack.c.b16 %v1495, %v1494
          %v1532 = vpack.c.b16 %v1497, %v1496
          %v1533 = vpack.c.b16 %v1499, %v1498
          %v1534 = vpack.c.b16 %v1501, %v1500
          %v1535 = vpack.c.b16 %v1503, %v1502
          %v1536 = vpack.c.b16 %v1505, %v1504
          %v1537 = vpack.c.b16 %v1507, %v1506
          %v1538 = vpack.c.b16 %v1509, %v1508
          %v1539 = vpack.c.b16 %v1511, %v1510
          %v1540 = vpack.c.b16 %v1513, %v1512
          %v1541 = vpack.c.b16 %v1515, %v1514
          %v1542 = vpack.c.b16 %v1517, %v1516
          %v1543 = vpack.c.b16 %v1519, %v1518
          %v1544 = vpack.c.b16 %v1521, %v1520
          %v1545 = vpack.c.b16 %v1522, %v1522
          %v1549 = vunpack.c.l.b16 %v1430
          %v1550 = vunpack.c.l.b16 %v1431
          %v1551 = vunpack.c.l.b16 %v1432
          %v1552 = vpack.c.b16 %v1549, %v1549
          %v1553 = vpack.c.b16 %v1551, %v1550
          %vm1554 = vcmask 1043456
          %v1557 = vsel %vm1554, %v1545, %v1552
          %v1559 = vsel %vm498, %v1523, 0
          %v1562 = vsel %vm498, %v1524, 0
          %v1565 = vsel %vm498, %v1525, 0
          %v1568 = vsel %vm498, %v1526, 0
          %v1571 = vsel %vm498, %v1527, 0
          %v1574 = vsel %vm498, %v1528, 0
          %v1577 = vsel %vm498, %v1529, 0
          %v1580 = vsel %vm498, %v1530, 0
          %v1583 = vsel %vm498, %v1531, 0
          %v1586 = vsel %vm498, %v1532, 0
          %v1589 = vsel %vm498, %v1533, 0
          %v1592 = vsel %vm498, %v1534, 0
          %v1595 = vsel %vm498, %v1535, 0
          %v1598 = vsel %vm498, %v1536, 0
          %v1601 = vsel %vm498, %v1537, 0
          %v1604 = vsel %vm498, %v1538, 0
          %v1607 = vsel %vm498, %v1539, 0
          %v1610 = vsel %vm498, %v1540, 0
          %v1613 = vsel %vm498, %v1541, 0
          %v1616 = vsel %vm498, %v1542, 0
          %v1619 = vsel %vm498, %v1543, 0
          %v1622 = vsel %vm498, %v1544, 0
          %v1624 = vsel %vm498, %v1557, 0
          %v1627 = vsel %vm498, %v1553, 0
          %1629 = vst [vmem:[#allocation2 + $0x18] sm:$0xff] %v1559
          %1630 = vst [vmem:[#allocation2 + $0x60] sm:$0xff] %v1562
          %1631 = vst [vmem:[#allocation2 + $0xa8] sm:$0xff] %v1565
          %1632 = vst [vmem:[#allocation2 + $0xf0] sm:$0xff] %v1568
          %1633 = vst [vmem:[#allocation2 + $0x138] sm:$0xff] %v1571
          %1634 = vst [vmem:[#allocation2 + $0x180] sm:$0xff] %v1574
          %1635 = vst [vmem:[#allocation2 + $0x1c8] sm:$0xff] %v1577
          %1636 = vst [vmem:[#allocation2 + $0x210] sm:$0xff] %v1580
          %1637 = vst [vmem:[#allocation2 + $0x258] sm:$0xff] %v1583
          %1638 = vst [vmem:[#allocation2 + $0x2a0] sm:$0xff] %v1586
          %1639 = vst [vmem:[#allocation2 + $0x2e8] sm:$0xff] %v1589
          %1640 = vst [vmem:[#allocation2 + $0x330] sm:$0xff] %v1592
          %1641 = vst [vmem:[#allocation2 + $0x378] sm:$0xff] %v1595
          %1642 = vst [vmem:[#allocation2 + $0x3c0] sm:$0xff] %v1598
          %1643 = vst [vmem:[#allocation2 + $0x408] sm:$0xff] %v1601
          %1644 = vst [vmem:[#allocation2 + $0x450] sm:$0xff] %v1604
          %1645 = vst [vmem:[#allocation2 + $0x498] sm:$0xff] %v1607
          %1646 = vst [vmem:[#allocation2 + $0x4e0] sm:$0xff] %v1610
          %1647 = vst [vmem:[#allocation2 + $0x528] sm:$0xff] %v1613
          %1648 = vst [vmem:[#allocation2 + $0x570] sm:$0xff] %v1616
          %1649 = vst [vmem:[#allocation2 + $0x5b8] sm:$0xff] %v1619
          %1650 = vst [vmem:[#allocation2 + $0x600] sm:$0xff] %v1622
          %1651 = vst [vmem:[#allocation2 + $0x648] sm:$0xff] %v1624
          %1652 = vst [vmem:[#allocation2 + $0x690] sm:$0xff] %v1627
          %v1653 = vld [vmem:[%s307 + $0xc] sm:$0xf]
          %v1654 = vld [vmem:[%s307 + $0x10] sm:$0xf]
          %v1655 = vld [vmem:[%s307 + $0x14] sm:$0xf]
          %v1656 = vld [vmem:[%s307 + $0x18] sm:$0xf]
          %v1657 = vld [vmem:[%s307 + $0x1c] sm:$0xf]
          %v1658 = vld [vmem:[%s307 + $0x20] sm:$0xf]
          %v1659 = vld [vmem:[%s307 + $0x24] sm:$0xf]
          %v1660 = vld [vmem:[%s307 + $0x28] sm:$0xf]
          %v1661 = vld [vmem:[%s307 + $0x2c] sm:$0xf]
          %v1662 = vld [vmem:[%s307 + $0x30] sm:$0xf]
          %v1663 = vld [vmem:[%s307 + $0x34] sm:$0xf]
          %v1664 = vld [vmem:[%s307 + $0x38] sm:$0xf]
          %v1665 = vld [vmem:[%s307 + $0x3c] sm:$0xf]
          %v1666 = vld [vmem:[%s307 + $0x40] sm:$0xf]
          %v1667 = vld [vmem:[%s307 + $0x44] sm:$0xf]
          %v1668 = vld [vmem:[%s307 + $0x48] sm:$0xf]
          %v1669 = vld [vmem:[%s307 + $0x4c] sm:$0xf]
          %v1670 = vld [vmem:[%s307 + $0x50] sm:$0xf]
          %v1671 = vld [vmem:[%s307 + $0x54] sm:$0xf]
          %v1672 = vld [vmem:[%s307 + $0x58] sm:$0xf]
          %v1673 = vld [vmem:[%s307 + $0x5c] sm:$0xf]
          %v1674 = vld [vmem:[%s307 + $0x60] sm:$0xf]
          %v1675 = vld [vmem:[%s307 + $0x64] sm:$0xf]
          %v1676 = vld [vmem:[%s307 + $0x68] sm:$0xf]
          %v1677 = vld [vmem:[%s307 + $0x6c] sm:$0xf]
          %v1678 = vld [vmem:[%s307 + $0x70] sm:$0xf]
          %v1679 = vld [vmem:[%s307 + $0x74] sm:$0xf]
          %v1680 = vld [vmem:[%s307 + $0x78] sm:$0xf]
          %v1681 = vld [vmem:[%s307 + $0x7c] sm:$0xf]
          %v1682 = vld [vmem:[%s307 + $0x80] sm:$0xf]
          %v1683 = vld [vmem:[%s307 + $0x84] sm:$0xf]
          %v1684 = vld [vmem:[%s307 + $0x88] sm:$0xf]
          %v1685 = vld [vmem:[%s307 + $0x8c] sm:$0xf]
          %v1686 = vld [vmem:[%s307 + $0x90] sm:$0xf]
          %v1687 = vld [vmem:[%s307 + $0x94] sm:$0xf]
          %v1688 = vld [vmem:[%s307 + $0x98] sm:$0xf]
          %v1689 = vld [vmem:[%s307 + $0x9c] sm:$0xf]
          %v1690 = vld [vmem:[%s307 + $0xa0] sm:$0xf]
          %v1691 = vld [vmem:[%s307 + $0xa4] sm:$0xf]
          %v1692 = vld [vmem:[%s307 + $0xa8] sm:$0xf]
          %v1693 = vld [vmem:[%s307 + $0xac] sm:$0xf]
          %v1694 = vld [vmem:[%s307 + $0xb0] sm:$0xf]
          %v1695 = vld [vmem:[%s307 + $0xb4] sm:$0xf]
          %v1696 = vld [vmem:[%s307 + $0xb8] sm:$0xf]
          %v1697 = vld [vmem:[%s307 + $0xbc] sm:$0xf]
          %v1698 = vld [vmem:[%s321] sm:$0xf]
          %v1699 = vld [vmem:[%s321 + $0x4] sm:$0xf]
          %v1700 = vld [vmem:[%s321 + $0x8] sm:$0xf]
          %v1701 = vld [vmem:[%s321 + $0xc] sm:$0x1]
          %v1747 = vunpack.c.l.b16 %v1653
          %v1748 = vunpack.c.l.b16 %v1654
          %v1749 = vunpack.c.l.b16 %v1655
          %v1750 = vunpack.c.l.b16 %v1656
          %v1751 = vunpack.c.l.b16 %v1657
          %v1752 = vunpack.c.l.b16 %v1658
          %v1753 = vunpack.c.l.b16 %v1659
          %v1754 = vunpack.c.l.b16 %v1660
          %v1755 = vunpack.c.l.b16 %v1661
          %v1756 = vunpack.c.l.b16 %v1662
          %v1757 = vunpack.c.l.b16 %v1663
          %v1758 = vunpack.c.l.b16 %v1664
          %v1759 = vunpack.c.l.b16 %v1665
          %v1760 = vunpack.c.l.b16 %v1666
          %v1761 = vunpack.c.l.b16 %v1667
          %v1762 = vunpack.c.l.b16 %v1668
          %v1763 = vunpack.c.l.b16 %v1669
          %v1764 = vunpack.c.l.b16 %v1670
          %v1765 = vunpack.c.l.b16 %v1671
          %v1766 = vunpack.c.l.b16 %v1672
          %v1767 = vunpack.c.l.b16 %v1673
          %v1768 = vunpack.c.l.b16 %v1674
          %v1769 = vunpack.c.l.b16 %v1675
          %v1770 = vunpack.c.l.b16 %v1676
          %v1771 = vunpack.c.l.b16 %v1677
          %v1772 = vunpack.c.l.b16 %v1678
          %v1773 = vunpack.c.l.b16 %v1679
          %v1774 = vunpack.c.l.b16 %v1680
          %v1775 = vunpack.c.l.b16 %v1681
          %v1776 = vunpack.c.l.b16 %v1682
          %v1777 = vunpack.c.l.b16 %v1683
          %v1778 = vunpack.c.l.b16 %v1684
          %v1779 = vunpack.c.l.b16 %v1685
          %v1780 = vunpack.c.l.b16 %v1686
          %v1781 = vunpack.c.l.b16 %v1687
          %v1782 = vunpack.c.l.b16 %v1688
          %v1783 = vunpack.c.l.b16 %v1689
          %v1784 = vunpack.c.l.b16 %v1690
          %v1785 = vunpack.c.l.b16 %v1691
          %v1786 = vunpack.c.l.b16 %v1692
          %v1787 = vunpack.c.l.b16 %v1693
          %v1788 = vunpack.c.l.b16 %v1694
          %v1789 = vunpack.c.l.b16 %v1695
          %v1790 = vunpack.c.l.b16 %v1696
          %v1791 = vunpack.c.l.b16 %v1697
          %v1792 = vpack.c.b16 %v1748, %v1747
          %v1793 = vpack.c.b16 %v1750, %v1749
          %v1794 = vpack.c.b16 %v1752, %v1751
          %v1795 = vpack.c.b16 %v1754, %v1753
          %v1796 = vpack.c.b16 %v1756, %v1755
          %v1797 = vpack.c.b16 %v1758, %v1757
          %v1798 = vpack.c.b16 %v1760, %v1759
          %v1799 = vpack.c.b16 %v1762, %v1761
          %v1800 = vpack.c.b16 %v1764, %v1763
          %v1801 = vpack.c.b16 %v1766, %v1765
          %v1802 = vpack.c.b16 %v1768, %v1767
          %v1803 = vpack.c.b16 %v1770, %v1769
          %v1804 = vpack.c.b16 %v1772, %v1771
          %v1805 = vpack.c.b16 %v1774, %v1773
          %v1806 = vpack.c.b16 %v1776, %v1775
          %v1807 = vpack.c.b16 %v1778, %v1777
          %v1808 = vpack.c.b16 %v1780, %v1779
          %v1809 = vpack.c.b16 %v1782, %v1781
          %v1810 = vpack.c.b16 %v1784, %v1783
          %v1811 = vpack.c.b16 %v1786, %v1785
          %v1812 = vpack.c.b16 %v1788, %v1787
          %v1813 = vpack.c.b16 %v1790, %v1789
          %v1814 = vpack.c.b16 %v1791, %v1791
          %v1816 = vshrl.u32 %v1792, 16
          %v1818 = vshll.u32 %v1792, 16
          %v1820 = vrot.slane %v1818, 1
          %v1821 = vor.u32 %v1816, %v1820
          %v1823 = vshll.u32 %v1793, 16
          %v1825 = vrot.slane %v1823, 1
          %v1826 = vsel %vm765, %v1821, %v1825
          %v1827 = vshrl.u32 %v1793, 16
          %v1829 = vor.u32 %v1827, %v1825
          %v1831 = vshll.u32 %v1794, 16
          %v1833 = vrot.slane %v1831, 1
          %v1834 = vsel %vm765, %v1829, %v1833
          %v1835 = vshrl.u32 %v1794, 16
          %v1837 = vor.u32 %v1835, %v1833
          %v1839 = vshll.u32 %v1795, 16
          %v1841 = vrot.slane %v1839, 1
          %v1842 = vsel %vm765, %v1837, %v1841
          %v1843 = vshrl.u32 %v1795, 16
          %v1845 = vor.u32 %v1843, %v1841
          %v1847 = vshll.u32 %v1796, 16
          %v1849 = vrot.slane %v1847, 1
          %v1850 = vsel %vm765, %v1845, %v1849
          %v1851 = vshrl.u32 %v1796, 16
          %v1853 = vor.u32 %v1851, %v1849
          %v1855 = vshll.u32 %v1797, 16
          %v1857 = vrot.slane %v1855, 1
          %v1858 = vsel %vm765, %v1853, %v1857
          %v1859 = vshrl.u32 %v1797, 16
          %v1861 = vor.u32 %v1859, %v1857
          %v1863 = vshll.u32 %v1798, 16
          %v1865 = vrot.slane %v1863, 1
          %v1866 = vsel %vm765, %v1861, %v1865
          %v1867 = vshrl.u32 %v1798, 16
          %v1869 = vor.u32 %v1867, %v1865
          %v1871 = vshll.u32 %v1799, 16
          %v1873 = vrot.slane %v1871, 1
          %v1874 = vsel %vm765, %v1869, %v1873
          %v1875 = vshrl.u32 %v1799, 16
          %v1877 = vor.u32 %v1875, %v1873
          %v1879 = vshll.u32 %v1800, 16
          %v1881 = vrot.slane %v1879, 1
          %v1882 = vsel %vm765, %v1877, %v1881
          %v1883 = vshrl.u32 %v1800, 16
          %v1885 = vor.u32 %v1883, %v1881
          %v1887 = vshll.u32 %v1801, 16
          %v1889 = vrot.slane %v1887, 1
          %v1890 = vsel %vm765, %v1885, %v1889
          %v1891 = vshrl.u32 %v1801, 16
          %v1893 = vor.u32 %v1891, %v1889
          %v1895 = vshll.u32 %v1802, 16
          %v1897 = vrot.slane %v1895, 1
          %v1898 = vsel %vm765, %v1893, %v1897
          %v1899 = vshrl.u32 %v1802, 16
          %v1901 = vor.u32 %v1899, %v1897
          %v1903 = vshll.u32 %v1803, 16
          %v1905 = vrot.slane %v1903, 1
          %v1906 = vsel %vm765, %v1901, %v1905
          %v1907 = vshrl.u32 %v1803, 16
          %v1909 = vor.u32 %v1907, %v1905
          %v1911 = vshll.u32 %v1804, 16
          %v1913 = vrot.slane %v1911, 1
          %v1914 = vsel %vm765, %v1909, %v1913
          %v1915 = vshrl.u32 %v1804, 16
          %v1917 = vor.u32 %v1915, %v1913
          %v1919 = vshll.u32 %v1805, 16
          %v1921 = vrot.slane %v1919, 1
          %v1922 = vsel %vm765, %v1917, %v1921
          %v1923 = vshrl.u32 %v1805, 16
          %v1925 = vor.u32 %v1923, %v1921
          %v1927 = vshll.u32 %v1806, 16
          %v1929 = vrot.slane %v1927, 1
          %v1930 = vsel %vm765, %v1925, %v1929
          %v1931 = vshrl.u32 %v1806, 16
          %v1933 = vor.u32 %v1931, %v1929
          %v1935 = vshll.u32 %v1807, 16
          %v1937 = vrot.slane %v1935, 1
          %v1938 = vsel %vm765, %v1933, %v1937
          %v1939 = vshrl.u32 %v1807, 16
          %v1941 = vor.u32 %v1939, %v1937
          %v1943 = vshll.u32 %v1808, 16
          %v1945 = vrot.slane %v1943, 1
          %v1946 = vsel %vm765, %v1941, %v1945
          %v1947 = vshrl.u32 %v1808, 16
          %v1949 = vor.u32 %v1947, %v1945
          %v1951 = vshll.u32 %v1809, 16
          %v1953 = vrot.slane %v1951, 1
          %v1954 = vsel %vm765, %v1949, %v1953
          %v1955 = vshrl.u32 %v1809, 16
          %v1957 = vor.u32 %v1955, %v1953
          %v1959 = vshll.u32 %v1810, 16
          %v1961 = vrot.slane %v1959, 1
          %v1962 = vsel %vm765, %v1957, %v1961
          %v1963 = vshrl.u32 %v1810, 16
          %v1965 = vor.u32 %v1963, %v1961
          %v1967 = vshll.u32 %v1811, 16
          %v1969 = vrot.slane %v1967, 1
          %v1970 = vsel %vm765, %v1965, %v1969
          %v1971 = vshrl.u32 %v1811, 16
          %v1973 = vor.u32 %v1971, %v1969
          %v1975 = vshll.u32 %v1812, 16
          %v1977 = vrot.slane %v1975, 1
          %v1978 = vsel %vm765, %v1973, %v1977
          %v1979 = vshrl.u32 %v1812, 16
          %v1981 = vor.u32 %v1979, %v1977
          %v1983 = vshll.u32 %v1813, 16
          %v1985 = vrot.slane %v1983, 1
          %v1986 = vsel %vm765, %v1981, %v1985
          %v1987 = vshrl.u32 %v1813, 16
          %v1989 = vor.u32 %v1987, %v1985
          %v1991 = vshll.u32 %v1814, 16
          %v1993 = vrot.slane %v1991, 1
          %v1994 = vsel %vm765, %v1989, %v1993
          %v1995 = vshrl.u32 %v1814, 16
          %v1997 = vor.u32 %v1995, %v1993
          %v2003 = vunpack.c.l.b16 %v1698
          %v2004 = vunpack.c.l.b16 %v1699
          %v2005 = vunpack.c.l.b16 %v1700
          %v2006 = vunpack.c.l.b16 %v1701
          %v2007 = vpack.c.b16 %v2004, %v2003
          %v2008 = vpack.c.b16 %v2006, %v2005
          %vm2009 = vsmask.f32 3328
          %v2011 = vshrl.u32 %v2007, 16
          %v2013 = vrot.slane %v2011, 4
          %v2014 = vshll.u32 %v2007, 16
          %v2016 = vrot.slane %v2014, 5
          %v2017 = vor.u32 %v2013, %v2016
          %v2019 = vshrl.u32 %v2008, 16
          %v2021 = vrot.slane %v2019, 4
          %v2022 = vshll.u32 %v2008, 16
          %v2024 = vrot.slane %v2022, 5
          %v2025 = vor.u32 %v2021, %v2024
          %v2026 = vsel %vm2009, %v2017, %v2025
          %vm2028 = vcmask 1043456
          %vm2029 = vmand %vm2028, %vm2009
          %v2030 = vsel %vm2029, %v1997, %v2017
          %v2032 = vsel %vm498, %v1826, 0
          %v2035 = vsel %vm498, %v1834, 0
          %v2038 = vsel %vm498, %v1842, 0
          %v2041 = vsel %vm498, %v1850, 0
          %v2044 = vsel %vm498, %v1858, 0
          %v2047 = vsel %vm498, %v1866, 0
          %v2050 = vsel %vm498, %v1874, 0
          %v2053 = vsel %vm498, %v1882, 0
          %v2056 = vsel %vm498, %v1890, 0
          %v2059 = vsel %vm498, %v1898, 0
          %v2062 = vsel %vm498, %v1906, 0
          %v2065 = vsel %vm498, %v1914, 0
          %v2068 = vsel %vm498, %v1922, 0
          %v2071 = vsel %vm498, %v1930, 0
          %v2074 = vsel %vm498, %v1938, 0
          %v2077 = vsel %vm498, %v1946, 0
          %v2080 = vsel %vm498, %v1954, 0
          %v2083 = vsel %vm498, %v1962, 0
          %v2086 = vsel %vm498, %v1970, 0
          %v2089 = vsel %vm498, %v1978, 0
          %v2092 = vsel %vm498, %v1986, 0
          %v2095 = vsel %vm498, %v1994, 0
          %v2098 = vsel %vm498, %v2030, 0
          %v2101 = vsel %vm498, %v2026, 0
          %2103 = vst [vmem:[#allocation2 + $0x20] sm:$0xff] %v2032
          %2104 = vst [vmem:[#allocation2 + $0x68] sm:$0xff] %v2035
          %2105 = vst [vmem:[#allocation2 + $0xb0] sm:$0xff] %v2038
          %2106 = vst [vmem:[#allocation2 + $0xf8] sm:$0xff] %v2041
          %2107 = vst [vmem:[#allocation2 + $0x140] sm:$0xff] %v2044
          %2108 = vst [vmem:[#allocation2 + $0x188] sm:$0xff] %v2047
          %2109 = vst [vmem:[#allocation2 + $0x1d0] sm:$0xff] %v2050
          %2110 = vst [vmem:[#allocation2 + $0x218] sm:$0xff] %v2053
          %2111 = vst [vmem:[#allocation2 + $0x260] sm:$0xff] %v2056
          %2112 = vst [vmem:[#allocation2 + $0x2a8] sm:$0xff] %v2059
          %2113 = vst [vmem:[#allocation2 + $0x2f0] sm:$0xff] %v2062
          %2114 = vst [vmem:[#allocation2 + $0x338] sm:$0xff] %v2065
          %2115 = vst [vmem:[#allocation2 + $0x380] sm:$0xff] %v2068
          %2116 = vst [vmem:[#allocation2 + $0x3c8] sm:$0xff] %v2071
          %2117 = vst [vmem:[#allocation2 + $0x410] sm:$0xff] %v2074
          %2118 = vst [vmem:[#allocation2 + $0x458] sm:$0xff] %v2077
          %2119 = vst [vmem:[#allocation2 + $0x4a0] sm:$0xff] %v2080
          %2120 = vst [vmem:[#allocation2 + $0x4e8] sm:$0xff] %v2083
          %2121 = vst [vmem:[#allocation2 + $0x530] sm:$0xff] %v2086
          %2122 = vst [vmem:[#allocation2 + $0x578] sm:$0xff] %v2089
          %2123 = vst [vmem:[#allocation2 + $0x5c0] sm:$0xff] %v2092
          %2124 = vst [vmem:[#allocation2 + $0x608] sm:$0xff] %v2095
          %2125 = vst [vmem:[#allocation2 + $0x650] sm:$0xff] %v2098
          %2126 = vst [vmem:[#allocation2 + $0x698] sm:$0xff] %v2101
          %v2127 = vld [vmem:[%s307 + $0xc] sm:$0xe]
          %v2128 = vld [vmem:[%s307 + $0x10] sm:$0xf]
          %v2129 = vld [vmem:[%s307 + $0x14] sm:$0xf]
          %v2130 = vld [vmem:[%s307 + $0x18] sm:$0xf]
          %v2131 = vld [vmem:[%s307 + $0x1c] sm:$0xf]
          %v2132 = vld [vmem:[%s307 + $0x20] sm:$0xf]
          %v2133 = vld [vmem:[%s307 + $0x24] sm:$0xf]
          %v2134 = vld [vmem:[%s307 + $0x28] sm:$0xf]
          %v2135 = vld [vmem:[%s307 + $0x2c] sm:$0xf]
          %v2136 = vld [vmem:[%s307 + $0x30] sm:$0xf]
          %v2137 = vld [vmem:[%s307 + $0x34] sm:$0xf]
          %v2138 = vld [vmem:[%s307 + $0x38] sm:$0xf]
          %v2139 = vld [vmem:[%s307 + $0x3c] sm:$0xf]
          %v2140 = vld [vmem:[%s307 + $0x40] sm:$0xf]
          %v2141 = vld [vmem:[%s307 + $0x44] sm:$0xf]
          %v2142 = vld [vmem:[%s307 + $0x48] sm:$0xf]
          %v2143 = vld [vmem:[%s307 + $0x4c] sm:$0xf]
          %v2144 = vld [vmem:[%s307 + $0x50] sm:$0xf]
          %v2145 = vld [vmem:[%s307 + $0x54] sm:$0xf]
          %v2146 = vld [vmem:[%s307 + $0x58] sm:$0xf]
          %v2147 = vld [vmem:[%s307 + $0x5c] sm:$0xf]
          %v2148 = vld [vmem:[%s307 + $0x60] sm:$0xf]
          %v2149 = vld [vmem:[%s307 + $0x64] sm:$0xf]
          %v2150 = vld [vmem:[%s307 + $0x68] sm:$0xf]
          %v2151 = vld [vmem:[%s307 + $0x6c] sm:$0xf]
          %v2152 = vld [vmem:[%s307 + $0x70] sm:$0xf]
          %v2153 = vld [vmem:[%s307 + $0x74] sm:$0xf]
          %v2154 = vld [vmem:[%s307 + $0x78] sm:$0xf]
          %v2155 = vld [vmem:[%s307 + $0x7c] sm:$0xf]
          %v2156 = vld [vmem:[%s307 + $0x80] sm:$0xf]
          %v2157 = vld [vmem:[%s307 + $0x84] sm:$0xf]
          %v2158 = vld [vmem:[%s307 + $0x88] sm:$0xf]
          %v2159 = vld [vmem:[%s307 + $0x8c] sm:$0xf]
          %v2160 = vld [vmem:[%s307 + $0x90] sm:$0xf]
          %v2161 = vld [vmem:[%s307 + $0x94] sm:$0xf]
          %v2162 = vld [vmem:[%s307 + $0x98] sm:$0xf]
          %v2163 = vld [vmem:[%s307 + $0x9c] sm:$0xf]
          %v2164 = vld [vmem:[%s307 + $0xa0] sm:$0xf]
          %v2165 = vld [vmem:[%s307 + $0xa4] sm:$0xf]
          %v2166 = vld [vmem:[%s307 + $0xa8] sm:$0xf]
          %v2167 = vld [vmem:[%s307 + $0xac] sm:$0xf]
          %v2168 = vld [vmem:[%s307 + $0xb0] sm:$0xf]
          %v2169 = vld [vmem:[%s307 + $0xb4] sm:$0xf]
          %v2170 = vld [vmem:[%s307 + $0xb8] sm:$0xf]
          %v2171 = vld [vmem:[%s307 + $0xbc] sm:$0xf]
          %v2172 = vld [vmem:[%s321] sm:$0xf]
          %v2173 = vld [vmem:[%s321 + $0x4] sm:$0xf]
          %v2174 = vld [vmem:[%s321 + $0x8] sm:$0xf]
          %v2175 = vld [vmem:[%s321 + $0xc] sm:$0x1]
          %v2221 = vunpack.c.l.b16 %v2127
          %v2222 = vunpack.c.l.b16 %v2128
          %v2223 = vunpack.c.l.b16 %v2129
          %v2224 = vunpack.c.l.b16 %v2130
          %v2225 = vunpack.c.l.b16 %v2131
          %v2226 = vunpack.c.l.b16 %v2132
          %v2227 = vunpack.c.l.b16 %v2133
          %v2228 = vunpack.c.l.b16 %v2134
          %v2229 = vunpack.c.l.b16 %v2135
          %v2230 = vunpack.c.l.b16 %v2136
          %v2231 = vunpack.c.l.b16 %v2137
          %v2232 = vunpack.c.l.b16 %v2138
          %v2233 = vunpack.c.l.b16 %v2139
          %v2234 = vunpack.c.l.b16 %v2140
          %v2235 = vunpack.c.l.b16 %v2141
          %v2236 = vunpack.c.l.b16 %v2142
          %v2237 = vunpack.c.l.b16 %v2143
          %v2238 = vunpack.c.l.b16 %v2144
          %v2239 = vunpack.c.l.b16 %v2145
          %v2240 = vunpack.c.l.b16 %v2146
          %v2241 = vunpack.c.l.b16 %v2147
          %v2242 = vunpack.c.l.b16 %v2148
          %v2243 = vunpack.c.l.b16 %v2149
          %v2244 = vunpack.c.l.b16 %v2150
          %v2245 = vunpack.c.l.b16 %v2151
          %v2246 = vunpack.c.l.b16 %v2152
          %v2247 = vunpack.c.l.b16 %v2153
          %v2248 = vunpack.c.l.b16 %v2154
          %v2249 = vunpack.c.l.b16 %v2155
          %v2250 = vunpack.c.l.b16 %v2156
          %v2251 = vunpack.c.l.b16 %v2157
          %v2252 = vunpack.c.l.b16 %v2158
          %v2253 = vunpack.c.l.b16 %v2159
          %v2254 = vunpack.c.l.b16 %v2160
          %v2255 = vunpack.c.l.b16 %v2161
          %v2256 = vunpack.c.l.b16 %v2162
          %v2257 = vunpack.c.l.b16 %v2163
          %v2258 = vunpack.c.l.b16 %v2164
          %v2259 = vunpack.c.l.b16 %v2165
          %v2260 = vunpack.c.l.b16 %v2166
          %v2261 = vunpack.c.l.b16 %v2167
          %v2262 = vunpack.c.l.b16 %v2168
          %v2263 = vunpack.c.l.b16 %v2169
          %v2264 = vunpack.c.l.b16 %v2170
          %v2265 = vunpack.c.l.b16 %v2171
          %v2266 = vpack.c.b16 %v2222, %v2221
          %v2267 = vpack.c.b16 %v2224, %v2223
          %v2268 = vpack.c.b16 %v2226, %v2225
          %v2269 = vpack.c.b16 %v2228, %v2227
          %v2270 = vpack.c.b16 %v2230, %v2229
          %v2271 = vpack.c.b16 %v2232, %v2231
          %v2272 = vpack.c.b16 %v2234, %v2233
          %v2273 = vpack.c.b16 %v2236, %v2235
          %v2274 = vpack.c.b16 %v2238, %v2237
          %v2275 = vpack.c.b16 %v2240, %v2239
          %v2276 = vpack.c.b16 %v2242, %v2241
          %v2277 = vpack.c.b16 %v2244, %v2243
          %v2278 = vpack.c.b16 %v2246, %v2245
          %v2279 = vpack.c.b16 %v2248, %v2247
          %v2280 = vpack.c.b16 %v2250, %v2249
          %v2281 = vpack.c.b16 %v2252, %v2251
          %v2282 = vpack.c.b16 %v2254, %v2253
          %v2283 = vpack.c.b16 %v2256, %v2255
          %v2284 = vpack.c.b16 %v2258, %v2257
          %v2285 = vpack.c.b16 %v2260, %v2259
          %v2286 = vpack.c.b16 %v2262, %v2261
          %v2287 = vpack.c.b16 %v2264, %v2263
          %v2288 = vpack.c.b16 %v2265, %v2265
          %v2289 = vrot.slane %v2266, 1
          %v2290 = vrot.slane %v2267, 1
          %v2291 = vsel %vm1234, %v2289, %v2290
          %v2292 = vrot.slane %v2268, 1
          %v2293 = vsel %vm1234, %v2290, %v2292
          %v2294 = vrot.slane %v2269, 1
          %v2295 = vsel %vm1234, %v2292, %v2294
          %v2296 = vrot.slane %v2270, 1
          %v2297 = vsel %vm1234, %v2294, %v2296
          %v2298 = vrot.slane %v2271, 1
          %v2299 = vsel %vm1234, %v2296, %v2298
          %v2300 = vrot.slane %v2272, 1
          %v2301 = vsel %vm1234, %v2298, %v2300
          %v2302 = vrot.slane %v2273, 1
          %v2303 = vsel %vm1234, %v2300, %v2302
          %v2304 = vrot.slane %v2274, 1
          %v2305 = vsel %vm1234, %v2302, %v2304
          %v2306 = vrot.slane %v2275, 1
          %v2307 = vsel %vm1234, %v2304, %v2306
          %v2308 = vrot.slane %v2276, 1
          %v2309 = vsel %vm1234, %v2306, %v2308
          %v2310 = vrot.slane %v2277, 1
          %v2311 = vsel %vm1234, %v2308, %v2310
          %v2312 = vrot.slane %v2278, 1
          %v2313 = vsel %vm1234, %v2310, %v2312
          %v2314 = vrot.slane %v2279, 1
          %v2315 = vsel %vm1234, %v2312, %v2314
          %v2316 = vrot.slane %v2280, 1
          %v2317 = vsel %vm1234, %v2314, %v2316
          %v2318 = vrot.slane %v2281, 1
          %v2319 = vsel %vm1234, %v2316, %v2318
          %v2320 = vrot.slane %v2282, 1
          %v2321 = vsel %vm1234, %v2318, %v2320
          %v2322 = vrot.slane %v2283, 1
          %v2323 = vsel %vm1234, %v2320, %v2322
          %v2324 = vrot.slane %v2284, 1
          %v2325 = vsel %vm1234, %v2322, %v2324
          %v2326 = vrot.slane %v2285, 1
          %v2327 = vsel %vm1234, %v2324, %v2326
          %v2328 = vrot.slane %v2286, 1
          %v2329 = vsel %vm1234, %v2326, %v2328
          %v2330 = vrot.slane %v2287, 1
          %v2331 = vsel %vm1234, %v2328, %v2330
          %v2332 = vrot.slane %v2288, 1
          %v2333 = vsel %vm1234, %v2330, %v2332
          %v2338 = vunpack.c.l.b16 %v2172
          %v2339 = vunpack.c.l.b16 %v2173
          %v2340 = vunpack.c.l.b16 %v2174
          %v2341 = vunpack.c.l.b16 %v2175
          %v2342 = vpack.c.b16 %v2339, %v2338
          %v2343 = vpack.c.b16 %v2341, %v2340
          %vm2344 = vcmask 1042432
          %v2345 = vrot.slane %v2342, 5
          %v2346 = vrot.slane %v2343, 5
          %v2347 = vsel %vm2344, %v2345, %v2346
          %vm2348 = vcmask 1042432
          %v2351 = vsel %vm2348, %v2332, %v2345
          %v2353 = vsel %vm498, %v2291, 0
          %v2356 = vsel %vm498, %v2293, 0
          %v2359 = vsel %vm498, %v2295, 0
          %v2362 = vsel %vm498, %v2297, 0
          %v2365 = vsel %vm498, %v2299, 0
          %v2368 = vsel %vm498, %v2301, 0
          %v2371 = vsel %vm498, %v2303, 0
          %v2374 = vsel %vm498, %v2305, 0
          %v2377 = vsel %vm498, %v2307, 0
          %v2380 = vsel %vm498, %v2309, 0
          %v2383 = vsel %vm498, %v2311, 0
          %v2386 = vsel %vm498, %v2313, 0
          %v2389 = vsel %vm498, %v2315, 0
          %v2392 = vsel %vm498, %v2317, 0
          %v2395 = vsel %vm498, %v2319, 0
          %v2398 = vsel %vm498, %v2321, 0
          %v2401 = vsel %vm498, %v2323, 0
          %v2404 = vsel %vm498, %v2325, 0
          %v2407 = vsel %vm498, %v2327, 0
          %v2410 = vsel %vm498, %v2329, 0
          %v2413 = vsel %vm498, %v2331, 0
          %v2416 = vsel %vm498, %v2333, 0
          %v2418 = vsel %vm498, %v2351, 0
          %v2421 = vsel %vm498, %v2347, 0
          %2423 = vst [vmem:[#allocation2 + $0x28] sm:$0xff] %v2353
          %2424 = vst [vmem:[#allocation2 + $0x70] sm:$0xff] %v2356
          %2425 = vst [vmem:[#allocation2 + $0xb8] sm:$0xff] %v2359
          %2426 = vst [vmem:[#allocation2 + $0x100] sm:$0xff] %v2362
          %2427 = vst [vmem:[#allocation2 + $0x148] sm:$0xff] %v2365
          %2428 = vst [vmem:[#allocation2 + $0x190] sm:$0xff] %v2368
          %2429 = vst [vmem:[#allocation2 + $0x1d8] sm:$0xff] %v2371
          %2430 = vst [vmem:[#allocation2 + $0x220] sm:$0xff] %v2374
          %2431 = vst [vmem:[#allocation2 + $0x268] sm:$0xff] %v2377
          %2432 = vst [vmem:[#allocation2 + $0x2b0] sm:$0xff] %v2380
          %2433 = vst [vmem:[#allocation2 + $0x2f8] sm:$0xff] %v2383
          %2434 = vst [vmem:[#allocation2 + $0x340] sm:$0xff] %v2386
          %2435 = vst [vmem:[#allocation2 + $0x388] sm:$0xff] %v2389
          %2436 = vst [vmem:[#allocation2 + $0x3d0] sm:$0xff] %v2392
          %2437 = vst [vmem:[#allocation2 + $0x418] sm:$0xff] %v2395
          %2438 = vst [vmem:[#allocation2 + $0x460] sm:$0xff] %v2398
          %2439 = vst [vmem:[#allocation2 + $0x4a8] sm:$0xff] %v2401
          %2440 = vst [vmem:[#allocation2 + $0x4f0] sm:$0xff] %v2404
          %2441 = vst [vmem:[#allocation2 + $0x538] sm:$0xff] %v2407
          %2442 = vst [vmem:[#allocation2 + $0x580] sm:$0xff] %v2410
          %2443 = vst [vmem:[#allocation2 + $0x5c8] sm:$0xff] %v2413
          %2444 = vst [vmem:[#allocation2 + $0x610] sm:$0xff] %v2416
          %2445 = vst [vmem:[#allocation2 + $0x658] sm:$0xff] %v2418
          %2446 = vst [vmem:[#allocation2 + $0x6a0] sm:$0xff] %v2421
          %v2447 = vld [vmem:[%s307 + $0x18] sm:$0xf]
          %v2448 = vld [vmem:[%s307 + $0x1c] sm:$0xf]
          %v2449 = vld [vmem:[%s307 + $0x20] sm:$0xf]
          %v2450 = vld [vmem:[%s307 + $0x24] sm:$0xf]
          %v2451 = vld [vmem:[%s307 + $0x28] sm:$0xf]
          %v2452 = vld [vmem:[%s307 + $0x2c] sm:$0xf]
          %v2453 = vld [vmem:[%s307 + $0x30] sm:$0xf]
          %v2454 = vld [vmem:[%s307 + $0x34] sm:$0xf]
          %v2455 = vld [vmem:[%s307 + $0x38] sm:$0xf]
          %v2456 = vld [vmem:[%s307 + $0x3c] sm:$0xf]
          %v2457 = vld [vmem:[%s307 + $0x40] sm:$0xf]
          %v2458 = vld [vmem:[%s307 + $0x44] sm:$0xf]
          %v2459 = vld [vmem:[%s307 + $0x48] sm:$0xf]
          %v2460 = vld [vmem:[%s307 + $0x4c] sm:$0xf]
          %v2461 = vld [vmem:[%s307 + $0x50] sm:$0xf]
          %v2462 = vld [vmem:[%s307 + $0x54] sm:$0xf]
          %v2463 = vld [vmem:[%s307 + $0x58] sm:$0xf]
          %v2464 = vld [vmem:[%s307 + $0x5c] sm:$0xf]
          %v2465 = vld [vmem:[%s307 + $0x60] sm:$0xf]
          %v2466 = vld [vmem:[%s307 + $0x64] sm:$0xf]
          %v2467 = vld [vmem:[%s307 + $0x68] sm:$0xf]
          %v2468 = vld [vmem:[%s307 + $0x6c] sm:$0xf]
          %v2469 = vld [vmem:[%s307 + $0x70] sm:$0xf]
          %v2470 = vld [vmem:[%s307 + $0x74] sm:$0xf]
          %v2471 = vld [vmem:[%s307 + $0x78] sm:$0xf]
          %v2472 = vld [vmem:[%s307 + $0x7c] sm:$0xf]
          %v2473 = vld [vmem:[%s307 + $0x80] sm:$0xf]
          %v2474 = vld [vmem:[%s307 + $0x84] sm:$0xf]
          %v2475 = vld [vmem:[%s307 + $0x88] sm:$0xf]
          %v2476 = vld [vmem:[%s307 + $0x8c] sm:$0xf]
          %v2477 = vld [vmem:[%s307 + $0x90] sm:$0xf]
          %v2478 = vld [vmem:[%s307 + $0x94] sm:$0xf]
          %v2479 = vld [vmem:[%s307 + $0x98] sm:$0xf]
          %v2480 = vld [vmem:[%s307 + $0x9c] sm:$0xf]
          %v2481 = vld [vmem:[%s307 + $0xa0] sm:$0xf]
          %v2482 = vld [vmem:[%s307 + $0xa4] sm:$0xf]
          %v2483 = vld [vmem:[%s307 + $0xa8] sm:$0xf]
          %v2484 = vld [vmem:[%s307 + $0xac] sm:$0xf]
          %v2485 = vld [vmem:[%s307 + $0xb0] sm:$0xf]
          %v2486 = vld [vmem:[%s307 + $0xb4] sm:$0xf]
          %v2487 = vld [vmem:[%s307 + $0xb8] sm:$0xf]
          %v2488 = vld [vmem:[%s307 + $0xbc] sm:$0xf]
          %v2489 = vld [vmem:[%s321] sm:$0xf]
          %v2490 = vld [vmem:[%s321 + $0x4] sm:$0xf]
          %v2491 = vld [vmem:[%s321 + $0x8] sm:$0xf]
          %v2492 = vld [vmem:[%s321 + $0xc] sm:$0xf]
          %v2493 = vld [vmem:[%s321 + $0x10] sm:$0xf]
          %v2494 = vld [vmem:[%s321 + $0x14] sm:$0xf]
          %v2537 = vunpack.c.l.b16 %v2447
          %v2538 = vunpack.c.l.b16 %v2448
          %v2539 = vunpack.c.l.b16 %v2449
          %v2540 = vunpack.c.l.b16 %v2450
          %v2541 = vunpack.c.l.b16 %v2451
          %v2542 = vunpack.c.l.b16 %v2452
          %v2543 = vunpack.c.l.b16 %v2453
          %v2544 = vunpack.c.l.b16 %v2454
          %v2545 = vunpack.c.l.b16 %v2455
          %v2546 = vunpack.c.l.b16 %v2456
          %v2547 = vunpack.c.l.b16 %v2457
          %v2548 = vunpack.c.l.b16 %v2458
          %v2549 = vunpack.c.l.b16 %v2459
          %v2550 = vunpack.c.l.b16 %v2460
          %v2551 = vunpack.c.l.b16 %v2461
          %v2552 = vunpack.c.l.b16 %v2462
          %v2553 = vunpack.c.l.b16 %v2463
          %v2554 = vunpack.c.l.b16 %v2464
          %v2555 = vunpack.c.l.b16 %v2465
          %v2556 = vunpack.c.l.b16 %v2466
          %v2557 = vunpack.c.l.b16 %v2467
          %v2558 = vunpack.c.l.b16 %v2468
          %v2559 = vunpack.c.l.b16 %v2469
          %v2560 = vunpack.c.l.b16 %v2470
          %v2561 = vunpack.c.l.b16 %v2471
          %v2562 = vunpack.c.l.b16 %v2472
          %v2563 = vunpack.c.l.b16 %v2473
          %v2564 = vunpack.c.l.b16 %v2474
          %v2565 = vunpack.c.l.b16 %v2475
          %v2566 = vunpack.c.l.b16 %v2476
          %v2567 = vunpack.c.l.b16 %v2477
          %v2568 = vunpack.c.l.b16 %v2478
          %v2569 = vunpack.c.l.b16 %v2479
          %v2570 = vunpack.c.l.b16 %v2480
          %v2571 = vunpack.c.l.b16 %v2481
          %v2572 = vunpack.c.l.b16 %v2482
          %v2573 = vunpack.c.l.b16 %v2483
          %v2574 = vunpack.c.l.b16 %v2484
          %v2575 = vunpack.c.l.b16 %v2485
          %v2576 = vunpack.c.l.b16 %v2486
          %v2577 = vunpack.c.l.b16 %v2487
          %v2578 = vunpack.c.l.b16 %v2488
          %v2579 = vpack.c.b16 %v2538, %v2537
          %v2580 = vpack.c.b16 %v2540, %v2539
          %v2581 = vpack.c.b16 %v2542, %v2541
          %v2582 = vpack.c.b16 %v2544, %v2543
          %v2583 = vpack.c.b16 %v2546, %v2545
          %v2584 = vpack.c.b16 %v2548, %v2547
          %v2585 = vpack.c.b16 %v2550, %v2549
          %v2586 = vpack.c.b16 %v2552, %v2551
          %v2587 = vpack.c.b16 %v2554, %v2553
          %v2588 = vpack.c.b16 %v2556, %v2555
          %v2589 = vpack.c.b16 %v2558, %v2557
          %v2590 = vpack.c.b16 %v2560, %v2559
          %v2591 = vpack.c.b16 %v2562, %v2561
          %v2592 = vpack.c.b16 %v2564, %v2563
          %v2593 = vpack.c.b16 %v2566, %v2565
          %v2594 = vpack.c.b16 %v2568, %v2567
          %v2595 = vpack.c.b16 %v2570, %v2569
          %v2596 = vpack.c.b16 %v2572, %v2571
          %v2597 = vpack.c.b16 %v2574, %v2573
          %v2598 = vpack.c.b16 %v2576, %v2575
          %v2599 = vpack.c.b16 %v2578, %v2577
          %v2606 = vunpack.c.l.b16 %v2489
          %v2607 = vunpack.c.l.b16 %v2490
          %v2608 = vunpack.c.l.b16 %v2491
          %v2609 = vunpack.c.l.b16 %v2492
          %v2610 = vunpack.c.l.b16 %v2493
          %v2611 = vunpack.c.l.b16 %v2494
          %v2612 = vpack.c.b16 %v2607, %v2606
          %v2613 = vpack.c.b16 %v2609, %v2608
          %v2614 = vpack.c.b16 %v2611, %v2610
          %v2616 = vsel %vm498, %v2579, 0
          %v2619 = vsel %vm498, %v2580, 0
          %v2622 = vsel %vm498, %v2581, 0
          %v2625 = vsel %vm498, %v2582, 0
          %v2628 = vsel %vm498, %v2583, 0
          %v2631 = vsel %vm498, %v2584, 0
          %v2634 = vsel %vm498, %v2585, 0
          %v2637 = vsel %vm498, %v2586, 0
          %v2640 = vsel %vm498, %v2587, 0
          %v2643 = vsel %vm498, %v2588, 0
          %v2646 = vsel %vm498, %v2589, 0
          %v2649 = vsel %vm498, %v2590, 0
          %v2652 = vsel %vm498, %v2591, 0
          %v2655 = vsel %vm498, %v2592, 0
          %v2658 = vsel %vm498, %v2593, 0
          %v2661 = vsel %vm498, %v2594, 0
          %v2664 = vsel %vm498, %v2595, 0
          %v2667 = vsel %vm498, %v2596, 0
          %v2670 = vsel %vm498, %v2597, 0
          %v2673 = vsel %vm498, %v2598, 0
          %v2676 = vsel %vm498, %v2599, 0
          %v2679 = vsel %vm498, %v2612, 0
          %v2682 = vsel %vm498, %v2613, 0
          %v2685 = vsel %vm498, %v2614, 0
          %2687 = vst [vmem:[#allocation2 + $0x30] sm:$0xff] %v2616
          %2688 = vst [vmem:[#allocation2 + $0x78] sm:$0xff] %v2619
          %2689 = vst [vmem:[#allocation2 + $0xc0] sm:$0xff] %v2622
          %2690 = vst [vmem:[#allocation2 + $0x108] sm:$0xff] %v2625
          %2691 = vst [vmem:[#allocation2 + $0x150] sm:$0xff] %v2628
          %2692 = vst [vmem:[#allocation2 + $0x198] sm:$0xff] %v2631
          %2693 = vst [vmem:[#allocation2 + $0x1e0] sm:$0xff] %v2634
          %2694 = vst [vmem:[#allocation2 + $0x228] sm:$0xff] %v2637
          %2695 = vst [vmem:[#allocation2 + $0x270] sm:$0xff] %v2640
          %2696 = vst [vmem:[#allocation2 + $0x2b8] sm:$0xff] %v2643
          %2697 = vst [vmem:[#allocation2 + $0x300] sm:$0xff] %v2646
          %2698 = vst [vmem:[#allocation2 + $0x348] sm:$0xff] %v2649
          %2699 = vst [vmem:[#allocation2 + $0x390] sm:$0xff] %v2652
          %2700 = vst [vmem:[#allocation2 + $0x3d8] sm:$0xff] %v2655
          %2701 = vst [vmem:[#allocation2 + $0x420] sm:$0xff] %v2658
          %2702 = vst [vmem:[#allocation2 + $0x468] sm:$0xff] %v2661
          %2703 = vst [vmem:[#allocation2 + $0x4b0] sm:$0xff] %v2664
          %2704 = vst [vmem:[#allocation2 + $0x4f8] sm:$0xff] %v2667
          %2705 = vst [vmem:[#allocation2 + $0x540] sm:$0xff] %v2670
          %2706 = vst [vmem:[#allocation2 + $0x588] sm:$0xff] %v2673
          %2707 = vst [vmem:[#allocation2 + $0x5d0] sm:$0xff] %v2676
          %2708 = vst [vmem:[#allocation2 + $0x618] sm:$0xff] %v2679
          %2709 = vst [vmem:[#allocation2 + $0x660] sm:$0xff] %v2682
          %2710 = vst [vmem:[#allocation2 + $0x6a8] sm:$0xff] %v2685
          %v2711 = vld [vmem:[%s307 + $0x18] sm:$0xf]
          %v2712 = vld [vmem:[%s307 + $0x1c] sm:$0xf]
          %v2713 = vld [vmem:[%s307 + $0x20] sm:$0xf]
          %v2714 = vld [vmem:[%s307 + $0x24] sm:$0xf]
          %v2715 = vld [vmem:[%s307 + $0x28] sm:$0xf]
          %v2716 = vld [vmem:[%s307 + $0x2c] sm:$0xf]
          %v2717 = vld [vmem:[%s307 + $0x30] sm:$0xf]
          %v2718 = vld [vmem:[%s307 + $0x34] sm:$0xf]
          %v2719 = vld [vmem:[%s307 + $0x38] sm:$0xf]
          %v2720 = vld [vmem:[%s307 + $0x3c] sm:$0xf]
          %v2721 = vld [vmem:[%s307 + $0x40] sm:$0xf]
          %v2722 = vld [vmem:[%s307 + $0x44] sm:$0xf]
          %v2723 = vld [vmem:[%s307 + $0x48] sm:$0xf]
          %v2724 = vld [vmem:[%s307 + $0x4c] sm:$0xf]
          %v2725 = vld [vmem:[%s307 + $0x50] sm:$0xf]
          %v2726 = vld [vmem:[%s307 + $0x54] sm:$0xf]
          %v2727 = vld [vmem:[%s307 + $0x58] sm:$0xf]
          %v2728 = vld [vmem:[%s307 + $0x5c] sm:$0xf]
          %v2729 = vld [vmem:[%s307 + $0x60] sm:$0xf]
          %v2730 = vld [vmem:[%s307 + $0x64] sm:$0xf]
          %v2731 = vld [vmem:[%s307 + $0x68] sm:$0xf]
          %v2732 = vld [vmem:[%s307 + $0x6c] sm:$0xf]
          %v2733 = vld [vmem:[%s307 + $0x70] sm:$0xf]
          %v2734 = vld [vmem:[%s307 + $0x74] sm:$0xf]
          %v2735 = vld [vmem:[%s307 + $0x78] sm:$0xf]
          %v2736 = vld [vmem:[%s307 + $0x7c] sm:$0xf]
          %v2737 = vld [vmem:[%s307 + $0x80] sm:$0xf]
          %v2738 = vld [vmem:[%s307 + $0x84] sm:$0xf]
          %v2739 = vld [vmem:[%s307 + $0x88] sm:$0xf]
          %v2740 = vld [vmem:[%s307 + $0x8c] sm:$0xf]
          %v2741 = vld [vmem:[%s307 + $0x90] sm:$0xf]
          %v2742 = vld [vmem:[%s307 + $0x94] sm:$0xf]
          %v2743 = vld [vmem:[%s307 + $0x98] sm:$0xf]
          %v2744 = vld [vmem:[%s307 + $0x9c] sm:$0xf]
          %v2745 = vld [vmem:[%s307 + $0xa0] sm:$0xf]
          %v2746 = vld [vmem:[%s307 + $0xa4] sm:$0xf]
          %v2747 = vld [vmem:[%s307 + $0xa8] sm:$0xf]
          %v2748 = vld [vmem:[%s307 + $0xac] sm:$0xf]
          %v2749 = vld [vmem:[%s307 + $0xb0] sm:$0xf]
          %v2750 = vld [vmem:[%s307 + $0xb4] sm:$0xf]
          %v2751 = vld [vmem:[%s307 + $0xb8] sm:$0xf]
          %v2752 = vld [vmem:[%s307 + $0xbc] sm:$0xf]
          %v2753 = vld [vmem:[%s321] sm:$0xf]
          %v2754 = vld [vmem:[%s321 + $0x4] sm:$0xf]
          %v2755 = vld [vmem:[%s321 + $0x8] sm:$0xf]
          %v2756 = vld [vmem:[%s321 + $0xc] sm:$0xf]
          %v2757 = vld [vmem:[%s321 + $0x10] sm:$0xf]
          %v2758 = vld [vmem:[%s321 + $0x14] sm:$0xf]
          %v2759 = vld [vmem:[%s321 + $0x18] sm:$0x1]
          %v2802 = vunpack.c.l.b16 %v2711
          %v2803 = vunpack.c.l.b16 %v2712
          %v2804 = vunpack.c.l.b16 %v2713
          %v2805 = vunpack.c.l.b16 %v2714
          %v2806 = vunpack.c.l.b16 %v2715
          %v2807 = vunpack.c.l.b16 %v2716
          %v2808 = vunpack.c.l.b16 %v2717
          %v2809 = vunpack.c.l.b16 %v2718
          %v2810 = vunpack.c.l.b16 %v2719
          %v2811 = vunpack.c.l.b16 %v2720
          %v2812 = vunpack.c.l.b16 %v2721
          %v2813 = vunpack.c.l.b16 %v2722
          %v2814 = vunpack.c.l.b16 %v2723
          %v2815 = vunpack.c.l.b16 %v2724
          %v2816 = vunpack.c.l.b16 %v2725
          %v2817 = vunpack.c.l.b16 %v2726
          %v2818 = vunpack.c.l.b16 %v2727
          %v2819 = vunpack.c.l.b16 %v2728
          %v2820 = vunpack.c.l.b16 %v2729
          %v2821 = vunpack.c.l.b16 %v2730
          %v2822 = vunpack.c.l.b16 %v2731
          %v2823 = vunpack.c.l.b16 %v2732
          %v2824 = vunpack.c.l.b16 %v2733
          %v2825 = vunpack.c.l.b16 %v2734
          %v2826 = vunpack.c.l.b16 %v2735
          %v2827 = vunpack.c.l.b16 %v2736
          %v2828 = vunpack.c.l.b16 %v2737
          %v2829 = vunpack.c.l.b16 %v2738
          %v2830 = vunpack.c.l.b16 %v2739
          %v2831 = vunpack.c.l.b16 %v2740
          %v2832 = vunpack.c.l.b16 %v2741
          %v2833 = vunpack.c.l.b16 %v2742
          %v2834 = vunpack.c.l.b16 %v2743
          %v2835 = vunpack.c.l.b16 %v2744
          %v2836 = vunpack.c.l.b16 %v2745
          %v2837 = vunpack.c.l.b16 %v2746
          %v2838 = vunpack.c.l.b16 %v2747
          %v2839 = vunpack.c.l.b16 %v2748
          %v2840 = vunpack.c.l.b16 %v2749
          %v2841 = vunpack.c.l.b16 %v2750
          %v2842 = vunpack.c.l.b16 %v2751
          %v2843 = vunpack.c.l.b16 %v2752
          %v2844 = vpack.c.b16 %v2803, %v2802
          %v2845 = vpack.c.b16 %v2805, %v2804
          %v2846 = vpack.c.b16 %v2807, %v2806
          %v2847 = vpack.c.b16 %v2809, %v2808
          %v2848 = vpack.c.b16 %v2811, %v2810
          %v2849 = vpack.c.b16 %v2813, %v2812
          %v2850 = vpack.c.b16 %v2815, %v2814
          %v2851 = vpack.c.b16 %v2817, %v2816
          %v2852 = vpack.c.b16 %v2819, %v2818
          %v2853 = vpack.c.b16 %v2821, %v2820
          %v2854 = vpack.c.b16 %v2823, %v2822
          %v2855 = vpack.c.b16 %v2825, %v2824
          %v2856 = vpack.c.b16 %v2827, %v2826
          %v2857 = vpack.c.b16 %v2829, %v2828
          %v2858 = vpack.c.b16 %v2831, %v2830
          %v2859 = vpack.c.b16 %v2833, %v2832
          %v2860 = vpack.c.b16 %v2835, %v2834
          %v2861 = vpack.c.b16 %v2837, %v2836
          %v2862 = vpack.c.b16 %v2839, %v2838
          %v2863 = vpack.c.b16 %v2841, %v2840
          %v2864 = vpack.c.b16 %v2843, %v2842
          %v2866 = vshrl.u32 %v2844, 16
          %v2868 = vshll.u32 %v2844, 16
          %v2870 = vrot.slane %v2868, 1
          %v2871 = vor.u32 %v2866, %v2870
          %v2873 = vshll.u32 %v2845, 16
          %v2875 = vrot.slane %v2873, 1
          %v2876 = vsel %vm765, %v2871, %v2875
          %v2877 = vshrl.u32 %v2845, 16
          %v2879 = vor.u32 %v2877, %v2875
          %v2881 = vshll.u32 %v2846, 16
          %v2883 = vrot.slane %v2881, 1
          %v2884 = vsel %vm765, %v2879, %v2883
          %v2885 = vshrl.u32 %v2846, 16
          %v2887 = vor.u32 %v2885, %v2883
          %v2889 = vshll.u32 %v2847, 16
          %v2891 = vrot.slane %v2889, 1
          %v2892 = vsel %vm765, %v2887, %v2891
          %v2893 = vshrl.u32 %v2847, 16
          %v2895 = vor.u32 %v2893, %v2891
          %v2897 = vshll.u32 %v2848, 16
          %v2899 = vrot.slane %v2897, 1
          %v2900 = vsel %vm765, %v2895, %v2899
          %v2901 = vshrl.u32 %v2848, 16
          %v2903 = vor.u32 %v2901, %v2899
          %v2905 = vshll.u32 %v2849, 16
          %v2907 = vrot.slane %v2905, 1
          %v2908 = vsel %vm765, %v2903, %v2907
          %v2909 = vshrl.u32 %v2849, 16
          %v2911 = vor.u32 %v2909, %v2907
          %v2913 = vshll.u32 %v2850, 16
          %v2915 = vrot.slane %v2913, 1
          %v2916 = vsel %vm765, %v2911, %v2915
          %v2917 = vshrl.u32 %v2850, 16
          %v2919 = vor.u32 %v2917, %v2915
          %v2921 = vshll.u32 %v2851, 16
          %v2923 = vrot.slane %v2921, 1
          %v2924 = vsel %vm765, %v2919, %v2923
          %v2925 = vshrl.u32 %v2851, 16
          %v2927 = vor.u32 %v2925, %v2923
          %v2929 = vshll.u32 %v2852, 16
          %v2931 = vrot.slane %v2929, 1
          %v2932 = vsel %vm765, %v2927, %v2931
          %v2933 = vshrl.u32 %v2852, 16
          %v2935 = vor.u32 %v2933, %v2931
          %v2937 = vshll.u32 %v2853, 16
          %v2939 = vrot.slane %v2937, 1
          %v2940 = vsel %vm765, %v2935, %v2939
          %v2941 = vshrl.u32 %v2853, 16
          %v2943 = vor.u32 %v2941, %v2939
          %v2945 = vshll.u32 %v2854, 16
          %v2947 = vrot.slane %v2945, 1
          %v2948 = vsel %vm765, %v2943, %v2947
          %v2949 = vshrl.u32 %v2854, 16
          %v2951 = vor.u32 %v2949, %v2947
          %v2953 = vshll.u32 %v2855, 16
          %v2955 = vrot.slane %v2953, 1
          %v2956 = vsel %vm765, %v2951, %v2955
          %v2957 = vshrl.u32 %v2855, 16
          %v2959 = vor.u32 %v2957, %v2955
          %v2961 = vshll.u32 %v2856, 16
          %v2963 = vrot.slane %v2961, 1
          %v2964 = vsel %vm765, %v2959, %v2963
          %v2965 = vshrl.u32 %v2856, 16
          %v2967 = vor.u32 %v2965, %v2963
          %v2969 = vshll.u32 %v2857, 16
          %v2971 = vrot.slane %v2969, 1
          %v2972 = vsel %vm765, %v2967, %v2971
          %v2973 = vshrl.u32 %v2857, 16
          %v2975 = vor.u32 %v2973, %v2971
          %v2977 = vshll.u32 %v2858, 16
          %v2979 = vrot.slane %v2977, 1
          %v2980 = vsel %vm765, %v2975, %v2979
          %v2981 = vshrl.u32 %v2858, 16
          %v2983 = vor.u32 %v2981, %v2979
          %v2985 = vshll.u32 %v2859, 16
          %v2987 = vrot.slane %v2985, 1
          %v2988 = vsel %vm765, %v2983, %v2987
          %v2989 = vshrl.u32 %v2859, 16
          %v2991 = vor.u32 %v2989, %v2987
          %v2993 = vshll.u32 %v2860, 16
          %v2995 = vrot.slane %v2993, 1
          %v2996 = vsel %vm765, %v2991, %v2995
          %v2997 = vshrl.u32 %v2860, 16
          %v2999 = vor.u32 %v2997, %v2995
          %v3001 = vshll.u32 %v2861, 16
          %v3003 = vrot.slane %v3001, 1
          %v3004 = vsel %vm765, %v2999, %v3003
          %v3005 = vshrl.u32 %v2861, 16
          %v3007 = vor.u32 %v3005, %v3003
          %v3009 = vshll.u32 %v2862, 16
          %v3011 = vrot.slane %v3009, 1
          %v3012 = vsel %vm765, %v3007, %v3011
          %v3013 = vshrl.u32 %v2862, 16
          %v3015 = vor.u32 %v3013, %v3011
          %v3017 = vshll.u32 %v2863, 16
          %v3019 = vrot.slane %v3017, 1
          %v3020 = vsel %vm765, %v3015, %v3019
          %v3021 = vshrl.u32 %v2863, 16
          %v3023 = vor.u32 %v3021, %v3019
          %v3025 = vshll.u32 %v2864, 16
          %v3027 = vrot.slane %v3025, 1
          %v3028 = vsel %vm765, %v3023, %v3027
          %v3029 = vshrl.u32 %v2864, 16
          %v3031 = vor.u32 %v3029, %v3027
          %v3040 = vunpack.c.l.b16 %v2753
          %v3041 = vunpack.c.l.b16 %v2754
          %v3042 = vunpack.c.l.b16 %v2755
          %v3043 = vunpack.c.l.b16 %v2756
          %v3044 = vunpack.c.l.b16 %v2757
          %v3045 = vunpack.c.l.b16 %v2758
          %v3046 = vunpack.c.l.b16 %v2759
          %v3047 = vpack.c.b16 %v3041, %v3040
          %v3048 = vpack.c.b16 %v3043, %v3042
          %v3049 = vpack.c.b16 %v3045, %v3044
          %v3050 = vpack.c.b16 %v3046, %v3046
          %v3052 = vshll.u32 %v3047, 16
          %v3054 = vrot.slane %v3052, 1
          %v3055 = vshrl.u32 %v3047, 16
          %v3057 = vor.u32 %v3055, %v3054
          %v3059 = vshll.u32 %v3048, 16
          %v3061 = vrot.slane %v3059, 1
          %v3062 = vsel %vm765, %v3057, %v3061
          %v3063 = vshrl.u32 %v3048, 16
          %v3065 = vor.u32 %v3063, %v3061
          %v3067 = vshll.u32 %v3049, 16
          %v3069 = vrot.slane %v3067, 1
          %v3070 = vsel %vm765, %v3065, %v3069
          %v3071 = vshrl.u32 %v3049, 16
          %v3073 = vor.u32 %v3071, %v3069
          %v3075 = vshll.u32 %v3050, 16
          %v3077 = vrot.slane %v3075, 1
          %v3078 = vsel %vm765, %v3073, %v3077
          %v3080 = vsel %vm967, %v3031, %v3054
          %v3082 = vsel %vm498, %v2876, 0
          %v3085 = vsel %vm498, %v2884, 0
          %v3088 = vsel %vm498, %v2892, 0
          %v3091 = vsel %vm498, %v2900, 0
          %v3094 = vsel %vm498, %v2908, 0
          %v3097 = vsel %vm498, %v2916, 0
          %v3100 = vsel %vm498, %v2924, 0
          %v3103 = vsel %vm498, %v2932, 0
          %v3106 = vsel %vm498, %v2940, 0
          %v3109 = vsel %vm498, %v2948, 0
          %v3112 = vsel %vm498, %v2956, 0
          %v3115 = vsel %vm498, %v2964, 0
          %v3118 = vsel %vm498, %v2972, 0
          %v3121 = vsel %vm498, %v2980, 0
          %v3124 = vsel %vm498, %v2988, 0
          %v3127 = vsel %vm498, %v2996, 0
          %v3130 = vsel %vm498, %v3004, 0
          %v3133 = vsel %vm498, %v3012, 0
          %v3136 = vsel %vm498, %v3020, 0
          %v3139 = vsel %vm498, %v3028, 0
          %v3142 = vsel %vm498, %v3080, 0
          %v3145 = vsel %vm498, %v3062, 0
          %v3148 = vsel %vm498, %v3070, 0
          %v3151 = vsel %vm498, %v3078, 0
          %3153 = vst [vmem:[#allocation2 + $0x38] sm:$0xff] %v3082
          %3154 = vst [vmem:[#allocation2 + $0x80] sm:$0xff] %v3085
          %3155 = vst [vmem:[#allocation2 + $0xc8] sm:$0xff] %v3088
          %3156 = vst [vmem:[#allocation2 + $0x110] sm:$0xff] %v3091
          %3157 = vst [vmem:[#allocation2 + $0x158] sm:$0xff] %v3094
          %3158 = vst [vmem:[#allocation2 + $0x1a0] sm:$0xff] %v3097
          %3159 = vst [vmem:[#allocation2 + $0x1e8] sm:$0xff] %v3100
          %3160 = vst [vmem:[#allocation2 + $0x230] sm:$0xff] %v3103
          %3161 = vst [vmem:[#allocation2 + $0x278] sm:$0xff] %v3106
          %3162 = vst [vmem:[#allocation2 + $0x2c0] sm:$0xff] %v3109
          %3163 = vst [vmem:[#allocation2 + $0x308] sm:$0xff] %v3112
          %3164 = vst [vmem:[#allocation2 + $0x350] sm:$0xff] %v3115
          %3165 = vst [vmem:[#allocation2 + $0x398] sm:$0xff] %v3118
          %3166 = vst [vmem:[#allocation2 + $0x3e0] sm:$0xff] %v3121
          %3167 = vst [vmem:[#allocation2 + $0x428] sm:$0xff] %v3124
          %3168 = vst [vmem:[#allocation2 + $0x470] sm:$0xff] %v3127
          %3169 = vst [vmem:[#allocation2 + $0x4b8] sm:$0xff] %v3130
          %3170 = vst [vmem:[#allocation2 + $0x500] sm:$0xff] %v3133
          %3171 = vst [vmem:[#allocation2 + $0x548] sm:$0xff] %v3136
          %3172 = vst [vmem:[#allocation2 + $0x590] sm:$0xff] %v3139
          %3173 = vst [vmem:[#allocation2 + $0x5d8] sm:$0xff] %v3142
          %3174 = vst [vmem:[#allocation2 + $0x620] sm:$0xff] %v3145
          %3175 = vst [vmem:[#allocation2 + $0x668] sm:$0xff] %v3148
          %3176 = vst [vmem:[#allocation2 + $0x6b0] sm:$0xff] %v3151
          %v3177 = vld [vmem:[%s307 + $0x18] sm:$0xe]
          %v3178 = vld [vmem:[%s307 + $0x1c] sm:$0xf]
          %v3179 = vld [vmem:[%s307 + $0x20] sm:$0xf]
          %v3180 = vld [vmem:[%s307 + $0x24] sm:$0xf]
          %v3181 = vld [vmem:[%s307 + $0x28] sm:$0xf]
          %v3182 = vld [vmem:[%s307 + $0x2c] sm:$0xf]
          %v3183 = vld [vmem:[%s307 + $0x30] sm:$0xf]
          %v3184 = vld [vmem:[%s307 + $0x34] sm:$0xf]
          %v3185 = vld [vmem:[%s307 + $0x38] sm:$0xf]
          %v3186 = vld [vmem:[%s307 + $0x3c] sm:$0xf]
          %v3187 = vld [vmem:[%s307 + $0x40] sm:$0xf]
          %v3188 = vld [vmem:[%s307 + $0x44] sm:$0xf]
          %v3189 = vld [vmem:[%s307 + $0x48] sm:$0xf]
          %v3190 = vld [vmem:[%s307 + $0x4c] sm:$0xf]
          %v3191 = vld [vmem:[%s307 + $0x50] sm:$0xf]
          %v3192 = vld [vmem:[%s307 + $0x54] sm:$0xf]
          %v3193 = vld [vmem:[%s307 + $0x58] sm:$0xf]
          %v3194 = vld [vmem:[%s307 + $0x5c] sm:$0xf]
          %v3195 = vld [vmem:[%s307 + $0x60] sm:$0xf]
          %v3196 = vld [vmem:[%s307 + $0x64] sm:$0xf]
          %v3197 = vld [vmem:[%s307 + $0x68] sm:$0xf]
          %v3198 = vld [vmem:[%s307 + $0x6c] sm:$0xf]
          %v3199 = vld [vmem:[%s307 + $0x70] sm:$0xf]
          %v3200 = vld [vmem:[%s307 + $0x74] sm:$0xf]
          %v3201 = vld [vmem:[%s307 + $0x78] sm:$0xf]
          %v3202 = vld [vmem:[%s307 + $0x7c] sm:$0xf]
          %v3203 = vld [vmem:[%s307 + $0x80] sm:$0xf]
          %v3204 = vld [vmem:[%s307 + $0x84] sm:$0xf]
          %v3205 = vld [vmem:[%s307 + $0x88] sm:$0xf]
          %v3206 = vld [vmem:[%s307 + $0x8c] sm:$0xf]
          %v3207 = vld [vmem:[%s307 + $0x90] sm:$0xf]
          %v3208 = vld [vmem:[%s307 + $0x94] sm:$0xf]
          %v3209 = vld [vmem:[%s307 + $0x98] sm:$0xf]
          %v3210 = vld [vmem:[%s307 + $0x9c] sm:$0xf]
          %v3211 = vld [vmem:[%s307 + $0xa0] sm:$0xf]
          %v3212 = vld [vmem:[%s307 + $0xa4] sm:$0xf]
          %v3213 = vld [vmem:[%s307 + $0xa8] sm:$0xf]
          %v3214 = vld [vmem:[%s307 + $0xac] sm:$0xf]
          %v3215 = vld [vmem:[%s307 + $0xb0] sm:$0xf]
          %v3216 = vld [vmem:[%s307 + $0xb4] sm:$0xf]
          %v3217 = vld [vmem:[%s307 + $0xb8] sm:$0xf]
          %v3218 = vld [vmem:[%s307 + $0xbc] sm:$0xf]
          %v3219 = vld [vmem:[%s321] sm:$0xf]
          %v3220 = vld [vmem:[%s321 + $0x4] sm:$0xf]
          %v3221 = vld [vmem:[%s321 + $0x8] sm:$0xf]
          %v3222 = vld [vmem:[%s321 + $0xc] sm:$0xf]
          %v3223 = vld [vmem:[%s321 + $0x10] sm:$0xf]
          %v3224 = vld [vmem:[%s321 + $0x14] sm:$0xf]
          %v3225 = vld [vmem:[%s321 + $0x18] sm:$0x1]
          %v3268 = vunpack.c.l.b16 %v3177
          %v3269 = vunpack.c.l.b16 %v3178
          %v3270 = vunpack.c.l.b16 %v3179
          %v3271 = vunpack.c.l.b16 %v3180
          %v3272 = vunpack.c.l.b16 %v3181
          %v3273 = vunpack.c.l.b16 %v3182
          %v3274 = vunpack.c.l.b16 %v3183
          %v3275 = vunpack.c.l.b16 %v3184
          %v3276 = vunpack.c.l.b16 %v3185
          %v3277 = vunpack.c.l.b16 %v3186
          %v3278 = vunpack.c.l.b16 %v3187
          %v3279 = vunpack.c.l.b16 %v3188
          %v3280 = vunpack.c.l.b16 %v3189
          %v3281 = vunpack.c.l.b16 %v3190
          %v3282 = vunpack.c.l.b16 %v3191
          %v3283 = vunpack.c.l.b16 %v3192
          %v3284 = vunpack.c.l.b16 %v3193
          %v3285 = vunpack.c.l.b16 %v3194
          %v3286 = vunpack.c.l.b16 %v3195
          %v3287 = vunpack.c.l.b16 %v3196
          %v3288 = vunpack.c.l.b16 %v3197
          %v3289 = vunpack.c.l.b16 %v3198
          %v3290 = vunpack.c.l.b16 %v3199
          %v3291 = vunpack.c.l.b16 %v3200
          %v3292 = vunpack.c.l.b16 %v3201
          %v3293 = vunpack.c.l.b16 %v3202
          %v3294 = vunpack.c.l.b16 %v3203
          %v3295 = vunpack.c.l.b16 %v3204
          %v3296 = vunpack.c.l.b16 %v3205
          %v3297 = vunpack.c.l.b16 %v3206
          %v3298 = vunpack.c.l.b16 %v3207
          %v3299 = vunpack.c.l.b16 %v3208
          %v3300 = vunpack.c.l.b16 %v3209
          %v3301 = vunpack.c.l.b16 %v3210
          %v3302 = vunpack.c.l.b16 %v3211
          %v3303 = vunpack.c.l.b16 %v3212
          %v3304 = vunpack.c.l.b16 %v3213
          %v3305 = vunpack.c.l.b16 %v3214
          %v3306 = vunpack.c.l.b16 %v3215
          %v3307 = vunpack.c.l.b16 %v3216
          %v3308 = vunpack.c.l.b16 %v3217
          %v3309 = vunpack.c.l.b16 %v3218
          %v3310 = vpack.c.b16 %v3269, %v3268
          %v3311 = vpack.c.b16 %v3271, %v3270
          %v3312 = vpack.c.b16 %v3273, %v3272
          %v3313 = vpack.c.b16 %v3275, %v3274
          %v3314 = vpack.c.b16 %v3277, %v3276
          %v3315 = vpack.c.b16 %v3279, %v3278
          %v3316 = vpack.c.b16 %v3281, %v3280
          %v3317 = vpack.c.b16 %v3283, %v3282
          %v3318 = vpack.c.b16 %v3285, %v3284
          %v3319 = vpack.c.b16 %v3287, %v3286
          %v3320 = vpack.c.b16 %v3289, %v3288
          %v3321 = vpack.c.b16 %v3291, %v3290
          %v3322 = vpack.c.b16 %v3293, %v3292
          %v3323 = vpack.c.b16 %v3295, %v3294
          %v3324 = vpack.c.b16 %v3297, %v3296
          %v3325 = vpack.c.b16 %v3299, %v3298
          %v3326 = vpack.c.b16 %v3301, %v3300
          %v3327 = vpack.c.b16 %v3303, %v3302
          %v3328 = vpack.c.b16 %v3305, %v3304
          %v3329 = vpack.c.b16 %v3307, %v3306
          %v3330 = vpack.c.b16 %v3309, %v3308
          %v3331 = vrot.slane %v3310, 1
          %v3332 = vrot.slane %v3311, 1
          %v3333 = vsel %vm1234, %v3331, %v3332
          %v3334 = vrot.slane %v3312, 1
          %v3335 = vsel %vm1234, %v3332, %v3334
          %v3336 = vrot.slane %v3313, 1
          %v3337 = vsel %vm1234, %v3334, %v3336
          %v3338 = vrot.slane %v3314, 1
          %v3339 = vsel %vm1234, %v3336, %v3338
          %v3340 = vrot.slane %v3315, 1
          %v3341 = vsel %vm1234, %v3338, %v3340
          %v3342 = vrot.slane %v3316, 1
          %v3343 = vsel %vm1234, %v3340, %v3342
          %v3344 = vrot.slane %v3317, 1
          %v3345 = vsel %vm1234, %v3342, %v3344
          %v3346 = vrot.slane %v3318, 1
          %v3347 = vsel %vm1234, %v3344, %v3346
          %v3348 = vrot.slane %v3319, 1
          %v3349 = vsel %vm1234, %v3346, %v3348
          %v3350 = vrot.slane %v3320, 1
          %v3351 = vsel %vm1234, %v3348, %v3350
          %v3352 = vrot.slane %v3321, 1
          %v3353 = vsel %vm1234, %v3350, %v3352
          %v3354 = vrot.slane %v3322, 1
          %v3355 = vsel %vm1234, %v3352, %v3354
          %v3356 = vrot.slane %v3323, 1
          %v3357 = vsel %vm1234, %v3354, %v3356
          %v3358 = vrot.slane %v3324, 1
          %v3359 = vsel %vm1234, %v3356, %v3358
          %v3360 = vrot.slane %v3325, 1
          %v3361 = vsel %vm1234, %v3358, %v3360
          %v3362 = vrot.slane %v3326, 1
          %v3363 = vsel %vm1234, %v3360, %v3362
          %v3364 = vrot.slane %v3327, 1
          %v3365 = vsel %vm1234, %v3362, %v3364
          %v3366 = vrot.slane %v3328, 1
          %v3367 = vsel %vm1234, %v3364, %v3366
          %v3368 = vrot.slane %v3329, 1
          %v3369 = vsel %vm1234, %v3366, %v3368
          %v3370 = vrot.slane %v3330, 1
          %v3371 = vsel %vm1234, %v3368, %v3370
          %v3379 = vunpack.c.l.b16 %v3219
          %v3380 = vunpack.c.l.b16 %v3220
          %v3381 = vunpack.c.l.b16 %v3221
          %v3382 = vunpack.c.l.b16 %v3222
          %v3383 = vunpack.c.l.b16 %v3223
          %v3384 = vunpack.c.l.b16 %v3224
          %v3385 = vunpack.c.l.b16 %v3225
          %v3386 = vpack.c.b16 %v3380, %v3379
          %v3387 = vpack.c.b16 %v3382, %v3381
          %v3388 = vpack.c.b16 %v3384, %v3383
          %v3389 = vpack.c.b16 %v3385, %v3385
          %v3390 = vrot.slane %v3386, 1
          %v3391 = vrot.slane %v3387, 1
          %v3392 = vsel %vm1234, %v3390, %v3391
          %v3393 = vrot.slane %v3388, 1
          %v3394 = vsel %vm1234, %v3391, %v3393
          %v3395 = vrot.slane %v3389, 1
          %v3396 = vsel %vm1234, %v3393, %v3395
          %v3399 = vsel %vm1286, %v3370, %v3390
          %v3401 = vsel %vm498, %v3333, 0
          %v3404 = vsel %vm498, %v3335, 0
          %v3407 = vsel %vm498, %v3337, 0
          %v3410 = vsel %vm498, %v3339, 0
          %v3413 = vsel %vm498, %v3341, 0
          %v3416 = vsel %vm498, %v3343, 0
          %v3419 = vsel %vm498, %v3345, 0
          %v3422 = vsel %vm498, %v3347, 0
          %v3425 = vsel %vm498, %v3349, 0
          %v3428 = vsel %vm498, %v3351, 0
          %v3431 = vsel %vm498, %v3353, 0
          %v3434 = vsel %vm498, %v3355, 0
          %v3437 = vsel %vm498, %v3357, 0
          %v3440 = vsel %vm498, %v3359, 0
          %v3443 = vsel %vm498, %v3361, 0
          %v3446 = vsel %vm498, %v3363, 0
          %v3449 = vsel %vm498, %v3365, 0
          %v3452 = vsel %vm498, %v3367, 0
          %v3455 = vsel %vm498, %v3369, 0
          %v3458 = vsel %vm498, %v3371, 0
          %v3460 = vsel %vm498, %v3399, 0
          %v3463 = vsel %vm498, %v3392, 0
          %v3466 = vsel %vm498, %v3394, 0
          %v3469 = vsel %vm498, %v3396, 0
          %3471 = vst [vmem:[#allocation2 + $0x40] sm:$0xff] %v3401
          %3472 = vst [vmem:[#allocation2 + $0x88] sm:$0xff] %v3404
          %3473 = vst [vmem:[#allocation2 + $0xd0] sm:$0xff] %v3407
          %3474 = vst [vmem:[#allocation2 + $0x118] sm:$0xff] %v3410
          %3475 = vst [vmem:[#allocation2 + $0x160] sm:$0xff] %v3413
          %3476 = vst [vmem:[#allocation2 + $0x1a8] sm:$0xff] %v3416
          %3477 = vst [vmem:[#allocation2 + $0x1f0] sm:$0xff] %v3419
          %3478 = vst [vmem:[#allocation2 + $0x238] sm:$0xff] %v3422
          %3479 = vst [vmem:[#allocation2 + $0x280] sm:$0xff] %v3425
          %3480 = vst [vmem:[#allocation2 + $0x2c8] sm:$0xff] %v3428
          %3481 = vst [vmem:[#allocation2 + $0x310] sm:$0xff] %v3431
          %3482 = vst [vmem:[#allocation2 + $0x358] sm:$0xff] %v3434
          %3483 = vst [vmem:[#allocation2 + $0x3a0] sm:$0xff] %v3437
          %3484 = vst [vmem:[#allocation2 + $0x3e8] sm:$0xff] %v3440
          %3485 = vst [vmem:[#allocation2 + $0x430] sm:$0xff] %v3443
          %3486 = vst [vmem:[#allocation2 + $0x478] sm:$0xff] %v3446
          %3487 = vst [vmem:[#allocation2 + $0x4c0] sm:$0xff] %v3449
          %3488 = vst [vmem:[#allocation2 + $0x508] sm:$0xff] %v3452
          %3489 = vst [vmem:[#allocation2 + $0x550] sm:$0xff] %v3455
          %3490 = vst [vmem:[#allocation2 + $0x598] sm:$0xff] %v3458
          %3491 = vst [vmem:[#allocation2 + $0x5e0] sm:$0xff] %v3460
          %3492 = vst [vmem:[#allocation2 + $0x628] sm:$0xff] %v3463
          %3493 = vst [vmem:[#allocation2 + $0x670] sm:$0xff] %v3466
          %3494 = vst [vmem:[#allocation2 + $0x6b8] sm:$0xff] %v3469
        $region44: #{tpu_custom_call.1} parent=35 // pred_fallthru
          _
        %v3495 = vld [vmem:[#allocation2] sm:$0xff]
        %v3496 = vld [vmem:[#allocation2 + $0x8] sm:$0xff]
        %v3497 = vld [vmem:[#allocation2 + $0x10] sm:$0xff]
        %v3498 = vld [vmem:[#allocation2 + $0x18] sm:$0xff]
        %v3499 = vld [vmem:[#allocation2 + $0x20] sm:$0xff]
        %v3500 = vld [vmem:[#allocation2 + $0x28] sm:$0xff]
        %v3501 = vld [vmem:[#allocation2 + $0x30] sm:$0xff]
        %v3502 = vld [vmem:[#allocation2 + $0x38] sm:$0xff]
        %v3503 = vld [vmem:[#allocation2 + $0x40] sm:$0xff]
        %v3504 = vld [vmem:[#allocation2 + $0x48] sm:$0xff]
        %v3505 = vld [vmem:[#allocation2 + $0x50] sm:$0xff]
        %v3506 = vld [vmem:[#allocation2 + $0x58] sm:$0xff]
        %v3507 = vld [vmem:[#allocation2 + $0x60] sm:$0xff]
        %v3508 = vld [vmem:[#allocation2 + $0x68] sm:$0xff]
        %v3509 = vld [vmem:[#allocation2 + $0x70] sm:$0xff]
        %v3510 = vld [vmem:[#allocation2 + $0x78] sm:$0xff]
        %v3511 = vld [vmem:[#allocation2 + $0x80] sm:$0xff]
        %v3512 = vld [vmem:[#allocation2 + $0x88] sm:$0xff]
        %v3513 = vld [vmem:[#allocation2 + $0x90] sm:$0xff]
        %v3514 = vld [vmem:[#allocation2 + $0x98] sm:$0xff]
        %v3515 = vld [vmem:[#allocation2 + $0xa0] sm:$0xff]
        %v3516 = vld [vmem:[#allocation2 + $0xa8] sm:$0xff]
        %v3517 = vld [vmem:[#allocation2 + $0xb0] sm:$0xff]
        %v3518 = vld [vmem:[#allocation2 + $0xb8] sm:$0xff]
        %v3519 = vld [vmem:[#allocation2 + $0xc0] sm:$0xff]
        %v3520 = vld [vmem:[#allocation2 + $0xc8] sm:$0xff]
        %v3521 = vld [vmem:[#allocation2 + $0xd0] sm:$0xff]
        %v3522 = vld [vmem:[#allocation2 + $0xd8] sm:$0xff]
        %v3523 = vld [vmem:[#allocation2 + $0xe0] sm:$0xff]
        %v3524 = vld [vmem:[#allocation2 + $0xe8] sm:$0xff]
        %v3525 = vld [vmem:[#allocation2 + $0xf0] sm:$0xff]
        %v3526 = vld [vmem:[#allocation2 + $0xf8] sm:$0xff]
        %v3527 = vld [vmem:[#allocation2 + $0x100] sm:$0xff]
        %v3528 = vld [vmem:[#allocation2 + $0x108] sm:$0xff]
        %v3529 = vld [vmem:[#allocation2 + $0x110] sm:$0xff]
        %v3530 = vld [vmem:[#allocation2 + $0x118] sm:$0xff]
        %v3531 = vld [vmem:[#allocation2 + $0x120] sm:$0xff]
        %v3532 = vld [vmem:[#allocation2 + $0x128] sm:$0xff]
        %v3533 = vld [vmem:[#allocation2 + $0x130] sm:$0xff]
        %v3534 = vld [vmem:[#allocation2 + $0x138] sm:$0xff]
        %v3535 = vld [vmem:[#allocation2 + $0x140] sm:$0xff]
        %v3536 = vld [vmem:[#allocation2 + $0x148] sm:$0xff]
        %v3537 = vld [vmem:[#allocation2 + $0x150] sm:$0xff]
        %v3538 = vld [vmem:[#allocation2 + $0x158] sm:$0xff]
        %v3539 = vld [vmem:[#allocation2 + $0x160] sm:$0xff]
        %v3540 = vld [vmem:[#allocation2 + $0x168] sm:$0xff]
        %v3541 = vld [vmem:[#allocation2 + $0x170] sm:$0xff]
        %v3542 = vld [vmem:[#allocation2 + $0x178] sm:$0xff]
        %v3543 = vld [vmem:[#allocation2 + $0x180] sm:$0xff]
        %v3544 = vld [vmem:[#allocation2 + $0x188] sm:$0xff]
        %v3545 = vld [vmem:[#allocation2 + $0x190] sm:$0xff]
        %v3546 = vld [vmem:[#allocation2 + $0x198] sm:$0xff]
        %v3547 = vld [vmem:[#allocation2 + $0x1a0] sm:$0xff]
        %v3548 = vld [vmem:[#allocation2 + $0x1a8] sm:$0xff]
        %v3549 = vld [vmem:[#allocation2 + $0x1b0] sm:$0xff]
        %v3550 = vld [vmem:[#allocation2 + $0x1b8] sm:$0xff]
        %v3551 = vld [vmem:[#allocation2 + $0x1c0] sm:$0xff]
        %v3552 = vld [vmem:[#allocation2 + $0x1c8] sm:$0xff]
        %v3553 = vld [vmem:[#allocation2 + $0x1d0] sm:$0xff]
        %v3554 = vld [vmem:[#allocation2 + $0x1d8] sm:$0xff]
        %v3555 = vld [vmem:[#allocation2 + $0x1e0] sm:$0xff]
        %v3556 = vld [vmem:[#allocation2 + $0x1e8] sm:$0xff]
        %v3557 = vld [vmem:[#allocation2 + $0x1f0] sm:$0xff]
        %v3558 = vld [vmem:[#allocation2 + $0x1f8] sm:$0xff]
        %v3559 = vld [vmem:[#allocation2 + $0x200] sm:$0xff]
        %v3560 = vld [vmem:[#allocation2 + $0x208] sm:$0xff]
        %v3561 = vld [vmem:[#allocation2 + $0x210] sm:$0xff]
        %v3562 = vld [vmem:[#allocation2 + $0x218] sm:$0xff]
        %v3563 = vld [vmem:[#allocation2 + $0x220] sm:$0xff]
        %v3564 = vld [vmem:[#allocation2 + $0x228] sm:$0xff]
        %v3565 = vld [vmem:[#allocation2 + $0x230] sm:$0xff]
        %v3566 = vld [vmem:[#allocation2 + $0x238] sm:$0xff]
        %v3567 = vld [vmem:[#allocation2 + $0x240] sm:$0xff]
        %v3568 = vld [vmem:[#allocation2 + $0x248] sm:$0xff]
        %v3569 = vld [vmem:[#allocation2 + $0x250] sm:$0xff]
        %v3570 = vld [vmem:[#allocation2 + $0x258] sm:$0xff]
        %v3571 = vld [vmem:[#allocation2 + $0x260] sm:$0xff]
        %v3572 = vld [vmem:[#allocation2 + $0x268] sm:$0xff]
        %v3573 = vld [vmem:[#allocation2 + $0x270] sm:$0xff]
        %v3574 = vld [vmem:[#allocation2 + $0x278] sm:$0xff]
        %v3575 = vld [vmem:[#allocation2 + $0x280] sm:$0xff]
        %v3576 = vld [vmem:[#allocation2 + $0x288] sm:$0xff]
        %v3577 = vld [vmem:[#allocation2 + $0x290] sm:$0xff]
        %v3578 = vld [vmem:[#allocation2 + $0x298] sm:$0xff]
        %v3579 = vld [vmem:[#allocation2 + $0x2a0] sm:$0xff]
        %v3580 = vld [vmem:[#allocation2 + $0x2a8] sm:$0xff]
        %v3581 = vld [vmem:[#allocation2 + $0x2b0] sm:$0xff]
        %v3582 = vld [vmem:[#allocation2 + $0x2b8] sm:$0xff]
        %v3583 = vld [vmem:[#allocation2 + $0x2c0] sm:$0xff]
        %v3584 = vld [vmem:[#allocation2 + $0x2c8] sm:$0xff]
        %v3585 = vld [vmem:[#allocation2 + $0x2d0] sm:$0xff]
        %v3586 = vld [vmem:[#allocation2 + $0x2d8] sm:$0xff]
        %v3587 = vld [vmem:[#allocation2 + $0x2e0] sm:$0xff]
        %v3588 = vld [vmem:[#allocation2 + $0x2e8] sm:$0xff]
        %v3589 = vld [vmem:[#allocation2 + $0x2f0] sm:$0xff]
        %v3590 = vld [vmem:[#allocation2 + $0x2f8] sm:$0xff]
        %v3591 = vld [vmem:[#allocation2 + $0x300] sm:$0xff]
        %v3592 = vld [vmem:[#allocation2 + $0x308] sm:$0xff]
        %v3593 = vld [vmem:[#allocation2 + $0x310] sm:$0xff]
        %v3594 = vld [vmem:[#allocation2 + $0x318] sm:$0xff]
        %v3595 = vld [vmem:[#allocation2 + $0x320] sm:$0xff]
        %v3596 = vld [vmem:[#allocation2 + $0x328] sm:$0xff]
        %v3597 = vld [vmem:[#allocation2 + $0x330] sm:$0xff]
        %v3598 = vld [vmem:[#allocation2 + $0x338] sm:$0xff]
        %v3599 = vld [vmem:[#allocation2 + $0x340] sm:$0xff]
        %v3600 = vld [vmem:[#allocation2 + $0x348] sm:$0xff]
        %v3601 = vld [vmem:[#allocation2 + $0x350] sm:$0xff]
        %v3602 = vld [vmem:[#allocation2 + $0x358] sm:$0xff]
        %v3603 = vld [vmem:[#allocation2 + $0x360] sm:$0xff]
        %v3604 = vld [vmem:[#allocation2 + $0x368] sm:$0xff]
        %v3605 = vld [vmem:[#allocation2 + $0x370] sm:$0xff]
        %v3606 = vld [vmem:[#allocation2 + $0x378] sm:$0xff]
        %v3607 = vld [vmem:[#allocation2 + $0x380] sm:$0xff]
        %v3608 = vld [vmem:[#allocation2 + $0x388] sm:$0xff]
        %v3609 = vld [vmem:[#allocation2 + $0x390] sm:$0xff]
        %v3610 = vld [vmem:[#allocation2 + $0x398] sm:$0xff]
        %v3611 = vld [vmem:[#allocation2 + $0x3a0] sm:$0xff]
        %v3612 = vld [vmem:[#allocation2 + $0x3a8] sm:$0xff]
        %v3613 = vld [vmem:[#allocation2 + $0x3b0] sm:$0xff]
        %v3614 = vld [vmem:[#allocation2 + $0x3b8] sm:$0xff]
        %v3615 = vld [vmem:[#allocation2 + $0x3c0] sm:$0xff]
        %v3616 = vld [vmem:[#allocation2 + $0x3c8] sm:$0xff]
        %v3617 = vld [vmem:[#allocation2 + $0x3d0] sm:$0xff]
        %v3618 = vld [vmem:[#allocation2 + $0x3d8] sm:$0xff]
        %v3619 = vld [vmem:[#allocation2 + $0x3e0] sm:$0xff]
        %v3620 = vld [vmem:[#allocation2 + $0x3e8] sm:$0xff]
        %v3621 = vld [vmem:[#allocation2 + $0x3f0] sm:$0xff]
        %v3622 = vld [vmem:[#allocation2 + $0x3f8] sm:$0xff]
        %v3623 = vld [vmem:[#allocation2 + $0x400] sm:$0xff]
        %v3624 = vld [vmem:[#allocation2 + $0x408] sm:$0xff]
        %v3625 = vld [vmem:[#allocation2 + $0x410] sm:$0xff]
        %v3626 = vld [vmem:[#allocation2 + $0x418] sm:$0xff]
        %v3627 = vld [vmem:[#allocation2 + $0x420] sm:$0xff]
        %v3628 = vld [vmem:[#allocation2 + $0x428] sm:$0xff]
        %v3629 = vld [vmem:[#allocation2 + $0x430] sm:$0xff]
        %v3630 = vld [vmem:[#allocation2 + $0x438] sm:$0xff]
        %v3631 = vld [vmem:[#allocation2 + $0x440] sm:$0xff]
        %v3632 = vld [vmem:[#allocation2 + $0x448] sm:$0xff]
        %v3633 = vld [vmem:[#allocation2 + $0x450] sm:$0xff]
        %v3634 = vld [vmem:[#allocation2 + $0x458] sm:$0xff]
        %v3635 = vld [vmem:[#allocation2 + $0x460] sm:$0xff]
        %v3636 = vld [vmem:[#allocation2 + $0x468] sm:$0xff]
        %v3637 = vld [vmem:[#allocation2 + $0x470] sm:$0xff]
        %v3638 = vld [vmem:[#allocation2 + $0x478] sm:$0xff]
        %v3639 = vld [vmem:[#allocation2 + $0x480] sm:$0xff]
        %v3640 = vld [vmem:[#allocation2 + $0x488] sm:$0xff]
        %v3641 = vld [vmem:[#allocation2 + $0x490] sm:$0xff]
        %v3642 = vld [vmem:[#allocation2 + $0x498] sm:$0xff]
        %v3643 = vld [vmem:[#allocation2 + $0x4a0] sm:$0xff]
        %v3644 = vld [vmem:[#allocation2 + $0x4a8] sm:$0xff]
        %v3645 = vld [vmem:[#allocation2 + $0x4b0] sm:$0xff]
        %v3646 = vld [vmem:[#allocation2 + $0x4b8] sm:$0xff]
        %v3647 = vld [vmem:[#allocation2 + $0x4c0] sm:$0xff]
        %v3648 = vld [vmem:[#allocation2 + $0x4c8] sm:$0xff]
        %v3649 = vld [vmem:[#allocation2 + $0x4d0] sm:$0xff]
        %v3650 = vld [vmem:[#allocation2 + $0x4d8] sm:$0xff]
        %v3651 = vld [vmem:[#allocation2 + $0x4e0] sm:$0xff]
        %v3652 = vld [vmem:[#allocation2 + $0x4e8] sm:$0xff]
        %v3653 = vld [vmem:[#allocation2 + $0x4f0] sm:$0xff]
        %v3654 = vld [vmem:[#allocation2 + $0x4f8] sm:$0xff]
        %v3655 = vld [vmem:[#allocation2 + $0x500] sm:$0xff]
        %v3656 = vld [vmem:[#allocation2 + $0x508] sm:$0xff]
        %v3657 = vld [vmem:[#allocation2 + $0x510] sm:$0xff]
        %v3658 = vld [vmem:[#allocation2 + $0x518] sm:$0xff]
        %v3659 = vld [vmem:[#allocation2 + $0x520] sm:$0xff]
        %v3660 = vld [vmem:[#allocation2 + $0x528] sm:$0xff]
        %v3661 = vld [vmem:[#allocation2 + $0x530] sm:$0xff]
        %v3662 = vld [vmem:[#allocation2 + $0x538] sm:$0xff]
        %v3663 = vld [vmem:[#allocation2 + $0x540] sm:$0xff]
        %v3664 = vld [vmem:[#allocation2 + $0x548] sm:$0xff]
        %v3665 = vld [vmem:[#allocation2 + $0x550] sm:$0xff]
        %v3666 = vld [vmem:[#allocation2 + $0x558] sm:$0xff]
        %v3667 = vld [vmem:[#allocation2 + $0x560] sm:$0xff]
        %v3668 = vld [vmem:[#allocation2 + $0x568] sm:$0xff]
        %v3669 = vld [vmem:[#allocation2 + $0x570] sm:$0xff]
        %v3670 = vld [vmem:[#allocation2 + $0x578] sm:$0xff]
        %v3671 = vld [vmem:[#allocation2 + $0x580] sm:$0xff]
        %v3672 = vld [vmem:[#allocation2 + $0x588] sm:$0xff]
        %v3673 = vld [vmem:[#allocation2 + $0x590] sm:$0xff]
        %v3674 = vld [vmem:[#allocation2 + $0x598] sm:$0xff]
        %v3675 = vld [vmem:[#allocation2 + $0x5a0] sm:$0xff]
        %v3676 = vld [vmem:[#allocation2 + $0x5a8] sm:$0xff]
        %v3677 = vld [vmem:[#allocation2 + $0x5b0] sm:$0xff]
        %v3678 = vld [vmem:[#allocation2 + $0x5b8] sm:$0xff]
        %v3679 = vld [vmem:[#allocation2 + $0x5c0] sm:$0xff]
        %v3680 = vld [vmem:[#allocation2 + $0x5c8] sm:$0xff]
        %v3681 = vld [vmem:[#allocation2 + $0x5d0] sm:$0xff]
        %v3682 = vld [vmem:[#allocation2 + $0x5d8] sm:$0xff]
        %v3683 = vld [vmem:[#allocation2 + $0x5e0] sm:$0xff]
        %v3684 = vld [vmem:[#allocation2 + $0x5e8] sm:$0xff]
        %v3685 = vld [vmem:[#allocation2 + $0x5f0] sm:$0xff]
        %v3686 = vld [vmem:[#allocation2 + $0x5f8] sm:$0xff]
        %v3687 = vld [vmem:[#allocation2 + $0x600] sm:$0xff]
        %v3688 = vld [vmem:[#allocation2 + $0x608] sm:$0xff]
        %v3689 = vld [vmem:[#allocation2 + $0x610] sm:$0xff]
        %v3690 = vld [vmem:[#allocation2 + $0x618] sm:$0xff]
        %v3691 = vld [vmem:[#allocation2 + $0x620] sm:$0xff]
        %v3692 = vld [vmem:[#allocation2 + $0x628] sm:$0xff]
        %v3693 = vld [vmem:[#allocation2 + $0x630] sm:$0xff]
        %v3694 = vld [vmem:[#allocation2 + $0x638] sm:$0xff]
        %v3695 = vld [vmem:[#allocation2 + $0x640] sm:$0xff]
        %v3696 = vld [vmem:[#allocation2 + $0x648] sm:$0xff]
        %v3697 = vld [vmem:[#allocation2 + $0x650] sm:$0xff]
        %v3698 = vld [vmem:[#allocation2 + $0x658] sm:$0xff]
        %v3699 = vld [vmem:[#allocation2 + $0x660] sm:$0xff]
        %v3700 = vld [vmem:[#allocation2 + $0x668] sm:$0xff]
        %v3701 = vld [vmem:[#allocation2 + $0x670] sm:$0xff]
        %v3702 = vld [vmem:[#allocation2 + $0x678] sm:$0xff]
        %v3703 = vld [vmem:[#allocation2 + $0x680] sm:$0xff]
        %v3704 = vld [vmem:[#allocation2 + $0x688] sm:$0xff]
        %v3705 = vld [vmem:[#allocation2 + $0x690] sm:$0xff]
        %v3706 = vld [vmem:[#allocation2 + $0x698] sm:$0xff]
        %v3707 = vld [vmem:[#allocation2 + $0x6a0] sm:$0xff]
        %v3708 = vld [vmem:[#allocation2 + $0x6a8] sm:$0xff]
        %v3709 = vld [vmem:[#allocation2 + $0x6b0] sm:$0xff]
        %v3710 = vld [vmem:[#allocation2 + $0x6b8] sm:$0xff]
        %v3711 = vld [vmem:[#allocation3] sm:$0xf]
        %v3712 = vld [vmem:[#allocation3 + $0x4] sm:$0xf]
        %v3713 = vld [vmem:[#allocation3 + $0x8] sm:$0xf]
        %v3714 = vld [vmem:[#allocation3 + $0xc] sm:$0xf]
        %v3715 = vld [vmem:[#allocation3 + $0x10] sm:$0xf]
        %v3716 = vld [vmem:[#allocation3 + $0x14] sm:$0xf]
        %v3717 = vld [vmem:[#allocation3 + $0x18] sm:$0xf]
        %v3718 = vld [vmem:[#allocation3 + $0x1c] sm:$0xf]
        %v3719 = vld [vmem:[#allocation3 + $0x20] sm:$0xf]
        %v3720 = vld [vmem:[#allocation3 + $0x24] sm:$0xf]
        %v3721 = vld [vmem:[#allocation3 + $0x28] sm:$0xf]
        %v3722 = vld [vmem:[#allocation3 + $0x2c] sm:$0xf]
        %v3723 = vld [vmem:[#allocation3 + $0x30] sm:$0xf]
        %v3724 = vld [vmem:[#allocation3 + $0x34] sm:$0xf]
        %v3725 = vld [vmem:[#allocation3 + $0x38] sm:$0xf]
        %v3726 = vld [vmem:[#allocation3 + $0x3c] sm:$0xf]
        %v3727 = vld [vmem:[#allocation3 + $0x40] sm:$0xf]
        %v3728 = vld [vmem:[#allocation3 + $0x44] sm:$0xf]
        %v3729 = vld [vmem:[#allocation3 + $0x48] sm:$0xf]
        %v3730 = vld [vmem:[#allocation3 + $0x4c] sm:$0xf]
        %v3731 = vld [vmem:[#allocation3 + $0x50] sm:$0xf]
        %v3732 = vld [vmem:[#allocation3 + $0x54] sm:$0xf]
        %v3733 = vld [vmem:[#allocation3 + $0x58] sm:$0xf]
        %v3734 = vld [vmem:[#allocation3 + $0x5c] sm:$0xf]
        %v3735 = vld [vmem:[#allocation3 + $0x60] sm:$0xf]
        %v3736 = vld [vmem:[#allocation3 + $0x64] sm:$0xf]
        %v3737 = vld [vmem:[#allocation3 + $0x68] sm:$0xf]
        %v3738 = vld [vmem:[#allocation3 + $0x6c] sm:$0xf]
        %v3739 = vld [vmem:[#allocation3 + $0x70] sm:$0xf]
        %v3740 = vld [vmem:[#allocation3 + $0x74] sm:$0xf]
        %v3741 = vld [vmem:[#allocation3 + $0x78] sm:$0xf]
        %v3742 = vld [vmem:[#allocation3 + $0x7c] sm:$0xf]
        %v3743 = vld [vmem:[#allocation3 + $0x80] sm:$0xf]
        %v3744 = vld [vmem:[#allocation3 + $0x84] sm:$0xf]
        %v3745 = vld [vmem:[#allocation3 + $0x88] sm:$0xf]
        %v3746 = vld [vmem:[#allocation3 + $0x8c] sm:$0xf]
        %v3747 = vld [vmem:[#allocation3 + $0x90] sm:$0xf]
        %v3748 = vld [vmem:[#allocation3 + $0x94] sm:$0xf]
        %v3749 = vld [vmem:[#allocation3 + $0x98] sm:$0xf]
        %v3750 = vld [vmem:[#allocation3 + $0x9c] sm:$0xf]
        %v3751 = vld [vmem:[#allocation3 + $0xa0] sm:$0xf]
        %v3752 = vld [vmem:[#allocation3 + $0xa4] sm:$0xf]
        %v3753 = vld [vmem:[#allocation3 + $0xa8] sm:$0xf]
        %v3754 = vld [vmem:[#allocation3 + $0xac] sm:$0xf]
        %v3755 = vld [vmem:[#allocation3 + $0xb0] sm:$0xf]
        %v3756 = vld [vmem:[#allocation3 + $0xb4] sm:$0xf]
        %v3757 = vld [vmem:[#allocation3 + $0xb8] sm:$0xf]
        %v3758 = vld [vmem:[#allocation3 + $0xbc] sm:$0xf]
        %v3759 = vld [vmem:[#allocation3 + $0xc0] sm:$0xf]
        %v3760 = vld [vmem:[#allocation3 + $0xc4] sm:$0xf]
        %v3761 = vld [vmem:[#allocation3 + $0xc8] sm:$0xf]
        %v3762 = vld [vmem:[#allocation3 + $0xcc] sm:$0xf]
        %v3763 = vld [vmem:[#allocation3 + $0xd0] sm:$0xf]
        %v3764 = vld [vmem:[#allocation3 + $0xd4] sm:$0xf]
        %v3765 = vld [vmem:[#allocation3 + $0xd8] sm:$0xf]
        %v3766 = vld [vmem:[#allocation3 + $0xdc] sm:$0xf]
        %v3767 = vld [vmem:[#allocation3 + $0xe0] sm:$0xf]
        %v3768 = vld [vmem:[#allocation3 + $0xe4] sm:$0xf]
        %v3769 = vld [vmem:[#allocation3 + $0xe8] sm:$0xf]
        %v3770 = vld [vmem:[#allocation3 + $0xec] sm:$0xf]
        %v3771 = vld [vmem:[#allocation3 + $0xf0] sm:$0xf]
        %v3772 = vld [vmem:[#allocation3 + $0xf4] sm:$0xf]
        %v3773 = vld [vmem:[#allocation3 + $0xf8] sm:$0xf]
        %v3774 = vld [vmem:[#allocation3 + $0xfc] sm:$0xf]
        %v3775 = vld [vmem:[#allocation3 + $0x100] sm:$0xf]
        %v3776 = vld [vmem:[#allocation3 + $0x104] sm:$0xf]
        %v3777 = vld [vmem:[#allocation3 + $0x108] sm:$0xf]
        %v3778 = vld [vmem:[#allocation3 + $0x10c] sm:$0xf]
        %v3779 = vld [vmem:[#allocation3 + $0x110] sm:$0xf]
        %v3780 = vld [vmem:[#allocation3 + $0x114] sm:$0xf]
        %v3781 = vld [vmem:[#allocation3 + $0x118] sm:$0xf]
        %v3782 = vld [vmem:[#allocation3 + $0x11c] sm:$0xf]
        %v3783 = vld [vmem:[#allocation3 + $0x120] sm:$0xf]
        %v3784 = vld [vmem:[#allocation3 + $0x124] sm:$0xf]
        %v3785 = vld [vmem:[#allocation3 + $0x128] sm:$0xf]
        %v3786 = vld [vmem:[#allocation3 + $0x12c] sm:$0xf]
        %v3787 = vld [vmem:[#allocation3 + $0x130] sm:$0xf]
        %v3788 = vld [vmem:[#allocation3 + $0x134] sm:$0xf]
        %v3789 = vld [vmem:[#allocation3 + $0x138] sm:$0xf]
        %v3790 = vld [vmem:[#allocation3 + $0x13c] sm:$0xf]
        %v3791 = vld [vmem:[#allocation3 + $0x140] sm:$0xf]
        %v3792 = vld [vmem:[#allocation3 + $0x144] sm:$0xf]
        %v3793 = vld [vmem:[#allocation3 + $0x148] sm:$0xf]
        %v3794 = vld [vmem:[#allocation3 + $0x14c] sm:$0xf]
        %v3795 = vld [vmem:[#allocation3 + $0x150] sm:$0xf]
        %v3796 = vld [vmem:[#allocation3 + $0x154] sm:$0xf]
        %v3797 = vld [vmem:[#allocation3 + $0x158] sm:$0xf]
        %v3798 = vld [vmem:[#allocation3 + $0x15c] sm:$0xf]
        %v3799 = vld [vmem:[#allocation3 + $0x160] sm:$0xf]
        %v3800 = vld [vmem:[#allocation3 + $0x164] sm:$0xf]
        %v3801 = vld [vmem:[#allocation3 + $0x168] sm:$0xf]
        %v3802 = vld [vmem:[#allocation3 + $0x16c] sm:$0xf]
        %v3803 = vld [vmem:[#allocation3 + $0x170] sm:$0xf]
        %v3804 = vld [vmem:[#allocation3 + $0x174] sm:$0xf]
        %v3805 = vld [vmem:[#allocation3 + $0x178] sm:$0xf]
        %v3806 = vld [vmem:[#allocation3 + $0x17c] sm:$0xf]
        %v3807 = vld [vmem:[#allocation3 + $0x180] sm:$0xf]
        %v3808 = vld [vmem:[#allocation3 + $0x184] sm:$0xf]
        %v3809 = vld [vmem:[#allocation3 + $0x188] sm:$0xf]
        %v3810 = vld [vmem:[#allocation3 + $0x18c] sm:$0xf]
        %v3811 = vld [vmem:[#allocation3 + $0x190] sm:$0xf]
        %v3812 = vld [vmem:[#allocation3 + $0x194] sm:$0xf]
        %v3813 = vld [vmem:[#allocation3 + $0x198] sm:$0xf]
        %v3814 = vld [vmem:[#allocation3 + $0x19c] sm:$0xf]
        %v3815 = vld [vmem:[#allocation3 + $0x1a0] sm:$0xf]
        %v3816 = vld [vmem:[#allocation3 + $0x1a4] sm:$0xf]
        %v3817 = vld [vmem:[#allocation3 + $0x1a8] sm:$0xf]
        %v3818 = vld [vmem:[#allocation3 + $0x1ac] sm:$0xf]
        %v3819 = vld [vmem:[#allocation3 + $0x1b0] sm:$0xf]
        %v3820 = vld [vmem:[#allocation3 + $0x1b4] sm:$0xf]
        %v3821 = vld [vmem:[#allocation3 + $0x1b8] sm:$0xf]
        %v3822 = vld [vmem:[#allocation3 + $0x1bc] sm:$0xf]
        %v3823 = vld [vmem:[#allocation3 + $0x1c0] sm:$0xf]
        %v3824 = vld [vmem:[#allocation3 + $0x1c4] sm:$0xf]
        %v3825 = vld [vmem:[#allocation3 + $0x1c8] sm:$0xf]
        %v3826 = vld [vmem:[#allocation3 + $0x1cc] sm:$0xf]
        %v3827 = vld [vmem:[#allocation3 + $0x1d0] sm:$0xf]
        %v3828 = vld [vmem:[#allocation3 + $0x1d4] sm:$0xf]
        %v3829 = vld [vmem:[#allocation3 + $0x1d8] sm:$0xf]
        %v3830 = vld [vmem:[#allocation3 + $0x1dc] sm:$0xf]
        %v3831 = vld [vmem:[#allocation3 + $0x1e0] sm:$0xf]
        %v3832 = vld [vmem:[#allocation3 + $0x1e4] sm:$0xf]
        %v3833 = vld [vmem:[#allocation3 + $0x1e8] sm:$0xf]
        %v3834 = vld [vmem:[#allocation3 + $0x1ec] sm:$0xf]
        %v3835 = vld [vmem:[#allocation3 + $0x1f0] sm:$0xf]
        %v3836 = vld [vmem:[#allocation3 + $0x1f4] sm:$0xf]
        %v3837 = vld [vmem:[#allocation3 + $0x1f8] sm:$0xf]
        %v3838 = vld [vmem:[#allocation3 + $0x1fc] sm:$0xf]
        %v3839 = vld [vmem:[#allocation3 + $0x200] sm:$0xf]
        %v3840 = vld [vmem:[#allocation3 + $0x204] sm:$0xf]
        %v3841 = vld [vmem:[#allocation3 + $0x208] sm:$0xf]
        %v3842 = vld [vmem:[#allocation3 + $0x20c] sm:$0xf]
        %v3843 = vld [vmem:[#allocation3 + $0x210] sm:$0xf]
        %v3844 = vld [vmem:[#allocation3 + $0x214] sm:$0xf]
        %v3845 = vld [vmem:[#allocation3 + $0x218] sm:$0xf]
        %v3846 = vld [vmem:[#allocation3 + $0x21c] sm:$0xf]
        %v3847 = vld [vmem:[#allocation3 + $0x220] sm:$0xf]
        %v3848 = vld [vmem:[#allocation3 + $0x224] sm:$0xf]
        %v3849 = vld [vmem:[#allocation3 + $0x228] sm:$0xf]
        %v3850 = vld [vmem:[#allocation3 + $0x22c] sm:$0xf]
        %v3851 = vld [vmem:[#allocation3 + $0x230] sm:$0xf]
        %v3852 = vld [vmem:[#allocation3 + $0x234] sm:$0xf]
        %v3853 = vld [vmem:[#allocation3 + $0x238] sm:$0xf]
        %v3854 = vld [vmem:[#allocation3 + $0x23c] sm:$0xf]
        %v3855 = vld [vmem:[%s324] sm:$0x1]
        %v3857 = vlaneseq
        %v3858 = vshrl.u32 %v3857, 7
        %v3859 = vsub.s32 0, %v3858
        %v3860 = vrot.slane %v3855, %v3859
        %v4006 = vunpack.c.l.b16 %v3711
        %v4007 = vunpack.c.l.b16 %v3712
        %v4008 = vunpack.c.l.b16 %v3713
        %v4009 = vunpack.c.l.b16 %v3714
        %v4010 = vunpack.c.l.b16 %v3715
        %v4011 = vunpack.c.l.b16 %v3716
        %v4012 = vunpack.c.l.b16 %v3717
        %v4013 = vunpack.c.l.b16 %v3718
        %v4014 = vunpack.c.l.b16 %v3719
        %v4015 = vunpack.c.l.b16 %v3720
        %v4016 = vunpack.c.l.b16 %v3721
        %v4017 = vunpack.c.l.b16 %v3722
        %v4018 = vunpack.c.l.b16 %v3723
        %v4019 = vunpack.c.l.b16 %v3724
        %v4020 = vunpack.c.l.b16 %v3725
        %v4021 = vunpack.c.l.b16 %v3726
        %v4022 = vunpack.c.l.b16 %v3727
        %v4023 = vunpack.c.l.b16 %v3728
        %v4024 = vunpack.c.l.b16 %v3729
        %v4025 = vunpack.c.l.b16 %v3730
        %v4026 = vunpack.c.l.b16 %v3731
        %v4027 = vunpack.c.l.b16 %v3732
        %v4028 = vunpack.c.l.b16 %v3733
        %v4029 = vunpack.c.l.b16 %v3734
        %v4030 = vunpack.c.l.b16 %v3735
        %v4031 = vunpack.c.l.b16 %v3736
        %v4032 = vunpack.c.l.b16 %v3737
        %v4033 = vunpack.c.l.b16 %v3738
        %v4034 = vunpack.c.l.b16 %v3739
        %v4035 = vunpack.c.l.b16 %v3740
        %v4036 = vunpack.c.l.b16 %v3741
        %v4037 = vunpack.c.l.b16 %v3742
        %v4038 = vunpack.c.l.b16 %v3743
        %v4039 = vunpack.c.l.b16 %v3744
        %v4040 = vunpack.c.l.b16 %v3745
        %v4041 = vunpack.c.l.b16 %v3746
        %v4042 = vunpack.c.l.b16 %v3747
        %v4043 = vunpack.c.l.b16 %v3748
        %v4044 = vunpack.c.l.b16 %v3749
        %v4045 = vunpack.c.l.b16 %v3750
        %v4046 = vunpack.c.l.b16 %v3751
        %v4047 = vunpack.c.l.b16 %v3752
        %v4048 = vunpack.c.l.b16 %v3753
        %v4049 = vunpack.c.l.b16 %v3754
        %v4050 = vunpack.c.l.b16 %v3755
        %v4051 = vunpack.c.l.b16 %v3756
        %v4052 = vunpack.c.l.b16 %v3757
        %v4053 = vunpack.c.l.b16 %v3758
        %v4054 = vunpack.c.l.b16 %v3759
        %v4055 = vunpack.c.l.b16 %v3760
        %v4056 = vunpack.c.l.b16 %v3761
        %v4057 = vunpack.c.l.b16 %v3762
        %v4058 = vunpack.c.l.b16 %v3763
        %v4059 = vunpack.c.l.b16 %v3764
        %v4060 = vunpack.c.l.b16 %v3765
        %v4061 = vunpack.c.l.b16 %v3766
        %v4062 = vunpack.c.l.b16 %v3767
        %v4063 = vunpack.c.l.b16 %v3768
        %v4064 = vunpack.c.l.b16 %v3769
        %v4065 = vunpack.c.l.b16 %v3770
        %v4066 = vunpack.c.l.b16 %v3771
        %v4067 = vunpack.c.l.b16 %v3772
        %v4068 = vunpack.c.l.b16 %v3773
        %v4069 = vunpack.c.l.b16 %v3774
        %v4070 = vunpack.c.l.b16 %v3775
        %v4071 = vunpack.c.l.b16 %v3776
        %v4072 = vunpack.c.l.b16 %v3777
        %v4073 = vunpack.c.l.b16 %v3778
        %v4074 = vunpack.c.l.b16 %v3779
        %v4075 = vunpack.c.l.b16 %v3780
        %v4076 = vunpack.c.l.b16 %v3781
        %v4077 = vunpack.c.l.b16 %v3782
        %v4078 = vunpack.c.l.b16 %v3783
        %v4079 = vunpack.c.l.b16 %v3784
        %v4080 = vunpack.c.l.b16 %v3785
        %v4081 = vunpack.c.l.b16 %v3786
        %v4082 = vunpack.c.l.b16 %v3787
        %v4083 = vunpack.c.l.b16 %v3788
        %v4084 = vunpack.c.l.b16 %v3789
        %v4085 = vunpack.c.l.b16 %v3790
        %v4086 = vunpack.c.l.b16 %v3791
        %v4087 = vunpack.c.l.b16 %v3792
        %v4088 = vunpack.c.l.b16 %v3793
        %v4089 = vunpack.c.l.b16 %v3794
        %v4090 = vunpack.c.l.b16 %v3795
        %v4091 = vunpack.c.l.b16 %v3796
        %v4092 = vunpack.c.l.b16 %v3797
        %v4093 = vunpack.c.l.b16 %v3798
        %v4094 = vunpack.c.l.b16 %v3799
        %v4095 = vunpack.c.l.b16 %v3800
        %v4096 = vunpack.c.l.b16 %v3801
        %v4097 = vunpack.c.l.b16 %v3802
        %v4098 = vunpack.c.l.b16 %v3803
        %v4099 = vunpack.c.l.b16 %v3804
        %v4100 = vunpack.c.l.b16 %v3805
        %v4101 = vunpack.c.l.b16 %v3806
        %v4102 = vunpack.c.l.b16 %v3807
        %v4103 = vunpack.c.l.b16 %v3808
        %v4104 = vunpack.c.l.b16 %v3809
        %v4105 = vunpack.c.l.b16 %v3810
        %v4106 = vunpack.c.l.b16 %v3811
        %v4107 = vunpack.c.l.b16 %v3812
        %v4108 = vunpack.c.l.b16 %v3813
        %v4109 = vunpack.c.l.b16 %v3814
        %v4110 = vunpack.c.l.b16 %v3815
        %v4111 = vunpack.c.l.b16 %v3816
        %v4112 = vunpack.c.l.b16 %v3817
        %v4113 = vunpack.c.l.b16 %v3818
        %v4114 = vunpack.c.l.b16 %v3819
        %v4115 = vunpack.c.l.b16 %v3820
        %v4116 = vunpack.c.l.b16 %v3821
        %v4117 = vunpack.c.l.b16 %v3822
        %v4118 = vunpack.c.l.b16 %v3823
        %v4119 = vunpack.c.l.b16 %v3824
        %v4120 = vunpack.c.l.b16 %v3825
        %v4121 = vunpack.c.l.b16 %v3826
        %v4122 = vunpack.c.l.b16 %v3827
        %v4123 = vunpack.c.l.b16 %v3828
        %v4124 = vunpack.c.l.b16 %v3829
        %v4125 = vunpack.c.l.b16 %v3830
        %v4126 = vunpack.c.l.b16 %v3831
        %v4127 = vunpack.c.l.b16 %v3832
        %v4128 = vunpack.c.l.b16 %v3833
        %v4129 = vunpack.c.l.b16 %v3834
        %v4130 = vunpack.c.l.b16 %v3835
        %v4131 = vunpack.c.l.b16 %v3836
        %v4132 = vunpack.c.l.b16 %v3837
        %v4133 = vunpack.c.l.b16 %v3838
        %v4134 = vunpack.c.l.b16 %v3839
        %v4135 = vunpack.c.l.b16 %v3840
        %v4136 = vunpack.c.l.b16 %v3841
        %v4137 = vunpack.c.l.b16 %v3842
        %v4138 = vunpack.c.l.b16 %v3843
        %v4139 = vunpack.c.l.b16 %v3844
        %v4140 = vunpack.c.l.b16 %v3845
        %v4141 = vunpack.c.l.b16 %v3846
        %v4142 = vunpack.c.l.b16 %v3847
        %v4143 = vunpack.c.l.b16 %v3848
        %v4144 = vunpack.c.l.b16 %v3849
        %v4145 = vunpack.c.l.b16 %v3850
        %v4146 = vunpack.c.l.b16 %v3851
        %v4147 = vunpack.c.l.b16 %v3852
        %v4148 = vunpack.c.l.b16 %v3853
        %v4149 = vunpack.c.l.b16 %v3854
        %v4150 = vpack.c.b16 %v4007, %v4006
        %v4151 = vpack.c.b16 %v4009, %v4008
        %v4152 = vpack.c.b16 %v4011, %v4010
        %v4153 = vpack.c.b16 %v4013, %v4012
        %v4154 = vpack.c.b16 %v4015, %v4014
        %v4155 = vpack.c.b16 %v4017, %v4016
        %v4156 = vpack.c.b16 %v4019, %v4018
        %v4157 = vpack.c.b16 %v4021, %v4020
        %v4158 = vpack.c.b16 %v4023, %v4022
        %v4159 = vpack.c.b16 %v4025, %v4024
        %v4160 = vpack.c.b16 %v4027, %v4026
        %v4161 = vpack.c.b16 %v4029, %v4028
        %v4162 = vpack.c.b16 %v4031, %v4030
        %v4163 = vpack.c.b16 %v4033, %v4032
        %v4164 = vpack.c.b16 %v4035, %v4034
        %v4165 = vpack.c.b16 %v4037, %v4036
        %v4166 = vpack.c.b16 %v4039, %v4038
        %v4167 = vpack.c.b16 %v4041, %v4040
        %v4168 = vpack.c.b16 %v4043, %v4042
        %v4169 = vpack.c.b16 %v4045, %v4044
        %v4170 = vpack.c.b16 %v4047, %v4046
        %v4171 = vpack.c.b16 %v4049, %v4048
        %v4172 = vpack.c.b16 %v4051, %v4050
        %v4173 = vpack.c.b16 %v4053, %v4052
        %v4174 = vpack.c.b16 %v4055, %v4054
        %v4175 = vpack.c.b16 %v4057, %v4056
        %v4176 = vpack.c.b16 %v4059, %v4058
        %v4177 = vpack.c.b16 %v4061, %v4060
        %v4178 = vpack.c.b16 %v4063, %v4062
        %v4179 = vpack.c.b16 %v4065, %v4064
        %v4180 = vpack.c.b16 %v4067, %v4066
        %v4181 = vpack.c.b16 %v4069, %v4068
        %v4182 = vpack.c.b16 %v4071, %v4070
        %v4183 = vpack.c.b16 %v4073, %v4072
        %v4184 = vpack.c.b16 %v4075, %v4074
        %v4185 = vpack.c.b16 %v4077, %v4076
        %v4186 = vpack.c.b16 %v4079, %v4078
        %v4187 = vpack.c.b16 %v4081, %v4080
        %v4188 = vpack.c.b16 %v4083, %v4082
        %v4189 = vpack.c.b16 %v4085, %v4084
        %v4190 = vpack.c.b16 %v4087, %v4086
        %v4191 = vpack.c.b16 %v4089, %v4088
        %v4192 = vpack.c.b16 %v4091, %v4090
        %v4193 = vpack.c.b16 %v4093, %v4092
        %v4194 = vpack.c.b16 %v4095, %v4094
        %v4195 = vpack.c.b16 %v4097, %v4096
        %v4196 = vpack.c.b16 %v4099, %v4098
        %v4197 = vpack.c.b16 %v4101, %v4100
        %v4198 = vpack.c.b16 %v4103, %v4102
        %v4199 = vpack.c.b16 %v4105, %v4104
        %v4200 = vpack.c.b16 %v4107, %v4106
        %v4201 = vpack.c.b16 %v4109, %v4108
        %v4202 = vpack.c.b16 %v4111, %v4110
        %v4203 = vpack.c.b16 %v4113, %v4112
        %v4204 = vpack.c.b16 %v4115, %v4114
        %v4205 = vpack.c.b16 %v4117, %v4116
        %v4206 = vpack.c.b16 %v4119, %v4118
        %v4207 = vpack.c.b16 %v4121, %v4120
        %v4208 = vpack.c.b16 %v4123, %v4122
        %v4209 = vpack.c.b16 %v4125, %v4124
        %v4210 = vpack.c.b16 %v4127, %v4126
        %v4211 = vpack.c.b16 %v4129, %v4128
        %v4212 = vpack.c.b16 %v4131, %v4130
        %v4213 = vpack.c.b16 %v4133, %v4132
        %v4214 = vpack.c.b16 %v4135, %v4134
        %v4215 = vpack.c.b16 %v4137, %v4136
        %v4216 = vpack.c.b16 %v4139, %v4138
        %v4217 = vpack.c.b16 %v4141, %v4140
        %v4218 = vpack.c.b16 %v4143, %v4142
        %v4219 = vpack.c.b16 %v4145, %v4144
        %v4220 = vpack.c.b16 %v4147, %v4146
        %v4221 = vpack.c.b16 %v4149, %v4148
        %4294 = vmatprep.subr.bf16.mxu0 0
        %4295 = vmatpush1.bf16.msra.mxu0 %v4150
        %4296 = vmatprep.subr.bf16.mxu0 0
        %4297 = vmatpush1.bf16.msra.mxu0 %v4151
        %4298 = vmatprep.subr.bf16.mxu0 0
        %4299 = vmatpush1.bf16.msra.mxu0 %v4152
        %4300 = vmatprep.subr.bf16.mxu0 0
        %4301 = vmatpush1.bf16.msra.mxu0 %v4153
        %4302 = vmatprep.subr.bf16.mxu0 0
        %4303 = vmatpush1.bf16.msra.mxu0 %v4154
        %4304 = vmatprep.subr.bf16.mxu0 0
        %4305 = vmatpush1.bf16.msra.mxu0 %v4155
        %4306 = vmatprep.subr.bf16.mxu0 0
        %4307 = vmatpush1.bf16.msra.mxu0 %v4156
        %4308 = vmatprep.subr.bf16.mxu0 0
        %4309 = vmatpush1.bf16.msra.mxu0 %v4157
        %4310 = vmatprep.subr.bf16.mxu0 0
        %4311 = vmatpush1.bf16.msra.mxu0 %v4158
        %4312 = vmatprep.subr.bf16.mxu0 0
        %4313 = vmatpush1.bf16.msra.mxu0 %v4159
        %4314 = vmatprep.subr.bf16.mxu0 0
        %4315 = vmatpush1.bf16.msra.mxu0 %v4160
        %4316 = vmatprep.subr.bf16.mxu0 0
        %4317 = vmatpush1.bf16.msra.mxu0 %v4161
        %4318 = vmatprep.subr.bf16.mxu0 0
        %4319 = vmatpush1.bf16.msra.mxu0 %v4162
        %4320 = vmatprep.subr.bf16.mxu0 0
        %4321 = vmatpush1.bf16.msra.mxu0 %v4163
        %4322 = vmatprep.subr.bf16.mxu0 0
        %4323 = vmatpush1.bf16.msra.mxu0 %v4164
        %4324 = vmatprep.subr.bf16.mxu0 0
        %4325 = vmatpush1.bf16.msra.mxu0 %v4165
        %4326 = vmatprep.mubr.bf16.mxu0 %v3496
        %4327 = vmatmul.mubr.bf16.gmra.mrb[0].mxu0 %v3495
        %v4328 = vpop.f32.mrb[0].mxu0
        %v4329 = vadd.f32 %v3860, %v4328
        %v4330 = vpop.f32.mrb[0].mxu0
        %v4331 = vpop.f32.mrb[0].mxu0
        %v4332 = vadd.f32 %v3860, %v4331
        %v4333 = vpop.f32.mrb[0].mxu0
        %4334 = vmatprep.mubr.bf16.mxu0 %v3505
        %4335 = vmatmul.mubr.bf16.gmra.mrb[0].mxu0 %v3504
        %v4336 = vpop.f32.mrb[0].mxu0
        %v4337 = vadd.f32 %v3860, %v4336
        %v4338 = vpop.f32.mrb[0].mxu0
        %v4339 = vpop.f32.mrb[0].mxu0
        %v4340 = vadd.f32 %v3860, %v4339
        %v4341 = vpop.f32.mrb[0].mxu0
        %4342 = vmatprep.mubr.bf16.mxu0 %v3514
        %4343 = vmatmul.mubr.bf16.gmra.mrb[0].mxu0 %v3513
        %v4344 = vpop.f32.mrb[0].mxu0
        %v4345 = vadd.f32 %v3860, %v4344
        %v4346 = vpop.f32.mrb[0].mxu0
        %v4347 = vpop.f32.mrb[0].mxu0
        %v4348 = vadd.f32 %v3860, %v4347
        %v4349 = vpop.f32.mrb[0].mxu0
        %4350 = vmatprep.mubr.bf16.mxu0 %v3523
        %4351 = vmatmul.mubr.bf16.gmra.mrb[0].mxu0 %v3522
        %v4352 = vpop.f32.mrb[0].mxu0
        %v4353 = vadd.f32 %v3860, %v4352
        %v4354 = vpop.f32.mrb[0].mxu0
        %v4355 = vpop.f32.mrb[0].mxu0
        %v4356 = vadd.f32 %v3860, %v4355
        %v4357 = vpop.f32.mrb[0].mxu0
        %4358 = vmatprep.mubr.bf16.mxu0 %v3532
        %4359 = vmatmul.mubr.bf16.gmra.mrb[0].mxu0 %v3531
        %v4360 = vpop.f32.mrb[0].mxu0
        %v4361 = vadd.f32 %v3860, %v4360
        %v4362 = vpop.f32.mrb[0].mxu0
        %v4363 = vpop.f32.mrb[0].mxu0
        %v4364 = vadd.f32 %v3860, %v4363
        %v4365 = vpop.f32.mrb[0].mxu0
        %4366 = vmatprep.mubr.bf16.mxu0 %v3541
        %4367 = vmatmul.mubr.bf16.gmra.mrb[0].mxu0 %v3540
        %v4368 = vpop.f32.mrb[0].mxu0
        %v4369 = vadd.f32 %v3860, %v4368
        %v4370 = vpop.f32.mrb[0].mxu0
        %v4371 = vpop.f32.mrb[0].mxu0
        %v4372 = vadd.f32 %v3860, %v4371
        %v4373 = vpop.f32.mrb[0].mxu0
        %4374 = vmatprep.mubr.bf16.mxu0 %v3550
        %4375 = vmatmul.mubr.bf16.gmra.mrb[0].mxu0 %v3549
        %v4376 = vpop.f32.mrb[0].mxu0
        %v4377 = vadd.f32 %v3860, %v4376
        %v4378 = vpop.f32.mrb[0].mxu0
        %v4379 = vpop.f32.mrb[0].mxu0
        %v4380 = vadd.f32 %v3860, %v4379
        %v4381 = vpop.f32.mrb[0].mxu0
        %4382 = vmatprep.mubr.bf16.mxu0 %v3559
        %4383 = vmatmul.mubr.bf16.gmra.mrb[0].mxu0 %v3558
        %v4384 = vpop.f32.mrb[0].mxu0
        %v4385 = vadd.f32 %v3860, %v4384
        %v4386 = vpop.f32.mrb[0].mxu0
        %v4387 = vpop.f32.mrb[0].mxu0
        %v4388 = vadd.f32 %v3860, %v4387
        %v4389 = vpop.f32.mrb[0].mxu0
        %4390 = vmatprep.mubr.bf16.mxu0 %v3568
        %4391 = vmatmul.mubr.bf16.gmra.mrb[0].mxu0 %v3567
        %v4392 = vpop.f32.mrb[0].mxu0
        %v4393 = vadd.f32 %v3860, %v4392
        %v4394 = vpop.f32.mrb[0].mxu0
        %v4395 = vpop.f32.mrb[0].mxu0
        %v4396 = vadd.f32 %v3860, %v4395
        %v4397 = vpop.f32.mrb[0].mxu0
        %4398 = vmatprep.mubr.bf16.mxu0 %v3577
        %4399 = vmatmul.mubr.bf16.gmra.mrb[0].mxu0 %v3576
        %v4400 = vpop.f32.mrb[0].mxu0
        %v4401 = vadd.f32 %v3860, %v4400
        %v4402 = vpop.f32.mrb[0].mxu0
        %v4403 = vpop.f32.mrb[0].mxu0
        %v4404 = vadd.f32 %v3860, %v4403
        %v4405 = vpop.f32.mrb[0].mxu0
        %4406 = vmatprep.mubr.bf16.mxu0 %v3586
        %4407 = vmatmul.mubr.bf16.gmra.mrb[0].mxu0 %v3585
        %v4408 = vpop.f32.mrb[0].mxu0
        %v4409 = vadd.f32 %v3860, %v4408
        %v4410 = vpop.f32.mrb[0].mxu0
        %v4411 = vpop.f32.mrb[0].mxu0
        %v4412 = vadd.f32 %v3860, %v4411
        %v4413 = vpop.f32.mrb[0].mxu0
        %4414 = vmatprep.mubr.bf16.mxu0 %v3595
        %4415 = vmatmul.mubr.bf16.gmra.mrb[0].mxu0 %v3594
        %v4416 = vpop.f32.mrb[0].mxu0
        %v4417 = vadd.f32 %v3860, %v4416
        %v4418 = vpop.f32.mrb[0].mxu0
        %v4419 = vpop.f32.mrb[0].mxu0
        %v4420 = vadd.f32 %v3860, %v4419
        %v4421 = vpop.f32.mrb[0].mxu0
        %4422 = vmatprep.mubr.bf16.mxu0 %v3604
        %4423 = vmatmul.mubr.bf16.gmra.mrb[0].mxu0 %v3603
        %v4424 = vpop.f32.mrb[0].mxu0
        %v4425 = vadd.f32 %v3860, %v4424
        %v4426 = vpop.f32.mrb[0].mxu0
        %v4427 = vpop.f32.mrb[0].mxu0
        %v4428 = vadd.f32 %v3860, %v4427
        %v4429 = vpop.f32.mrb[0].mxu0
        %4430 = vmatprep.mubr.bf16.mxu0 %v3613
        %4431 = vmatmul.mubr.bf16.gmra.mrb[0].mxu0 %v3612
        %v4432 = vpop.f32.mrb[0].mxu0
        %v4433 = vadd.f32 %v3860, %v4432
        %v4434 = vpop.f32.mrb[0].mxu0
        %v4435 = vpop.f32.mrb[0].mxu0
        %v4436 = vadd.f32 %v3860, %v4435
        %v4437 = vpop.f32.mrb[0].mxu0
        %4438 = vmatprep.mubr.bf16.mxu0 %v3622
        %4439 = vmatmul.mubr.bf16.gmra.mrb[0].mxu0 %v3621
        %v4440 = vpop.f32.mrb[0].mxu0
        %v4441 = vadd.f32 %v3860, %v4440
        %v4442 = vpop.f32.mrb[0].mxu0
        %v4443 = vpop.f32.mrb[0].mxu0
        %v4444 = vadd.f32 %v3860, %v4443
        %v4445 = vpop.f32.mrb[0].mxu0
        %4446 = vmatprep.mubr.bf16.mxu0 %v3631
        %4447 = vmatmul.mubr.bf16.gmra.mrb[0].mxu0 %v3630
        %v4448 = vpop.f32.mrb[0].mxu0
        %v4449 = vadd.f32 %v3860, %v4448
        %v4450 = vpop.f32.mrb[0].mxu0
        %v4451 = vpop.f32.mrb[0].mxu0
        %v4452 = vadd.f32 %v3860, %v4451
        %v4453 = vpop.f32.mrb[0].mxu0
        %4454 = vmatprep.mubr.bf16.mxu0 %v3640
        %4455 = vmatmul.mubr.bf16.gmra.mrb[0].mxu0 %v3639
        %v4456 = vpop.f32.mrb[0].mxu0
        %v4457 = vadd.f32 %v3860, %v4456
        %v4458 = vpop.f32.mrb[0].mxu0
        %v4459 = vpop.f32.mrb[0].mxu0
        %v4460 = vadd.f32 %v3860, %v4459
        %v4461 = vpop.f32.mrb[0].mxu0
        %4462 = vmatprep.mubr.bf16.mxu0 %v3649
        %4463 = vmatmul.mubr.bf16.gmra.mrb[0].mxu0 %v3648
        %v4464 = vpop.f32.mrb[0].mxu0
        %v4465 = vadd.f32 %v3860, %v4464
        %v4466 = vpop.f32.mrb[0].mxu0
        %v4467 = vpop.f32.mrb[0].mxu0
        %v4468 = vadd.f32 %v3860, %v4467
        %v4469 = vpop.f32.mrb[0].mxu0
        %4470 = vmatprep.mubr.bf16.mxu0 %v3658
        %4471 = vmatmul.mubr.bf16.gmra.mrb[0].mxu0 %v3657
        %v4472 = vpop.f32.mrb[0].mxu0
        %v4473 = vadd.f32 %v3860, %v4472
        %v4474 = vpop.f32.mrb[0].mxu0
        %v4475 = vpop.f32.mrb[0].mxu0
        %v4476 = vadd.f32 %v3860, %v4475
        %v4477 = vpop.f32.mrb[0].mxu0
        %4478 = vmatprep.mubr.bf16.mxu0 %v3667
        %4479 = vmatmul.mubr.bf16.gmra.mrb[0].mxu0 %v3666
        %v4480 = vpop.f32.mrb[0].mxu0
        %v4481 = vadd.f32 %v3860, %v4480
        %v4482 = vpop.f32.mrb[0].mxu0
        %v4483 = vpop.f32.mrb[0].mxu0
        %v4484 = vadd.f32 %v3860, %v4483
        %v4485 = vpop.f32.mrb[0].mxu0
        %4486 = vmatprep.mubr.bf16.mxu0 %v3676
        %4487 = vmatmul.mubr.bf16.gmra.mrb[0].mxu0 %v3675
        %v4488 = vpop.f32.mrb[0].mxu0
        %v4489 = vadd.f32 %v3860, %v4488
        %v4490 = vpop.f32.mrb[0].mxu0
        %v4491 = vpop.f32.mrb[0].mxu0
        %v4492 = vadd.f32 %v3860, %v4491
        %v4493 = vpop.f32.mrb[0].mxu0
        %4494 = vmatprep.mubr.bf16.mxu0 %v3685
        %4495 = vmatmul.mubr.bf16.gmra.mrb[0].mxu0 %v3684
        %v4496 = vpop.f32.mrb[0].mxu0
        %v4497 = vadd.f32 %v3860, %v4496
        %v4498 = vpop.f32.mrb[0].mxu0
        %v4499 = vpop.f32.mrb[0].mxu0
        %v4500 = vadd.f32 %v3860, %v4499
        %v4501 = vpop.f32.mrb[0].mxu0
        %4502 = vmatprep.mubr.bf16.mxu0 %v3694
        %4503 = vmatmul.mubr.bf16.gmra.mrb[0].mxu0 %v3693
        %v4504 = vpop.f32.mrb[0].mxu0
        %v4505 = vadd.f32 %v3860, %v4504
        %v4506 = vpop.f32.mrb[0].mxu0
        %v4507 = vpop.f32.mrb[0].mxu0
        %v4508 = vadd.f32 %v3860, %v4507
        %v4509 = vpop.f32.mrb[0].mxu0
        %4510 = vmatprep.mubr.bf16.mxu0 %v3703
        %4511 = vmatmul.mubr.bf16.gmra.mrb[0].mxu0 %v3702
        %v4512 = vpop.f32.mrb[0].mxu0
        %v4513 = vadd.f32 %v3860, %v4512
        %v4514 = vpop.f32.mrb[0].mxu0
        %v4515 = vpop.f32.mrb[0].mxu0
        %v4516 = vadd.f32 %v3860, %v4515
        %v4517 = vpop.f32.mrb[0].mxu0
        %4518 = vdwg.mxu0
        %4519 = vmatprep.subr.bf16.mxu0 0
        %4520 = vmatpush1.bf16.msra.mxu0 %v4166
        %4521 = vmatprep.subr.bf16.mxu0 0
        %4522 = vmatpush1.bf16.msra.mxu0 %v4167
        %4523 = vmatprep.subr.bf16.mxu0 0
        %4524 = vmatpush1.bf16.msra.mxu0 %v4168
        %4525 = vmatprep.subr.bf16.mxu0 0
        %4526 = vmatpush1.bf16.msra.mxu0 %v4169
        %4527 = vmatprep.subr.bf16.mxu0 0
        %4528 = vmatpush1.bf16.msra.mxu0 %v4170
        %4529 = vmatprep.subr.bf16.mxu0 0
        %4530 = vmatpush1.bf16.msra.mxu0 %v4171
        %4531 = vmatprep.subr.bf16.mxu0 0
        %4532 = vmatpush1.bf16.msra.mxu0 %v4172
        %4533 = vmatprep.subr.bf16.mxu0 0
        %4534 = vmatpush1.bf16.msra.mxu0 %v4173
        %4535 = vmatprep.subr.bf16.mxu0 0
        %4536 = vmatpush1.bf16.msra.mxu0 %v4174
        %4537 = vmatprep.subr.bf16.mxu0 0
        %4538 = vmatpush1.bf16.msra.mxu0 %v4175
        %4539 = vmatprep.subr.bf16.mxu0 0
        %4540 = vmatpush1.bf16.msra.mxu0 %v4176
        %4541 = vmatprep.subr.bf16.mxu0 0
        %4542 = vmatpush1.bf16.msra.mxu0 %v4177
        %4543 = vmatprep.subr.bf16.mxu0 0
        %4544 = vmatpush1.bf16.msra.mxu0 %v4178
        %4545 = vmatprep.subr.bf16.mxu0 0
        %4546 = vmatpush1.bf16.msra.mxu0 %v4179
        %4547 = vmatprep.subr.bf16.mxu0 0
        %4548 = vmatpush1.bf16.msra.mxu0 %v4180
        %4549 = vmatprep.subr.bf16.mxu0 0
        %4550 = vmatpush1.bf16.msra.mxu0 %v4181
        %4551 = vmatprep.mubr.bf16.mxu0 %v3498
        %4552 = vmatmul.mubr.bf16.gmra.mrb[0].mxu0 %v3497
        %v4553 = vpop.f32.mrb[0].mxu0
        %v4554 = vadd.f32 %v4329, %v4553
        %v4555 = vpop.f32.mrb[0].mxu0
        %v4556 = vpop.f32.mrb[0].mxu0
        %v4557 = vadd.f32 %v4332, %v4556
        %v4558 = vpop.f32.mrb[0].mxu0
        %4559 = vmatprep.mubr.bf16.mxu0 %v3507
        %4560 = vmatmul.mubr.bf16.gmra.mrb[0].mxu0 %v3506
        %v4561 = vpop.f32.mrb[0].mxu0
        %v4562 = vadd.f32 %v4337, %v4561
        %v4563 = vpop.f32.mrb[0].mxu0
        %v4564 = vpop.f32.mrb[0].mxu0
        %v4565 = vadd.f32 %v4340, %v4564
        %v4566 = vpop.f32.mrb[0].mxu0
        %4567 = vmatprep.mubr.bf16.mxu0 %v3516
        %4568 = vmatmul.mubr.bf16.gmra.mrb[0].mxu0 %v3515
        %v4569 = vpop.f32.mrb[0].mxu0
        %v4570 = vadd.f32 %v4345, %v4569
        %v4571 = vpop.f32.mrb[0].mxu0
        %v4572 = vpop.f32.mrb[0].mxu0
        %v4573 = vadd.f32 %v4348, %v4572
        %v4574 = vpop.f32.mrb[0].mxu0
        %4575 = vmatprep.mubr.bf16.mxu0 %v3525
        %4576 = vmatmul.mubr.bf16.gmra.mrb[0].mxu0 %v3524
        %v4577 = vpop.f32.mrb[0].mxu0
        %v4578 = vadd.f32 %v4353, %v4577
        %v4579 = vpop.f32.mrb[0].mxu0
        %v4580 = vpop.f32.mrb[0].mxu0
        %v4581 = vadd.f32 %v4356, %v4580
        %v4582 = vpop.f32.mrb[0].mxu0
        %4583 = vmatprep.mubr.bf16.mxu0 %v3534
        %4584 = vmatmul.mubr.bf16.gmra.mrb[0].mxu0 %v3533
        %v4585 = vpop.f32.mrb[0].mxu0
        %v4586 = vadd.f32 %v4361, %v4585
        %v4587 = vpop.f32.mrb[0].mxu0
        %v4588 = vpop.f32.mrb[0].mxu0
        %v4589 = vadd.f32 %v4364, %v4588
        %v4590 = vpop.f32.mrb[0].mxu0
        %4591 = vmatprep.mubr.bf16.mxu0 %v3543
        %4592 = vmatmul.mubr.bf16.gmra.mrb[0].mxu0 %v3542
        %v4593 = vpop.f32.mrb[0].mxu0
        %v4594 = vadd.f32 %v4369, %v4593
        %v4595 = vpop.f32.mrb[0].mxu0
        %v4596 = vpop.f32.mrb[0].mxu0
        %v4597 = vadd.f32 %v4372, %v4596
        %v4598 = vpop.f32.mrb[0].mxu0
        %4599 = vmatprep.mubr.bf16.mxu0 %v3552
        %4600 = vmatmul.mubr.bf16.gmra.mrb[0].mxu0 %v3551
        %v4601 = vpop.f32.mrb[0].mxu0
        %v4602 = vadd.f32 %v4377, %v4601
        %v4603 = vpop.f32.mrb[0].mxu0
        %v4604 = vpop.f32.mrb[0].mxu0
        %v4605 = vadd.f32 %v4380, %v4604
        %v4606 = vpop.f32.mrb[0].mxu0
        %4607 = vmatprep.mubr.bf16.mxu0 %v3561
        %4608 = vmatmul.mubr.bf16.gmra.mrb[0].mxu0 %v3560
        %v4609 = vpop.f32.mrb[0].mxu0
        %v4610 = vadd.f32 %v4385, %v4609
        %v4611 = vpop.f32.mrb[0].mxu0
        %v4612 = vpop.f32.mrb[0].mxu0
        %v4613 = vadd.f32 %v4388, %v4612
        %v4614 = vpop.f32.mrb[0].mxu0
        %4615 = vmatprep.mubr.bf16.mxu0 %v3570
        %4616 = vmatmul.mubr.bf16.gmra.mrb[0].mxu0 %v3569
        %v4617 = vpop.f32.mrb[0].mxu0
        %v4618 = vadd.f32 %v4393, %v4617
        %v4619 = vpop.f32.mrb[0].mxu0
        %v4620 = vpop.f32.mrb[0].mxu0
        %v4621 = vadd.f32 %v4396, %v4620
        %v4622 = vpop.f32.mrb[0].mxu0
        %4623 = vmatprep.mubr.bf16.mxu0 %v3579
        %4624 = vmatmul.mubr.bf16.gmra.mrb[0].mxu0 %v3578
        %v4625 = vpop.f32.mrb[0].mxu0
        %v4626 = vadd.f32 %v4401, %v4625
        %v4627 = vpop.f32.mrb[0].mxu0
        %v4628 = vpop.f32.mrb[0].mxu0
        %v4629 = vadd.f32 %v4404, %v4628
        %v4630 = vpop.f32.mrb[0].mxu0
        %4631 = vmatprep.mubr.bf16.mxu0 %v3588
        %4632 = vmatmul.mubr.bf16.gmra.mrb[0].mxu0 %v3587
        %v4633 = vpop.f32.mrb[0].mxu0
        %v4634 = vadd.f32 %v4409, %v4633
        %v4635 = vpop.f32.mrb[0].mxu0
        %v4636 = vpop.f32.mrb[0].mxu0
        %v4637 = vadd.f32 %v4412, %v4636
        %v4638 = vpop.f32.mrb[0].mxu0
        %4639 = vmatprep.mubr.bf16.mxu0 %v3597
        %4640 = vmatmul.mubr.bf16.gmra.mrb[0].mxu0 %v3596
        %v4641 = vpop.f32.mrb[0].mxu0
        %v4642 = vadd.f32 %v4417, %v4641
        %v4643 = vpop.f32.mrb[0].mxu0
        %v4644 = vpop.f32.mrb[0].mxu0
        %v4645 = vadd.f32 %v4420, %v4644
        %v4646 = vpop.f32.mrb[0].mxu0
        %4647 = vmatprep.mubr.bf16.mxu0 %v3606
        %4648 = vmatmul.mubr.bf16.gmra.mrb[0].mxu0 %v3605
        %v4649 = vpop.f32.mrb[0].mxu0
        %v4650 = vadd.f32 %v4425, %v4649
        %v4651 = vpop.f32.mrb[0].mxu0
        %v4652 = vpop.f32.mrb[0].mxu0
        %v4653 = vadd.f32 %v4428, %v4652
        %v4654 = vpop.f32.mrb[0].mxu0
        %4655 = vmatprep.mubr.bf16.mxu0 %v3615
        %4656 = vmatmul.mubr.bf16.gmra.mrb[0].mxu0 %v3614
        %v4657 = vpop.f32.mrb[0].mxu0
        %v4658 = vadd.f32 %v4433, %v4657
        %v4659 = vpop.f32.mrb[0].mxu0
        %v4660 = vpop.f32.mrb[0].mxu0
        %v4661 = vadd.f32 %v4436, %v4660
        %v4662 = vpop.f32.mrb[0].mxu0
        %4663 = vmatprep.mubr.bf16.mxu0 %v3624
        %4664 = vmatmul.mubr.bf16.gmra.mrb[0].mxu0 %v3623
        %v4665 = vpop.f32.mrb[0].mxu0
        %v4666 = vadd.f32 %v4441, %v4665
        %v4667 = vpop.f32.mrb[0].mxu0
        %v4668 = vpop.f32.mrb[0].mxu0
        %v4669 = vadd.f32 %v4444, %v4668
        %v4670 = vpop.f32.mrb[0].mxu0
        %4671 = vmatprep.mubr.bf16.mxu0 %v3633
        %4672 = vmatmul.mubr.bf16.gmra.mrb[0].mxu0 %v3632
        %v4673 = vpop.f32.mrb[0].mxu0
        %v4674 = vadd.f32 %v4449, %v4673
        %v4675 = vpop.f32.mrb[0].mxu0
        %v4676 = vpop.f32.mrb[0].mxu0
        %v4677 = vadd.f32 %v4452, %v4676
        %v4678 = vpop.f32.mrb[0].mxu0
        %4679 = vmatprep.mubr.bf16.mxu0 %v3642
        %4680 = vmatmul.mubr.bf16.gmra.mrb[0].mxu0 %v3641
        %v4681 = vpop.f32.mrb[0].mxu0
        %v4682 = vadd.f32 %v4457, %v4681
        %v4683 = vpop.f32.mrb[0].mxu0
        %v4684 = vpop.f32.mrb[0].mxu0
        %v4685 = vadd.f32 %v4460, %v4684
        %v4686 = vpop.f32.mrb[0].mxu0
        %4687 = vmatprep.mubr.bf16.mxu0 %v3651
        %4688 = vmatmul.mubr.bf16.gmra.mrb[0].mxu0 %v3650
        %v4689 = vpop.f32.mrb[0].mxu0
        %v4690 = vadd.f32 %v4465, %v4689
        %v4691 = vpop.f32.mrb[0].mxu0
        %v4692 = vpop.f32.mrb[0].mxu0
        %v4693 = vadd.f32 %v4468, %v4692
        %v4694 = vpop.f32.mrb[0].mxu0
        %4695 = vmatprep.mubr.bf16.mxu0 %v3660
        %4696 = vmatmul.mubr.bf16.gmra.mrb[0].mxu0 %v3659
        %v4697 = vpop.f32.mrb[0].mxu0
        %v4698 = vadd.f32 %v4473, %v4697
        %v4699 = vpop.f32.mrb[0].mxu0
        %v4700 = vpop.f32.mrb[0].mxu0
        %v4701 = vadd.f32 %v4476, %v4700
        %v4702 = vpop.f32.mrb[0].mxu0
        %4703 = vmatprep.mubr.bf16.mxu0 %v3669
        %4704 = vmatmul.mubr.bf16.gmra.mrb[0].mxu0 %v3668
        %v4705 = vpop.f32.mrb[0].mxu0
        %v4706 = vadd.f32 %v4481, %v4705
        %v4707 = vpop.f32.mrb[0].mxu0
        %v4708 = vpop.f32.mrb[0].mxu0
        %v4709 = vadd.f32 %v4484, %v4708
        %v4710 = vpop.f32.mrb[0].mxu0
        %4711 = vmatprep.mubr.bf16.mxu0 %v3678
        %4712 = vmatmul.mubr.bf16.gmra.mrb[0].mxu0 %v3677
        %v4713 = vpop.f32.mrb[0].mxu0
        %v4714 = vadd.f32 %v4489, %v4713
        %v4715 = vpop.f32.mrb[0].mxu0
        %v4716 = vpop.f32.mrb[0].mxu0
        %v4717 = vadd.f32 %v4492, %v4716
        %v4718 = vpop.f32.mrb[0].mxu0
        %4719 = vmatprep.mubr.bf16.mxu0 %v3687
        %4720 = vmatmul.mubr.bf16.gmra.mrb[0].mxu0 %v3686
        %v4721 = vpop.f32.mrb[0].mxu0
        %v4722 = vadd.f32 %v4497, %v4721
        %v4723 = vpop.f32.mrb[0].mxu0
        %v4724 = vpop.f32.mrb[0].mxu0
        %v4725 = vadd.f32 %v4500, %v4724
        %v4726 = vpop.f32.mrb[0].mxu0
        %4727 = vmatprep.mubr.bf16.mxu0 %v3696
        %4728 = vmatmul.mubr.bf16.gmra.mrb[0].mxu0 %v3695
        %v4729 = vpop.f32.mrb[0].mxu0
        %v4730 = vadd.f32 %v4505, %v4729
        %v4731 = vpop.f32.mrb[0].mxu0
        %v4732 = vpop.f32.mrb[0].mxu0
        %v4733 = vadd.f32 %v4508, %v4732
        %v4734 = vpop.f32.mrb[0].mxu0
        %4735 = vmatprep.mubr.bf16.mxu0 %v3705
        %4736 = vmatmul.mubr.bf16.gmra.mrb[0].mxu0 %v3704
        %v4737 = vpop.f32.mrb[0].mxu0
        %v4738 = vadd.f32 %v4513, %v4737
        %v4739 = vpop.f32.mrb[0].mxu0
        %v4740 = vpop.f32.mrb[0].mxu0
        %v4741 = vadd.f32 %v4516, %v4740
        %v4742 = vpop.f32.mrb[0].mxu0
        %4743 = vdwg.mxu0
        %4744 = vmatprep.subr.bf16.mxu0 0
        %4745 = vmatpush1.bf16.msra.mxu0 %v4182
        %4746 = vmatprep.subr.bf16.mxu0 0
        %4747 = vmatpush1.bf16.msra.mxu0 %v4183
        %4748 = vmatprep.subr.bf16.mxu0 0
        %4749 = vmatpush1.bf16.msra.mxu0 %v4184
        %4750 = vmatprep.subr.bf16.mxu0 0
        %4751 = vmatpush1.bf16.msra.mxu0 %v4185
        %4752 = vmatprep.subr.bf16.mxu0 0
        %4753 = vmatpush1.bf16.msra.mxu0 %v4186
        %4754 = vmatprep.subr.bf16.mxu0 0
        %4755 = vmatpush1.bf16.msra.mxu0 %v4187
        %4756 = vmatprep.subr.bf16.mxu0 0
        %4757 = vmatpush1.bf16.msra.mxu0 %v4188
        %4758 = vmatprep.subr.bf16.mxu0 0
        %4759 = vmatpush1.bf16.msra.mxu0 %v4189
        %4760 = vmatprep.subr.bf16.mxu0 0
        %4761 = vmatpush1.bf16.msra.mxu0 %v4190
        %4762 = vmatprep.subr.bf16.mxu0 0
        %4763 = vmatpush1.bf16.msra.mxu0 %v4191
        %4764 = vmatprep.subr.bf16.mxu0 0
        %4765 = vmatpush1.bf16.msra.mxu0 %v4192
        %4766 = vmatprep.subr.bf16.mxu0 0
        %4767 = vmatpush1.bf16.msra.mxu0 %v4193
        %4768 = vmatprep.subr.bf16.mxu0 0
        %4769 = vmatpush1.bf16.msra.mxu0 %v4194
        %4770 = vmatprep.subr.bf16.mxu0 0
        %4771 = vmatpush1.bf16.msra.mxu0 %v4195
        %4772 = vmatprep.subr.bf16.mxu0 0
        %4773 = vmatpush1.bf16.msra.mxu0 %v4196
        %4774 = vmatprep.subr.bf16.mxu0 0
        %4775 = vmatpush1.bf16.msra.mxu0 %v4197
        %4776 = vmatprep.mubr.bf16.mxu0 %v3500
        %4777 = vmatmul.mubr.bf16.gmra.mrb[0].mxu0 %v3499
        %v4778 = vpop.f32.mrb[0].mxu0
        %v4779 = vadd.f32 %v4554, %v4778
        %v4780 = vpop.f32.mrb[0].mxu0
        %v4781 = vpop.f32.mrb[0].mxu0
        %v4782 = vadd.f32 %v4557, %v4781
        %v4783 = vpop.f32.mrb[0].mxu0
        %4784 = vmatprep.mubr.bf16.mxu0 %v3509
        %4785 = vmatmul.mubr.bf16.gmra.mrb[0].mxu0 %v3508
        %v4786 = vpop.f32.mrb[0].mxu0
        %v4787 = vadd.f32 %v4562, %v4786
        %v4788 = vpop.f32.mrb[0].mxu0
        %v4789 = vpop.f32.mrb[0].mxu0
        %v4790 = vadd.f32 %v4565, %v4789
        %v4791 = vpop.f32.mrb[0].mxu0
        %4792 = vmatprep.mubr.bf16.mxu0 %v3518
        %4793 = vmatmul.mubr.bf16.gmra.mrb[0].mxu0 %v3517
        %v4794 = vpop.f32.mrb[0].mxu0
        %v4795 = vadd.f32 %v4570, %v4794
        %v4796 = vpop.f32.mrb[0].mxu0
        %v4797 = vpop.f32.mrb[0].mxu0
        %v4798 = vadd.f32 %v4573, %v4797
        %v4799 = vpop.f32.mrb[0].mxu0
        %4800 = vmatprep.mubr.bf16.mxu0 %v3527
        %4801 = vmatmul.mubr.bf16.gmra.mrb[0].mxu0 %v3526
        %v4802 = vpop.f32.mrb[0].mxu0
        %v4803 = vadd.f32 %v4578, %v4802
        %v4804 = vpop.f32.mrb[0].mxu0
        %v4805 = vpop.f32.mrb[0].mxu0
        %v4806 = vadd.f32 %v4581, %v4805
        %v4807 = vpop.f32.mrb[0].mxu0
        %4808 = vmatprep.mubr.bf16.mxu0 %v3536
        %4809 = vmatmul.mubr.bf16.gmra.mrb[0].mxu0 %v3535
        %v4810 = vpop.f32.mrb[0].mxu0
        %v4811 = vadd.f32 %v4586, %v4810
        %v4812 = vpop.f32.mrb[0].mxu0
        %v4813 = vpop.f32.mrb[0].mxu0
        %v4814 = vadd.f32 %v4589, %v4813
        %v4815 = vpop.f32.mrb[0].mxu0
        %4816 = vmatprep.mubr.bf16.mxu0 %v3545
        %4817 = vmatmul.mubr.bf16.gmra.mrb[0].mxu0 %v3544
        %v4818 = vpop.f32.mrb[0].mxu0
        %v4819 = vadd.f32 %v4594, %v4818
        %v4820 = vpop.f32.mrb[0].mxu0
        %v4821 = vpop.f32.mrb[0].mxu0
        %v4822 = vadd.f32 %v4597, %v4821
        %v4823 = vpop.f32.mrb[0].mxu0
        %4824 = vmatprep.mubr.bf16.mxu0 %v3554
        %4825 = vmatmul.mubr.bf16.gmra.mrb[0].mxu0 %v3553
        %v4826 = vpop.f32.mrb[0].mxu0
        %v4827 = vadd.f32 %v4602, %v4826
        %v4828 = vpop.f32.mrb[0].mxu0
        %v4829 = vpop.f32.mrb[0].mxu0
        %v4830 = vadd.f32 %v4605, %v4829
        %v4831 = vpop.f32.mrb[0].mxu0
        %4832 = vmatprep.mubr.bf16.mxu0 %v3563
        %4833 = vmatmul.mubr.bf16.gmra.mrb[0].mxu0 %v3562
        %v4834 = vpop.f32.mrb[0].mxu0
        %v4835 = vadd.f32 %v4610, %v4834
        %v4836 = vpop.f32.mrb[0].mxu0
        %v4837 = vpop.f32.mrb[0].mxu0
        %v4838 = vadd.f32 %v4613, %v4837
        %v4839 = vpop.f32.mrb[0].mxu0
        %4840 = vmatprep.mubr.bf16.mxu0 %v3572
        %4841 = vmatmul.mubr.bf16.gmra.mrb[0].mxu0 %v3571
        %v4842 = vpop.f32.mrb[0].mxu0
        %v4843 = vadd.f32 %v4618, %v4842
        %v4844 = vpop.f32.mrb[0].mxu0
        %v4845 = vpop.f32.mrb[0].mxu0
        %v4846 = vadd.f32 %v4621, %v4845
        %v4847 = vpop.f32.mrb[0].mxu0
        %4848 = vmatprep.mubr.bf16.mxu0 %v3581
        %4849 = vmatmul.mubr.bf16.gmra.mrb[0].mxu0 %v3580
        %v4850 = vpop.f32.mrb[0].mxu0
        %v4851 = vadd.f32 %v4626, %v4850
        %v4852 = vpop.f32.mrb[0].mxu0
        %v4853 = vpop.f32.mrb[0].mxu0
        %v4854 = vadd.f32 %v4629, %v4853
        %v4855 = vpop.f32.mrb[0].mxu0
        %4856 = vmatprep.mubr.bf16.mxu0 %v3590
        %4857 = vmatmul.mubr.bf16.gmra.mrb[0].mxu0 %v3589
        %v4858 = vpop.f32.mrb[0].mxu0
        %v4859 = vadd.f32 %v4634, %v4858
        %v4860 = vpop.f32.mrb[0].mxu0
        %v4861 = vpop.f32.mrb[0].mxu0
        %v4862 = vadd.f32 %v4637, %v4861
        %v4863 = vpop.f32.mrb[0].mxu0
        %4864 = vmatprep.mubr.bf16.mxu0 %v3599
        %4865 = vmatmul.mubr.bf16.gmra.mrb[0].mxu0 %v3598
        %v4866 = vpop.f32.mrb[0].mxu0
        %v4867 = vadd.f32 %v4642, %v4866
        %v4868 = vpop.f32.mrb[0].mxu0
        %v4869 = vpop.f32.mrb[0].mxu0
        %v4870 = vadd.f32 %v4645, %v4869
        %v4871 = vpop.f32.mrb[0].mxu0
        %4872 = vmatprep.mubr.bf16.mxu0 %v3608
        %4873 = vmatmul.mubr.bf16.gmra.mrb[0].mxu0 %v3607
        %v4874 = vpop.f32.mrb[0].mxu0
        %v4875 = vadd.f32 %v4650, %v4874
        %v4876 = vpop.f32.mrb[0].mxu0
        %v4877 = vpop.f32.mrb[0].mxu0
        %v4878 = vadd.f32 %v4653, %v4877
        %v4879 = vpop.f32.mrb[0].mxu0
        %4880 = vmatprep.mubr.bf16.mxu0 %v3617
        %4881 = vmatmul.mubr.bf16.gmra.mrb[0].mxu0 %v3616
        %v4882 = vpop.f32.mrb[0].mxu0
        %v4883 = vadd.f32 %v4658, %v4882
        %v4884 = vpop.f32.mrb[0].mxu0
        %v4885 = vpop.f32.mrb[0].mxu0
        %v4886 = vadd.f32 %v4661, %v4885
        %v4887 = vpop.f32.mrb[0].mxu0
        %4888 = vmatprep.mubr.bf16.mxu0 %v3626
        %4889 = vmatmul.mubr.bf16.gmra.mrb[0].mxu0 %v3625
        %v4890 = vpop.f32.mrb[0].mxu0
        %v4891 = vadd.f32 %v4666, %v4890
        %v4892 = vpop.f32.mrb[0].mxu0
        %v4893 = vpop.f32.mrb[0].mxu0
        %v4894 = vadd.f32 %v4669, %v4893
        %v4895 = vpop.f32.mrb[0].mxu0
        %4896 = vmatprep.mubr.bf16.mxu0 %v3635
        %4897 = vmatmul.mubr.bf16.gmra.mrb[0].mxu0 %v3634
        %v4898 = vpop.f32.mrb[0].mxu0
        %v4899 = vadd.f32 %v4674, %v4898
        %v4900 = vpop.f32.mrb[0].mxu0
        %v4901 = vpop.f32.mrb[0].mxu0
        %v4902 = vadd.f32 %v4677, %v4901
        %v4903 = vpop.f32.mrb[0].mxu0
        %4904 = vmatprep.mubr.bf16.mxu0 %v3644
        %4905 = vmatmul.mubr.bf16.gmra.mrb[0].mxu0 %v3643
        %v4906 = vpop.f32.mrb[0].mxu0
        %v4907 = vadd.f32 %v4682, %v4906
        %v4908 = vpop.f32.mrb[0].mxu0
        %v4909 = vpop.f32.mrb[0].mxu0
        %v4910 = vadd.f32 %v4685, %v4909
        %v4911 = vpop.f32.mrb[0].mxu0
        %4912 = vmatprep.mubr.bf16.mxu0 %v3653
        %4913 = vmatmul.mubr.bf16.gmra.mrb[0].mxu0 %v3652
        %v4914 = vpop.f32.mrb[0].mxu0
        %v4915 = vadd.f32 %v4690, %v4914
        %v4916 = vpop.f32.mrb[0].mxu0
        %v4917 = vpop.f32.mrb[0].mxu0
        %v4918 = vadd.f32 %v4693, %v4917
        %v4919 = vpop.f32.mrb[0].mxu0
        %4920 = vmatprep.mubr.bf16.mxu0 %v3662
        %4921 = vmatmul.mubr.bf16.gmra.mrb[0].mxu0 %v3661
        %v4922 = vpop.f32.mrb[0].mxu0
        %v4923 = vadd.f32 %v4698, %v4922
        %v4924 = vpop.f32.mrb[0].mxu0
        %v4925 = vpop.f32.mrb[0].mxu0
        %v4926 = vadd.f32 %v4701, %v4925
        %v4927 = vpop.f32.mrb[0].mxu0
        %4928 = vmatprep.mubr.bf16.mxu0 %v3671
        %4929 = vmatmul.mubr.bf16.gmra.mrb[0].mxu0 %v3670
        %v4930 = vpop.f32.mrb[0].mxu0
        %v4931 = vadd.f32 %v4706, %v4930
        %v4932 = vpop.f32.mrb[0].mxu0
        %v4933 = vpop.f32.mrb[0].mxu0
        %v4934 = vadd.f32 %v4709, %v4933
        %v4935 = vpop.f32.mrb[0].mxu0
        %4936 = vmatprep.mubr.bf16.mxu0 %v3680
        %4937 = vmatmul.mubr.bf16.gmra.mrb[0].mxu0 %v3679
        %v4938 = vpop.f32.mrb[0].mxu0
        %v4939 = vadd.f32 %v4714, %v4938
        %v4940 = vpop.f32.mrb[0].mxu0
        %v4941 = vpop.f32.mrb[0].mxu0
        %v4942 = vadd.f32 %v4717, %v4941
        %v4943 = vpop.f32.mrb[0].mxu0
        %4944 = vmatprep.mubr.bf16.mxu0 %v3689
        %4945 = vmatmul.mubr.bf16.gmra.mrb[0].mxu0 %v3688
        %v4946 = vpop.f32.mrb[0].mxu0
        %v4947 = vadd.f32 %v4722, %v4946
        %v4948 = vpop.f32.mrb[0].mxu0
        %v4949 = vpop.f32.mrb[0].mxu0
        %v4950 = vadd.f32 %v4725, %v4949
        %v4951 = vpop.f32.mrb[0].mxu0
        %4952 = vmatprep.mubr.bf16.mxu0 %v3698
        %4953 = vmatmul.mubr.bf16.gmra.mrb[0].mxu0 %v3697
        %v4954 = vpop.f32.mrb[0].mxu0
        %v4955 = vadd.f32 %v4730, %v4954
        %v4956 = vpop.f32.mrb[0].mxu0
        %v4957 = vpop.f32.mrb[0].mxu0
        %v4958 = vadd.f32 %v4733, %v4957
        %v4959 = vpop.f32.mrb[0].mxu0
        %4960 = vmatprep.mubr.bf16.mxu0 %v3707
        %4961 = vmatmul.mubr.bf16.gmra.mrb[0].mxu0 %v3706
        %v4962 = vpop.f32.mrb[0].mxu0
        %v4963 = vadd.f32 %v4738, %v4962
        %v4964 = vpop.f32.mrb[0].mxu0
        %v4965 = vpop.f32.mrb[0].mxu0
        %v4966 = vadd.f32 %v4741, %v4965
        %v4967 = vpop.f32.mrb[0].mxu0
        %4968 = vdwg.mxu0
        %4969 = vmatprep.subr.bf16.mxu0 0
        %4970 = vmatpush1.bf16.msra.mxu0 %v4198
        %4971 = vmatprep.subr.bf16.mxu0 0
        %4972 = vmatpush1.bf16.msra.mxu0 %v4199
        %4973 = vmatprep.subr.bf16.mxu0 0
        %4974 = vmatpush1.bf16.msra.mxu0 %v4200
        %4975 = vmatprep.subr.bf16.mxu0 0
        %4976 = vmatpush1.bf16.msra.mxu0 %v4201
        %4977 = vmatprep.subr.bf16.mxu0 0
        %4978 = vmatpush1.bf16.msra.mxu0 %v4202
        %4979 = vmatprep.subr.bf16.mxu0 0
        %4980 = vmatpush1.bf16.msra.mxu0 %v4203
        %4981 = vmatprep.subr.bf16.mxu0 0
        %4982 = vmatpush1.bf16.msra.mxu0 %v4204
        %4983 = vmatprep.subr.bf16.mxu0 0
        %4984 = vmatpush1.bf16.msra.mxu0 %v4205
        %4985 = vmatprep.subr.bf16.mxu0 0
        %4986 = vmatpush1.bf16.msra.mxu0 %v4206
        %4987 = vmatprep.subr.bf16.mxu0 0
        %4988 = vmatpush1.bf16.msra.mxu0 %v4207
        %4989 = vmatprep.subr.bf16.mxu0 0
        %4990 = vmatpush1.bf16.msra.mxu0 %v4208
        %4991 = vmatprep.subr.bf16.mxu0 0
        %4992 = vmatpush1.bf16.msra.mxu0 %v4209
        %4993 = vmatprep.subr.bf16.mxu0 0
        %4994 = vmatpush1.bf16.msra.mxu0 %v4210
        %4995 = vmatprep.subr.bf16.mxu0 0
        %4996 = vmatpush1.bf16.msra.mxu0 %v4211
        %4997 = vmatprep.subr.bf16.mxu0 0
        %4998 = vmatpush1.bf16.msra.mxu0 %v4212
        %4999 = vmatprep.subr.bf16.mxu0 0
        %5000 = vmatpush1.bf16.msra.mxu0 %v4213
        %5001 = vmatprep.mubr.bf16.mxu0 %v3502
        %5002 = vmatmul.mubr.bf16.gmra.mrb[0].mxu0 %v3501
        %v5003 = vpop.f32.mrb[0].mxu0
        %v5004 = vadd.f32 %v4779, %v5003
        %v5005 = vpop.f32.mrb[0].mxu0
        %v5006 = vpop.f32.mrb[0].mxu0
        %v5007 = vadd.f32 %v4782, %v5006
        %v5008 = vpop.f32.mrb[0].mxu0
        %5009 = vmatprep.mubr.bf16.mxu0 %v3511
        %5010 = vmatmul.mubr.bf16.gmra.mrb[0].mxu0 %v3510
        %v5011 = vpop.f32.mrb[0].mxu0
        %v5012 = vadd.f32 %v4787, %v5011
        %v5013 = vpop.f32.mrb[0].mxu0
        %v5014 = vpop.f32.mrb[0].mxu0
        %v5015 = vadd.f32 %v4790, %v5014
        %v5016 = vpop.f32.mrb[0].mxu0
        %5017 = vmatprep.mubr.bf16.mxu0 %v3520
        %5018 = vmatmul.mubr.bf16.gmra.mrb[0].mxu0 %v3519
        %v5019 = vpop.f32.mrb[0].mxu0
        %v5020 = vadd.f32 %v4795, %v5019
        %v5021 = vpop.f32.mrb[0].mxu0
        %v5022 = vpop.f32.mrb[0].mxu0
        %v5023 = vadd.f32 %v4798, %v5022
        %v5024 = vpop.f32.mrb[0].mxu0
        %5025 = vmatprep.mubr.bf16.mxu0 %v3529
        %5026 = vmatmul.mubr.bf16.gmra.mrb[0].mxu0 %v3528
        %v5027 = vpop.f32.mrb[0].mxu0
        %v5028 = vadd.f32 %v4803, %v5027
        %v5029 = vpop.f32.mrb[0].mxu0
        %v5030 = vpop.f32.mrb[0].mxu0
        %v5031 = vadd.f32 %v4806, %v5030
        %v5032 = vpop.f32.mrb[0].mxu0
        %5033 = vmatprep.mubr.bf16.mxu0 %v3538
        %5034 = vmatmul.mubr.bf16.gmra.mrb[0].mxu0 %v3537
        %v5035 = vpop.f32.mrb[0].mxu0
        %v5036 = vadd.f32 %v4811, %v5035
        %v5037 = vpop.f32.mrb[0].mxu0
        %v5038 = vpop.f32.mrb[0].mxu0
        %v5039 = vadd.f32 %v4814, %v5038
        %v5040 = vpop.f32.mrb[0].mxu0
        %5041 = vmatprep.mubr.bf16.mxu0 %v3547
        %5042 = vmatmul.mubr.bf16.gmra.mrb[0].mxu0 %v3546
        %v5043 = vpop.f32.mrb[0].mxu0
        %v5044 = vadd.f32 %v4819, %v5043
        %v5045 = vpop.f32.mrb[0].mxu0
        %v5046 = vpop.f32.mrb[0].mxu0
        %v5047 = vadd.f32 %v4822, %v5046
        %v5048 = vpop.f32.mrb[0].mxu0
        %5049 = vmatprep.mubr.bf16.mxu0 %v3556
        %5050 = vmatmul.mubr.bf16.gmra.mrb[0].mxu0 %v3555
        %v5051 = vpop.f32.mrb[0].mxu0
        %v5052 = vadd.f32 %v4827, %v5051
        %v5053 = vpop.f32.mrb[0].mxu0
        %v5054 = vpop.f32.mrb[0].mxu0
        %v5055 = vadd.f32 %v4830, %v5054
        %v5056 = vpop.f32.mrb[0].mxu0
        %5057 = vmatprep.mubr.bf16.mxu0 %v3565
        %5058 = vmatmul.mubr.bf16.gmra.mrb[0].mxu0 %v3564
        %v5059 = vpop.f32.mrb[0].mxu0
        %v5060 = vadd.f32 %v4835, %v5059
        %v5061 = vpop.f32.mrb[0].mxu0
        %v5062 = vpop.f32.mrb[0].mxu0
        %v5063 = vadd.f32 %v4838, %v5062
        %v5064 = vpop.f32.mrb[0].mxu0
        %5065 = vmatprep.mubr.bf16.mxu0 %v3574
        %5066 = vmatmul.mubr.bf16.gmra.mrb[0].mxu0 %v3573
        %v5067 = vpop.f32.mrb[0].mxu0
        %v5068 = vadd.f32 %v4843, %v5067
        %v5069 = vpop.f32.mrb[0].mxu0
        %v5070 = vpop.f32.mrb[0].mxu0
        %v5071 = vadd.f32 %v4846, %v5070
        %v5072 = vpop.f32.mrb[0].mxu0
        %5073 = vmatprep.mubr.bf16.mxu0 %v3583
        %5074 = vmatmul.mubr.bf16.gmra.mrb[0].mxu0 %v3582
        %v5075 = vpop.f32.mrb[0].mxu0
        %v5076 = vadd.f32 %v4851, %v5075
        %v5077 = vpop.f32.mrb[0].mxu0
        %v5078 = vpop.f32.mrb[0].mxu0
        %v5079 = vadd.f32 %v4854, %v5078
        %v5080 = vpop.f32.mrb[0].mxu0
        %5081 = vmatprep.mubr.bf16.mxu0 %v3592
        %5082 = vmatmul.mubr.bf16.gmra.mrb[0].mxu0 %v3591
        %v5083 = vpop.f32.mrb[0].mxu0
        %v5084 = vadd.f32 %v4859, %v5083
        %v5085 = vpop.f32.mrb[0].mxu0
        %v5086 = vpop.f32.mrb[0].mxu0
        %v5087 = vadd.f32 %v4862, %v5086
        %v5088 = vpop.f32.mrb[0].mxu0
        %5089 = vmatprep.mubr.bf16.mxu0 %v3601
        %5090 = vmatmul.mubr.bf16.gmra.mrb[0].mxu0 %v3600
        %v5091 = vpop.f32.mrb[0].mxu0
        %v5092 = vadd.f32 %v4867, %v5091
        %v5093 = vpop.f32.mrb[0].mxu0
        %v5094 = vpop.f32.mrb[0].mxu0
        %v5095 = vadd.f32 %v4870, %v5094
        %v5096 = vpop.f32.mrb[0].mxu0
        %5097 = vmatprep.mubr.bf16.mxu0 %v3610
        %5098 = vmatmul.mubr.bf16.gmra.mrb[0].mxu0 %v3609
        %v5099 = vpop.f32.mrb[0].mxu0
        %v5100 = vadd.f32 %v4875, %v5099
        %v5101 = vpop.f32.mrb[0].mxu0
        %v5102 = vpop.f32.mrb[0].mxu0
        %v5103 = vadd.f32 %v4878, %v5102
        %v5104 = vpop.f32.mrb[0].mxu0
        %5105 = vmatprep.mubr.bf16.mxu0 %v3619
        %5106 = vmatmul.mubr.bf16.gmra.mrb[0].mxu0 %v3618
        %v5107 = vpop.f32.mrb[0].mxu0
        %v5108 = vadd.f32 %v4883, %v5107
        %v5109 = vpop.f32.mrb[0].mxu0
        %v5110 = vpop.f32.mrb[0].mxu0
        %v5111 = vadd.f32 %v4886, %v5110
        %v5112 = vpop.f32.mrb[0].mxu0
        %5113 = vmatprep.mubr.bf16.mxu0 %v3628
        %5114 = vmatmul.mubr.bf16.gmra.mrb[0].mxu0 %v3627
        %v5115 = vpop.f32.mrb[0].mxu0
        %v5116 = vadd.f32 %v4891, %v5115
        %v5117 = vpop.f32.mrb[0].mxu0
        %v5118 = vpop.f32.mrb[0].mxu0
        %v5119 = vadd.f32 %v4894, %v5118
        %v5120 = vpop.f32.mrb[0].mxu0
        %5121 = vmatprep.mubr.bf16.mxu0 %v3637
        %5122 = vmatmul.mubr.bf16.gmra.mrb[0].mxu0 %v3636
        %v5123 = vpop.f32.mrb[0].mxu0
        %v5124 = vadd.f32 %v4899, %v5123
        %v5125 = vpop.f32.mrb[0].mxu0
        %v5126 = vpop.f32.mrb[0].mxu0
        %v5127 = vadd.f32 %v4902, %v5126
        %v5128 = vpop.f32.mrb[0].mxu0
        %5129 = vmatprep.mubr.bf16.mxu0 %v3646
        %5130 = vmatmul.mubr.bf16.gmra.mrb[0].mxu0 %v3645
        %v5131 = vpop.f32.mrb[0].mxu0
        %v5132 = vadd.f32 %v4907, %v5131
        %v5133 = vpop.f32.mrb[0].mxu0
        %v5134 = vpop.f32.mrb[0].mxu0
        %v5135 = vadd.f32 %v4910, %v5134
        %v5136 = vpop.f32.mrb[0].mxu0
        %5137 = vmatprep.mubr.bf16.mxu0 %v3655
        %5138 = vmatmul.mubr.bf16.gmra.mrb[0].mxu0 %v3654
        %v5139 = vpop.f32.mrb[0].mxu0
        %v5140 = vadd.f32 %v4915, %v5139
        %v5141 = vpop.f32.mrb[0].mxu0
        %v5142 = vpop.f32.mrb[0].mxu0
        %v5143 = vadd.f32 %v4918, %v5142
        %v5144 = vpop.f32.mrb[0].mxu0
        %5145 = vmatprep.mubr.bf16.mxu0 %v3664
        %5146 = vmatmul.mubr.bf16.gmra.mrb[0].mxu0 %v3663
        %v5147 = vpop.f32.mrb[0].mxu0
        %v5148 = vadd.f32 %v4923, %v5147
        %v5149 = vpop.f32.mrb[0].mxu0
        %v5150 = vpop.f32.mrb[0].mxu0
        %v5151 = vadd.f32 %v4926, %v5150
        %v5152 = vpop.f32.mrb[0].mxu0
        %5153 = vmatprep.mubr.bf16.mxu0 %v3673
        %5154 = vmatmul.mubr.bf16.gmra.mrb[0].mxu0 %v3672
        %v5155 = vpop.f32.mrb[0].mxu0
        %v5156 = vadd.f32 %v4931, %v5155
        %v5157 = vpop.f32.mrb[0].mxu0
        %v5158 = vpop.f32.mrb[0].mxu0
        %v5159 = vadd.f32 %v4934, %v5158
        %v5160 = vpop.f32.mrb[0].mxu0
        %5161 = vmatprep.mubr.bf16.mxu0 %v3682
        %5162 = vmatmul.mubr.bf16.gmra.mrb[0].mxu0 %v3681
        %v5163 = vpop.f32.mrb[0].mxu0
        %v5164 = vadd.f32 %v4939, %v5163
        %v5165 = vpop.f32.mrb[0].mxu0
        %v5166 = vpop.f32.mrb[0].mxu0
        %v5167 = vadd.f32 %v4942, %v5166
        %v5168 = vpop.f32.mrb[0].mxu0
        %5169 = vmatprep.mubr.bf16.mxu0 %v3691
        %5170 = vmatmul.mubr.bf16.gmra.mrb[0].mxu0 %v3690
        %v5171 = vpop.f32.mrb[0].mxu0
        %v5172 = vadd.f32 %v4947, %v5171
        %v5173 = vpop.f32.mrb[0].mxu0
        %v5174 = vpop.f32.mrb[0].mxu0
        %v5175 = vadd.f32 %v4950, %v5174
        %v5176 = vpop.f32.mrb[0].mxu0
        %5177 = vmatprep.mubr.bf16.mxu0 %v3700
        %5178 = vmatmul.mubr.bf16.gmra.mrb[0].mxu0 %v3699
        %v5179 = vpop.f32.mrb[0].mxu0
        %v5180 = vadd.f32 %v4955, %v5179
        %v5181 = vpop.f32.mrb[0].mxu0
        %v5182 = vpop.f32.mrb[0].mxu0
        %v5183 = vadd.f32 %v4958, %v5182
        %v5184 = vpop.f32.mrb[0].mxu0
        %5185 = vmatprep.mubr.bf16.mxu0 %v3709
        %5186 = vmatmul.mubr.bf16.gmra.mrb[0].mxu0 %v3708
        %v5187 = vpop.f32.mrb[0].mxu0
        %v5188 = vadd.f32 %v4963, %v5187
        %v5189 = vpop.f32.mrb[0].mxu0
        %v5190 = vpop.f32.mrb[0].mxu0
        %v5191 = vadd.f32 %v4966, %v5190
        %v5192 = vpop.f32.mrb[0].mxu0
        %5193 = vdwg.mxu0
        %5194 = vmatprep.subr.bf16.mxu0 0
        %5195 = vmatpush1.bf16.msra.mxu0 %v4214
        %5196 = vmatprep.subr.bf16.mxu0 0
        %5197 = vmatpush1.bf16.msra.mxu0 %v4215
        %5198 = vmatprep.subr.bf16.mxu0 0
        %5199 = vmatpush1.bf16.msra.mxu0 %v4216
        %5200 = vmatprep.subr.bf16.mxu0 0
        %5201 = vmatpush1.bf16.msra.mxu0 %v4217
        %5202 = vmatprep.subr.bf16.mxu0 0
        %5203 = vmatpush1.bf16.msra.mxu0 %v4218
        %5204 = vmatprep.subr.bf16.mxu0 0
        %5205 = vmatpush1.bf16.msra.mxu0 %v4219
        %5206 = vmatprep.subr.bf16.mxu0 0
        %5207 = vmatpush1.bf16.msra.mxu0 %v4220
        %5208 = vmatprep.subr.bf16.mxu0 0
        %5209 = vmatpush1.bf16.msra.mxu0 %v4221
        %5210 = vmatprep.subr.bf16.mxu0 0
        %5211 = vmatpush1.bf16.msra.mxu0 0
        %5212 = vmatprep.subr.bf16.mxu0 0
        %5213 = vmatpush1.bf16.msra.mxu0 0
        %5214 = vmatprep.subr.bf16.mxu0 0
        %5215 = vmatpush1.bf16.msra.mxu0 0
        %5216 = vmatprep.subr.bf16.mxu0 0
        %5217 = vmatpush1.bf16.msra.mxu0 0
        %5218 = vmatprep.subr.bf16.mxu0 0
        %5219 = vmatpush1.bf16.msra.mxu0 0
        %5220 = vmatprep.subr.bf16.mxu0 0
        %5221 = vmatpush1.bf16.msra.mxu0 0
        %5222 = vmatprep.subr.bf16.mxu0 0
        %5223 = vmatpush1.bf16.msra.mxu0 0
        %5224 = vmatprep.subr.bf16.mxu0 0
        %5225 = vmatpush1.bf16.msra.mxu0 0
        %5226 = vmatprep.mubr.bf16.mxu0 0
        %5227 = vmatmul.mubr.bf16.gmra.mrb[0].mxu0 %v3503
        %v5228 = vpop.f32.mrb[0].mxu0
        %v5229 = vadd.f32 %v5004, %v5228
        %v5230 = vpop.f32.mrb[0].mxu0
        %v5231 = vpop.f32.mrb[0].mxu0
        %v5232 = vadd.f32 %v5007, %v5231
        %v5233 = vpop.f32.mrb[0].mxu0
        %5234 = vmatprep.mubr.bf16.mxu0 0
        %5235 = vmatmul.mubr.bf16.gmra.mrb[0].mxu0 %v3512
        %v5236 = vpop.f32.mrb[0].mxu0
        %v5237 = vadd.f32 %v5012, %v5236
        %v5238 = vpop.f32.mrb[0].mxu0
        %v5239 = vpop.f32.mrb[0].mxu0
        %v5240 = vadd.f32 %v5015, %v5239
        %v5241 = vpop.f32.mrb[0].mxu0
        %5242 = vmatprep.mubr.bf16.mxu0 0
        %5243 = vmatmul.mubr.bf16.gmra.mrb[0].mxu0 %v3521
        %v5244 = vpop.f32.mrb[0].mxu0
        %v5245 = vadd.f32 %v5020, %v5244
        %v5246 = vpop.f32.mrb[0].mxu0
        %v5247 = vpop.f32.mrb[0].mxu0
        %v5248 = vadd.f32 %v5023, %v5247
        %v5249 = vpop.f32.mrb[0].mxu0
        %5250 = vmatprep.mubr.bf16.mxu0 0
        %5251 = vmatmul.mubr.bf16.gmra.mrb[0].mxu0 %v3530
        %v5252 = vpop.f32.mrb[0].mxu0
        %v5253 = vadd.f32 %v5028, %v5252
        %v5254 = vpop.f32.mrb[0].mxu0
        %v5255 = vpop.f32.mrb[0].mxu0
        %v5256 = vadd.f32 %v5031, %v5255
        %v5257 = vpop.f32.mrb[0].mxu0
        %5258 = vmatprep.mubr.bf16.mxu0 0
        %5259 = vmatmul.mubr.bf16.gmra.mrb[0].mxu0 %v3539
        %v5260 = vpop.f32.mrb[0].mxu0
        %v5261 = vadd.f32 %v5036, %v5260
        %v5262 = vpop.f32.mrb[0].mxu0
        %v5263 = vpop.f32.mrb[0].mxu0
        %v5264 = vadd.f32 %v5039, %v5263
        %v5265 = vpop.f32.mrb[0].mxu0
        %5266 = vmatprep.mubr.bf16.mxu0 0
        %5267 = vmatmul.mubr.bf16.gmra.mrb[0].mxu0 %v3548
        %v5268 = vpop.f32.mrb[0].mxu0
        %v5269 = vadd.f32 %v5044, %v5268
        %v5270 = vpop.f32.mrb[0].mxu0
        %v5271 = vpop.f32.mrb[0].mxu0
        %v5272 = vadd.f32 %v5047, %v5271
        %v5273 = vpop.f32.mrb[0].mxu0
        %5274 = vmatprep.mubr.bf16.mxu0 0
        %5275 = vmatmul.mubr.bf16.gmra.mrb[0].mxu0 %v3557
        %v5276 = vpop.f32.mrb[0].mxu0
        %v5277 = vadd.f32 %v5052, %v5276
        %v5278 = vpop.f32.mrb[0].mxu0
        %v5279 = vpop.f32.mrb[0].mxu0
        %v5280 = vadd.f32 %v5055, %v5279
        %v5281 = vpop.f32.mrb[0].mxu0
        %5282 = vmatprep.mubr.bf16.mxu0 0
        %5283 = vmatmul.mubr.bf16.gmra.mrb[0].mxu0 %v3566
        %v5284 = vpop.f32.mrb[0].mxu0
        %v5285 = vadd.f32 %v5060, %v5284
        %v5286 = vpop.f32.mrb[0].mxu0
        %v5287 = vpop.f32.mrb[0].mxu0
        %v5288 = vadd.f32 %v5063, %v5287
        %v5289 = vpop.f32.mrb[0].mxu0
        %5290 = vmatprep.mubr.bf16.mxu0 0
        %5291 = vmatmul.mubr.bf16.gmra.mrb[0].mxu0 %v3575
        %v5292 = vpop.f32.mrb[0].mxu0
        %v5293 = vadd.f32 %v5068, %v5292
        %v5294 = vpop.f32.mrb[0].mxu0
        %v5295 = vpop.f32.mrb[0].mxu0
        %v5296 = vadd.f32 %v5071, %v5295
        %v5297 = vpop.f32.mrb[0].mxu0
        %5298 = vmatprep.mubr.bf16.mxu0 0
        %5299 = vmatmul.mubr.bf16.gmra.mrb[0].mxu0 %v3584
        %v5300 = vpop.f32.mrb[0].mxu0
        %v5301 = vadd.f32 %v5076, %v5300
        %v5302 = vpop.f32.mrb[0].mxu0
        %v5303 = vpop.f32.mrb[0].mxu0
        %v5304 = vadd.f32 %v5079, %v5303
        %v5305 = vpop.f32.mrb[0].mxu0
        %5306 = vmatprep.mubr.bf16.mxu0 0
        %5307 = vmatmul.mubr.bf16.gmra.mrb[0].mxu0 %v3593
        %v5308 = vpop.f32.mrb[0].mxu0
        %v5309 = vadd.f32 %v5084, %v5308
        %v5310 = vpop.f32.mrb[0].mxu0
        %v5311 = vpop.f32.mrb[0].mxu0
        %v5312 = vadd.f32 %v5087, %v5311
        %v5313 = vpop.f32.mrb[0].mxu0
        %5314 = vmatprep.mubr.bf16.mxu0 0
        %5315 = vmatmul.mubr.bf16.gmra.mrb[0].mxu0 %v3602
        %v5316 = vpop.f32.mrb[0].mxu0
        %v5317 = vadd.f32 %v5092, %v5316
        %v5318 = vpop.f32.mrb[0].mxu0
        %v5319 = vpop.f32.mrb[0].mxu0
        %v5320 = vadd.f32 %v5095, %v5319
        %v5321 = vpop.f32.mrb[0].mxu0
        %5322 = vmatprep.mubr.bf16.mxu0 0
        %5323 = vmatmul.mubr.bf16.gmra.mrb[0].mxu0 %v3611
        %v5324 = vpop.f32.mrb[0].mxu0
        %v5325 = vadd.f32 %v5100, %v5324
        %v5326 = vpop.f32.mrb[0].mxu0
        %v5327 = vpop.f32.mrb[0].mxu0
        %v5328 = vadd.f32 %v5103, %v5327
        %v5329 = vpop.f32.mrb[0].mxu0
        %5330 = vmatprep.mubr.bf16.mxu0 0
        %5331 = vmatmul.mubr.bf16.gmra.mrb[0].mxu0 %v3620
        %v5332 = vpop.f32.mrb[0].mxu0
        %v5333 = vadd.f32 %v5108, %v5332
        %v5334 = vpop.f32.mrb[0].mxu0
        %v5335 = vpop.f32.mrb[0].mxu0
        %v5336 = vadd.f32 %v5111, %v5335
        %v5337 = vpop.f32.mrb[0].mxu0
        %5338 = vmatprep.mubr.bf16.mxu0 0
        %5339 = vmatmul.mubr.bf16.gmra.mrb[0].mxu0 %v3629
        %v5340 = vpop.f32.mrb[0].mxu0
        %v5341 = vadd.f32 %v5116, %v5340
        %v5342 = vpop.f32.mrb[0].mxu0
        %v5343 = vpop.f32.mrb[0].mxu0
        %v5344 = vadd.f32 %v5119, %v5343
        %v5345 = vpop.f32.mrb[0].mxu0
        %5346 = vmatprep.mubr.bf16.mxu0 0
        %5347 = vmatmul.mubr.bf16.gmra.mrb[0].mxu0 %v3638
        %v5348 = vpop.f32.mrb[0].mxu0
        %v5349 = vadd.f32 %v5124, %v5348
        %v5350 = vpop.f32.mrb[0].mxu0
        %v5351 = vpop.f32.mrb[0].mxu0
        %v5352 = vadd.f32 %v5127, %v5351
        %v5353 = vpop.f32.mrb[0].mxu0
        %5354 = vmatprep.mubr.bf16.mxu0 0
        %5355 = vmatmul.mubr.bf16.gmra.mrb[0].mxu0 %v3647
        %v5356 = vpop.f32.mrb[0].mxu0
        %v5357 = vadd.f32 %v5132, %v5356
        %v5358 = vpop.f32.mrb[0].mxu0
        %v5359 = vpop.f32.mrb[0].mxu0
        %v5360 = vadd.f32 %v5135, %v5359
        %v5361 = vpop.f32.mrb[0].mxu0
        %5362 = vmatprep.mubr.bf16.mxu0 0
        %5363 = vmatmul.mubr.bf16.gmra.mrb[0].mxu0 %v3656
        %v5364 = vpop.f32.mrb[0].mxu0
        %v5365 = vadd.f32 %v5140, %v5364
        %v5366 = vpop.f32.mrb[0].mxu0
        %v5367 = vpop.f32.mrb[0].mxu0
        %v5368 = vadd.f32 %v5143, %v5367
        %v5369 = vpop.f32.mrb[0].mxu0
        %5370 = vmatprep.mubr.bf16.mxu0 0
        %5371 = vmatmul.mubr.bf16.gmra.mrb[0].mxu0 %v3665
        %v5372 = vpop.f32.mrb[0].mxu0
        %v5373 = vadd.f32 %v5148, %v5372
        %v5374 = vpop.f32.mrb[0].mxu0
        %v5375 = vpop.f32.mrb[0].mxu0
        %v5376 = vadd.f32 %v5151, %v5375
        %v5377 = vpop.f32.mrb[0].mxu0
        %5378 = vmatprep.mubr.bf16.mxu0 0
        %5379 = vmatmul.mubr.bf16.gmra.mrb[0].mxu0 %v3674
        %v5380 = vpop.f32.mrb[0].mxu0
        %v5381 = vadd.f32 %v5156, %v5380
        %v5382 = vpop.f32.mrb[0].mxu0
        %v5383 = vpop.f32.mrb[0].mxu0
        %v5384 = vadd.f32 %v5159, %v5383
        %v5385 = vpop.f32.mrb[0].mxu0
        %5386 = vmatprep.mubr.bf16.mxu0 0
        %5387 = vmatmul.mubr.bf16.gmra.mrb[0].mxu0 %v3683
        %v5388 = vpop.f32.mrb[0].mxu0
        %v5389 = vadd.f32 %v5164, %v5388
        %v5390 = vpop.f32.mrb[0].mxu0
        %v5391 = vpop.f32.mrb[0].mxu0
        %v5392 = vadd.f32 %v5167, %v5391
        %v5393 = vpop.f32.mrb[0].mxu0
        %5394 = vmatprep.mubr.bf16.mxu0 0
        %5395 = vmatmul.mubr.bf16.gmra.mrb[0].mxu0 %v3692
        %v5396 = vpop.f32.mrb[0].mxu0
        %v5397 = vadd.f32 %v5172, %v5396
        %v5398 = vpop.f32.mrb[0].mxu0
        %v5399 = vpop.f32.mrb[0].mxu0
        %v5400 = vadd.f32 %v5175, %v5399
        %v5401 = vpop.f32.mrb[0].mxu0
        %5402 = vmatprep.mubr.bf16.mxu0 0
        %5403 = vmatmul.mubr.bf16.gmra.mrb[0].mxu0 %v3701
        %v5404 = vpop.f32.mrb[0].mxu0
        %v5405 = vadd.f32 %v5180, %v5404
        %v5406 = vpop.f32.mrb[0].mxu0
        %v5407 = vpop.f32.mrb[0].mxu0
        %v5408 = vadd.f32 %v5183, %v5407
        %v5409 = vpop.f32.mrb[0].mxu0
        %5410 = vmatprep.mubr.bf16.mxu0 0
        %5411 = vmatmul.mubr.bf16.gmra.mrb[0].mxu0 %v3710
        %v5412 = vpop.f32.mrb[0].mxu0
        %v5413 = vadd.f32 %v5188, %v5412
        %v5414 = vpop.f32.mrb[0].mxu0
        %v5415 = vpop.f32.mrb[0].mxu0
        %v5416 = vadd.f32 %v5191, %v5415
        %v5417 = vpop.f32.mrb[0].mxu0
        %5418 = vdwg.mxu0
        %v5419 = vmul.f32 %v5229, 0.5
        %v5420 = vmul.f32 %v5232, 0.5
        %v5421 = vmul.f32 %v5237, 0.5
        %v5422 = vmul.f32 %v5240, 0.5
        %v5423 = vmul.f32 %v5245, 0.5
        %v5424 = vmul.f32 %v5248, 0.5
        %v5425 = vmul.f32 %v5253, 0.5
        %v5426 = vmul.f32 %v5256, 0.5
        %v5427 = vmul.f32 %v5261, 0.5
        %v5428 = vmul.f32 %v5264, 0.5
        %v5429 = vmul.f32 %v5269, 0.5
        %v5430 = vmul.f32 %v5272, 0.5
        %v5431 = vmul.f32 %v5277, 0.5
        %v5432 = vmul.f32 %v5280, 0.5
        %v5433 = vmul.f32 %v5285, 0.5
        %v5434 = vmul.f32 %v5288, 0.5
        %v5435 = vmul.f32 %v5293, 0.5
        %v5436 = vmul.f32 %v5296, 0.5
        %v5437 = vmul.f32 %v5301, 0.5
        %v5438 = vmul.f32 %v5304, 0.5
        %v5439 = vmul.f32 %v5309, 0.5
        %v5440 = vmul.f32 %v5312, 0.5
        %v5441 = vmul.f32 %v5317, 0.5
        %v5442 = vmul.f32 %v5320, 0.5
        %v5443 = vmul.f32 %v5325, 0.5
        %v5444 = vmul.f32 %v5328, 0.5
        %v5445 = vmul.f32 %v5333, 0.5
        %v5446 = vmul.f32 %v5336, 0.5
        %v5447 = vmul.f32 %v5341, 0.5
        %v5448 = vmul.f32 %v5344, 0.5
        %v5449 = vmul.f32 %v5349, 0.5
        %v5450 = vmul.f32 %v5352, 0.5
        %v5451 = vmul.f32 %v5357, 0.5
        %v5452 = vmul.f32 %v5360, 0.5
        %v5453 = vmul.f32 %v5365, 0.5
        %v5454 = vmul.f32 %v5368, 0.5
        %v5455 = vmul.f32 %v5373, 0.5
        %v5456 = vmul.f32 %v5376, 0.5
        %v5457 = vmul.f32 %v5381, 0.5
        %v5458 = vmul.f32 %v5384, 0.5
        %v5459 = vmul.f32 %v5389, 0.5
        %v5460 = vmul.f32 %v5392, 0.5
        %v5461 = vmul.f32 %v5397, 0.5
        %v5462 = vmul.f32 %v5400, 0.5
        %v5463 = vmul.f32 %v5405, 0.5
        %v5464 = vmul.f32 %v5408, 0.5
        %v5465 = vmul.f32 %v5413, 0.5
        %v5466 = vmul.f32 %v5416, 0.5
        %v5467 = vtanh.pop %v5419
        %v5468 = vtanh.pop %v5420
        %v5469 = vtanh.pop %v5421
        %v5470 = vtanh.pop %v5422
        %v5471 = vtanh.pop %v5423
        %v5472 = vtanh.pop %v5424
        %v5473 = vtanh.pop %v5425
        %v5474 = vtanh.pop %v5426
        %v5475 = vtanh.pop %v5427
        %v5476 = vtanh.pop %v5428
        %v5477 = vtanh.pop %v5429
        %v5478 = vtanh.pop %v5430
        %v5479 = vtanh.pop %v5431
        %v5480 = vtanh.pop %v5432
        %v5481 = vtanh.pop %v5433
        %v5482 = vtanh.pop %v5434
        %v5483 = vtanh.pop %v5435
        %v5484 = vtanh.pop %v5436
        %v5485 = vtanh.pop %v5437
        %v5486 = vtanh.pop %v5438
        %v5487 = vtanh.pop %v5439
        %v5488 = vtanh.pop %v5440
        %v5489 = vtanh.pop %v5441
        %v5490 = vtanh.pop %v5442
        %v5491 = vtanh.pop %v5443
        %v5492 = vtanh.pop %v5444
        %v5493 = vtanh.pop %v5445
        %v5494 = vtanh.pop %v5446
        %v5495 = vtanh.pop %v5447
        %v5496 = vtanh.pop %v5448
        %v5497 = vtanh.pop %v5449
        %v5498 = vtanh.pop %v5450
        %v5499 = vtanh.pop %v5451
        %v5500 = vtanh.pop %v5452
        %v5501 = vtanh.pop %v5453
        %v5502 = vtanh.pop %v5454
        %v5503 = vtanh.pop %v5455
        %v5504 = vtanh.pop %v5456
        %v5505 = vtanh.pop %v5457
        %v5506 = vtanh.pop %v5458
        %v5507 = vtanh.pop %v5459
        %v5508 = vtanh.pop %v5460
        %v5509 = vtanh.pop %v5461
        %v5510 = vtanh.pop %v5462
        %v5511 = vtanh.pop %v5463
        %v5512 = vtanh.pop %v5464
        %v5513 = vtanh.pop %v5465
        %v5514 = vtanh.pop %v5466
        %v5515 = vadd.f32 %v5467, 1.0
        %v5516 = vadd.f32 %v5468, 1.0
        %v5517 = vadd.f32 %v5469, 1.0
        %v5518 = vadd.f32 %v5470, 1.0
        %v5519 = vadd.f32 %v5471, 1.0
        %v5520 = vadd.f32 %v5472, 1.0
        %v5521 = vadd.f32 %v5473, 1.0
        %v5522 = vadd.f32 %v5474, 1.0
        %v5523 = vadd.f32 %v5475, 1.0
        %v5524 = vadd.f32 %v5476, 1.0
        %v5525 = vadd.f32 %v5477, 1.0
        %v5526 = vadd.f32 %v5478, 1.0
        %v5527 = vadd.f32 %v5479, 1.0
        %v5528 = vadd.f32 %v5480, 1.0
        %v5529 = vadd.f32 %v5481, 1.0
        %v5530 = vadd.f32 %v5482, 1.0
        %v5531 = vadd.f32 %v5483, 1.0
        %v5532 = vadd.f32 %v5484, 1.0
        %v5533 = vadd.f32 %v5485, 1.0
        %v5534 = vadd.f32 %v5486, 1.0
        %v5535 = vadd.f32 %v5487, 1.0
        %v5536 = vadd.f32 %v5488, 1.0
        %v5537 = vadd.f32 %v5489, 1.0
        %v5538 = vadd.f32 %v5490, 1.0
        %v5539 = vadd.f32 %v5491, 1.0
        %v5540 = vadd.f32 %v5492, 1.0
        %v5541 = vadd.f32 %v5493, 1.0
        %v5542 = vadd.f32 %v5494, 1.0
        %v5543 = vadd.f32 %v5495, 1.0
        %v5544 = vadd.f32 %v5496, 1.0
        %v5545 = vadd.f32 %v5497, 1.0
        %v5546 = vadd.f32 %v5498, 1.0
        %v5547 = vadd.f32 %v5499, 1.0
        %v5548 = vadd.f32 %v5500, 1.0
        %v5549 = vadd.f32 %v5501, 1.0
        %v5550 = vadd.f32 %v5502, 1.0
        %v5551 = vadd.f32 %v5503, 1.0
        %v5552 = vadd.f32 %v5504, 1.0
        %v5553 = vadd.f32 %v5505, 1.0
        %v5554 = vadd.f32 %v5506, 1.0
        %v5555 = vadd.f32 %v5507, 1.0
        %v5556 = vadd.f32 %v5508, 1.0
        %v5557 = vadd.f32 %v5509, 1.0
        %v5558 = vadd.f32 %v5510, 1.0
        %v5559 = vadd.f32 %v5511, 1.0
        %v5560 = vadd.f32 %v5512, 1.0
        %v5561 = vadd.f32 %v5513, 1.0
        %v5562 = vadd.f32 %v5514, 1.0
        %v5563 = vmul.f32 %v5515, 0.5
        %v5564 = vmul.f32 %v5516, 0.5
        %v5565 = vmul.f32 %v5517, 0.5
        %v5566 = vmul.f32 %v5518, 0.5
        %v5567 = vmul.f32 %v5519, 0.5
        %v5568 = vmul.f32 %v5520, 0.5
        %v5569 = vmul.f32 %v5521, 0.5
        %v5570 = vmul.f32 %v5522, 0.5
        %v5571 = vmul.f32 %v5523, 0.5
        %v5572 = vmul.f32 %v5524, 0.5
        %v5573 = vmul.f32 %v5525, 0.5
        %v5574 = vmul.f32 %v5526, 0.5
        %v5575 = vmul.f32 %v5527, 0.5
        %v5576 = vmul.f32 %v5528, 0.5
        %v5577 = vmul.f32 %v5529, 0.5
        %v5578 = vmul.f32 %v5530, 0.5
        %v5579 = vmul.f32 %v5531, 0.5
        %v5580 = vmul.f32 %v5532, 0.5
        %v5581 = vmul.f32 %v5533, 0.5
        %v5582 = vmul.f32 %v5534, 0.5
        %v5583 = vmul.f32 %v5535, 0.5
        %v5584 = vmul.f32 %v5536, 0.5
        %v5585 = vmul.f32 %v5537, 0.5
        %v5586 = vmul.f32 %v5538, 0.5
        %v5587 = vmul.f32 %v5539, 0.5
        %v5588 = vmul.f32 %v5540, 0.5
        %v5589 = vmul.f32 %v5541, 0.5
        %v5590 = vmul.f32 %v5542, 0.5
        %v5591 = vmul.f32 %v5543, 0.5
        %v5592 = vmul.f32 %v5544, 0.5
        %v5593 = vmul.f32 %v5545, 0.5
        %v5594 = vmul.f32 %v5546, 0.5
        %v5595 = vmul.f32 %v5547, 0.5
        %v5596 = vmul.f32 %v5548, 0.5
        %v5597 = vmul.f32 %v5549, 0.5
        %v5598 = vmul.f32 %v5550, 0.5
        %v5599 = vmul.f32 %v5551, 0.5
        %v5600 = vmul.f32 %v5552, 0.5
        %v5601 = vmul.f32 %v5553, 0.5
        %v5602 = vmul.f32 %v5554, 0.5
        %v5603 = vmul.f32 %v5555, 0.5
        %v5604 = vmul.f32 %v5556, 0.5
        %v5605 = vmul.f32 %v5557, 0.5
        %v5606 = vmul.f32 %v5558, 0.5
        %v5607 = vmul.f32 %v5559, 0.5
        %v5608 = vmul.f32 %v5560, 0.5
        %v5609 = vmul.f32 %v5561, 0.5
        %v5610 = vmul.f32 %v5562, 0.5
        %v5611 = vmul.f32 %v5229, %v5563
        %v5612 = vmul.f32 %v5232, %v5564
        %v5613 = vmul.f32 %v5237, %v5565
        %v5614 = vmul.f32 %v5240, %v5566
        %v5615 = vmul.f32 %v5245, %v5567
        %v5616 = vmul.f32 %v5248, %v5568
        %v5617 = vmul.f32 %v5253, %v5569
        %v5618 = vmul.f32 %v5256, %v5570
        %v5619 = vmul.f32 %v5261, %v5571
        %v5620 = vmul.f32 %v5264, %v5572
        %v5621 = vmul.f32 %v5269, %v5573
        %v5622 = vmul.f32 %v5272, %v5574
        %v5623 = vmul.f32 %v5277, %v5575
        %v5624 = vmul.f32 %v5280, %v5576
        %v5625 = vmul.f32 %v5285, %v5577
        %v5626 = vmul.f32 %v5288, %v5578
        %v5627 = vmul.f32 %v5293, %v5579
        %v5628 = vmul.f32 %v5296, %v5580
        %v5629 = vmul.f32 %v5301, %v5581
        %v5630 = vmul.f32 %v5304, %v5582
        %v5631 = vmul.f32 %v5309, %v5583
        %v5632 = vmul.f32 %v5312, %v5584
        %v5633 = vmul.f32 %v5317, %v5585
        %v5634 = vmul.f32 %v5320, %v5586
        %v5635 = vmul.f32 %v5325, %v5587
        %v5636 = vmul.f32 %v5328, %v5588
        %v5637 = vmul.f32 %v5333, %v5589
        %v5638 = vmul.f32 %v5336, %v5590
        %v5639 = vmul.f32 %v5341, %v5591
        %v5640 = vmul.f32 %v5344, %v5592
        %v5641 = vmul.f32 %v5349, %v5593
        %v5642 = vmul.f32 %v5352, %v5594
        %v5643 = vmul.f32 %v5357, %v5595
        %v5644 = vmul.f32 %v5360, %v5596
        %v5645 = vmul.f32 %v5365, %v5597
        %v5646 = vmul.f32 %v5368, %v5598
        %v5647 = vmul.f32 %v5373, %v5599
        %v5648 = vmul.f32 %v5376, %v5600
        %v5649 = vmul.f32 %v5381, %v5601
        %v5650 = vmul.f32 %v5384, %v5602
        %v5651 = vmul.f32 %v5389, %v5603
        %v5652 = vmul.f32 %v5392, %v5604
        %v5653 = vmul.f32 %v5397, %v5605
        %v5654 = vmul.f32 %v5400, %v5606
        %v5655 = vmul.f32 %v5405, %v5607
        %v5656 = vmul.f32 %v5408, %v5608
        %v5657 = vmul.f32 %v5413, %v5609
        %v5658 = vmul.f32 %v5416, %v5610
        %v5659 = vpack.c.bf16 %v5612, %v5611
        %v5660 = vpack.c.bf16 %v5614, %v5613
        %v5661 = vpack.c.bf16 %v5616, %v5615
        %v5662 = vpack.c.bf16 %v5618, %v5617
        %v5663 = vpack.c.bf16 %v5620, %v5619
        %v5664 = vpack.c.bf16 %v5622, %v5621
        %v5665 = vpack.c.bf16 %v5624, %v5623
        %v5666 = vpack.c.bf16 %v5626, %v5625
        %v5667 = vpack.c.bf16 %v5628, %v5627
        %v5668 = vpack.c.bf16 %v5630, %v5629
        %v5669 = vpack.c.bf16 %v5632, %v5631
        %v5670 = vpack.c.bf16 %v5634, %v5633
        %v5671 = vpack.c.bf16 %v5636, %v5635
        %v5672 = vpack.c.bf16 %v5638, %v5637
        %v5673 = vpack.c.bf16 %v5640, %v5639
        %v5674 = vpack.c.bf16 %v5642, %v5641
        %v5675 = vpack.c.bf16 %v5644, %v5643
        %v5676 = vpack.c.bf16 %v5646, %v5645
        %v5677 = vpack.c.bf16 %v5648, %v5647
        %v5678 = vpack.c.bf16 %v5650, %v5649
        %v5679 = vpack.c.bf16 %v5652, %v5651
        %v5680 = vpack.c.bf16 %v5654, %v5653
        %v5681 = vpack.c.bf16 %v5656, %v5655
        %v5682 = vpack.c.bf16 %v5658, %v5657
        %v5707 = vunpack.c.l.b16 %v5659
        %v5708 = vunpack.c.h.b16 %v5659
        %v5709 = vunpack.c.l.b16 %v5660
        %v5710 = vunpack.c.h.b16 %v5660
        %v5711 = vunpack.c.l.b16 %v5661
        %v5712 = vunpack.c.h.b16 %v5661
        %v5713 = vunpack.c.l.b16 %v5662
        %v5714 = vunpack.c.h.b16 %v5662
        %v5715 = vunpack.c.l.b16 %v5663
        %v5716 = vunpack.c.h.b16 %v5663
        %v5717 = vunpack.c.l.b16 %v5664
        %v5718 = vunpack.c.h.b16 %v5664
        %v5719 = vunpack.c.l.b16 %v5665
        %v5720 = vunpack.c.h.b16 %v5665
        %v5721 = vunpack.c.l.b16 %v5666
        %v5722 = vunpack.c.h.b16 %v5666
        %v5723 = vunpack.c.l.b16 %v5667
        %v5724 = vunpack.c.h.b16 %v5667
        %v5725 = vunpack.c.l.b16 %v5668
        %v5726 = vunpack.c.h.b16 %v5668
        %v5727 = vunpack.c.l.b16 %v5669
        %v5728 = vunpack.c.h.b16 %v5669
        %v5729 = vunpack.c.l.b16 %v5670
        %v5730 = vunpack.c.h.b16 %v5670
        %v5731 = vunpack.c.l.b16 %v5671
        %v5732 = vunpack.c.h.b16 %v5671
        %v5733 = vunpack.c.l.b16 %v5672
        %v5734 = vunpack.c.h.b16 %v5672
        %v5735 = vunpack.c.l.b16 %v5673
        %v5736 = vunpack.c.h.b16 %v5673
        %v5737 = vunpack.c.l.b16 %v5674
        %v5738 = vunpack.c.h.b16 %v5674
        %v5739 = vunpack.c.l.b16 %v5675
        %v5740 = vunpack.c.h.b16 %v5675
        %v5741 = vunpack.c.l.b16 %v5676
        %v5742 = vunpack.c.h.b16 %v5676
        %v5743 = vunpack.c.l.b16 %v5677
        %v5744 = vunpack.c.h.b16 %v5677
        %v5745 = vunpack.c.l.b16 %v5678
        %v5746 = vunpack.c.h.b16 %v5678
        %v5747 = vunpack.c.l.b16 %v5679
        %v5748 = vunpack.c.h.b16 %v5679
        %v5749 = vunpack.c.l.b16 %v5680
        %v5750 = vunpack.c.h.b16 %v5680
        %v5751 = vunpack.c.l.b16 %v5681
        %v5752 = vunpack.c.h.b16 %v5681
        %v5753 = vunpack.c.l.b16 %v5682
        %v5754 = vunpack.c.h.b16 %v5682
        %v5755 = vpack.c.b16 %v5707, %v5707
        %v5756 = vpack.c.b16 %v5708, %v5708
        %v5757 = vpack.c.b16 %v5709, %v5709
        %v5758 = vpack.c.b16 %v5710, %v5710
        %v5759 = vpack.c.b16 %v5711, %v5711
        %v5760 = vpack.c.b16 %v5712, %v5712
        %v5761 = vpack.c.b16 %v5713, %v5713
        %v5762 = vpack.c.b16 %v5714, %v5714
        %v5763 = vpack.c.b16 %v5715, %v5715
        %v5764 = vpack.c.b16 %v5716, %v5716
        %v5765 = vpack.c.b16 %v5717, %v5717
        %v5766 = vpack.c.b16 %v5718, %v5718
        %v5767 = vpack.c.b16 %v5719, %v5719
        %v5768 = vpack.c.b16 %v5720, %v5720
        %v5769 = vpack.c.b16 %v5721, %v5721
        %v5770 = vpack.c.b16 %v5722, %v5722
        %v5771 = vpack.c.b16 %v5723, %v5723
        %v5772 = vpack.c.b16 %v5724, %v5724
        %v5773 = vpack.c.b16 %v5725, %v5725
        %v5774 = vpack.c.b16 %v5726, %v5726
        %v5775 = vpack.c.b16 %v5727, %v5727
        %v5776 = vpack.c.b16 %v5728, %v5728
        %v5777 = vpack.c.b16 %v5729, %v5729
        %v5778 = vpack.c.b16 %v5730, %v5730
        %v5779 = vpack.c.b16 %v5731, %v5731
        %v5780 = vpack.c.b16 %v5732, %v5732
        %v5781 = vpack.c.b16 %v5733, %v5733
        %v5782 = vpack.c.b16 %v5734, %v5734
        %v5783 = vpack.c.b16 %v5735, %v5735
        %v5784 = vpack.c.b16 %v5736, %v5736
        %v5785 = vpack.c.b16 %v5737, %v5737
        %v5786 = vpack.c.b16 %v5738, %v5738
        %v5787 = vpack.c.b16 %v5739, %v5739
        %v5788 = vpack.c.b16 %v5740, %v5740
        %v5789 = vpack.c.b16 %v5741, %v5741
        %v5790 = vpack.c.b16 %v5742, %v5742
        %v5791 = vpack.c.b16 %v5743, %v5743
        %v5792 = vpack.c.b16 %v5744, %v5744
        %v5793 = vpack.c.b16 %v5745, %v5745
        %v5794 = vpack.c.b16 %v5746, %v5746
        %v5795 = vpack.c.b16 %v5747, %v5747
        %v5796 = vpack.c.b16 %v5748, %v5748
        %v5797 = vpack.c.b16 %v5749, %v5749
        %v5798 = vpack.c.b16 %v5750, %v5750
        %v5799 = vpack.c.b16 %v5751, %v5751
        %v5800 = vpack.c.b16 %v5752, %v5752
        %v5801 = vpack.c.b16 %v5753, %v5753
        %v5802 = vpack.c.b16 %v5754, %v5754
        %5851 = vst [vmem:[%s294] sm:$0xf] %v5755
        %5852 = vst [vmem:[%s294 + $0x4] sm:$0xf] %v5756
        %5853 = vst [vmem:[%s294 + $0x8] sm:$0xf] %v5757
        %5854 = vst [vmem:[%s294 + $0xc] sm:$0xf] %v5758
        %5855 = vst [vmem:[%s294 + $0x10] sm:$0xf] %v5759
        %5856 = vst [vmem:[%s294 + $0x14] sm:$0xf] %v5760
        %5857 = vst [vmem:[%s294 + $0x18] sm:$0xf] %v5761
        %5858 = vst [vmem:[%s294 + $0x1c] sm:$0xf] %v5762
        %5859 = vst [vmem:[%s294 + $0x20] sm:$0xf] %v5763
        %5860 = vst [vmem:[%s294 + $0x24] sm:$0xf] %v5764
        %5861 = vst [vmem:[%s294 + $0x28] sm:$0xf] %v5765
        %5862 = vst [vmem:[%s294 + $0x2c] sm:$0xf] %v5766
        %5863 = vst [vmem:[%s294 + $0x30] sm:$0xf] %v5767
        %5864 = vst [vmem:[%s294 + $0x34] sm:$0xf] %v5768
        %5865 = vst [vmem:[%s294 + $0x38] sm:$0xf] %v5769
        %5866 = vst [vmem:[%s294 + $0x3c] sm:$0xf] %v5770
        %5867 = vst [vmem:[%s294 + $0x40] sm:$0xf] %v5771
        %5868 = vst [vmem:[%s294 + $0x44] sm:$0xf] %v5772
        %5869 = vst [vmem:[%s294 + $0x48] sm:$0xf] %v5773
        %5870 = vst [vmem:[%s294 + $0x4c] sm:$0xf] %v5774
        %5871 = vst [vmem:[%s294 + $0x50] sm:$0xf] %v5775
        %5872 = vst [vmem:[%s294 + $0x54] sm:$0xf] %v5776
        %5873 = vst [vmem:[%s294 + $0x58] sm:$0xf] %v5777
        %5874 = vst [vmem:[%s294 + $0x5c] sm:$0xf] %v5778
        %5875 = vst [vmem:[%s294 + $0x60] sm:$0xf] %v5779
        %5876 = vst [vmem:[%s294 + $0x64] sm:$0xf] %v5780
        %5877 = vst [vmem:[%s294 + $0x68] sm:$0xf] %v5781
        %5878 = vst [vmem:[%s294 + $0x6c] sm:$0xf] %v5782
        %5879 = vst [vmem:[%s294 + $0x70] sm:$0xf] %v5783
        %5880 = vst [vmem:[%s294 + $0x74] sm:$0xf] %v5784
        %5881 = vst [vmem:[%s294 + $0x78] sm:$0xf] %v5785
        %5882 = vst [vmem:[%s294 + $0x7c] sm:$0xf] %v5786
        %5883 = vst [vmem:[%s294 + $0x80] sm:$0xf] %v5787
        %5884 = vst [vmem:[%s294 + $0x84] sm:$0xf] %v5788
        %5885 = vst [vmem:[%s294 + $0x88] sm:$0xf] %v5789
        %5886 = vst [vmem:[%s294 + $0x8c] sm:$0xf] %v5790
        %5887 = vst [vmem:[%s294 + $0x90] sm:$0xf] %v5791
        %5888 = vst [vmem:[%s294 + $0x94] sm:$0xf] %v5792
        %5889 = vst [vmem:[%s294 + $0x98] sm:$0xf] %v5793
        %5890 = vst [vmem:[%s294 + $0x9c] sm:$0xf] %v5794
        %5891 = vst [vmem:[%s294 + $0xa0] sm:$0xf] %v5795
        %5892 = vst [vmem:[%s294 + $0xa4] sm:$0xf] %v5796
        %5893 = vst [vmem:[%s294 + $0xa8] sm:$0xf] %v5797
        %5894 = vst [vmem:[%s294 + $0xac] sm:$0xf] %v5798
        %5895 = vst [vmem:[%s294 + $0xb0] sm:$0xf] %v5799
        %5896 = vst [vmem:[%s294 + $0xb4] sm:$0xf] %v5800
        %5897 = vst [vmem:[%s294 + $0xb8] sm:$0xf] %v5801
        %5898 = vst [vmem:[%s294 + $0xbc] sm:$0xf] %v5802
        %s5899 = sand.u32 %s158, 1
        %s5900 = scalar_lea.sflag [#allocation5], %s5899
        %s5901 = sand.u32 %s158, 1
        %s5902 = smul.addr %s5901, 192
        %s5903 = scalar_lea.vmem [#allocation6], %s5902
        // Predicated region
        $region45: #{tpu_custom_call.1} parent=35 // pred_check
          %p5904 = pneg %p168
        $region46: #{tpu_custom_call.1} parent=35 // pred_check_branch
          %5906 = sbr.rel (%p5904) target = $region48
        $region47: #{tpu_custom_call.1} parent=35 // pred_region
          %s5908 = ssub.s32 3072, 3072
          %5909 = vsyncadd %s5900, %s5908
          %s5910 = smul.addr %s25, 48
          %s5911 = sadd.s32 %s26, %s5910
          %s5912 = smul.addr %s24, 48
          %s5913 = sadd.s32 %s5911, %s5912
          %s5914 = smul.addr %s5913, 64
          %s5915 = scalar_lea.hbm %s4, %s5914
          %s5916 = sshll.u32 %s5903, 4
          %s5917 = int_to_ptr.vmem [resolvable:$true] %s5916
          %5922 = dma.vmem_to_hbm [thread:$0]  %s5917, 3072, %s5915, %s5900, 64, 64, 4
        $region48: #{tpu_custom_call.1} parent=35 // pred_fallthru
          _
      $region36: #{tpu_custom_call.1} parent=5 // pred_fallthru
        _
      %p5923 = scmp.le.s32.totalorder 2, %s14
      // Predicated region
      $region49: #{tpu_custom_call.1} parent=5 // pred_check
        %p5924 = pneg %p5923
      $region50: #{tpu_custom_call.1} parent=5 // pred_check_branch
        %5926 = sbr.rel (%p5924) target = $region52
      $region51: #{tpu_custom_call.1} parent=5 // pred_region
        %s5927 = ssub.s32 %s14, 2
        // Predicated region
        $region53: #{tpu_custom_call.1} parent=51 // pred_check
          %p5928 = pneg %p174
        $region54: #{tpu_custom_call.1} parent=51 // pred_check_branch
          %5930 = sbr.rel (%p5928) target = $region56
        $region55: #{tpu_custom_call.1} parent=51 // pred_region
          %s5931 = sand.u32 %s159, 1
          %s5932 = scalar_lea.sflag [#allocation5], %s5931
          %s5933 = sand.u32 %s159, 1
          %s5934 = smul.addr %s5933, 192
          %s5935 = scalar_lea.vmem [#allocation6], %s5934
          %5936 = dma.done %s5932, 3072
        $region56: #{tpu_custom_call.1} parent=51 // pred_fallthru
          _
      $region52: #{tpu_custom_call.1} parent=5 // pred_fallthru
        _
    $region6: #{tpu_custom_call.1} parent=1 // loop_footer
      %s18 = sadd.s32 1, %s14
    $region7: #{tpu_custom_call.1} parent=1 // loop_footer_branch
      %13 = sbr.rel target = $region3
    $region8: #{tpu_custom_call.1} parent=1 // loop_exit
      _
    %5937 = vsyncpa [#allocation4], 1
    %s5938 = scalar_lea.sflag [#allocation4], 1
    %5939 = vsyncpa %s5938, 1
    %5940 = vsyncpa [#allocation5], 1
    %s5941 = scalar_lea.sflag [#allocation5], 1
    %5942 = vsyncpa %s5941, 1

// kernel: tpu_custom_call.1
$region0: #{tpu_custom_call.1}
  #allocation0 [shape = 'u32[]', space=smem, size = 0x4, offset = 0x4, fixed_abs, tag = 'smem constant byte address 0x4 - core index']
  #allocation1 [shape = 'u32[144,128]{1,0:T(1,128)}', space=vmem, size = 0x12000, scoped, tag = 'internal scratch']
  #allocation2 [shape = 'bf16[384,1152]{1,0:T(16,128)(2,1)}', space=vmem, size = 0xd8000, scoped, tag = 'scratch operand']
  %s0 = inlined_call_operand.vmem [shape: bf16[2,434,4], index: 0, kind: input, shape index: {}]
  %s1 = inlined_call_operand.vmem [shape: bf16[2,1,50,4], index: 1, kind: input, shape index: {}]
  %s2 = inlined_call_operand.hbm [shape: bf16[1152,128], index: 2, kind: input, shape index: {}]
  %s3 = inlined_call_operand.vmem [shape: f32[1,128], index: 3, kind: input, shape index: {}]
  %s4 = inlined_call_operand.hbm [shape: bf16[2,1,384,128], index: 4, kind: output, shape index: {}]
  %s5 = sld [smem:[#allocation0]]
  $region57: #{tpu_custom_call.1} parent=0
    _
  %s7 = ssub.s32 1, %s5
  %s8 = scalar_select 0, %s7, %s5
  $region1: #{tpu_custom_call.1} parent=0
    #allocation3 [shape = 'u8[294912]{0}', space=vmem, size = 0x48000, scoped, tag = 'input window, operand 2, single buffered']
    #allocation4 [shape = 's32[2]{0}', space=sflag, size = 0x8, scoped, tag = 'scoped memory for tpu_custom_call.1']
    #allocation5 [shape = 's32[2]{0}', space=sflag, size = 0x8, scoped, tag = 'scoped memory for tpu_custom_call.1']
    #allocation6 [shape = 'u8[196608]{0}', space=vmem, size = 0x30000, scoped, tag = 'output window, operand 0']
    %9 = vsyncpa [#allocation4], 0
    %10 = vsyncpa [#allocation5], 0
    %s11 = scalar_lea.sflag [#allocation5], 1
    %12 = vsyncpa %s11, 0
    loop: start=0, step=1, limit=4
    $region2: #{tpu_custom_call.1} parent=1 // loop_pre_header
      _
    $region3: #{tpu_custom_call.1} parent=1 // loop_header
      %s14 = sphi 0, %s18
      %p15 = scmp.ge.s32.totalorder %s14, 4
      %s21 = sphi 0, %s40
      %s22 = sphi 0, %s36
      %s23 = sphi 0, %s32
      %s24 = sphi 0, %s21
      %s25 = sphi 0, %s22
      %s26 = sphi 0, %s23
      %s27 = sphi 0, %s24
      %s28 = sphi 0, %s25
      %s29 = sphi 0, %s26
      %s45 = sphi 0, %s47
      %s48 = sphi 0, %s45
      %s49 = sphi 0, %s48
      %s65 = sphi 0, %s49
      %s73 = sphi 0, %s75
      %s76 = sphi 0, %s73
      %s77 = sphi 0, %s76
      %s93 = sphi 0, %s77
      %s99 = sphi 0, %s101
      %s102 = sphi 0, %s99
      %s103 = sphi 0, %s102
      %s119 = sphi 0, %s103
      %s125 = sphi 0, %s127
      %s128 = sphi 0, %s125
      %s129 = sphi 0, %s128
      %s145 = sphi 0, %s129
      %s155 = sphi 0, %s157
      %s158 = sphi 0, %s155
      %s159 = sphi 0, %s158
      %s175 = sphi 0, %s159
    $region4: #{tpu_custom_call.1} parent=1 // loop_header_branch
      %17 = sbr.rel (%p15) target = $region8
    $region5: #{tpu_custom_call.1} parent=1 // loop_body
      %s19 = ssub.s32 %s14, 1
      %s20 = ssub.s32 %s14, 2
      %s30 = sadd.s32 1, %s23
      %p31 = scmp.ge.s32.totalorder %s30, 1
      %s32 = scalar_select %p31, 0, %s30
      %s33 = sadd.s32 1, %s22
      %s34 = scalar_select %p31, %s33, %s22
      %p35 = scmp.ge.s32.totalorder %s34, 1
      %s36 = scalar_select %p35, 0, %s34
      %s37 = sadd.s32 1, %s21
      %s38 = scalar_select %p35, %s37, %s21
      %p39 = scmp.ge.s32.totalorder %s38, 2
      %s40 = scalar_select %p39, 0, %s38
      %s41 = ssub.s32 %s21, %s40
      %s42 = ssub.s32 %s22, %s36
      %s43 = sor.u32 %s41, %s42
      %p44 = scmp.eq.s32.totalorder %s43, 0
      %s46 = sadd.s32 %s45, 1
      %s47 = scalar_select %p44, %s45, %s46
      %p50 = pneg %p44
      %p51 = scmp.eq.s32.totalorder %s14, 1
      %p52 = por %p50, %p51
      %p53 = scmp.ne.s32.totalorder %s45, %s48
      %p54 = scmp.eq.s32.totalorder %s14, 0
      %p55 = por %p53, %p54
      %p56 = scmp.ne.s32.totalorder %s45, %s48
      %p57 = scmp.eq.s32.totalorder %s19, 1
      %p58 = por %p56, %p57
      %p59 = scmp.ne.s32.totalorder %s48, %s49
      %p60 = scmp.eq.s32.totalorder %s19, 0
      %p61 = por %p59, %p60
      %p62 = scmp.ne.s32.totalorder %s48, %s49
      %p63 = scmp.eq.s32.totalorder %s20, 1
      %p64 = por %p62, %p63
      %p66 = scmp.ne.s32.totalorder %s49, %s65
      %p67 = scmp.eq.s32.totalorder %s20, 0
      %p68 = por %p66, %p67
      %s69 = ssub.s32 %s21, %s40
      %s70 = ssub.s32 %s22, %s36
      %s71 = sor.u32 %s69, %s70
      %p72 = scmp.eq.s32.totalorder %s71, 0
      %s74 = sadd.s32 %s73, 1
      %s75 = scalar_select %p72, %s73, %s74
      %p78 = pneg %p72
      %p79 = scmp.eq.s32.totalorder %s14, 1
      %p80 = por %p78, %p79
      %p81 = scmp.ne.s32.totalorder %s73, %s76
      %p82 = scmp.eq.s32.totalorder %s14, 0
      %p83 = por %p81, %p82
      %p84 = scmp.ne.s32.totalorder %s73, %s76
      %p85 = scmp.eq.s32.totalorder %s19, 1
      %p86 = por %p84, %p85
      %p87 = scmp.ne.s32.totalorder %s76, %s77
      %p88 = scmp.eq.s32.totalorder %s19, 0
      %p89 = por %p87, %p88
      %p90 = scmp.ne.s32.totalorder %s76, %s77
      %p91 = scmp.eq.s32.totalorder %s20, 1
      %p92 = por %p90, %p91
      %p94 = scmp.ne.s32.totalorder %s77, %s93
      %p95 = scmp.eq.s32.totalorder %s20, 0
      %p96 = por %p94, %p95
      %s97 = ssub.s32 %s23, %s32
      %p98 = scmp.eq.s32.totalorder %s97, 0
      %s100 = sadd.s32 %s99, 1
      %s101 = scalar_select %p98, %s99, %s100
      %p104 = pneg %p98
      %p105 = scmp.eq.s32.totalorder %s14, 1
      %p106 = por %p104, %p105
      %p107 = scmp.ne.s32.totalorder %s99, %s102
      %p108 = scmp.eq.s32.totalorder %s14, 0
      %p109 = por %p107, %p108
      %p110 = scmp.ne.s32.totalorder %s99, %s102
      %p111 = scmp.eq.s32.totalorder %s19, 1
      %p112 = por %p110, %p111
      %p113 = scmp.ne.s32.totalorder %s102, %s103
      %p114 = scmp.eq.s32.totalorder %s19, 0
      %p115 = por %p113, %p114
      %p116 = scmp.ne.s32.totalorder %s102, %s103
      %p117 = scmp.eq.s32.totalorder %s20, 1
      %p118 = por %p116, %p117
      %p120 = scmp.ne.s32.totalorder %s103, %s119
      %p121 = scmp.eq.s32.totalorder %s20, 0
      %p122 = por %p120, %p121
      %s123 = ssub.s32 %s23, %s32
      %p124 = scmp.eq.s32.totalorder %s123, 0
      %s126 = sadd.s32 %s125, 1
      %s127 = scalar_select %p124, %s125, %s126
      %p130 = pneg %p124
      %p131 = scmp.eq.s32.totalorder %s14, 1
      %p132 = por %p130, %p131
      %p133 = scmp.ne.s32.totalorder %s125, %s128
      %p134 = scmp.eq.s32.totalorder %s14, 0
      %p135 = por %p133, %p134
      %p136 = scmp.ne.s32.totalorder %s125, %s128
      %p137 = scmp.eq.s32.totalorder %s19, 1
      %p138 = por %p136, %p137
      %p139 = scmp.ne.s32.totalorder %s128, %s129
      %p140 = scmp.eq.s32.totalorder %s19, 0
      %p141 = por %p139, %p140
      %p142 = scmp.ne.s32.totalorder %s128, %s129
      %p143 = scmp.eq.s32.totalorder %s20, 1
      %p144 = por %p142, %p143
      %p146 = scmp.ne.s32.totalorder %s129, %s145
      %p147 = scmp.eq.s32.totalorder %s20, 0
      %p148 = por %p146, %p147
      %s149 = ssub.s32 %s21, %s40
      %s150 = ssub.s32 %s22, %s36
      %s151 = sor.u32 %s149, %s150
      %s152 = ssub.s32 %s23, %s32
      %s153 = sor.u32 %s151, %s152
      %p154 = scmp.eq.s32.totalorder %s153, 0
      %s156 = sadd.s32 %s155, 1
      %s157 = scalar_select %p154, %s155, %s156
      %p160 = pneg %p154
      %p161 = scmp.eq.s32.totalorder %s14, 1
      %p162 = por %p160, %p161
      %p163 = scmp.ne.s32.totalorder %s155, %s158
      %p164 = scmp.eq.s32.totalorder %s14, 0
      %p165 = por %p163, %p164
      %p166 = scmp.ne.s32.totalorder %s155, %s158
      %p167 = scmp.eq.s32.totalorder %s19, 1
      %p168 = por %p166, %p167
      %p169 = scmp.ne.s32.totalorder %s158, %s159
      %p170 = scmp.eq.s32.totalorder %s19, 0
      %p171 = por %p169, %p170
      %p172 = scmp.ne.s32.totalorder %s158, %s159
      %p173 = scmp.eq.s32.totalorder %s20, 1
      %p174 = por %p172, %p173
      %p176 = scmp.ne.s32.totalorder %s159, %s175
      %p177 = scmp.eq.s32.totalorder %s20, 0
      %p178 = por %p176, %p177
      %p179 = scmp.le.s32.totalorder 1, %s14
      %p180 = scmp.lt.s32.totalorder %s14, 3
      %p181 = pnand %p179, %p180
      %p182 = pneg %p181
      // Predicated region
      $region9: #{tpu_custom_call.1} parent=5 // pred_check
        _
      $region10: #{tpu_custom_call.1} parent=5 // pred_check_branch
        %184 = sbr.rel (%p181) target = $region12
      $region11: #{tpu_custom_call.1} parent=5 // pred_region
        %s185 = ssub.s32 %s14, 1
        // Predicated region
        $region13: #{tpu_custom_call.1} parent=11 // pred_check
          %p186 = pneg %p115
        $region14: #{tpu_custom_call.1} parent=11 // pred_check_branch
          %188 = sbr.rel (%p186) target = $region16
        $region15: #{tpu_custom_call.1} parent=11 // pred_region
          %s190 = ssub.s32 9216, 9216
          %191 = vsyncadd [#allocation4], %s190
          %s192 = smul.addr %s26, 64
          %s193 = scalar_lea.hbm %s2, %s192
          %s194 = sshll.u32 [#allocation3], 4
          %s195 = int_to_ptr.vmem [resolvable:$true] %s194
          %200 = dma.hbm_to_vmem [thread:$0]  %s193, 9216, %s195, [#allocation4], 64, 64, 4
        $region16: #{tpu_custom_call.1} parent=11 // pred_fallthru
          _
        // Predicated region
        $region17: #{tpu_custom_call.1} parent=11 // pred_check
          %p201 = pneg %p141
        $region18: #{tpu_custom_call.1} parent=11 // pred_check_branch
          %203 = sbr.rel (%p201) target = $region20
        $region19: #{tpu_custom_call.1} parent=11 // pred_region
          %p204 = scmp.lt.s32.totalorder %s26, 0
          %s205 = scalar_select %p204, %s26, 0
          %s206 = scalar_lea.vmem %s3, %s205
        $region20: #{tpu_custom_call.1} parent=11 // pred_fallthru
          _
      $region12: #{tpu_custom_call.1} parent=5 // pred_fallthru
        _
      %p207 = scmp.lt.s32.totalorder %s14, 2
      // Predicated region
      $region21: #{tpu_custom_call.1} parent=5 // pred_check
        %p208 = pneg %p207
      $region22: #{tpu_custom_call.1} parent=5 // pred_check_branch
        %210 = sbr.rel (%p208) target = $region24
      $region23: #{tpu_custom_call.1} parent=5 // pred_region
        // Predicated region
        $region25: #{tpu_custom_call.1} parent=23 // pred_check
          %p211 = pneg %p55
        $region26: #{tpu_custom_call.1} parent=23 // pred_check_branch
          %213 = sbr.rel (%p211) target = $region28
        $region27: #{tpu_custom_call.1} parent=23 // pred_region
          %s214 = smul.u32 48, %s22
          %s215 = ssub.s32 55, %s214
          %p216 = scmp.lt.s32.totalorder %s215, 48
          %s217 = scalar_select %p216, %s215, 48
          %s218 = smul.u32 64, %s217
          %p219 = scmp.lt.s32.totalorder %s21, 1
          %s220 = scalar_select %p219, %s21, 1
          %p221 = scmp.lt.s32.totalorder %s214, 54
          %s222 = scalar_select %p221, %s214, 54
          %s223 = smul.addr %s220, 55
          %s224 = sadd.s32 %s222, %s223
          %s225 = smul.addr %s224, 4
          %s226 = scalar_lea.vmem %s0, %s225
          %s227 = smul.u32 48, %s22
          %s228 = ssub.s32 55, %s227
          %p229 = scmp.lt.s32.totalorder %s228, 48
          %s230 = scalar_select %p229, %s228, 48
          %s231 = smul.u32 64, %s230
        $region28: #{tpu_custom_call.1} parent=23 // pred_fallthru
          _
        // Predicated region
        $region29: #{tpu_custom_call.1} parent=23 // pred_check
          %p232 = pneg %p83
        $region30: #{tpu_custom_call.1} parent=23 // pred_check_branch
          %234 = sbr.rel (%p232) target = $region32
        $region31: #{tpu_custom_call.1} parent=23 // pred_region
          %p235 = scmp.lt.s32.totalorder %s21, 1
          %s236 = scalar_select %p235, %s21, 1
          %p237 = scmp.lt.s32.totalorder %s22, 0
          %s238 = scalar_select %p237, %s22, 0
          %s239 = smul.addr %s238, 7
          %s240 = smul.addr %s236, 7
          %s241 = sadd.s32 %s239, %s240
          %s242 = smul.addr %s241, 4
          %s243 = scalar_lea.vmem %s1, %s242
        $region32: #{tpu_custom_call.1} parent=23 // pred_fallthru
          _
      $region24: #{tpu_custom_call.1} parent=5 // pred_fallthru
        _
      %p244 = scmp.le.s32.totalorder 1, %s14
      %p245 = scmp.lt.s32.totalorder %s14, 3
      %p246 = pnand %p244, %p245
      %p247 = pneg %p246
      // Predicated region
      $region33: #{tpu_custom_call.1} parent=5 // pred_check
        _
      $region34: #{tpu_custom_call.1} parent=5 // pred_check_branch
        %249 = sbr.rel (%p246) target = $region36
      $region35: #{tpu_custom_call.1} parent=5 // pred_region
        %s250 = ssub.s32 %s14, 1
        // Predicated region
        $region37: #{tpu_custom_call.1} parent=35 // pred_check
          %p251 = pneg %p115
        $region38: #{tpu_custom_call.1} parent=35 // pred_check_branch
          %253 = sbr.rel (%p251) target = $region40
        $region39: #{tpu_custom_call.1} parent=35 // pred_region
          %254 = dma.done [#allocation4], 9216
        $region40: #{tpu_custom_call.1} parent=35 // pred_fallthru
          _
        %s255 = smul.u32 48, %s25
        %s256 = ssub.s32 55, %s255
        %p257 = scmp.lt.s32.totalorder %s256, 48
        %s258 = scalar_select %p257, %s256, 48
        %s259 = smul.u32 64, %s258
        %p260 = scmp.lt.s32.totalorder %s24, 1
        %s261 = scalar_select %p260, %s24, 1
        %p262 = scmp.lt.s32.totalorder %s255, 54
        %s263 = scalar_select %p262, %s255, 54
        %s264 = smul.addr %s261, 55
        %s265 = sadd.s32 %s263, %s264
        %s266 = smul.addr %s265, 4
        %s267 = scalar_lea.vmem %s0, %s266
        %p268 = pneg %p61
        %p269 = pneg %p58
        %p270 = scmp.lt.s32.totalorder %s24, 1
        %s271 = scalar_select %p270, %s24, 1
        %p272 = scmp.lt.s32.totalorder %s25, 0
        %s273 = scalar_select %p272, %s25, 0
        %s274 = smul.addr %s273, 7
        %s275 = smul.addr %s271, 7
        %s276 = sadd.s32 %s274, %s275
        %s277 = smul.addr %s276, 4
        %s278 = scalar_lea.vmem %s1, %s277
        %p279 = pneg %p89
        %p280 = pneg %p86
        %p281 = pneg %p115
        %p282 = pneg %p112
        %p283 = scmp.lt.s32.totalorder %s26, 0
        %s284 = scalar_select %p283, %s26, 0
        %s285 = scalar_lea.vmem %s3, %s284
        %p286 = pneg %p141
        %p287 = pneg %p138
        %p288 = pneg %p171
        %p289 = pneg %p168
        %s290 = sand.u32 %s158, 1
        %s291 = scalar_lea.sflag [#allocation5], %s290
        %s292 = sand.u32 %s158, 1
        %s293 = smul.addr %s292, 192
        %s294 = scalar_lea.vmem [#allocation6], %s293
        %s295 = smul.u32 48, %s25
        %s296 = ssub.s32 55, %s295
        %p297 = scmp.lt.s32.totalorder %s296, 48
        %s298 = scalar_select %p297, %s296, 48
        %s299 = smul.u32 64, %s298
        %p300 = scmp.lt.s32.totalorder %s24, 1
        %s301 = scalar_select %p300, %s24, 1
        %p302 = scmp.lt.s32.totalorder %s295, 54
        %s303 = scalar_select %p302, %s295, 54
        %s304 = smul.addr %s301, 55
        %s305 = sadd.s32 %s303, %s304
        %s306 = smul.addr %s305, 4
        %s307 = scalar_lea.vmem %s0, %s306
        %s308 = smul.u32 48, %s25
        %s309 = ssub.s32 55, %s308
        %p310 = scmp.lt.s32.totalorder %s309, 48
        %s311 = scalar_select %p310, %s309, 48
        %s312 = smul.u32 64, %s311
        %p313 = scmp.lt.s32.totalorder %s24, 1
        %s314 = scalar_select %p313, %s24, 1
        %p315 = scmp.lt.s32.totalorder %s25, 0
        %s316 = scalar_select %p315, %s25, 0
        %s317 = smul.addr %s316, 7
        %s318 = smul.addr %s314, 7
        %s319 = sadd.s32 %s317, %s318
        %s320 = smul.addr %s319, 4
        %s321 = scalar_lea.vmem %s1, %s320
        %p322 = scmp.lt.s32.totalorder %s26, 0
        %s323 = scalar_select %p322, %s26, 0
        %s324 = scalar_lea.vmem %s3, %s323
        %p326 = scmp.eq.s32.totalorder %s26, 0
        // Predicated region
        $region41: #{tpu_custom_call.1} parent=35 // pred_check
          %p327 = pneg %p326
        $region42: #{tpu_custom_call.1} parent=35 // pred_check_branch
          %329 = sbr.rel (%p327) target = $region44
        $region43: #{tpu_custom_call.1} parent=35 // pred_region
          %v330 = vld [vmem:[%s307] sm:$0xf]
          %v331 = vld [vmem:[%s307 + $0x4] sm:$0xf]
          %v332 = vld [vmem:[%s307 + $0x8] sm:$0xf]
          %v333 = vld [vmem:[%s307 + $0xc] sm:$0xf]
          %v334 = vld [vmem:[%s307 + $0x10] sm:$0xf]
          %v335 = vld [vmem:[%s307 + $0x14] sm:$0xf]
          %v336 = vld [vmem:[%s307 + $0x18] sm:$0xf]
          %v337 = vld [vmem:[%s307 + $0x1c] sm:$0xf]
          %v338 = vld [vmem:[%s307 + $0x20] sm:$0xf]
          %v339 = vld [vmem:[%s307 + $0x24] sm:$0xf]
          %v340 = vld [vmem:[%s307 + $0x28] sm:$0xf]
          %v341 = vld [vmem:[%s307 + $0x2c] sm:$0xf]
          %v342 = vld [vmem:[%s307 + $0x30] sm:$0xf]
          %v343 = vld [vmem:[%s307 + $0x34] sm:$0xf]
          %v344 = vld [vmem:[%s307 + $0x38] sm:$0xf]
          %v345 = vld [vmem:[%s307 + $0x3c] sm:$0xf]
          %v346 = vld [vmem:[%s307 + $0x40] sm:$0xf]
          %v347 = vld [vmem:[%s307 + $0x44] sm:$0xf]
          %v348 = vld [vmem:[%s307 + $0x48] sm:$0xf]
          %v349 = vld [vmem:[%s307 + $0x4c] sm:$0xf]
          %v350 = vld [vmem:[%s307 + $0x50] sm:$0xf]
          %v351 = vld [vmem:[%s307 + $0x54] sm:$0xf]
          %v352 = vld [vmem:[%s307 + $0x58] sm:$0xf]
          %v353 = vld [vmem:[%s307 + $0x5c] sm:$0xf]
          %v354 = vld [vmem:[%s307 + $0x60] sm:$0xf]
          %v355 = vld [vmem:[%s307 + $0x64] sm:$0xf]
          %v356 = vld [vmem:[%s307 + $0x68] sm:$0xf]
          %v357 = vld [vmem:[%s307 + $0x6c] sm:$0xf]
          %v358 = vld [vmem:[%s307 + $0x70] sm:$0xf]
          %v359 = vld [vmem:[%s307 + $0x74] sm:$0xf]
          %v360 = vld [vmem:[%s307 + $0x78] sm:$0xf]
          %v361 = vld [vmem:[%s307 + $0x7c] sm:$0xf]
          %v362 = vld [vmem:[%s307 + $0x80] sm:$0xf]
          %v363 = vld [vmem:[%s307 + $0x84] sm:$0xf]
          %v364 = vld [vmem:[%s307 + $0x88] sm:$0xf]
          %v365 = vld [vmem:[%s307 + $0x8c] sm:$0xf]
          %v366 = vld [vmem:[%s307 + $0x90] sm:$0xf]
          %v367 = vld [vmem:[%s307 + $0x94] sm:$0xf]
          %v368 = vld [vmem:[%s307 + $0x98] sm:$0xf]
          %v369 = vld [vmem:[%s307 + $0x9c] sm:$0xf]
          %v370 = vld [vmem:[%s307 + $0xa0] sm:$0xf]
          %v371 = vld [vmem:[%s307 + $0xa4] sm:$0xf]
          %v372 = vld [vmem:[%s307 + $0xa8] sm:$0xf]
          %v373 = vld [vmem:[%s307 + $0xac] sm:$0xf]
          %v374 = vld [vmem:[%s307 + $0xb0] sm:$0xf]
          %v375 = vld [vmem:[%s307 + $0xb4] sm:$0xf]
          %v376 = vld [vmem:[%s307 + $0xb8] sm:$0xf]
          %v377 = vld [vmem:[%s307 + $0xbc] sm:$0xf]
          %v426 = vunpack.c.l.b16 %v330
          %v427 = vunpack.c.l.b16 %v331
          %v428 = vunpack.c.l.b16 %v332
          %v429 = vunpack.c.l.b16 %v333
          %v430 = vunpack.c.l.b16 %v334
          %v431 = vunpack.c.l.b16 %v335
          %v432 = vunpack.c.l.b16 %v336
          %v433 = vunpack.c.l.b16 %v337
          %v434 = vunpack.c.l.b16 %v338
          %v435 = vunpack.c.l.b16 %v339
          %v436 = vunpack.c.l.b16 %v340
          %v437 = vunpack.c.l.b16 %v341
          %v438 = vunpack.c.l.b16 %v342
          %v439 = vunpack.c.l.b16 %v343
          %v440 = vunpack.c.l.b16 %v344
          %v441 = vunpack.c.l.b16 %v345
          %v442 = vunpack.c.l.b16 %v346
          %v443 = vunpack.c.l.b16 %v347
          %v444 = vunpack.c.l.b16 %v348
          %v445 = vunpack.c.l.b16 %v349
          %v446 = vunpack.c.l.b16 %v350
          %v447 = vunpack.c.l.b16 %v351
          %v448 = vunpack.c.l.b16 %v352
          %v449 = vunpack.c.l.b16 %v353
          %v450 = vunpack.c.l.b16 %v354
          %v451 = vunpack.c.l.b16 %v355
          %v452 = vunpack.c.l.b16 %v356
          %v453 = vunpack.c.l.b16 %v357
          %v454 = vunpack.c.l.b16 %v358
          %v455 = vunpack.c.l.b16 %v359
          %v456 = vunpack.c.l.b16 %v360
          %v457 = vunpack.c.l.b16 %v361
          %v458 = vunpack.c.l.b16 %v362
          %v459 = vunpack.c.l.b16 %v363
          %v460 = vunpack.c.l.b16 %v364
          %v461 = vunpack.c.l.b16 %v365
          %v462 = vunpack.c.l.b16 %v366
          %v463 = vunpack.c.l.b16 %v367
          %v464 = vunpack.c.l.b16 %v368
          %v465 = vunpack.c.l.b16 %v369
          %v466 = vunpack.c.l.b16 %v370
          %v467 = vunpack.c.l.b16 %v371
          %v468 = vunpack.c.l.b16 %v372
          %v469 = vunpack.c.l.b16 %v373
          %v470 = vunpack.c.l.b16 %v374
          %v471 = vunpack.c.l.b16 %v375
          %v472 = vunpack.c.l.b16 %v376
          %v473 = vunpack.c.l.b16 %v377
          %v474 = vpack.c.b16 %v427, %v426
          %v475 = vpack.c.b16 %v429, %v428
          %v476 = vpack.c.b16 %v431, %v430
          %v477 = vpack.c.b16 %v433, %v432
          %v478 = vpack.c.b16 %v435, %v434
          %v479 = vpack.c.b16 %v437, %v436
          %v480 = vpack.c.b16 %v439, %v438
          %v481 = vpack.c.b16 %v441, %v440
          %v482 = vpack.c.b16 %v443, %v442
          %v483 = vpack.c.b16 %v445, %v444
          %v484 = vpack.c.b16 %v447, %v446
          %v485 = vpack.c.b16 %v449, %v448
          %v486 = vpack.c.b16 %v451, %v450
          %v487 = vpack.c.b16 %v453, %v452
          %v488 = vpack.c.b16 %v455, %v454
          %v489 = vpack.c.b16 %v457, %v456
          %v490 = vpack.c.b16 %v459, %v458
          %v491 = vpack.c.b16 %v461, %v460
          %v492 = vpack.c.b16 %v463, %v462
          %v493 = vpack.c.b16 %v465, %v464
          %v494 = vpack.c.b16 %v467, %v466
          %v495 = vpack.c.b16 %v469, %v468
          %v496 = vpack.c.b16 %v471, %v470
          %v497 = vpack.c.b16 %v473, %v472
          %vm498 = vcmask 31744
          %v501 = vsel %vm498, %v474, 0
          %v504 = vsel %vm498, %v475, 0
          %v507 = vsel %vm498, %v476, 0
          %v510 = vsel %vm498, %v477, 0
          %v513 = vsel %vm498, %v478, 0
          %v516 = vsel %vm498, %v479, 0
          %v519 = vsel %vm498, %v480, 0
          %v522 = vsel %vm498, %v481, 0
          %v525 = vsel %vm498, %v482, 0
          %v528 = vsel %vm498, %v483, 0
          %v531 = vsel %vm498, %v484, 0
          %v534 = vsel %vm498, %v485, 0
          %v537 = vsel %vm498, %v486, 0
          %v540 = vsel %vm498, %v487, 0
          %v543 = vsel %vm498, %v488, 0
          %v546 = vsel %vm498, %v489, 0
          %v549 = vsel %vm498, %v490, 0
          %v552 = vsel %vm498, %v491, 0
          %v555 = vsel %vm498, %v492, 0
          %v558 = vsel %vm498, %v493, 0
          %v561 = vsel %vm498, %v494, 0
          %v564 = vsel %vm498, %v495, 0
          %v567 = vsel %vm498, %v496, 0
          %v570 = vsel %vm498, %v497, 0
          %572 = vst [vmem:[#allocation2] sm:$0xff] %v501
          %573 = vst [vmem:[#allocation2 + $0x48] sm:$0xff] %v504
          %574 = vst [vmem:[#allocation2 + $0x90] sm:$0xff] %v507
          %575 = vst [vmem:[#allocation2 + $0xd8] sm:$0xff] %v510
          %576 = vst [vmem:[#allocation2 + $0x120] sm:$0xff] %v513
          %577 = vst [vmem:[#allocation2 + $0x168] sm:$0xff] %v516
          %578 = vst [vmem:[#allocation2 + $0x1b0] sm:$0xff] %v519
          %579 = vst [vmem:[#allocation2 + $0x1f8] sm:$0xff] %v522
          %580 = vst [vmem:[#allocation2 + $0x240] sm:$0xff] %v525
          %581 = vst [vmem:[#allocation2 + $0x288] sm:$0xff] %v528
          %582 = vst [vmem:[#allocation2 + $0x2d0] sm:$0xff] %v531
          %583 = vst [vmem:[#allocation2 + $0x318] sm:$0xff] %v534
          %584 = vst [vmem:[#allocation2 + $0x360] sm:$0xff] %v537
          %585 = vst [vmem:[#allocation2 + $0x3a8] sm:$0xff] %v540
          %586 = vst [vmem:[#allocation2 + $0x3f0] sm:$0xff] %v543
          %587 = vst [vmem:[#allocation2 + $0x438] sm:$0xff] %v546
          %588 = vst [vmem:[#allocation2 + $0x480] sm:$0xff] %v549
          %589 = vst [vmem:[#allocation2 + $0x4c8] sm:$0xff] %v552
          %590 = vst [vmem:[#allocation2 + $0x510] sm:$0xff] %v555
          %591 = vst [vmem:[#allocation2 + $0x558] sm:$0xff] %v558
          %592 = vst [vmem:[#allocation2 + $0x5a0] sm:$0xff] %v561
          %593 = vst [vmem:[#allocation2 + $0x5e8] sm:$0xff] %v564
          %594 = vst [vmem:[#allocation2 + $0x630] sm:$0xff] %v567
          %595 = vst [vmem:[#allocation2 + $0x678] sm:$0xff] %v570
          %v596 = vld [vmem:[%s307] sm:$0xf]
          %v597 = vld [vmem:[%s307 + $0x4] sm:$0xf]
          %v598 = vld [vmem:[%s307 + $0x8] sm:$0xf]
          %v599 = vld [vmem:[%s307 + $0xc] sm:$0xf]
          %v600 = vld [vmem:[%s307 + $0x10] sm:$0xf]
          %v601 = vld [vmem:[%s307 + $0x14] sm:$0xf]
          %v602 = vld [vmem:[%s307 + $0x18] sm:$0xf]
          %v603 = vld [vmem:[%s307 + $0x1c] sm:$0xf]
          %v604 = vld [vmem:[%s307 + $0x20] sm:$0xf]
          %v605 = vld [vmem:[%s307 + $0x24] sm:$0xf]
          %v606 = vld [vmem:[%s307 + $0x28] sm:$0xf]
          %v607 = vld [vmem:[%s307 + $0x2c] sm:$0xf]
          %v608 = vld [vmem:[%s307 + $0x30] sm:$0xf]
          %v609 = vld [vmem:[%s307 + $0x34] sm:$0xf]
          %v610 = vld [vmem:[%s307 + $0x38] sm:$0xf]
          %v611 = vld [vmem:[%s307 + $0x3c] sm:$0xf]
          %v612 = vld [vmem:[%s307 + $0x40] sm:$0xf]
          %v613 = vld [vmem:[%s307 + $0x44] sm:$0xf]
          %v614 = vld [vmem:[%s307 + $0x48] sm:$0xf]
          %v615 = vld [vmem:[%s307 + $0x4c] sm:$0xf]
          %v616 = vld [vmem:[%s307 + $0x50] sm:$0xf]
          %v617 = vld [vmem:[%s307 + $0x54] sm:$0xf]
          %v618 = vld [vmem:[%s307 + $0x58] sm:$0xf]
          %v619 = vld [vmem:[%s307 + $0x5c] sm:$0xf]
          %v620 = vld [vmem:[%s307 + $0x60] sm:$0xf]
          %v621 = vld [vmem:[%s307 + $0x64] sm:$0xf]
          %v622 = vld [vmem:[%s307 + $0x68] sm:$0xf]
          %v623 = vld [vmem:[%s307 + $0x6c] sm:$0xf]
          %v624 = vld [vmem:[%s307 + $0x70] sm:$0xf]
          %v625 = vld [vmem:[%s307 + $0x74] sm:$0xf]
          %v626 = vld [vmem:[%s307 + $0x78] sm:$0xf]
          %v627 = vld [vmem:[%s307 + $0x7c] sm:$0xf]
          %v628 = vld [vmem:[%s307 + $0x80] sm:$0xf]
          %v629 = vld [vmem:[%s307 + $0x84] sm:$0xf]
          %v630 = vld [vmem:[%s307 + $0x88] sm:$0xf]
          %v631 = vld [vmem:[%s307 + $0x8c] sm:$0xf]
          %v632 = vld [vmem:[%s307 + $0x90] sm:$0xf]
          %v633 = vld [vmem:[%s307 + $0x94] sm:$0xf]
          %v634 = vld [vmem:[%s307 + $0x98] sm:$0xf]
          %v635 = vld [vmem:[%s307 + $0x9c] sm:$0xf]
          %v636 = vld [vmem:[%s307 + $0xa0] sm:$0xf]
          %v637 = vld [vmem:[%s307 + $0xa4] sm:$0xf]
          %v638 = vld [vmem:[%s307 + $0xa8] sm:$0xf]
          %v639 = vld [vmem:[%s307 + $0xac] sm:$0xf]
          %v640 = vld [vmem:[%s307 + $0xb0] sm:$0xf]
          %v641 = vld [vmem:[%s307 + $0xb4] sm:$0xf]
          %v642 = vld [vmem:[%s307 + $0xb8] sm:$0xf]
          %v643 = vld [vmem:[%s307 + $0xbc] sm:$0xf]
          %v644 = vld [vmem:[%s321] sm:$0x1]
          %v693 = vunpack.c.l.b16 %v596
          %v694 = vunpack.c.l.b16 %v597
          %v695 = vunpack.c.l.b16 %v598
          %v696 = vunpack.c.l.b16 %v599
          %v697 = vunpack.c.l.b16 %v600
          %v698 = vunpack.c.l.b16 %v601
          %v699 = vunpack.c.l.b16 %v602
          %v700 = vunpack.c.l.b16 %v603
          %v701 = vunpack.c.l.b16 %v604
          %v702 = vunpack.c.l.b16 %v605
          %v703 = vunpack.c.l.b16 %v606
          %v704 = vunpack.c.l.b16 %v607
          %v705 = vunpack.c.l.b16 %v608
          %v706 = vunpack.c.l.b16 %v609
          %v707 = vunpack.c.l.b16 %v610
          %v708 = vunpack.c.l.b16 %v611
          %v709 = vunpack.c.l.b16 %v612
          %v710 = vunpack.c.l.b16 %v613
          %v711 = vunpack.c.l.b16 %v614
          %v712 = vunpack.c.l.b16 %v615
          %v713 = vunpack.c.l.b16 %v616
          %v714 = vunpack.c.l.b16 %v617
          %v715 = vunpack.c.l.b16 %v618
          %v716 = vunpack.c.l.b16 %v619
          %v717 = vunpack.c.l.b16 %v620
          %v718 = vunpack.c.l.b16 %v621
          %v719 = vunpack.c.l.b16 %v622
          %v720 = vunpack.c.l.b16 %v623
          %v721 = vunpack.c.l.b16 %v624
          %v722 = vunpack.c.l.b16 %v625
          %v723 = vunpack.c.l.b16 %v626
          %v724 = vunpack.c.l.b16 %v627
          %v725 = vunpack.c.l.b16 %v628
          %v726 = vunpack.c.l.b16 %v629
          %v727 = vunpack.c.l.b16 %v630
          %v728 = vunpack.c.l.b16 %v631
          %v729 = vunpack.c.l.b16 %v632
          %v730 = vunpack.c.l.b16 %v633
          %v731 = vunpack.c.l.b16 %v634
          %v732 = vunpack.c.l.b16 %v635
          %v733 = vunpack.c.l.b16 %v636
          %v734 = vunpack.c.l.b16 %v637
          %v735 = vunpack.c.l.b16 %v638
          %v736 = vunpack.c.l.b16 %v639
          %v737 = vunpack.c.l.b16 %v640
          %v738 = vunpack.c.l.b16 %v641
          %v739 = vunpack.c.l.b16 %v642
          %v740 = vunpack.c.l.b16 %v643
          %v741 = vpack.c.b16 %v694, %v693
          %v742 = vpack.c.b16 %v696, %v695
          %v743 = vpack.c.b16 %v698, %v697
          %v744 = vpack.c.b16 %v700, %v699
          %v745 = vpack.c.b16 %v702, %v701
          %v746 = vpack.c.b16 %v704, %v703
          %v747 = vpack.c.b16 %v706, %v705
          %v748 = vpack.c.b16 %v708, %v707
          %v749 = vpack.c.b16 %v710, %v709
          %v750 = vpack.c.b16 %v712, %v711
          %v751 = vpack.c.b16 %v714, %v713
          %v752 = vpack.c.b16 %v716, %v715
          %v753 = vpack.c.b16 %v718, %v717
          %v754 = vpack.c.b16 %v720, %v719
          %v755 = vpack.c.b16 %v722, %v721
          %v756 = vpack.c.b16 %v724, %v723
          %v757 = vpack.c.b16 %v726, %v725
          %v758 = vpack.c.b16 %v728, %v727
          %v759 = vpack.c.b16 %v730, %v729
          %v760 = vpack.c.b16 %v732, %v731
          %v761 = vpack.c.b16 %v734, %v733
          %v762 = vpack.c.b16 %v736, %v735
          %v763 = vpack.c.b16 %v738, %v737
          %v764 = vpack.c.b16 %v740, %v739
          %vm765 = vsmask.f32 7424
          %v767 = vshrl.u32 %v741, 16
          %v769 = vshll.u32 %v741, 16
          %v771 = vrot.slane %v769, 1
          %v772 = vor.u32 %v767, %v771
          %v774 = vshll.u32 %v742, 16
          %v776 = vrot.slane %v774, 1
          %v777 = vsel %vm765, %v772, %v776
          %v778 = vshrl.u32 %v742, 16
          %v780 = vor.u32 %v778, %v776
          %v782 = vshll.u32 %v743, 16
          %v784 = vrot.slane %v782, 1
          %v785 = vsel %vm765, %v780, %v784
          %v786 = vshrl.u32 %v743, 16
          %v788 = vor.u32 %v786, %v784
          %v790 = vshll.u32 %v744, 16
          %v792 = vrot.slane %v790, 1
          %v793 = vsel %vm765, %v788, %v792
          %v794 = vshrl.u32 %v744, 16
          %v796 = vor.u32 %v794, %v792
          %v798 = vshll.u32 %v745, 16
          %v800 = vrot.slane %v798, 1
          %v801 = vsel %vm765, %v796, %v800
          %v802 = vshrl.u32 %v745, 16
          %v804 = vor.u32 %v802, %v800
          %v806 = vshll.u32 %v746, 16
          %v808 = vrot.slane %v806, 1
          %v809 = vsel %vm765, %v804, %v808
          %v810 = vshrl.u32 %v746, 16
          %v812 = vor.u32 %v810, %v808
          %v814 = vshll.u32 %v747, 16
          %v816 = vrot.slane %v814, 1
          %v817 = vsel %vm765, %v812, %v816
          %v818 = vshrl.u32 %v747, 16
          %v820 = vor.u32 %v818, %v816
          %v822 = vshll.u32 %v748, 16
          %v824 = vrot.slane %v822, 1
          %v825 = vsel %vm765, %v820, %v824
          %v826 = vshrl.u32 %v748, 16
          %v828 = vor.u32 %v826, %v824
          %v830 = vshll.u32 %v749, 16
          %v832 = vrot.slane %v830, 1
          %v833 = vsel %vm765, %v828, %v832
          %v834 = vshrl.u32 %v749, 16
          %v836 = vor.u32 %v834, %v832
          %v838 = vshll.u32 %v750, 16
          %v840 = vrot.slane %v838, 1
          %v841 = vsel %vm765, %v836, %v840
          %v842 = vshrl.u32 %v750, 16
          %v844 = vor.u32 %v842, %v840
          %v846 = vshll.u32 %v751, 16
          %v848 = vrot.slane %v846, 1
          %v849 = vsel %vm765, %v844, %v848
          %v850 = vshrl.u32 %v751, 16
          %v852 = vor.u32 %v850, %v848
          %v854 = vshll.u32 %v752, 16
          %v856 = vrot.slane %v854, 1
          %v857 = vsel %vm765, %v852, %v856
          %v858 = vshrl.u32 %v752, 16
          %v860 = vor.u32 %v858, %v856
          %v862 = vshll.u32 %v753, 16
          %v864 = vrot.slane %v862, 1
          %v865 = vsel %vm765, %v860, %v864
          %v866 = vshrl.u32 %v753, 16
          %v868 = vor.u32 %v866, %v864
          %v870 = vshll.u32 %v754, 16
          %v872 = vrot.slane %v870, 1
          %v873 = vsel %vm765, %v868, %v872
          %v874 = vshrl.u32 %v754, 16
          %v876 = vor.u32 %v874, %v872
          %v878 = vshll.u32 %v755, 16
          %v880 = vrot.slane %v878, 1
          %v881 = vsel %vm765, %v876, %v880
          %v882 = vshrl.u32 %v755, 16
          %v884 = vor.u32 %v882, %v880
          %v886 = vshll.u32 %v756, 16
          %v888 = vrot.slane %v886, 1
          %v889 = vsel %vm765, %v884, %v888
          %v890 = vshrl.u32 %v756, 16
          %v892 = vor.u32 %v890, %v888
          %v894 = vshll.u32 %v757, 16
          %v896 = vrot.slane %v894, 1
          %v897 = vsel %vm765, %v892, %v896
          %v898 = vshrl.u32 %v757, 16
          %v900 = vor.u32 %v898, %v896
          %v902 = vshll.u32 %v758, 16
          %v904 = vrot.slane %v902, 1
          %v905 = vsel %vm765, %v900, %v904
          %v906 = vshrl.u32 %v758, 16
          %v908 = vor.u32 %v906, %v904
          %v910 = vshll.u32 %v759, 16
          %v912 = vrot.slane %v910, 1
          %v913 = vsel %vm765, %v908, %v912
          %v914 = vshrl.u32 %v759, 16
          %v916 = vor.u32 %v914, %v912
          %v918 = vshll.u32 %v760, 16
          %v920 = vrot.slane %v918, 1
          %v921 = vsel %vm765, %v916, %v920
          %v922 = vshrl.u32 %v760, 16
          %v924 = vor.u32 %v922, %v920
          %v926 = vshll.u32 %v761, 16
          %v928 = vrot.slane %v926, 1
          %v929 = vsel %vm765, %v924, %v928
          %v930 = vshrl.u32 %v761, 16
          %v932 = vor.u32 %v930, %v928
          %v934 = vshll.u32 %v762, 16
          %v936 = vrot.slane %v934, 1
          %v937 = vsel %vm765, %v932, %v936
          %v938 = vshrl.u32 %v762, 16
          %v940 = vor.u32 %v938, %v936
          %v942 = vshll.u32 %v763, 16
          %v944 = vrot.slane %v942, 1
          %v945 = vsel %vm765, %v940, %v944
          %v946 = vshrl.u32 %v763, 16
          %v948 = vor.u32 %v946, %v944
          %v950 = vshll.u32 %v764, 16
          %v952 = vrot.slane %v950, 1
          %v953 = vsel %vm765, %v948, %v952
          %v954 = vshrl.u32 %v764, 16
          %v956 = vor.u32 %v954, %v952
          %v959 = vunpack.c.l.b16 %v644
          %v960 = vpack.c.b16 %v959, %v959
          %v962 = vshll.u32 %v960, 16
          %v964 = vrot.slane %v962, 1
          %vm966 = vcmask 1047552
          %vm967 = vmand %vm966, %vm765
          %v968 = vsel %vm967, %v956, %v964
          %v970 = vsel %vm498, %v777, 0
          %v973 = vsel %vm498, %v785, 0
          %v976 = vsel %vm498, %v793, 0
          %v979 = vsel %vm498, %v801, 0
          %v982 = vsel %vm498, %v809, 0
          %v985 = vsel %vm498, %v817, 0
          %v988 = vsel %vm498, %v825, 0
          %v991 = vsel %vm498, %v833, 0
          %v994 = vsel %vm498, %v841, 0
          %v997 = vsel %vm498, %v849, 0
          %v1000 = vsel %vm498, %v857, 0
          %v1003 = vsel %vm498, %v865, 0
          %v1006 = vsel %vm498, %v873, 0
          %v1009 = vsel %vm498, %v881, 0
          %v1012 = vsel %vm498, %v889, 0
          %v1015 = vsel %vm498, %v897, 0
          %v1018 = vsel %vm498, %v905, 0
          %v1021 = vsel %vm498, %v913, 0
          %v1024 = vsel %vm498, %v921, 0
          %v1027 = vsel %vm498, %v929, 0
          %v1030 = vsel %vm498, %v937, 0
          %v1033 = vsel %vm498, %v945, 0
          %v1036 = vsel %vm498, %v953, 0
          %v1039 = vsel %vm498, %v968, 0
          %1041 = vst [vmem:[#allocation2 + $0x8] sm:$0xff] %v970
          %1042 = vst [vmem:[#allocation2 + $0x50] sm:$0xff] %v973
          %1043 = vst [vmem:[#allocation2 + $0x98] sm:$0xff] %v976
          %1044 = vst [vmem:[#allocation2 + $0xe0] sm:$0xff] %v979
          %1045 = vst [vmem:[#allocation2 + $0x128] sm:$0xff] %v982
          %1046 = vst [vmem:[#allocation2 + $0x170] sm:$0xff] %v985
          %1047 = vst [vmem:[#allocation2 + $0x1b8] sm:$0xff] %v988
          %1048 = vst [vmem:[#allocation2 + $0x200] sm:$0xff] %v991
          %1049 = vst [vmem:[#allocation2 + $0x248] sm:$0xff] %v994
          %1050 = vst [vmem:[#allocation2 + $0x290] sm:$0xff] %v997
          %1051 = vst [vmem:[#allocation2 + $0x2d8] sm:$0xff] %v1000
          %1052 = vst [vmem:[#allocation2 + $0x320] sm:$0xff] %v1003
          %1053 = vst [vmem:[#allocation2 + $0x368] sm:$0xff] %v1006
          %1054 = vst [vmem:[#allocation2 + $0x3b0] sm:$0xff] %v1009
          %1055 = vst [vmem:[#allocation2 + $0x3f8] sm:$0xff] %v1012
          %1056 = vst [vmem:[#allocation2 + $0x440] sm:$0xff] %v1015
          %1057 = vst [vmem:[#allocation2 + $0x488] sm:$0xff] %v1018
          %1058 = vst [vmem:[#allocation2 + $0x4d0] sm:$0xff] %v1021
          %1059 = vst [vmem:[#allocation2 + $0x518] sm:$0xff] %v1024
          %1060 = vst [vmem:[#allocation2 + $0x560] sm:$0xff] %v1027
          %1061 = vst [vmem:[#allocation2 + $0x5a8] sm:$0xff] %v1030
          %1062 = vst [vmem:[#allocation2 + $0x5f0] sm:$0xff] %v1033
          %1063 = vst [vmem:[#allocation2 + $0x638] sm:$0xff] %v1036
          %1064 = vst [vmem:[#allocation2 + $0x680] sm:$0xff] %v1039
          %v1065 = vld [vmem:[%s307] sm:$0xe]
          %v1066 = vld [vmem:[%s307 + $0x4] sm:$0xf]
          %v1067 = vld [vmem:[%s307 + $0x8] sm:$0xf]
          %v1068 = vld [vmem:[%s307 + $0xc] sm:$0xf]
          %v1069 = vld [vmem:[%s307 + $0x10] sm:$0xf]
          %v1070 = vld [vmem:[%s307 + $0x14] sm:$0xf]
          %v1071 = vld [vmem:[%s307 + $0x18] sm:$0xf]
          %v1072 = vld [vmem:[%s307 + $0x1c] sm:$0xf]
          %v1073 = vld [vmem:[%s307 + $0x20] sm:$0xf]
          %v1074 = vld [vmem:[%s307 + $0x24] sm:$0xf]
          %v1075 = vld [vmem:[%s307 + $0x28] sm:$0xf]
          %v1076 = vld [vmem:[%s307 + $0x2c] sm:$0xf]
          %v1077 = vld [vmem:[%s307 + $0x30] sm:$0xf]
          %v1078 = vld [vmem:[%s307 + $0x34] sm:$0xf]
          %v1079 = vld [vmem:[%s307 + $0x38] sm:$0xf]
          %v1080 = vld [vmem:[%s307 + $0x3c] sm:$0xf]
          %v1081 = vld [vmem:[%s307 + $0x40] sm:$0xf]
          %v1082 = vld [vmem:[%s307 + $0x44] sm:$0xf]
          %v1083 = vld [vmem:[%s307 + $0x48] sm:$0xf]
          %v1084 = vld [vmem:[%s307 + $0x4c] sm:$0xf]
          %v1085 = vld [vmem:[%s307 + $0x50] sm:$0xf]
          %v1086 = vld [vmem:[%s307 + $0x54] sm:$0xf]
          %v1087 = vld [vmem:[%s307 + $0x58] sm:$0xf]
          %v1088 = vld [vmem:[%s307 + $0x5c] sm:$0xf]
          %v1089 = vld [vmem:[%s307 + $0x60] sm:$0xf]
          %v1090 = vld [vmem:[%s307 + $0x64] sm:$0xf]
          %v1091 = vld [vmem:[%s307 + $0x68] sm:$0xf]
          %v1092 = vld [vmem:[%s307 + $0x6c] sm:$0xf]
          %v1093 = vld [vmem:[%s307 + $0x70] sm:$0xf]
          %v1094 = vld [vmem:[%s307 + $0x74] sm:$0xf]
          %v1095 = vld [vmem:[%s307 + $0x78] sm:$0xf]
          %v1096 = vld [vmem:[%s307 + $0x7c] sm:$0xf]
          %v1097 = vld [vmem:[%s307 + $0x80] sm:$0xf]
          %v1098 = vld [vmem:[%s307 + $0x84] sm:$0xf]
          %v1099 = vld [vmem:[%s307 + $0x88] sm:$0xf]
          %v1100 = vld [vmem:[%s307 + $0x8c] sm:$0xf]
          %v1101 = vld [vmem:[%s307 + $0x90] sm:$0xf]
          %v1102 = vld [vmem:[%s307 + $0x94] sm:$0xf]
          %v1103 = vld [vmem:[%s307 + $0x98] sm:$0xf]
          %v1104 = vld [vmem:[%s307 + $0x9c] sm:$0xf]
          %v1105 = vld [vmem:[%s307 + $0xa0] sm:$0xf]
          %v1106 = vld [vmem:[%s307 + $0xa4] sm:$0xf]
          %v1107 = vld [vmem:[%s307 + $0xa8] sm:$0xf]
          %v1108 = vld [vmem:[%s307 + $0xac] sm:$0xf]
          %v1109 = vld [vmem:[%s307 + $0xb0] sm:$0xf]
          %v1110 = vld [vmem:[%s307 + $0xb4] sm:$0xf]
          %v1111 = vld [vmem:[%s307 + $0xb8] sm:$0xf]
          %v1112 = vld [vmem:[%s307 + $0xbc] sm:$0xf]
          %v1113 = vld [vmem:[%s321] sm:$0x1]
          %v1162 = vunpack.c.l.b16 %v1065
          %v1163 = vunpack.c.l.b16 %v1066
          %v1164 = vunpack.c.l.b16 %v1067
          %v1165 = vunpack.c.l.b16 %v1068
          %v1166 = vunpack.c.l.b16 %v1069
          %v1167 = vunpack.c.l.b16 %v1070
          %v1168 = vunpack.c.l.b16 %v1071
          %v1169 = vunpack.c.l.b16 %v1072
          %v1170 = vunpack.c.l.b16 %v1073
          %v1171 = vunpack.c.l.b16 %v1074
          %v1172 = vunpack.c.l.b16 %v1075
          %v1173 = vunpack.c.l.b16 %v1076
          %v1174 = vunpack.c.l.b16 %v1077
          %v1175 = vunpack.c.l.b16 %v1078
          %v1176 = vunpack.c.l.b16 %v1079
          %v1177 = vunpack.c.l.b16 %v1080
          %v1178 = vunpack.c.l.b16 %v1081
          %v1179 = vunpack.c.l.b16 %v1082
          %v1180 = vunpack.c.l.b16 %v1083
          %v1181 = vunpack.c.l.b16 %v1084
          %v1182 = vunpack.c.l.b16 %v1085
          %v1183 = vunpack.c.l.b16 %v1086
          %v1184 = vunpack.c.l.b16 %v1087
          %v1185 = vunpack.c.l.b16 %v1088
          %v1186 = vunpack.c.l.b16 %v1089
          %v1187 = vunpack.c.l.b16 %v1090
          %v1188 = vunpack.c.l.b16 %v1091
          %v1189 = vunpack.c.l.b16 %v1092
          %v1190 = vunpack.c.l.b16 %v1093
          %v1191 = vunpack.c.l.b16 %v1094
          %v1192 = vunpack.c.l.b16 %v1095
          %v1193 = vunpack.c.l.b16 %v1096
          %v1194 = vunpack.c.l.b16 %v1097
          %v1195 = vunpack.c.l.b16 %v1098
          %v1196 = vunpack.c.l.b16 %v1099
          %v1197 = vunpack.c.l.b16 %v1100
          %v1198 = vunpack.c.l.b16 %v1101
          %v1199 = vunpack.c.l.b16 %v1102
          %v1200 = vunpack.c.l.b16 %v1103
          %v1201 = vunpack.c.l.b16 %v1104
          %v1202 = vunpack.c.l.b16 %v1105
          %v1203 = vunpack.c.l.b16 %v1106
          %v1204 = vunpack.c.l.b16 %v1107
          %v1205 = vunpack.c.l.b16 %v1108
          %v1206 = vunpack.c.l.b16 %v1109
          %v1207 = vunpack.c.l.b16 %v1110
          %v1208 = vunpack.c.l.b16 %v1111
          %v1209 = vunpack.c.l.b16 %v1112
          %v1210 = vpack.c.b16 %v1163, %v1162
          %v1211 = vpack.c.b16 %v1165, %v1164
          %v1212 = vpack.c.b16 %v1167, %v1166
          %v1213 = vpack.c.b16 %v1169, %v1168
          %v1214 = vpack.c.b16 %v1171, %v1170
          %v1215 = vpack.c.b16 %v1173, %v1172
          %v1216 = vpack.c.b16 %v1175, %v1174
          %v1217 = vpack.c.b16 %v1177, %v1176
          %v1218 = vpack.c.b16 %v1179, %v1178
          %v1219 = vpack.c.b16 %v1181, %v1180
          %v1220 = vpack.c.b16 %v1183, %v1182
          %v1221 = vpack.c.b16 %v1185, %v1184
          %v1222 = vpack.c.b16 %v1187, %v1186
          %v1223 = vpack.c.b16 %v1189, %v1188
          %v1224 = vpack.c.b16 %v1191, %v1190
          %v1225 = vpack.c.b16 %v1193, %v1192
          %v1226 = vpack.c.b16 %v1195, %v1194
          %v1227 = vpack.c.b16 %v1197, %v1196
          %v1228 = vpack.c.b16 %v1199, %v1198
          %v1229 = vpack.c.b16 %v1201, %v1200
          %v1230 = vpack.c.b16 %v1203, %v1202
          %v1231 = vpack.c.b16 %v1205, %v1204
          %v1232 = vpack.c.b16 %v1207, %v1206
          %v1233 = vpack.c.b16 %v1209, %v1208
          %vm1234 = vcmask 1046528
          %v1235 = vrot.slane %v1210, 1
          %v1236 = vrot.slane %v1211, 1
          %v1237 = vsel %vm1234, %v1235, %v1236
          %v1238 = vrot.slane %v1212, 1
          %v1239 = vsel %vm1234, %v1236, %v1238
          %v1240 = vrot.slane %v1213, 1
          %v1241 = vsel %vm1234, %v1238, %v1240
          %v1242 = vrot.slane %v1214, 1
          %v1243 = vsel %vm1234, %v1240, %v1242
          %v1244 = vrot.slane %v1215, 1
          %v1245 = vsel %vm1234, %v1242, %v1244
          %v1246 = vrot.slane %v1216, 1
          %v1247 = vsel %vm1234, %v1244, %v1246
          %v1248 = vrot.slane %v1217, 1
          %v1249 = vsel %vm1234, %v1246, %v1248
          %v1250 = vrot.slane %v1218, 1
          %v1251 = vsel %vm1234, %v1248, %v1250
          %v1252 = vrot.slane %v1219, 1
          %v1253 = vsel %vm1234, %v1250, %v1252
          %v1254 = vrot.slane %v1220, 1
          %v1255 = vsel %vm1234, %v1252, %v1254
          %v1256 = vrot.slane %v1221, 1
          %v1257 = vsel %vm1234, %v1254, %v1256
          %v1258 = vrot.slane %v1222, 1
          %v1259 = vsel %vm1234, %v1256, %v1258
          %v1260 = vrot.slane %v1223, 1
          %v1261 = vsel %vm1234, %v1258, %v1260
          %v1262 = vrot.slane %v1224, 1
          %v1263 = vsel %vm1234, %v1260, %v1262
          %v1264 = vrot.slane %v1225, 1
          %v1265 = vsel %vm1234, %v1262, %v1264
          %v1266 = vrot.slane %v1226, 1
          %v1267 = vsel %vm1234, %v1264, %v1266
          %v1268 = vrot.slane %v1227, 1
          %v1269 = vsel %vm1234, %v1266, %v1268
          %v1270 = vrot.slane %v1228, 1
          %v1271 = vsel %vm1234, %v1268, %v1270
          %v1272 = vrot.slane %v1229, 1
          %v1273 = vsel %vm1234, %v1270, %v1272
          %v1274 = vrot.slane %v1230, 1
          %v1275 = vsel %vm1234, %v1272, %v1274
          %v1276 = vrot.slane %v1231, 1
          %v1277 = vsel %vm1234, %v1274, %v1276
          %v1278 = vrot.slane %v1232, 1
          %v1279 = vsel %vm1234, %v1276, %v1278
          %v1280 = vrot.slane %v1233, 1
          %v1281 = vsel %vm1234, %v1278, %v1280
          %v1283 = vunpack.c.l.b16 %v1113
          %v1284 = vpack.c.b16 %v1283, %v1283
          %v1285 = vrot.slane %v1284, 1
          %vm1286 = vcmask 1046528
          %v1289 = vsel %vm1286, %v1280, %v1285
          %v1291 = vsel %vm498, %v1237, 0
          %v1294 = vsel %vm498, %v1239, 0
          %v1297 = vsel %vm498, %v1241, 0
          %v1300 = vsel %vm498, %v1243, 0
          %v1303 = vsel %vm498, %v1245, 0
          %v1306 = vsel %vm498, %v1247, 0
          %v1309 = vsel %vm498, %v1249, 0
          %v1312 = vsel %vm498, %v1251, 0
          %v1315 = vsel %vm498, %v1253, 0
          %v1318 = vsel %vm498, %v1255, 0
          %v1321 = vsel %vm498, %v1257, 0
          %v1324 = vsel %vm498, %v1259, 0
          %v1327 = vsel %vm498, %v1261, 0
          %v1330 = vsel %vm498, %v1263, 0
          %v1333 = vsel %vm498, %v1265, 0
          %v1336 = vsel %vm498, %v1267, 0
          %v1339 = vsel %vm498, %v1269, 0
          %v1342 = vsel %vm498, %v1271, 0
          %v1345 = vsel %vm498, %v1273, 0
          %v1348 = vsel %vm498, %v1275, 0
          %v1351 = vsel %vm498, %v1277, 0
          %v1354 = vsel %vm498, %v1279, 0
          %v1357 = vsel %vm498, %v1281, 0
          %v1359 = vsel %vm498, %v1289, 0
          %1361 = vst [vmem:[#allocation2 + $0x10] sm:$0xff] %v1291
          %1362 = vst [vmem:[#allocation2 + $0x58] sm:$0xff] %v1294
          %1363 = vst [vmem:[#allocation2 + $0xa0] sm:$0xff] %v1297
          %1364 = vst [vmem:[#allocation2 + $0xe8] sm:$0xff] %v1300
          %1365 = vst [vmem:[#allocation2 + $0x130] sm:$0xff] %v1303
          %1366 = vst [vmem:[#allocation2 + $0x178] sm:$0xff] %v1306
          %1367 = vst [vmem:[#allocation2 + $0x1c0] sm:$0xff] %v1309
          %1368 = vst [vmem:[#allocation2 + $0x208] sm:$0xff] %v1312
          %1369 = vst [vmem:[#allocation2 + $0x250] sm:$0xff] %v1315
          %1370 = vst [vmem:[#allocation2 + $0x298] sm:$0xff] %v1318
          %1371 = vst [vmem:[#allocation2 + $0x2e0] sm:$0xff] %v1321
          %1372 = vst [vmem:[#allocation2 + $0x328] sm:$0xff] %v1324
          %1373 = vst [vmem:[#allocation2 + $0x370] sm:$0xff] %v1327
          %1374 = vst [vmem:[#allocation2 + $0x3b8] sm:$0xff] %v1330
          %1375 = vst [vmem:[#allocation2 + $0x400] sm:$0xff] %v1333
          %1376 = vst [vmem:[#allocation2 + $0x448] sm:$0xff] %v1336
          %1377 = vst [vmem:[#allocation2 + $0x490] sm:$0xff] %v1339
          %1378 = vst [vmem:[#allocation2 + $0x4d8] sm:$0xff] %v1342
          %1379 = vst [vmem:[#allocation2 + $0x520] sm:$0xff] %v1345
          %1380 = vst [vmem:[#allocation2 + $0x568] sm:$0xff] %v1348
          %1381 = vst [vmem:[#allocation2 + $0x5b0] sm:$0xff] %v1351
          %1382 = vst [vmem:[#allocation2 + $0x5f8] sm:$0xff] %v1354
          %1383 = vst [vmem:[#allocation2 + $0x640] sm:$0xff] %v1357
          %1384 = vst [vmem:[#allocation2 + $0x688] sm:$0xff] %v1359
          %v1385 = vld [vmem:[%s307 + $0xc] sm:$0xf]
          %v1386 = vld [vmem:[%s307 + $0x10] sm:$0xf]
          %v1387 = vld [vmem:[%s307 + $0x14] sm:$0xf]
          %v1388 = vld [vmem:[%s307 + $0x18] sm:$0xf]
          %v1389 = vld [vmem:[%s307 + $0x1c] sm:$0xf]
          %v1390 = vld [vmem:[%s307 + $0x20] sm:$0xf]
          %v1391 = vld [vmem:[%s307 + $0x24] sm:$0xf]
          %v1392 = vld [vmem:[%s307 + $0x28] sm:$0xf]
          %v1393 = vld [vmem:[%s307 + $0x2c] sm:$0xf]
          %v1394 = vld [vmem:[%s307 + $0x30] sm:$0xf]
          %v1395 = vld [vmem:[%s307 + $0x34] sm:$0xf]
          %v1396 = vld [vmem:[%s307 + $0x38] sm:$0xf]
          %v1397 = vld [vmem:[%s307 + $0x3c] sm:$0xf]
          %v1398 = vld [vmem:[%s307 + $0x40] sm:$0xf]
          %v1399 = vld [vmem:[%s307 + $0x44] sm:$0xf]
          %v1400 = vld [vmem:[%s307 + $0x48] sm:$0xf]
          %v1401 = vld [vmem:[%s307 + $0x4c] sm:$0xf]
          %v1402 = vld [vmem:[%s307 + $0x50] sm:$0xf]
          %v1403 = vld [vmem:[%s307 + $0x54] sm:$0xf]
          %v1404 = vld [vmem:[%s307 + $0x58] sm:$0xf]
          %v1405 = vld [vmem:[%s307 + $0x5c] sm:$0xf]
          %v1406 = vld [vmem:[%s307 + $0x60] sm:$0xf]
          %v1407 = vld [vmem:[%s307 + $0x64] sm:$0xf]
          %v1408 = vld [vmem:[%s307 + $0x68] sm:$0xf]
          %v1409 = vld [vmem:[%s307 + $0x6c] sm:$0xf]
          %v1410 = vld [vmem:[%s307 + $0x70] sm:$0xf]
          %v1411 = vld [vmem:[%s307 + $0x74] sm:$0xf]
          %v1412 = vld [vmem:[%s307 + $0x78] sm:$0xf]
          %v1413 = vld [vmem:[%s307 + $0x7c] sm:$0xf]
          %v1414 = vld [vmem:[%s307 + $0x80] sm:$0xf]
          %v1415 = vld [vmem:[%s307 + $0x84] sm:$0xf]
          %v1416 = vld [vmem:[%s307 + $0x88] sm:$0xf]
          %v1417 = vld [vmem:[%s307 + $0x8c] sm:$0xf]
          %v1418 = vld [vmem:[%s307 + $0x90] sm:$0xf]
          %v1419 = vld [vmem:[%s307 + $0x94] sm:$0xf]
          %v1420 = vld [vmem:[%s307 + $0x98] sm:$0xf]
          %v1421 = vld [vmem:[%s307 + $0x9c] sm:$0xf]
          %v1422 = vld [vmem:[%s307 + $0xa0] sm:$0xf]
          %v1423 = vld [vmem:[%s307 + $0xa4] sm:$0xf]
          %v1424 = vld [vmem:[%s307 + $0xa8] sm:$0xf]
          %v1425 = vld [vmem:[%s307 + $0xac] sm:$0xf]
          %v1426 = vld [vmem:[%s307 + $0xb0] sm:$0xf]
          %v1427 = vld [vmem:[%s307 + $0xb4] sm:$0xf]
          %v1428 = vld [vmem:[%s307 + $0xb8] sm:$0xf]
          %v1429 = vld [vmem:[%s307 + $0xbc] sm:$0xf]
          %v1430 = vld [vmem:[%s321] sm:$0xf]
          %v1431 = vld [vmem:[%s321 + $0x4] sm:$0xf]
          %v1432 = vld [vmem:[%s321 + $0x8] sm:$0xf]
          %v1478 = vunpack.c.l.b16 %v1385
          %v1479 = vunpack.c.l.b16 %v1386
          %v1480 = vunpack.c.l.b16 %v1387
          %v1481 = vunpack.c.l.b16 %v1388
          %v1482 = vunpack.c.l.b16 %v1389
          %v1483 = vunpack.c.l.b16 %v1390
          %v1484 = vunpack.c.l.b16 %v1391
          %v1485 = vunpack.c.l.b16 %v1392
          %v1486 = vunpack.c.l.b16 %v1393
          %v1487 = vunpack.c.l.b16 %v1394
          %v1488 = vunpack.c.l.b16 %v1395
          %v1489 = vunpack.c.l.b16 %v1396
          %v1490 = vunpack.c.l.b16 %v1397
          %v1491 = vunpack.c.l.b16 %v1398
          %v1492 = vunpack.c.l.b16 %v1399
          %v1493 = vunpack.c.l.b16 %v1400
          %v1494 = vunpack.c.l.b16 %v1401
          %v1495 = vunpack.c.l.b16 %v1402
          %v1496 = vunpack.c.l.b16 %v1403
          %v1497 = vunpack.c.l.b16 %v1404
          %v1498 = vunpack.c.l.b16 %v1405
          %v1499 = vunpack.c.l.b16 %v1406
          %v1500 = vunpack.c.l.b16 %v1407
          %v1501 = vunpack.c.l.b16 %v1408
          %v1502 = vunpack.c.l.b16 %v1409
          %v1503 = vunpack.c.l.b16 %v1410
          %v1504 = vunpack.c.l.b16 %v1411
          %v1505 = vunpack.c.l.b16 %v1412
          %v1506 = vunpack.c.l.b16 %v1413
          %v1507 = vunpack.c.l.b16 %v1414
          %v1508 = vunpack.c.l.b16 %v1415
          %v1509 = vunpack.c.l.b16 %v1416
          %v1510 = vunpack.c.l.b16 %v1417
          %v1511 = vunpack.c.l.b16 %v1418
          %v1512 = vunpack.c.l.b16 %v1419
          %v1513 = vunpack.c.l.b16 %v1420
          %v1514 = vunpack.c.l.b16 %v1421
          %v1515 = vunpack.c.l.b16 %v1422
          %v1516 = vunpack.c.l.b16 %v1423
          %v1517 = vunpack.c.l.b16 %v1424
          %v1518 = vunpack.c.l.b16 %v1425
          %v1519 = vunpack.c.l.b16 %v1426
          %v1520 = vunpack.c.l.b16 %v1427
          %v1521 = vunpack.c.l.b16 %v1428
          %v1522 = vunpack.c.l.b16 %v1429
          %v1523 = vpack.c.b16 %v1479, %v1478
          %v1524 = vpack.c.b16 %v1481, %v1480
          %v1525 = vpack.c.b16 %v1483, %v1482
          %v1526 = vpack.c.b16 %v1485, %v1484
          %v1527 = vpack.c.b16 %v1487, %v1486
          %v1528 = vpack.c.b16 %v1489, %v1488
          %v1529 = vpack.c.b16 %v1491, %v1490
          %v1530 = vpack.c.b16 %v1493, %v1492
          %v1531 = vpack.c.b16 %v1495, %v1494
          %v1532 = vpack.c.b16 %v1497, %v1496
          %v1533 = vpack.c.b16 %v1499, %v1498
          %v1534 = vpack.c.b16 %v1501, %v1500
          %v1535 = vpack.c.b16 %v1503, %v1502
          %v1536 = vpack.c.b16 %v1505, %v1504
          %v1537 = vpack.c.b16 %v1507, %v1506
          %v1538 = vpack.c.b16 %v1509, %v1508
          %v1539 = vpack.c.b16 %v1511, %v1510
          %v1540 = vpack.c.b16 %v1513, %v1512
          %v1541 = vpack.c.b16 %v1515, %v1514
          %v1542 = vpack.c.b16 %v1517, %v1516
          %v1543 = vpack.c.b16 %v1519, %v1518
          %v1544 = vpack.c.b16 %v1521, %v1520
          %v1545 = vpack.c.b16 %v1522, %v1522
          %v1549 = vunpack.c.l.b16 %v1430
          %v1550 = vunpack.c.l.b16 %v1431
          %v1551 = vunpack.c.l.b16 %v1432
          %v1552 = vpack.c.b16 %v1549, %v1549
          %v1553 = vpack.c.b16 %v1551, %v1550
          %vm1554 = vcmask 1043456
          %v1557 = vsel %vm1554, %v1545, %v1552
          %v1559 = vsel %vm498, %v1523, 0
          %v1562 = vsel %vm498, %v1524, 0
          %v1565 = vsel %vm498, %v1525, 0
          %v1568 = vsel %vm498, %v1526, 0
          %v1571 = vsel %vm498, %v1527, 0
          %v1574 = vsel %vm498, %v1528, 0
          %v1577 = vsel %vm498, %v1529, 0
          %v1580 = vsel %vm498, %v1530, 0
          %v1583 = vsel %vm498, %v1531, 0
          %v1586 = vsel %vm498, %v1532, 0
          %v1589 = vsel %vm498, %v1533, 0
          %v1592 = vsel %vm498, %v1534, 0
          %v1595 = vsel %vm498, %v1535, 0
          %v1598 = vsel %vm498, %v1536, 0
          %v1601 = vsel %vm498, %v1537, 0
          %v1604 = vsel %vm498, %v1538, 0
          %v1607 = vsel %vm498, %v1539, 0
          %v1610 = vsel %vm498, %v1540, 0
          %v1613 = vsel %vm498, %v1541, 0
          %v1616 = vsel %vm498, %v1542, 0
          %v1619 = vsel %vm498, %v1543, 0
          %v1622 = vsel %vm498, %v1544, 0
          %v1624 = vsel %vm498, %v1557, 0
          %v1627 = vsel %vm498, %v1553, 0
          %1629 = vst [vmem:[#allocation2 + $0x18] sm:$0xff] %v1559
          %1630 = vst [vmem:[#allocation2 + $0x60] sm:$0xff] %v1562
          %1631 = vst [vmem:[#allocation2 + $0xa8] sm:$0xff] %v1565
          %1632 = vst [vmem:[#allocation2 + $0xf0] sm:$0xff] %v1568
          %1633 = vst [vmem:[#allocation2 + $0x138] sm:$0xff] %v1571
          %1634 = vst [vmem:[#allocation2 + $0x180] sm:$0xff] %v1574
          %1635 = vst [vmem:[#allocation2 + $0x1c8] sm:$0xff] %v1577
          %1636 = vst [vmem:[#allocation2 + $0x210] sm:$0xff] %v1580
          %1637 = vst [vmem:[#allocation2 + $0x258] sm:$0xff] %v1583
          %1638 = vst [vmem:[#allocation2 + $0x2a0] sm:$0xff] %v1586
          %1639 = vst [vmem:[#allocation2 + $0x2e8] sm:$0xff] %v1589
          %1640 = vst [vmem:[#allocation2 + $0x330] sm:$0xff] %v1592
          %1641 = vst [vmem:[#allocation2 + $0x378] sm:$0xff] %v1595
          %1642 = vst [vmem:[#allocation2 + $0x3c0] sm:$0xff] %v1598
          %1643 = vst [vmem:[#allocation2 + $0x408] sm:$0xff] %v1601
          %1644 = vst [vmem:[#allocation2 + $0x450] sm:$0xff] %v1604
          %1645 = vst [vmem:[#allocation2 + $0x498] sm:$0xff] %v1607
          %1646 = vst [vmem:[#allocation2 + $0x4e0] sm:$0xff] %v1610
          %1647 = vst [vmem:[#allocation2 + $0x528] sm:$0xff] %v1613
          %1648 = vst [vmem:[#allocation2 + $0x570] sm:$0xff] %v1616
          %1649 = vst [vmem:[#allocation2 + $0x5b8] sm:$0xff] %v1619
          %1650 = vst [vmem:[#allocation2 + $0x600] sm:$0xff] %v1622
          %1651 = vst [vmem:[#allocation2 + $0x648] sm:$0xff] %v1624
          %1652 = vst [vmem:[#allocation2 + $0x690] sm:$0xff] %v1627
          %v1653 = vld [vmem:[%s307 + $0xc] sm:$0xf]
          %v1654 = vld [vmem:[%s307 + $0x10] sm:$0xf]
          %v1655 = vld [vmem:[%s307 + $0x14] sm:$0xf]
          %v1656 = vld [vmem:[%s307 + $0x18] sm:$0xf]
          %v1657 = vld [vmem:[%s307 + $0x1c] sm:$0xf]
          %v1658 = vld [vmem:[%s307 + $0x20] sm:$0xf]
          %v1659 = vld [vmem:[%s307 + $0x24] sm:$0xf]
          %v1660 = vld [vmem:[%s307 + $0x28] sm:$0xf]
          %v1661 = vld [vmem:[%s307 + $0x2c] sm:$0xf]
          %v1662 = vld [vmem:[%s307 + $0x30] sm:$0xf]
          %v1663 = vld [vmem:[%s307 + $0x34] sm:$0xf]
          %v1664 = vld [vmem:[%s307 + $0x38] sm:$0xf]
          %v1665 = vld [vmem:[%s307 + $0x3c] sm:$0xf]
          %v1666 = vld [vmem:[%s307 + $0x40] sm:$0xf]
          %v1667 = vld [vmem:[%s307 + $0x44] sm:$0xf]
          %v1668 = vld [vmem:[%s307 + $0x48] sm:$0xf]
          %v1669 = vld [vmem:[%s307 + $0x4c] sm:$0xf]
          %v1670 = vld [vmem:[%s307 + $0x50] sm:$0xf]
          %v1671 = vld [vmem:[%s307 + $0x54] sm:$0xf]
          %v1672 = vld [vmem:[%s307 + $0x58] sm:$0xf]
          %v1673 = vld [vmem:[%s307 + $0x5c] sm:$0xf]
          %v1674 = vld [vmem:[%s307 + $0x60] sm:$0xf]
          %v1675 = vld [vmem:[%s307 + $0x64] sm:$0xf]
          %v1676 = vld [vmem:[%s307 + $0x68] sm:$0xf]
          %v1677 = vld [vmem:[%s307 + $0x6c] sm:$0xf]
          %v1678 = vld [vmem:[%s307 + $0x70] sm:$0xf]
          %v1679 = vld [vmem:[%s307 + $0x74] sm:$0xf]
          %v1680 = vld [vmem:[%s307 + $0x78] sm:$0xf]
          %v1681 = vld [vmem:[%s307 + $0x7c] sm:$0xf]
          %v1682 = vld [vmem:[%s307 + $0x80] sm:$0xf]
          %v1683 = vld [vmem:[%s307 + $0x84] sm:$0xf]
          %v1684 = vld [vmem:[%s307 + $0x88] sm:$0xf]
          %v1685 = vld [vmem:[%s307 + $0x8c] sm:$0xf]
          %v1686 = vld [vmem:[%s307 + $0x90] sm:$0xf]
          %v1687 = vld [vmem:[%s307 + $0x94] sm:$0xf]
          %v1688 = vld [vmem:[%s307 + $0x98] sm:$0xf]
          %v1689 = vld [vmem:[%s307 + $0x9c] sm:$0xf]
          %v1690 = vld [vmem:[%s307 + $0xa0] sm:$0xf]
          %v1691 = vld [vmem:[%s307 + $0xa4] sm:$0xf]
          %v1692 = vld [vmem:[%s307 + $0xa8] sm:$0xf]
          %v1693 = vld [vmem:[%s307 + $0xac] sm:$0xf]
          %v1694 = vld [vmem:[%s307 + $0xb0] sm:$0xf]
          %v1695 = vld [vmem:[%s307 + $0xb4] sm:$0xf]
          %v1696 = vld [vmem:[%s307 + $0xb8] sm:$0xf]
          %v1697 = vld [vmem:[%s307 + $0xbc] sm:$0xf]
          %v1698 = vld [vmem:[%s321] sm:$0xf]
          %v1699 = vld [vmem:[%s321 + $0x4] sm:$0xf]
          %v1700 = vld [vmem:[%s321 + $0x8] sm:$0xf]
          %v1701 = vld [vmem:[%s321 + $0xc] sm:$0x1]
          %v1747 = vunpack.c.l.b16 %v1653
          %v1748 = vunpack.c.l.b16 %v1654
          %v1749 = vunpack.c.l.b16 %v1655
          %v1750 = vunpack.c.l.b16 %v1656
          %v1751 = vunpack.c.l.b16 %v1657
          %v1752 = vunpack.c.l.b16 %v1658
          %v1753 = vunpack.c.l.b16 %v1659
          %v1754 = vunpack.c.l.b16 %v1660
          %v1755 = vunpack.c.l.b16 %v1661
          %v1756 = vunpack.c.l.b16 %v1662
          %v1757 = vunpack.c.l.b16 %v1663
          %v1758 = vunpack.c.l.b16 %v1664
          %v1759 = vunpack.c.l.b16 %v1665
          %v1760 = vunpack.c.l.b16 %v1666
          %v1761 = vunpack.c.l.b16 %v1667
          %v1762 = vunpack.c.l.b16 %v1668
          %v1763 = vunpack.c.l.b16 %v1669
          %v1764 = vunpack.c.l.b16 %v1670
          %v1765 = vunpack.c.l.b16 %v1671
          %v1766 = vunpack.c.l.b16 %v1672
          %v1767 = vunpack.c.l.b16 %v1673
          %v1768 = vunpack.c.l.b16 %v1674
          %v1769 = vunpack.c.l.b16 %v1675
          %v1770 = vunpack.c.l.b16 %v1676
          %v1771 = vunpack.c.l.b16 %v1677
          %v1772 = vunpack.c.l.b16 %v1678
          %v1773 = vunpack.c.l.b16 %v1679
          %v1774 = vunpack.c.l.b16 %v1680
          %v1775 = vunpack.c.l.b16 %v1681
          %v1776 = vunpack.c.l.b16 %v1682
          %v1777 = vunpack.c.l.b16 %v1683
          %v1778 = vunpack.c.l.b16 %v1684
          %v1779 = vunpack.c.l.b16 %v1685
          %v1780 = vunpack.c.l.b16 %v1686
          %v1781 = vunpack.c.l.b16 %v1687
          %v1782 = vunpack.c.l.b16 %v1688
          %v1783 = vunpack.c.l.b16 %v1689
          %v1784 = vunpack.c.l.b16 %v1690
          %v1785 = vunpack.c.l.b16 %v1691
          %v1786 = vunpack.c.l.b16 %v1692
          %v1787 = vunpack.c.l.b16 %v1693
          %v1788 = vunpack.c.l.b16 %v1694
          %v1789 = vunpack.c.l.b16 %v1695
          %v1790 = vunpack.c.l.b16 %v1696
          %v1791 = vunpack.c.l.b16 %v1697
          %v1792 = vpack.c.b16 %v1748, %v1747
          %v1793 = vpack.c.b16 %v1750, %v1749
          %v1794 = vpack.c.b16 %v1752, %v1751
          %v1795 = vpack.c.b16 %v1754, %v1753
          %v1796 = vpack.c.b16 %v1756, %v1755
          %v1797 = vpack.c.b16 %v1758, %v1757
          %v1798 = vpack.c.b16 %v1760, %v1759
          %v1799 = vpack.c.b16 %v1762, %v1761
          %v1800 = vpack.c.b16 %v1764, %v1763
          %v1801 = vpack.c.b16 %v1766, %v1765
          %v1802 = vpack.c.b16 %v1768, %v1767
          %v1803 = vpack.c.b16 %v1770, %v1769
          %v1804 = vpack.c.b16 %v1772, %v1771
          %v1805 = vpack.c.b16 %v1774, %v1773
          %v1806 = vpack.c.b16 %v1776, %v1775
          %v1807 = vpack.c.b16 %v1778, %v1777
          %v1808 = vpack.c.b16 %v1780, %v1779
          %v1809 = vpack.c.b16 %v1782, %v1781
          %v1810 = vpack.c.b16 %v1784, %v1783
          %v1811 = vpack.c.b16 %v1786, %v1785
          %v1812 = vpack.c.b16 %v1788, %v1787
          %v1813 = vpack.c.b16 %v1790, %v1789
          %v1814 = vpack.c.b16 %v1791, %v1791
          %v1816 = vshrl.u32 %v1792, 16
          %v1818 = vshll.u32 %v1792, 16
          %v1820 = vrot.slane %v1818, 1
          %v1821 = vor.u32 %v1816, %v1820
          %v1823 = vshll.u32 %v1793, 16
          %v1825 = vrot.slane %v1823, 1
          %v1826 = vsel %vm765, %v1821, %v1825
          %v1827 = vshrl.u32 %v1793, 16
          %v1829 = vor.u32 %v1827, %v1825
          %v1831 = vshll.u32 %v1794, 16
          %v1833 = vrot.slane %v1831, 1
          %v1834 = vsel %vm765, %v1829, %v1833
          %v1835 = vshrl.u32 %v1794, 16
          %v1837 = vor.u32 %v1835, %v1833
          %v1839 = vshll.u32 %v1795, 16
          %v1841 = vrot.slane %v1839, 1
          %v1842 = vsel %vm765, %v1837, %v1841
          %v1843 = vshrl.u32 %v1795, 16
          %v1845 = vor.u32 %v1843, %v1841
          %v1847 = vshll.u32 %v1796, 16
          %v1849 = vrot.slane %v1847, 1
          %v1850 = vsel %vm765, %v1845, %v1849
          %v1851 = vshrl.u32 %v1796, 16
          %v1853 = vor.u32 %v1851, %v1849
          %v1855 = vshll.u32 %v1797, 16
          %v1857 = vrot.slane %v1855, 1
          %v1858 = vsel %vm765, %v1853, %v1857
          %v1859 = vshrl.u32 %v1797, 16
          %v1861 = vor.u32 %v1859, %v1857
          %v1863 = vshll.u32 %v1798, 16
          %v1865 = vrot.slane %v1863, 1
          %v1866 = vsel %vm765, %v1861, %v1865
          %v1867 = vshrl.u32 %v1798, 16
          %v1869 = vor.u32 %v1867, %v1865
          %v1871 = vshll.u32 %v1799, 16
          %v1873 = vrot.slane %v1871, 1
          %v1874 = vsel %vm765, %v1869, %v1873
          %v1875 = vshrl.u32 %v1799, 16
          %v1877 = vor.u32 %v1875, %v1873
          %v1879 = vshll.u32 %v1800, 16
          %v1881 = vrot.slane %v1879, 1
          %v1882 = vsel %vm765, %v1877, %v1881
          %v1883 = vshrl.u32 %v1800, 16
          %v1885 = vor.u32 %v1883, %v1881
          %v1887 = vshll.u32 %v1801, 16
          %v1889 = vrot.slane %v1887, 1
          %v1890 = vsel %vm765, %v1885, %v1889
          %v1891 = vshrl.u32 %v1801, 16
          %v1893 = vor.u32 %v1891, %v1889
          %v1895 = vshll.u32 %v1802, 16
          %v1897 = vrot.slane %v1895, 1
          %v1898 = vsel %vm765, %v1893, %v1897
          %v1899 = vshrl.u32 %v1802, 16
          %v1901 = vor.u32 %v1899, %v1897
          %v1903 = vshll.u32 %v1803, 16
          %v1905 = vrot.slane %v1903, 1
          %v1906 = vsel %vm765, %v1901, %v1905
          %v1907 = vshrl.u32 %v1803, 16
          %v1909 = vor.u32 %v1907, %v1905
          %v1911 = vshll.u32 %v1804, 16
          %v1913 = vrot.slane %v1911, 1
          %v1914 = vsel %vm765, %v1909, %v1913
          %v1915 = vshrl.u32 %v1804, 16
          %v1917 = vor.u32 %v1915, %v1913
          %v1919 = vshll.u32 %v1805, 16
          %v1921 = vrot.slane %v1919, 1
          %v1922 = vsel %vm765, %v1917, %v1921
          %v1923 = vshrl.u32 %v1805, 16
          %v1925 = vor.u32 %v1923, %v1921
          %v1927 = vshll.u32 %v1806, 16
          %v1929 = vrot.slane %v1927, 1
          %v1930 = vsel %vm765, %v1925, %v1929
          %v1931 = vshrl.u32 %v1806, 16
          %v1933 = vor.u32 %v1931, %v1929
          %v1935 = vshll.u32 %v1807, 16
          %v1937 = vrot.slane %v1935, 1
          %v1938 = vsel %vm765, %v1933, %v1937
          %v1939 = vshrl.u32 %v1807, 16
          %v1941 = vor.u32 %v1939, %v1937
          %v1943 = vshll.u32 %v1808, 16
          %v1945 = vrot.slane %v1943, 1
          %v1946 = vsel %vm765, %v1941, %v1945
          %v1947 = vshrl.u32 %v1808, 16
          %v1949 = vor.u32 %v1947, %v1945
          %v1951 = vshll.u32 %v1809, 16
          %v1953 = vrot.slane %v1951, 1
          %v1954 = vsel %vm765, %v1949, %v1953
          %v1955 = vshrl.u32 %v1809, 16
          %v1957 = vor.u32 %v1955, %v1953
          %v1959 = vshll.u32 %v1810, 16
          %v1961 = vrot.slane %v1959, 1
          %v1962 = vsel %vm765, %v1957, %v1961
          %v1963 = vshrl.u32 %v1810, 16
          %v1965 = vor.u32 %v1963, %v1961
          %v1967 = vshll.u32 %v1811, 16
          %v1969 = vrot.slane %v1967, 1
          %v1970 = vsel %vm765, %v1965, %v1969
          %v1971 = vshrl.u32 %v1811, 16
          %v1973 = vor.u32 %v1971, %v1969
          %v1975 = vshll.u32 %v1812, 16
          %v1977 = vrot.slane %v1975, 1
          %v1978 = vsel %vm765, %v1973, %v1977
          %v1979 = vshrl.u32 %v1812, 16
          %v1981 = vor.u32 %v1979, %v1977
          %v1983 = vshll.u32 %v1813, 16
          %v1985 = vrot.slane %v1983, 1
          %v1986 = vsel %vm765, %v1981, %v1985
          %v1987 = vshrl.u32 %v1813, 16
          %v1989 = vor.u32 %v1987, %v1985
          %v1991 = vshll.u32 %v1814, 16
          %v1993 = vrot.slane %v1991, 1
          %v1994 = vsel %vm765, %v1989, %v1993
          %v1995 = vshrl.u32 %v1814, 16
          %v1997 = vor.u32 %v1995, %v1993
          %v2003 = vunpack.c.l.b16 %v1698
          %v2004 = vunpack.c.l.b16 %v1699
          %v2005 = vunpack.c.l.b16 %v1700
          %v2006 = vunpack.c.l.b16 %v1701
          %v2007 = vpack.c.b16 %v2004, %v2003
          %v2008 = vpack.c.b16 %v2006, %v2005
          %vm2009 = vsmask.f32 3328
          %v2011 = vshrl.u32 %v2007, 16
          %v2013 = vrot.slane %v2011, 4
          %v2014 = vshll.u32 %v2007, 16
          %v2016 = vrot.slane %v2014, 5
          %v2017 = vor.u32 %v2013, %v2016
          %v2019 = vshrl.u32 %v2008, 16
          %v2021 = vrot.slane %v2019, 4
          %v2022 = vshll.u32 %v2008, 16
          %v2024 = vrot.slane %v2022, 5
          %v2025 = vor.u32 %v2021, %v2024
          %v2026 = vsel %vm2009, %v2017, %v2025
          %vm2028 = vcmask 1043456
          %vm2029 = vmand %vm2028, %vm2009
          %v2030 = vsel %vm2029, %v1997, %v2017
          %v2032 = vsel %vm498, %v1826, 0
          %v2035 = vsel %vm498, %v1834, 0
          %v2038 = vsel %vm498, %v1842, 0
          %v2041 = vsel %vm498, %v1850, 0
          %v2044 = vsel %vm498, %v1858, 0
          %v2047 = vsel %vm498, %v1866, 0
          %v2050 = vsel %vm498, %v1874, 0
          %v2053 = vsel %vm498, %v1882, 0
          %v2056 = vsel %vm498, %v1890, 0
          %v2059 = vsel %vm498, %v1898, 0
          %v2062 = vsel %vm498, %v1906, 0
          %v2065 = vsel %vm498, %v1914, 0
          %v2068 = vsel %vm498, %v1922, 0
          %v2071 = vsel %vm498, %v1930, 0
          %v2074 = vsel %vm498, %v1938, 0
          %v2077 = vsel %vm498, %v1946, 0
          %v2080 = vsel %vm498, %v1954, 0
          %v2083 = vsel %vm498, %v1962, 0
          %v2086 = vsel %vm498, %v1970, 0
          %v2089 = vsel %vm498, %v1978, 0
          %v2092 = vsel %vm498, %v1986, 0
          %v2095 = vsel %vm498, %v1994, 0
          %v2098 = vsel %vm498, %v2030, 0
          %v2101 = vsel %vm498, %v2026, 0
          %2103 = vst [vmem:[#allocation2 + $0x20] sm:$0xff] %v2032
          %2104 = vst [vmem:[#allocation2 + $0x68] sm:$0xff] %v2035
          %2105 = vst [vmem:[#allocation2 + $0xb0] sm:$0xff] %v2038
          %2106 = vst [vmem:[#allocation2 + $0xf8] sm:$0xff] %v2041
          %2107 = vst [vmem:[#allocation2 + $0x140] sm:$0xff] %v2044
          %2108 = vst [vmem:[#allocation2 + $0x188] sm:$0xff] %v2047
          %2109 = vst [vmem:[#allocation2 + $0x1d0] sm:$0xff] %v2050
          %2110 = vst [vmem:[#allocation2 + $0x218] sm:$0xff] %v2053
          %2111 = vst [vmem:[#allocation2 + $0x260] sm:$0xff] %v2056
          %2112 = vst [vmem:[#allocation2 + $0x2a8] sm:$0xff] %v2059
          %2113 = vst [vmem:[#allocation2 + $0x2f0] sm:$0xff] %v2062
          %2114 = vst [vmem:[#allocation2 + $0x338] sm:$0xff] %v2065
          %2115 = vst [vmem:[#allocation2 + $0x380] sm:$0xff] %v2068
          %2116 = vst [vmem:[#allocation2 + $0x3c8] sm:$0xff] %v2071
          %2117 = vst [vmem:[#allocation2 + $0x410] sm:$0xff] %v2074
          %2118 = vst [vmem:[#allocation2 + $0x458] sm:$0xff] %v2077
          %2119 = vst [vmem:[#allocation2 + $0x4a0] sm:$0xff] %v2080
          %2120 = vst [vmem:[#allocation2 + $0x4e8] sm:$0xff] %v2083
          %2121 = vst [vmem:[#allocation2 + $0x530] sm:$0xff] %v2086
          %2122 = vst [vmem:[#allocation2 + $0x578] sm:$0xff] %v2089
          %2123 = vst [vmem:[#allocation2 + $0x5c0] sm:$0xff] %v2092
          %2124 = vst [vmem:[#allocation2 + $0x608] sm:$0xff] %v2095
          %2125 = vst [vmem:[#allocation2 + $0x650] sm:$0xff] %v2098
          %2126 = vst [vmem:[#allocation2 + $0x698] sm:$0xff] %v2101
          %v2127 = vld [vmem:[%s307 + $0xc] sm:$0xe]
          %v2128 = vld [vmem:[%s307 + $0x10] sm:$0xf]
          %v2129 = vld [vmem:[%s307 + $0x14] sm:$0xf]
          %v2130 = vld [vmem:[%s307 + $0x18] sm:$0xf]
          %v2131 = vld [vmem:[%s307 + $0x1c] sm:$0xf]
          %v2132 = vld [vmem:[%s307 + $0x20] sm:$0xf]
          %v2133 = vld [vmem:[%s307 + $0x24] sm:$0xf]
          %v2134 = vld [vmem:[%s307 + $0x28] sm:$0xf]
          %v2135 = vld [vmem:[%s307 + $0x2c] sm:$0xf]
          %v2136 = vld [vmem:[%s307 + $0x30] sm:$0xf]
          %v2137 = vld [vmem:[%s307 + $0x34] sm:$0xf]
          %v2138 = vld [vmem:[%s307 + $0x38] sm:$0xf]
          %v2139 = vld [vmem:[%s307 + $0x3c] sm:$0xf]
          %v2140 = vld [vmem:[%s307 + $0x40] sm:$0xf]
          %v2141 = vld [vmem:[%s307 + $0x44] sm:$0xf]
          %v2142 = vld [vmem:[%s307 + $0x48] sm:$0xf]
          %v2143 = vld [vmem:[%s307 + $0x4c] sm:$0xf]
          %v2144 = vld [vmem:[%s307 + $0x50] sm:$0xf]
          %v2145 = vld [vmem:[%s307 + $0x54] sm:$0xf]
          %v2146 = vld [vmem:[%s307 + $0x58] sm:$0xf]
          %v2147 = vld [vmem:[%s307 + $0x5c] sm:$0xf]
          %v2148 = vld [vmem:[%s307 + $0x60] sm:$0xf]
          %v2149 = vld [vmem:[%s307 + $0x64] sm:$0xf]
          %v2150 = vld [vmem:[%s307 + $0x68] sm:$0xf]
          %v2151 = vld [vmem:[%s307 + $0x6c] sm:$0xf]
          %v2152 = vld [vmem:[%s307 + $0x70] sm:$0xf]
          %v2153 = vld [vmem:[%s307 + $0x74] sm:$0xf]
          %v2154 = vld [vmem:[%s307 + $0x78] sm:$0xf]
          %v2155 = vld [vmem:[%s307 + $0x7c] sm:$0xf]
          %v2156 = vld [vmem:[%s307 + $0x80] sm:$0xf]
          %v2157 = vld [vmem:[%s307 + $0x84] sm:$0xf]
          %v2158 = vld [vmem:[%s307 + $0x88] sm:$0xf]
          %v2159 = vld [vmem:[%s307 + $0x8c] sm:$0xf]
          %v2160 = vld [vmem:[%s307 + $0x90] sm:$0xf]
          %v2161 = vld [vmem:[%s307 + $0x94] sm:$0xf]
          %v2162 = vld [vmem:[%s307 + $0x98] sm:$0xf]
          %v2163 = vld [vmem:[%s307 + $0x9c] sm:$0xf]
          %v2164 = vld [vmem:[%s307 + $0xa0] sm:$0xf]
          %v2165 = vld [vmem:[%s307 + $0xa4] sm:$0xf]
          %v2166 = vld [vmem:[%s307 + $0xa8] sm:$0xf]
          %v2167 = vld [vmem:[%s307 + $0xac] sm:$0xf]
          %v2168 = vld [vmem:[%s307 + $0xb0] sm:$0xf]
          %v2169 = vld [vmem:[%s307 + $0xb4] sm:$0xf]
          %v2170 = vld [vmem:[%s307 + $0xb8] sm:$0xf]
          %v2171 = vld [vmem:[%s307 + $0xbc] sm:$0xf]
          %v2172 = vld [vmem:[%s321] sm:$0xf]
          %v2173 = vld [vmem:[%s321 + $0x4] sm:$0xf]
          %v2174 = vld [vmem:[%s321 + $0x8] sm:$0xf]
          %v2175 = vld [vmem:[%s321 + $0xc] sm:$0x1]
          %v2221 = vunpack.c.l.b16 %v2127
          %v2222 = vunpack.c.l.b16 %v2128
          %v2223 = vunpack.c.l.b16 %v2129
          %v2224 = vunpack.c.l.b16 %v2130
          %v2225 = vunpack.c.l.b16 %v2131
          %v2226 = vunpack.c.l.b16 %v2132
          %v2227 = vunpack.c.l.b16 %v2133
          %v2228 = vunpack.c.l.b16 %v2134
          %v2229 = vunpack.c.l.b16 %v2135
          %v2230 = vunpack.c.l.b16 %v2136
          %v2231 = vunpack.c.l.b16 %v2137
          %v2232 = vunpack.c.l.b16 %v2138
          %v2233 = vunpack.c.l.b16 %v2139
          %v2234 = vunpack.c.l.b16 %v2140
          %v2235 = vunpack.c.l.b16 %v2141
          %v2236 = vunpack.c.l.b16 %v2142
          %v2237 = vunpack.c.l.b16 %v2143
          %v2238 = vunpack.c.l.b16 %v2144
          %v2239 = vunpack.c.l.b16 %v2145
          %v2240 = vunpack.c.l.b16 %v2146
          %v2241 = vunpack.c.l.b16 %v2147
          %v2242 = vunpack.c.l.b16 %v2148
          %v2243 = vunpack.c.l.b16 %v2149
          %v2244 = vunpack.c.l.b16 %v2150
          %v2245 = vunpack.c.l.b16 %v2151
          %v2246 = vunpack.c.l.b16 %v2152
          %v2247 = vunpack.c.l.b16 %v2153
          %v2248 = vunpack.c.l.b16 %v2154
          %v2249 = vunpack.c.l.b16 %v2155
          %v2250 = vunpack.c.l.b16 %v2156
          %v2251 = vunpack.c.l.b16 %v2157
          %v2252 = vunpack.c.l.b16 %v2158
          %v2253 = vunpack.c.l.b16 %v2159
          %v2254 = vunpack.c.l.b16 %v2160
          %v2255 = vunpack.c.l.b16 %v2161
          %v2256 = vunpack.c.l.b16 %v2162
          %v2257 = vunpack.c.l.b16 %v2163
          %v2258 = vunpack.c.l.b16 %v2164
          %v2259 = vunpack.c.l.b16 %v2165
          %v2260 = vunpack.c.l.b16 %v2166
          %v2261 = vunpack.c.l.b16 %v2167
          %v2262 = vunpack.c.l.b16 %v2168
          %v2263 = vunpack.c.l.b16 %v2169
          %v2264 = vunpack.c.l.b16 %v2170
          %v2265 = vunpack.c.l.b16 %v2171
          %v2266 = vpack.c.b16 %v2222, %v2221
          %v2267 = vpack.c.b16 %v2224, %v2223
          %v2268 = vpack.c.b16 %v2226, %v2225
          %v2269 = vpack.c.b16 %v2228, %v2227
          %v2270 = vpack.c.b16 %v2230, %v2229
          %v2271 = vpack.c.b16 %v2232, %v2231
          %v2272 = vpack.c.b16 %v2234, %v2233
          %v2273 = vpack.c.b16 %v2236, %v2235
          %v2274 = vpack.c.b16 %v2238, %v2237
          %v2275 = vpack.c.b16 %v2240, %v2239
          %v2276 = vpack.c.b16 %v2242, %v2241
          %v2277 = vpack.c.b16 %v2244, %v2243
          %v2278 = vpack.c.b16 %v2246, %v2245
          %v2279 = vpack.c.b16 %v2248, %v2247
          %v2280 = vpack.c.b16 %v2250, %v2249
          %v2281 = vpack.c.b16 %v2252, %v2251
          %v2282 = vpack.c.b16 %v2254, %v2253
          %v2283 = vpack.c.b16 %v2256, %v2255
          %v2284 = vpack.c.b16 %v2258, %v2257
          %v2285 = vpack.c.b16 %v2260, %v2259
          %v2286 = vpack.c.b16 %v2262, %v2261
          %v2287 = vpack.c.b16 %v2264, %v2263
          %v2288 = vpack.c.b16 %v2265, %v2265
          %v2289 = vrot.slane %v2266, 1
          %v2290 = vrot.slane %v2267, 1
          %v2291 = vsel %vm1234, %v2289, %v2290
          %v2292 = vrot.slane %v2268, 1
          %v2293 = vsel %vm1234, %v2290, %v2292
          %v2294 = vrot.slane %v2269, 1
          %v2295 = vsel %vm1234, %v2292, %v2294
          %v2296 = vrot.slane %v2270, 1
          %v2297 = vsel %vm1234, %v2294, %v2296
          %v2298 = vrot.slane %v2271, 1
          %v2299 = vsel %vm1234, %v2296, %v2298
          %v2300 = vrot.slane %v2272, 1
          %v2301 = vsel %vm1234, %v2298, %v2300
          %v2302 = vrot.slane %v2273, 1
          %v2303 = vsel %vm1234, %v2300, %v2302
          %v2304 = vrot.slane %v2274, 1
          %v2305 = vsel %vm1234, %v2302, %v2304
          %v2306 = vrot.slane %v2275, 1
          %v2307 = vsel %vm1234, %v2304, %v2306
          %v2308 = vrot.slane %v2276, 1
          %v2309 = vsel %vm1234, %v2306, %v2308
          %v2310 = vrot.slane %v2277, 1
          %v2311 = vsel %vm1234, %v2308, %v2310
          %v2312 = vrot.slane %v2278, 1
          %v2313 = vsel %vm1234, %v2310, %v2312
          %v2314 = vrot.slane %v2279, 1
          %v2315 = vsel %vm1234, %v2312, %v2314
          %v2316 = vrot.slane %v2280, 1
          %v2317 = vsel %vm1234, %v2314, %v2316
          %v2318 = vrot.slane %v2281, 1
          %v2319 = vsel %vm1234, %v2316, %v2318
          %v2320 = vrot.slane %v2282, 1
          %v2321 = vsel %vm1234, %v2318, %v2320
          %v2322 = vrot.slane %v2283, 1
          %v2323 = vsel %vm1234, %v2320, %v2322
          %v2324 = vrot.slane %v2284, 1
          %v2325 = vsel %vm1234, %v2322, %v2324
          %v2326 = vrot.slane %v2285, 1
          %v2327 = vsel %vm1234, %v2324, %v2326
          %v2328 = vrot.slane %v2286, 1
          %v2329 = vsel %vm1234, %v2326, %v2328
          %v2330 = vrot.slane %v2287, 1
          %v2331 = vsel %vm1234, %v2328, %v2330
          %v2332 = vrot.slane %v2288, 1
          %v2333 = vsel %vm1234, %v2330, %v2332
          %v2338 = vunpack.c.l.b16 %v2172
          %v2339 = vunpack.c.l.b16 %v2173
          %v2340 = vunpack.c.l.b16 %v2174
          %v2341 = vunpack.c.l.b16 %v2175
          %v2342 = vpack.c.b16 %v2339, %v2338
          %v2343 = vpack.c.b16 %v2341, %v2340
          %vm2344 = vcmask 1042432
          %v2345 = vrot.slane %v2342, 5
          %v2346 = vrot.slane %v2343, 5
          %v2347 = vsel %vm2344, %v2345, %v2346
          %vm2348 = vcmask 1042432
          %v2351 = vsel %vm2348, %v2332, %v2345
          %v2353 = vsel %vm498, %v2291, 0
          %v2356 = vsel %vm498, %v2293, 0
          %v2359 = vsel %vm498, %v2295, 0
          %v2362 = vsel %vm498, %v2297, 0
          %v2365 = vsel %vm498, %v2299, 0
          %v2368 = vsel %vm498, %v2301, 0
          %v2371 = vsel %vm498, %v2303, 0
          %v2374 = vsel %vm498, %v2305, 0
          %v2377 = vsel %vm498, %v2307, 0
          %v2380 = vsel %vm498, %v2309, 0
          %v2383 = vsel %vm498, %v2311, 0
          %v2386 = vsel %vm498, %v2313, 0
          %v2389 = vsel %vm498, %v2315, 0
          %v2392 = vsel %vm498, %v2317, 0
          %v2395 = vsel %vm498, %v2319, 0
          %v2398 = vsel %vm498, %v2321, 0
          %v2401 = vsel %vm498, %v2323, 0
          %v2404 = vsel %vm498, %v2325, 0
          %v2407 = vsel %vm498, %v2327, 0
          %v2410 = vsel %vm498, %v2329, 0
          %v2413 = vsel %vm498, %v2331, 0
          %v2416 = vsel %vm498, %v2333, 0
          %v2418 = vsel %vm498, %v2351, 0
          %v2421 = vsel %vm498, %v2347, 0
          %2423 = vst [vmem:[#allocation2 + $0x28] sm:$0xff] %v2353
          %2424 = vst [vmem:[#allocation2 + $0x70] sm:$0xff] %v2356
          %2425 = vst [vmem:[#allocation2 + $0xb8] sm:$0xff] %v2359
          %2426 = vst [vmem:[#allocation2 + $0x100] sm:$0xff] %v2362
          %2427 = vst [vmem:[#allocation2 + $0x148] sm:$0xff] %v2365
          %2428 = vst [vmem:[#allocation2 + $0x190] sm:$0xff] %v2368
          %2429 = vst [vmem:[#allocation2 + $0x1d8] sm:$0xff] %v2371
          %2430 = vst [vmem:[#allocation2 + $0x220] sm:$0xff] %v2374
          %2431 = vst [vmem:[#allocation2 + $0x268] sm:$0xff] %v2377
          %2432 = vst [vmem:[#allocation2 + $0x2b0] sm:$0xff] %v2380
          %2433 = vst [vmem:[#allocation2 + $0x2f8] sm:$0xff] %v2383
          %2434 = vst [vmem:[#allocation2 + $0x340] sm:$0xff] %v2386
          %2435 = vst [vmem:[#allocation2 + $0x388] sm:$0xff] %v2389
          %2436 = vst [vmem:[#allocation2 + $0x3d0] sm:$0xff] %v2392
          %2437 = vst [vmem:[#allocation2 + $0x418] sm:$0xff] %v2395
          %2438 = vst [vmem:[#allocation2 + $0x460] sm:$0xff] %v2398
          %2439 = vst [vmem:[#allocation2 + $0x4a8] sm:$0xff] %v2401
          %2440 = vst [vmem:[#allocation2 + $0x4f0] sm:$0xff] %v2404
          %2441 = vst [vmem:[#allocation2 + $0x538] sm:$0xff] %v2407
          %2442 = vst [vmem:[#allocation2 + $0x580] sm:$0xff] %v2410
          %2443 = vst [vmem:[#allocation2 + $0x5c8] sm:$0xff] %v2413
          %2444 = vst [vmem:[#allocation2 + $0x610] sm:$0xff] %v2416
          %2445 = vst [vmem:[#allocation2 + $0x658] sm:$0xff] %v2418
          %2446 = vst [vmem:[#allocation2 + $0x6a0] sm:$0xff] %v2421
          %v2447 = vld [vmem:[%s307 + $0x18] sm:$0xf]
          %v2448 = vld [vmem:[%s307 + $0x1c] sm:$0xf]
          %v2449 = vld [vmem:[%s307 + $0x20] sm:$0xf]
          %v2450 = vld [vmem:[%s307 + $0x24] sm:$0xf]
          %v2451 = vld [vmem:[%s307 + $0x28] sm:$0xf]
          %v2452 = vld [vmem:[%s307 + $0x2c] sm:$0xf]
          %v2453 = vld [vmem:[%s307 + $0x30] sm:$0xf]
          %v2454 = vld [vmem:[%s307 + $0x34] sm:$0xf]
          %v2455 = vld [vmem:[%s307 + $0x38] sm:$0xf]
          %v2456 = vld [vmem:[%s307 + $0x3c] sm:$0xf]
          %v2457 = vld [vmem:[%s307 + $0x40] sm:$0xf]
          %v2458 = vld [vmem:[%s307 + $0x44] sm:$0xf]
          %v2459 = vld [vmem:[%s307 + $0x48] sm:$0xf]
          %v2460 = vld [vmem:[%s307 + $0x4c] sm:$0xf]
          %v2461 = vld [vmem:[%s307 + $0x50] sm:$0xf]
          %v2462 = vld [vmem:[%s307 + $0x54] sm:$0xf]
          %v2463 = vld [vmem:[%s307 + $0x58] sm:$0xf]
          %v2464 = vld [vmem:[%s307 + $0x5c] sm:$0xf]
          %v2465 = vld [vmem:[%s307 + $0x60] sm:$0xf]
          %v2466 = vld [vmem:[%s307 + $0x64] sm:$0xf]
          %v2467 = vld [vmem:[%s307 + $0x68] sm:$0xf]
          %v2468 = vld [vmem:[%s307 + $0x6c] sm:$0xf]
          %v2469 = vld [vmem:[%s307 + $0x70] sm:$0xf]
          %v2470 = vld [vmem:[%s307 + $0x74] sm:$0xf]
          %v2471 = vld [vmem:[%s307 + $0x78] sm:$0xf]
          %v2472 = vld [vmem:[%s307 + $0x7c] sm:$0xf]
          %v2473 = vld [vmem:[%s307 + $0x80] sm:$0xf]
          %v2474 = vld [vmem:[%s307 + $0x84] sm:$0xf]
          %v2475 = vld [vmem:[%s307 + $0x88] sm:$0xf]
          %v2476 = vld [vmem:[%s307 + $0x8c] sm:$0xf]
          %v2477 = vld [vmem:[%s307 + $0x90] sm:$0xf]
          %v2478 = vld [vmem:[%s307 + $0x94] sm:$0xf]
          %v2479 = vld [vmem:[%s307 + $0x98] sm:$0xf]
          %v2480 = vld [vmem:[%s307 + $0x9c] sm:$0xf]
          %v2481 = vld [vmem:[%s307 + $0xa0] sm:$0xf]
          %v2482 = vld [vmem:[%s307 + $0xa4] sm:$0xf]
          %v2483 = vld [vmem:[%s307 + $0xa8] sm:$0xf]
          %v2484 = vld [vmem:[%s307 + $0xac] sm:$0xf]
          %v2485 = vld [vmem:[%s307 + $0xb0] sm:$0xf]
          %v2486 = vld [vmem:[%s307 + $0xb4] sm:$0xf]
          %v2487 = vld [vmem:[%s307 + $0xb8] sm:$0xf]
          %v2488 = vld [vmem:[%s307 + $0xbc] sm:$0xf]
          %v2489 = vld [vmem:[%s321] sm:$0xf]
          %v2490 = vld [vmem:[%s321 + $0x4] sm:$0xf]
          %v2491 = vld [vmem:[%s321 + $0x8] sm:$0xf]
          %v2492 = vld [vmem:[%s321 + $0xc] sm:$0xf]
          %v2493 = vld [vmem:[%s321 + $0x10] sm:$0xf]
          %v2494 = vld [vmem:[%s321 + $0x14] sm:$0xf]
          %v2537 = vunpack.c.l.b16 %v2447
          %v2538 = vunpack.c.l.b16 %v2448
          %v2539 = vunpack.c.l.b16 %v2449
          %v2540 = vunpack.c.l.b16 %v2450
          %v2541 = vunpack.c.l.b16 %v2451
          %v2542 = vunpack.c.l.b16 %v2452
          %v2543 = vunpack.c.l.b16 %v2453
          %v2544 = vunpack.c.l.b16 %v2454
          %v2545 = vunpack.c.l.b16 %v2455
          %v2546 = vunpack.c.l.b16 %v2456
          %v2547 = vunpack.c.l.b16 %v2457
          %v2548 = vunpack.c.l.b16 %v2458
          %v2549 = vunpack.c.l.b16 %v2459
          %v2550 = vunpack.c.l.b16 %v2460
          %v2551 = vunpack.c.l.b16 %v2461
          %v2552 = vunpack.c.l.b16 %v2462
          %v2553 = vunpack.c.l.b16 %v2463
          %v2554 = vunpack.c.l.b16 %v2464
          %v2555 = vunpack.c.l.b16 %v2465
          %v2556 = vunpack.c.l.b16 %v2466
          %v2557 = vunpack.c.l.b16 %v2467
          %v2558 = vunpack.c.l.b16 %v2468
          %v2559 = vunpack.c.l.b16 %v2469
          %v2560 = vunpack.c.l.b16 %v2470
          %v2561 = vunpack.c.l.b16 %v2471
          %v2562 = vunpack.c.l.b16 %v2472
          %v2563 = vunpack.c.l.b16 %v2473
          %v2564 = vunpack.c.l.b16 %v2474
          %v2565 = vunpack.c.l.b16 %v2475
          %v2566 = vunpack.c.l.b16 %v2476
          %v2567 = vunpack.c.l.b16 %v2477
          %v2568 = vunpack.c.l.b16 %v2478
          %v2569 = vunpack.c.l.b16 %v2479
          %v2570 = vunpack.c.l.b16 %v2480
          %v2571 = vunpack.c.l.b16 %v2481
          %v2572 = vunpack.c.l.b16 %v2482
          %v2573 = vunpack.c.l.b16 %v2483
          %v2574 = vunpack.c.l.b16 %v2484
          %v2575 = vunpack.c.l.b16 %v2485
          %v2576 = vunpack.c.l.b16 %v2486
          %v2577 = vunpack.c.l.b16 %v2487
          %v2578 = vunpack.c.l.b16 %v2488
          %v2579 = vpack.c.b16 %v2538, %v2537
          %v2580 = vpack.c.b16 %v2540, %v2539
          %v2581 = vpack.c.b16 %v2542, %v2541
          %v2582 = vpack.c.b16 %v2544, %v2543
          %v2583 = vpack.c.b16 %v2546, %v2545
          %v2584 = vpack.c.b16 %v2548, %v2547
          %v2585 = vpack.c.b16 %v2550, %v2549
          %v2586 = vpack.c.b16 %v2552, %v2551
          %v2587 = vpack.c.b16 %v2554, %v2553
          %v2588 = vpack.c.b16 %v2556, %v2555
          %v2589 = vpack.c.b16 %v2558, %v2557
          %v2590 = vpack.c.b16 %v2560, %v2559
          %v2591 = vpack.c.b16 %v2562, %v2561
          %v2592 = vpack.c.b16 %v2564, %v2563
          %v2593 = vpack.c.b16 %v2566, %v2565
          %v2594 = vpack.c.b16 %v2568, %v2567
          %v2595 = vpack.c.b16 %v2570, %v2569
          %v2596 = vpack.c.b16 %v2572, %v2571
          %v2597 = vpack.c.b16 %v2574, %v2573
          %v2598 = vpack.c.b16 %v2576, %v2575
          %v2599 = vpack.c.b16 %v2578, %v2577
          %v2606 = vunpack.c.l.b16 %v2489
          %v2607 = vunpack.c.l.b16 %v2490
          %v2608 = vunpack.c.l.b16 %v2491
          %v2609 = vunpack.c.l.b16 %v2492
          %v2610 = vunpack.c.l.b16 %v2493
          %v2611 = vunpack.c.l.b16 %v2494
          %v2612 = vpack.c.b16 %v2607, %v2606
          %v2613 = vpack.c.b16 %v2609, %v2608
          %v2614 = vpack.c.b16 %v2611, %v2610
          %v2616 = vsel %vm498, %v2579, 0
          %v2619 = vsel %vm498, %v2580, 0
          %v2622 = vsel %vm498, %v2581, 0
          %v2625 = vsel %vm498, %v2582, 0
          %v2628 = vsel %vm498, %v2583, 0
          %v2631 = vsel %vm498, %v2584, 0
          %v2634 = vsel %vm498, %v2585, 0
          %v2637 = vsel %vm498, %v2586, 0
          %v2640 = vsel %vm498, %v2587, 0
          %v2643 = vsel %vm498, %v2588, 0
          %v2646 = vsel %vm498, %v2589, 0
          %v2649 = vsel %vm498, %v2590, 0
          %v2652 = vsel %vm498, %v2591, 0
          %v2655 = vsel %vm498, %v2592, 0
          %v2658 = vsel %vm498, %v2593, 0
          %v2661 = vsel %vm498, %v2594, 0
          %v2664 = vsel %vm498, %v2595, 0
          %v2667 = vsel %vm498, %v2596, 0
          %v2670 = vsel %vm498, %v2597, 0
          %v2673 = vsel %vm498, %v2598, 0
          %v2676 = vsel %vm498, %v2599, 0
          %v2679 = vsel %vm498, %v2612, 0
          %v2682 = vsel %vm498, %v2613, 0
          %v2685 = vsel %vm498, %v2614, 0
          %2687 = vst [vmem:[#allocation2 + $0x30] sm:$0xff] %v2616
          %2688 = vst [vmem:[#allocation2 + $0x78] sm:$0xff] %v2619
          %2689 = vst [vmem:[#allocation2 + $0xc0] sm:$0xff] %v2622
          %2690 = vst [vmem:[#allocation2 + $0x108] sm:$0xff] %v2625
          %2691 = vst [vmem:[#allocation2 + $0x150] sm:$0xff] %v2628
          %2692 = vst [vmem:[#allocation2 + $0x198] sm:$0xff] %v2631
          %2693 = vst [vmem:[#allocation2 + $0x1e0] sm:$0xff] %v2634
          %2694 = vst [vmem:[#allocation2 + $0x228] sm:$0xff] %v2637
          %2695 = vst [vmem:[#allocation2 + $0x270] sm:$0xff] %v2640
          %2696 = vst [vmem:[#allocation2 + $0x2b8] sm:$0xff] %v2643
          %2697 = vst [vmem:[#allocation2 + $0x300] sm:$0xff] %v2646
          %2698 = vst [vmem:[#allocation2 + $0x348] sm:$0xff] %v2649
          %2699 = vst [vmem:[#allocation2 + $0x390] sm:$0xff] %v2652
          %2700 = vst [vmem:[#allocation2 + $0x3d8] sm:$0xff] %v2655
          %2701 = vst [vmem:[#allocation2 + $0x420] sm:$0xff] %v2658
          %2702 = vst [vmem:[#allocation2 + $0x468] sm:$0xff] %v2661
          %2703 = vst [vmem:[#allocation2 + $0x4b0] sm:$0xff] %v2664
          %2704 = vst [vmem:[#allocation2 + $0x4f8] sm:$0xff] %v2667
          %2705 = vst [vmem:[#allocation2 + $0x540] sm:$0xff] %v2670
          %2706 = vst [vmem:[#allocation2 + $0x588] sm:$0xff] %v2673
          %2707 = vst [vmem:[#allocation2 + $0x5d0] sm:$0xff] %v2676
          %2708 = vst [vmem:[#allocation2 + $0x618] sm:$0xff] %v2679
          %2709 = vst [vmem:[#allocation2 + $0x660] sm:$0xff] %v2682
          %2710 = vst [vmem:[#allocation2 + $0x6a8] sm:$0xff] %v2685
          %v2711 = vld [vmem:[%s307 + $0x18] sm:$0xf]
          %v2712 = vld [vmem:[%s307 + $0x1c] sm:$0xf]
          %v2713 = vld [vmem:[%s307 + $0x20] sm:$0xf]
          %v2714 = vld [vmem:[%s307 + $0x24] sm:$0xf]
          %v2715 = vld [vmem:[%s307 + $0x28] sm:$0xf]
          %v2716 = vld [vmem:[%s307 + $0x2c] sm:$0xf]
          %v2717 = vld [vmem:[%s307 + $0x30] sm:$0xf]
          %v2718 = vld [vmem:[%s307 + $0x34] sm:$0xf]
          %v2719 = vld [vmem:[%s307 + $0x38] sm:$0xf]
          %v2720 = vld [vmem:[%s307 + $0x3c] sm:$0xf]
          %v2721 = vld [vmem:[%s307 + $0x40] sm:$0xf]
          %v2722 = vld [vmem:[%s307 + $0x44] sm:$0xf]
          %v2723 = vld [vmem:[%s307 + $0x48] sm:$0xf]
          %v2724 = vld [vmem:[%s307 + $0x4c] sm:$0xf]
          %v2725 = vld [vmem:[%s307 + $0x50] sm:$0xf]
          %v2726 = vld [vmem:[%s307 + $0x54] sm:$0xf]
          %v2727 = vld [vmem:[%s307 + $0x58] sm:$0xf]
          %v2728 = vld [vmem:[%s307 + $0x5c] sm:$0xf]
          %v2729 = vld [vmem:[%s307 + $0x60] sm:$0xf]
          %v2730 = vld [vmem:[%s307 + $0x64] sm:$0xf]
          %v2731 = vld [vmem:[%s307 + $0x68] sm:$0xf]
          %v2732 = vld [vmem:[%s307 + $0x6c] sm:$0xf]
          %v2733 = vld [vmem:[%s307 + $0x70] sm:$0xf]
          %v2734 = vld [vmem:[%s307 + $0x74] sm:$0xf]
          %v2735 = vld [vmem:[%s307 + $0x78] sm:$0xf]
          %v2736 = vld [vmem:[%s307 + $0x7c] sm:$0xf]
          %v2737 = vld [vmem:[%s307 + $0x80] sm:$0xf]
          %v2738 = vld [vmem:[%s307 + $0x84] sm:$0xf]
          %v2739 = vld [vmem:[%s307 + $0x88] sm:$0xf]
          %v2740 = vld [vmem:[%s307 + $0x8c] sm:$0xf]
          %v2741 = vld [vmem:[%s307 + $0x90] sm:$0xf]
          %v2742 = vld [vmem:[%s307 + $0x94] sm:$0xf]
          %v2743 = vld [vmem:[%s307 + $0x98] sm:$0xf]
          %v2744 = vld [vmem:[%s307 + $0x9c] sm:$0xf]
          %v2745 = vld [vmem:[%s307 + $0xa0] sm:$0xf]
          %v2746 = vld [vmem:[%s307 + $0xa4] sm:$0xf]
          %v2747 = vld [vmem:[%s307 + $0xa8] sm:$0xf]
          %v2748 = vld [vmem:[%s307 + $0xac] sm:$0xf]
          %v2749 = vld [vmem:[%s307 + $0xb0] sm:$0xf]
          %v2750 = vld [vmem:[%s307 + $0xb4] sm:$0xf]
          %v2751 = vld [vmem:[%s307 + $0xb8] sm:$0xf]
          %v2752 = vld [vmem:[%s307 + $0xbc] sm:$0xf]
          %v2753 = vld [vmem:[%s321] sm:$0xf]
          %v2754 = vld [vmem:[%s321 + $0x4] sm:$0xf]
          %v2755 = vld [vmem:[%s321 + $0x8] sm:$0xf]
          %v2756 = vld [vmem:[%s321 + $0xc] sm:$0xf]
          %v2757 = vld [vmem:[%s321 + $0x10] sm:$0xf]
          %v2758 = vld [vmem:[%s321 + $0x14] sm:$0xf]
          %v2759 = vld [vmem:[%s321 + $0x18] sm:$0x1]
          %v2802 = vunpack.c.l.b16 %v2711
          %v2803 = vunpack.c.l.b16 %v2712
          %v2804 = vunpack.c.l.b16 %v2713
          %v2805 = vunpack.c.l.b16 %v2714
          %v2806 = vunpack.c.l.b16 %v2715
          %v2807 = vunpack.c.l.b16 %v2716
          %v2808 = vunpack.c.l.b16 %v2717
          %v2809 = vunpack.c.l.b16 %v2718
          %v2810 = vunpack.c.l.b16 %v2719
          %v2811 = vunpack.c.l.b16 %v2720
          %v2812 = vunpack.c.l.b16 %v2721
          %v2813 = vunpack.c.l.b16 %v2722
          %v2814 = vunpack.c.l.b16 %v2723
          %v2815 = vunpack.c.l.b16 %v2724
          %v2816 = vunpack.c.l.b16 %v2725
          %v2817 = vunpack.c.l.b16 %v2726
          %v2818 = vunpack.c.l.b16 %v2727
          %v2819 = vunpack.c.l.b16 %v2728
          %v2820 = vunpack.c.l.b16 %v2729
          %v2821 = vunpack.c.l.b16 %v2730
          %v2822 = vunpack.c.l.b16 %v2731
          %v2823 = vunpack.c.l.b16 %v2732
          %v2824 = vunpack.c.l.b16 %v2733
          %v2825 = vunpack.c.l.b16 %v2734
          %v2826 = vunpack.c.l.b16 %v2735
          %v2827 = vunpack.c.l.b16 %v2736
          %v2828 = vunpack.c.l.b16 %v2737
          %v2829 = vunpack.c.l.b16 %v2738
          %v2830 = vunpack.c.l.b16 %v2739
          %v2831 = vunpack.c.l.b16 %v2740
          %v2832 = vunpack.c.l.b16 %v2741
          %v2833 = vunpack.c.l.b16 %v2742
          %v2834 = vunpack.c.l.b16 %v2743
          %v2835 = vunpack.c.l.b16 %v2744
          %v2836 = vunpack.c.l.b16 %v2745
          %v2837 = vunpack.c.l.b16 %v2746
          %v2838 = vunpack.c.l.b16 %v2747
          %v2839 = vunpack.c.l.b16 %v2748
          %v2840 = vunpack.c.l.b16 %v2749
          %v2841 = vunpack.c.l.b16 %v2750
          %v2842 = vunpack.c.l.b16 %v2751
          %v2843 = vunpack.c.l.b16 %v2752
          %v2844 = vpack.c.b16 %v2803, %v2802
          %v2845 = vpack.c.b16 %v2805, %v2804
          %v2846 = vpack.c.b16 %v2807, %v2806
          %v2847 = vpack.c.b16 %v2809, %v2808
          %v2848 = vpack.c.b16 %v2811, %v2810
          %v2849 = vpack.c.b16 %v2813, %v2812
          %v2850 = vpack.c.b16 %v2815, %v2814
          %v2851 = vpack.c.b16 %v2817, %v2816
          %v2852 = vpack.c.b16 %v2819, %v2818
          %v2853 = vpack.c.b16 %v2821, %v2820
          %v2854 = vpack.c.b16 %v2823, %v2822
          %v2855 = vpack.c.b16 %v2825, %v2824
          %v2856 = vpack.c.b16 %v2827, %v2826
          %v2857 = vpack.c.b16 %v2829, %v2828
          %v2858 = vpack.c.b16 %v2831, %v2830
          %v2859 = vpack.c.b16 %v2833, %v2832
          %v2860 = vpack.c.b16 %v2835, %v2834
          %v2861 = vpack.c.b16 %v2837, %v2836
          %v2862 = vpack.c.b16 %v2839, %v2838
          %v2863 = vpack.c.b16 %v2841, %v2840
          %v2864 = vpack.c.b16 %v2843, %v2842
          %v2866 = vshrl.u32 %v2844, 16
          %v2868 = vshll.u32 %v2844, 16
          %v2870 = vrot.slane %v2868, 1
          %v2871 = vor.u32 %v2866, %v2870
          %v2873 = vshll.u32 %v2845, 16
          %v2875 = vrot.slane %v2873, 1
          %v2876 = vsel %vm765, %v2871, %v2875
          %v2877 = vshrl.u32 %v2845, 16
          %v2879 = vor.u32 %v2877, %v2875
          %v2881 = vshll.u32 %v2846, 16
          %v2883 = vrot.slane %v2881, 1
          %v2884 = vsel %vm765, %v2879, %v2883
          %v2885 = vshrl.u32 %v2846, 16
          %v2887 = vor.u32 %v2885, %v2883
          %v2889 = vshll.u32 %v2847, 16
          %v2891 = vrot.slane %v2889, 1
          %v2892 = vsel %vm765, %v2887, %v2891
          %v2893 = vshrl.u32 %v2847, 16
          %v2895 = vor.u32 %v2893, %v2891
          %v2897 = vshll.u32 %v2848, 16
          %v2899 = vrot.slane %v2897, 1
          %v2900 = vsel %vm765, %v2895, %v2899
          %v2901 = vshrl.u32 %v2848, 16
          %v2903 = vor.u32 %v2901, %v2899
          %v2905 = vshll.u32 %v2849, 16
          %v2907 = vrot.slane %v2905, 1
          %v2908 = vsel %vm765, %v2903, %v2907
          %v2909 = vshrl.u32 %v2849, 16
          %v2911 = vor.u32 %v2909, %v2907
          %v2913 = vshll.u32 %v2850, 16
          %v2915 = vrot.slane %v2913, 1
          %v2916 = vsel %vm765, %v2911, %v2915
          %v2917 = vshrl.u32 %v2850, 16
          %v2919 = vor.u32 %v2917, %v2915
          %v2921 = vshll.u32 %v2851, 16
          %v2923 = vrot.slane %v2921, 1
          %v2924 = vsel %vm765, %v2919, %v2923
          %v2925 = vshrl.u32 %v2851, 16
          %v2927 = vor.u32 %v2925, %v2923
          %v2929 = vshll.u32 %v2852, 16
          %v2931 = vrot.slane %v2929, 1
          %v2932 = vsel %vm765, %v2927, %v2931
          %v2933 = vshrl.u32 %v2852, 16
          %v2935 = vor.u32 %v2933, %v2931
          %v2937 = vshll.u32 %v2853, 16
          %v2939 = vrot.slane %v2937, 1
          %v2940 = vsel %vm765, %v2935, %v2939
          %v2941 = vshrl.u32 %v2853, 16
          %v2943 = vor.u32 %v2941, %v2939
          %v2945 = vshll.u32 %v2854, 16
          %v2947 = vrot.slane %v2945, 1
          %v2948 = vsel %vm765, %v2943, %v2947
          %v2949 = vshrl.u32 %v2854, 16
          %v2951 = vor.u32 %v2949, %v2947
          %v2953 = vshll.u32 %v2855, 16
          %v2955 = vrot.slane %v2953, 1
          %v2956 = vsel %vm765, %v2951, %v2955
          %v2957 = vshrl.u32 %v2855, 16
          %v2959 = vor.u32 %v2957, %v2955
          %v2961 = vshll.u32 %v2856, 16
          %v2963 = vrot.slane %v2961, 1
          %v2964 = vsel %vm765, %v2959, %v2963
          %v2965 = vshrl.u32 %v2856, 16
          %v2967 = vor.u32 %v2965, %v2963
          %v2969 = vshll.u32 %v2857, 16
          %v2971 = vrot.slane %v2969, 1
          %v2972 = vsel %vm765, %v2967, %v2971
          %v2973 = vshrl.u32 %v2857, 16
          %v2975 = vor.u32 %v2973, %v2971
          %v2977 = vshll.u32 %v2858, 16
          %v2979 = vrot.slane %v2977, 1
          %v2980 = vsel %vm765, %v2975, %v2979
          %v2981 = vshrl.u32 %v2858, 16
          %v2983 = vor.u32 %v2981, %v2979
          %v2985 = vshll.u32 %v2859, 16
          %v2987 = vrot.slane %v2985, 1
          %v2988 = vsel %vm765, %v2983, %v2987
          %v2989 = vshrl.u32 %v2859, 16
          %v2991 = vor.u32 %v2989, %v2987
          %v2993 = vshll.u32 %v2860, 16
          %v2995 = vrot.slane %v2993, 1
          %v2996 = vsel %vm765, %v2991, %v2995
          %v2997 = vshrl.u32 %v2860, 16
          %v2999 = vor.u32 %v2997, %v2995
          %v3001 = vshll.u32 %v2861, 16
          %v3003 = vrot.slane %v3001, 1
          %v3004 = vsel %vm765, %v2999, %v3003
          %v3005 = vshrl.u32 %v2861, 16
          %v3007 = vor.u32 %v3005, %v3003
          %v3009 = vshll.u32 %v2862, 16
          %v3011 = vrot.slane %v3009, 1
          %v3012 = vsel %vm765, %v3007, %v3011
          %v3013 = vshrl.u32 %v2862, 16
          %v3015 = vor.u32 %v3013, %v3011
          %v3017 = vshll.u32 %v2863, 16
          %v3019 = vrot.slane %v3017, 1
          %v3020 = vsel %vm765, %v3015, %v3019
          %v3021 = vshrl.u32 %v2863, 16
          %v3023 = vor.u32 %v3021, %v3019
          %v3025 = vshll.u32 %v2864, 16
          %v3027 = vrot.slane %v3025, 1
          %v3028 = vsel %vm765, %v3023, %v3027
          %v3029 = vshrl.u32 %v2864, 16
          %v3031 = vor.u32 %v3029, %v3027
          %v3040 = vunpack.c.l.b16 %v2753
          %v3041 = vunpack.c.l.b16 %v2754
          %v3042 = vunpack.c.l.b16 %v2755
          %v3043 = vunpack.c.l.b16 %v2756
          %v3044 = vunpack.c.l.b16 %v2757
          %v3045 = vunpack.c.l.b16 %v2758
          %v3046 = vunpack.c.l.b16 %v2759
          %v3047 = vpack.c.b16 %v3041, %v3040
          %v3048 = vpack.c.b16 %v3043, %v3042
          %v3049 = vpack.c.b16 %v3045, %v3044
          %v3050 = vpack.c.b16 %v3046, %v3046
          %v3052 = vshll.u32 %v3047, 16
          %v3054 = vrot.slane %v3052, 1
          %v3055 = vshrl.u32 %v3047, 16
          %v3057 = vor.u32 %v3055, %v3054
          %v3059 = vshll.u32 %v3048, 16
          %v3061 = vrot.slane %v3059, 1
          %v3062 = vsel %vm765, %v3057, %v3061
          %v3063 = vshrl.u32 %v3048, 16
          %v3065 = vor.u32 %v3063, %v3061
          %v3067 = vshll.u32 %v3049, 16
          %v3069 = vrot.slane %v3067, 1
          %v3070 = vsel %vm765, %v3065, %v3069
          %v3071 = vshrl.u32 %v3049, 16
          %v3073 = vor.u32 %v3071, %v3069
          %v3075 = vshll.u32 %v3050, 16
          %v3077 = vrot.slane %v3075, 1
          %v3078 = vsel %vm765, %v3073, %v3077
          %v3080 = vsel %vm967, %v3031, %v3054
          %v3082 = vsel %vm498, %v2876, 0
          %v3085 = vsel %vm498, %v2884, 0
          %v3088 = vsel %vm498, %v2892, 0
          %v3091 = vsel %vm498, %v2900, 0
          %v3094 = vsel %vm498, %v2908, 0
          %v3097 = vsel %vm498, %v2916, 0
          %v3100 = vsel %vm498, %v2924, 0
          %v3103 = vsel %vm498, %v2932, 0
          %v3106 = vsel %vm498, %v2940, 0
          %v3109 = vsel %vm498, %v2948, 0
          %v3112 = vsel %vm498, %v2956, 0
          %v3115 = vsel %vm498, %v2964, 0
          %v3118 = vsel %vm498, %v2972, 0
          %v3121 = vsel %vm498, %v2980, 0
          %v3124 = vsel %vm498, %v2988, 0
          %v3127 = vsel %vm498, %v2996, 0
          %v3130 = vsel %vm498, %v3004, 0
          %v3133 = vsel %vm498, %v3012, 0
          %v3136 = vsel %vm498, %v3020, 0
          %v3139 = vsel %vm498, %v3028, 0
          %v3142 = vsel %vm498, %v3080, 0
          %v3145 = vsel %vm498, %v3062, 0
          %v3148 = vsel %vm498, %v3070, 0
          %v3151 = vsel %vm498, %v3078, 0
          %3153 = vst [vmem:[#allocation2 + $0x38] sm:$0xff] %v3082
          %3154 = vst [vmem:[#allocation2 + $0x80] sm:$0xff] %v3085
          %3155 = vst [vmem:[#allocation2 + $0xc8] sm:$0xff] %v3088
          %3156 = vst [vmem:[#allocation2 + $0x110] sm:$0xff] %v3091
          %3157 = vst [vmem:[#allocation2 + $0x158] sm:$0xff] %v3094
          %3158 = vst [vmem:[#allocation2 + $0x1a0] sm:$0xff] %v3097
          %3159 = vst [vmem:[#allocation2 + $0x1e8] sm:$0xff] %v3100
          %3160 = vst [vmem:[#allocation2 + $0x230] sm:$0xff] %v3103
          %3161 = vst [vmem:[#allocation2 + $0x278] sm:$0xff] %v3106
          %3162 = vst [vmem:[#allocation2 + $0x2c0] sm:$0xff] %v3109
          %3163 = vst [vmem:[#allocation2 + $0x308] sm:$0xff] %v3112
          %3164 = vst [vmem:[#allocation2 + $0x350] sm:$0xff] %v3115
          %3165 = vst [vmem:[#allocation2 + $0x398] sm:$0xff] %v3118
          %3166 = vst [vmem:[#allocation2 + $0x3e0] sm:$0xff] %v3121
          %3167 = vst [vmem:[#allocation2 + $0x428] sm:$0xff] %v3124
          %3168 = vst [vmem:[#allocation2 + $0x470] sm:$0xff] %v3127
          %3169 = vst [vmem:[#allocation2 + $0x4b8] sm:$0xff] %v3130
          %3170 = vst [vmem:[#allocation2 + $0x500] sm:$0xff] %v3133
          %3171 = vst [vmem:[#allocation2 + $0x548] sm:$0xff] %v3136
          %3172 = vst [vmem:[#allocation2 + $0x590] sm:$0xff] %v3139
          %3173 = vst [vmem:[#allocation2 + $0x5d8] sm:$0xff] %v3142
          %3174 = vst [vmem:[#allocation2 + $0x620] sm:$0xff] %v3145
          %3175 = vst [vmem:[#allocation2 + $0x668] sm:$0xff] %v3148
          %3176 = vst [vmem:[#allocation2 + $0x6b0] sm:$0xff] %v3151
          %v3177 = vld [vmem:[%s307 + $0x18] sm:$0xe]
          %v3178 = vld [vmem:[%s307 + $0x1c] sm:$0xf]
          %v3179 = vld [vmem:[%s307 + $0x20] sm:$0xf]
          %v3180 = vld [vmem:[%s307 + $0x24] sm:$0xf]
          %v3181 = vld [vmem:[%s307 + $0x28] sm:$0xf]
          %v3182 = vld [vmem:[%s307 + $0x2c] sm:$0xf]
          %v3183 = vld [vmem:[%s307 + $0x30] sm:$0xf]
          %v3184 = vld [vmem:[%s307 + $0x34] sm:$0xf]
          %v3185 = vld [vmem:[%s307 + $0x38] sm:$0xf]
          %v3186 = vld [vmem:[%s307 + $0x3c] sm:$0xf]
          %v3187 = vld [vmem:[%s307 + $0x40] sm:$0xf]
          %v3188 = vld [vmem:[%s307 + $0x44] sm:$0xf]
          %v3189 = vld [vmem:[%s307 + $0x48] sm:$0xf]
          %v3190 = vld [vmem:[%s307 + $0x4c] sm:$0xf]
          %v3191 = vld [vmem:[%s307 + $0x50] sm:$0xf]
          %v3192 = vld [vmem:[%s307 + $0x54] sm:$0xf]
          %v3193 = vld [vmem:[%s307 + $0x58] sm:$0xf]
          %v3194 = vld [vmem:[%s307 + $0x5c] sm:$0xf]
          %v3195 = vld [vmem:[%s307 + $0x60] sm:$0xf]
          %v3196 = vld [vmem:[%s307 + $0x64] sm:$0xf]
          %v3197 = vld [vmem:[%s307 + $0x68] sm:$0xf]
          %v3198 = vld [vmem:[%s307 + $0x6c] sm:$0xf]
          %v3199 = vld [vmem:[%s307 + $0x70] sm:$0xf]
          %v3200 = vld [vmem:[%s307 + $0x74] sm:$0xf]
          %v3201 = vld [vmem:[%s307 + $0x78] sm:$0xf]
          %v3202 = vld [vmem:[%s307 + $0x7c] sm:$0xf]
          %v3203 = vld [vmem:[%s307 + $0x80] sm:$0xf]
          %v3204 = vld [vmem:[%s307 + $0x84] sm:$0xf]
          %v3205 = vld [vmem:[%s307 + $0x88] sm:$0xf]
          %v3206 = vld [vmem:[%s307 + $0x8c] sm:$0xf]
          %v3207 = vld [vmem:[%s307 + $0x90] sm:$0xf]
          %v3208 = vld [vmem:[%s307 + $0x94] sm:$0xf]
          %v3209 = vld [vmem:[%s307 + $0x98] sm:$0xf]
          %v3210 = vld [vmem:[%s307 + $0x9c] sm:$0xf]
          %v3211 = vld [vmem:[%s307 + $0xa0] sm:$0xf]
          %v3212 = vld [vmem:[%s307 + $0xa4] sm:$0xf]
          %v3213 = vld [vmem:[%s307 + $0xa8] sm:$0xf]
          %v3214 = vld [vmem:[%s307 + $0xac] sm:$0xf]
          %v3215 = vld [vmem:[%s307 + $0xb0] sm:$0xf]
          %v3216 = vld [vmem:[%s307 + $0xb4] sm:$0xf]
          %v3217 = vld [vmem:[%s307 + $0xb8] sm:$0xf]
          %v3218 = vld [vmem:[%s307 + $0xbc] sm:$0xf]
          %v3219 = vld [vmem:[%s321] sm:$0xf]
          %v3220 = vld [vmem:[%s321 + $0x4] sm:$0xf]
          %v3221 = vld [vmem:[%s321 + $0x8] sm:$0xf]
          %v3222 = vld [vmem:[%s321 + $0xc] sm:$0xf]
          %v3223 = vld [vmem:[%s321 + $0x10] sm:$0xf]
          %v3224 = vld [vmem:[%s321 + $0x14] sm:$0xf]
          %v3225 = vld [vmem:[%s321 + $0x18] sm:$0x1]
          %v3268 = vunpack.c.l.b16 %v3177
          %v3269 = vunpack.c.l.b16 %v3178
          %v3270 = vunpack.c.l.b16 %v3179
          %v3271 = vunpack.c.l.b16 %v3180
          %v3272 = vunpack.c.l.b16 %v3181
          %v3273 = vunpack.c.l.b16 %v3182
          %v3274 = vunpack.c.l.b16 %v3183
          %v3275 = vunpack.c.l.b16 %v3184
          %v3276 = vunpack.c.l.b16 %v3185
          %v3277 = vunpack.c.l.b16 %v3186
          %v3278 = vunpack.c.l.b16 %v3187
          %v3279 = vunpack.c.l.b16 %v3188
          %v3280 = vunpack.c.l.b16 %v3189
          %v3281 = vunpack.c.l.b16 %v3190
          %v3282 = vunpack.c.l.b16 %v3191
          %v3283 = vunpack.c.l.b16 %v3192
          %v3284 = vunpack.c.l.b16 %v3193
          %v3285 = vunpack.c.l.b16 %v3194
          %v3286 = vunpack.c.l.b16 %v3195
          %v3287 = vunpack.c.l.b16 %v3196
          %v3288 = vunpack.c.l.b16 %v3197
          %v3289 = vunpack.c.l.b16 %v3198
          %v3290 = vunpack.c.l.b16 %v3199
          %v3291 = vunpack.c.l.b16 %v3200
          %v3292 = vunpack.c.l.b16 %v3201
          %v3293 = vunpack.c.l.b16 %v3202
          %v3294 = vunpack.c.l.b16 %v3203
          %v3295 = vunpack.c.l.b16 %v3204
          %v3296 = vunpack.c.l.b16 %v3205
          %v3297 = vunpack.c.l.b16 %v3206
          %v3298 = vunpack.c.l.b16 %v3207
          %v3299 = vunpack.c.l.b16 %v3208
          %v3300 = vunpack.c.l.b16 %v3209
          %v3301 = vunpack.c.l.b16 %v3210
          %v3302 = vunpack.c.l.b16 %v3211
          %v3303 = vunpack.c.l.b16 %v3212
          %v3304 = vunpack.c.l.b16 %v3213
          %v3305 = vunpack.c.l.b16 %v3214
          %v3306 = vunpack.c.l.b16 %v3215
          %v3307 = vunpack.c.l.b16 %v3216
          %v3308 = vunpack.c.l.b16 %v3217
          %v3309 = vunpack.c.l.b16 %v3218
          %v3310 = vpack.c.b16 %v3269, %v3268
          %v3311 = vpack.c.b16 %v3271, %v3270
          %v3312 = vpack.c.b16 %v3273, %v3272
          %v3313 = vpack.c.b16 %v3275, %v3274
          %v3314 = vpack.c.b16 %v3277, %v3276
          %v3315 = vpack.c.b16 %v3279, %v3278
          %v3316 = vpack.c.b16 %v3281, %v3280
          %v3317 = vpack.c.b16 %v3283, %v3282
          %v3318 = vpack.c.b16 %v3285, %v3284
          %v3319 = vpack.c.b16 %v3287, %v3286
          %v3320 = vpack.c.b16 %v3289, %v3288
          %v3321 = vpack.c.b16 %v3291, %v3290
          %v3322 = vpack.c.b16 %v3293, %v3292
          %v3323 = vpack.c.b16 %v3295, %v3294
          %v3324 = vpack.c.b16 %v3297, %v3296
          %v3325 = vpack.c.b16 %v3299, %v3298
          %v3326 = vpack.c.b16 %v3301, %v3300
          %v3327 = vpack.c.b16 %v3303, %v3302
          %v3328 = vpack.c.b16 %v3305, %v3304
          %v3329 = vpack.c.b16 %v3307, %v3306
          %v3330 = vpack.c.b16 %v3309, %v3308
          %v3331 = vrot.slane %v3310, 1
          %v3332 = vrot.slane %v3311, 1
          %v3333 = vsel %vm1234, %v3331, %v3332
          %v3334 = vrot.slane %v3312, 1
          %v3335 = vsel %vm1234, %v3332, %v3334
          %v3336 = vrot.slane %v3313, 1
          %v3337 = vsel %vm1234, %v3334, %v3336
          %v3338 = vrot.slane %v3314, 1
          %v3339 = vsel %vm1234, %v3336, %v3338
          %v3340 = vrot.slane %v3315, 1
          %v3341 = vsel %vm1234, %v3338, %v3340
          %v3342 = vrot.slane %v3316, 1
          %v3343 = vsel %vm1234, %v3340, %v3342
          %v3344 = vrot.slane %v3317, 1
          %v3345 = vsel %vm1234, %v3342, %v3344
          %v3346 = vrot.slane %v3318, 1
          %v3347 = vsel %vm1234, %v3344, %v3346
          %v3348 = vrot.slane %v3319, 1
          %v3349 = vsel %vm1234, %v3346, %v3348
          %v3350 = vrot.slane %v3320, 1
          %v3351 = vsel %vm1234, %v3348, %v3350
          %v3352 = vrot.slane %v3321, 1
          %v3353 = vsel %vm1234, %v3350, %v3352
          %v3354 = vrot.slane %v3322, 1
          %v3355 = vsel %vm1234, %v3352, %v3354
          %v3356 = vrot.slane %v3323, 1
          %v3357 = vsel %vm1234, %v3354, %v3356
          %v3358 = vrot.slane %v3324, 1
          %v3359 = vsel %vm1234, %v3356, %v3358
          %v3360 = vrot.slane %v3325, 1
          %v3361 = vsel %vm1234, %v3358, %v3360
          %v3362 = vrot.slane %v3326, 1
          %v3363 = vsel %vm1234, %v3360, %v3362
          %v3364 = vrot.slane %v3327, 1
          %v3365 = vsel %vm1234, %v3362, %v3364
          %v3366 = vrot.slane %v3328, 1
          %v3367 = vsel %vm1234, %v3364, %v3366
          %v3368 = vrot.slane %v3329, 1
          %v3369 = vsel %vm1234, %v3366, %v3368
          %v3370 = vrot.slane %v3330, 1
          %v3371 = vsel %vm1234, %v3368, %v3370
          %v3379 = vunpack.c.l.b16 %v3219
          %v3380 = vunpack.c.l.b16 %v3220
          %v3381 = vunpack.c.l.b16 %v3221
          %v3382 = vunpack.c.l.b16 %v3222
          %v3383 = vunpack.c.l.b16 %v3223
          %v3384 = vunpack.c.l.b16 %v3224
          %v3385 = vunpack.c.l.b16 %v3225
          %v3386 = vpack.c.b16 %v3380, %v3379
          %v3387 = vpack.c.b16 %v3382, %v3381
          %v3388 = vpack.c.b16 %v3384, %v3383
          %v3389 = vpack.c.b16 %v3385, %v3385
          %v3390 = vrot.slane %v3386, 1
          %v3391 = vrot.slane %v3387, 1
          %v3392 = vsel %vm1234, %v3390, %v3391
          %v3393 = vrot.slane %v3388, 1
          %v3394 = vsel %vm1234, %v3391, %v3393
          %v3395 = vrot.slane %v3389, 1
          %v3396 = vsel %vm1234, %v3393, %v3395
          %v3399 = vsel %vm1286, %v3370, %v3390
          %v3401 = vsel %vm498, %v3333, 0
          %v3404 = vsel %vm498, %v3335, 0
          %v3407 = vsel %vm498, %v3337, 0
          %v3410 = vsel %vm498, %v3339, 0
          %v3413 = vsel %vm498, %v3341, 0
          %v3416 = vsel %vm498, %v3343, 0
          %v3419 = vsel %vm498, %v3345, 0
          %v3422 = vsel %vm498, %v3347, 0
          %v3425 = vsel %vm498, %v3349, 0
          %v3428 = vsel %vm498, %v3351, 0
          %v3431 = vsel %vm498, %v3353, 0
          %v3434 = vsel %vm498, %v3355, 0
          %v3437 = vsel %vm498, %v3357, 0
          %v3440 = vsel %vm498, %v3359, 0
          %v3443 = vsel %vm498, %v3361, 0
          %v3446 = vsel %vm498, %v3363, 0
          %v3449 = vsel %vm498, %v3365, 0
          %v3452 = vsel %vm498, %v3367, 0
          %v3455 = vsel %vm498, %v3369, 0
          %v3458 = vsel %vm498, %v3371, 0
          %v3460 = vsel %vm498, %v3399, 0
          %v3463 = vsel %vm498, %v3392, 0
          %v3466 = vsel %vm498, %v3394, 0
          %v3469 = vsel %vm498, %v3396, 0
          %3471 = vst [vmem:[#allocation2 + $0x40] sm:$0xff] %v3401
          %3472 = vst [vmem:[#allocation2 + $0x88] sm:$0xff] %v3404
          %3473 = vst [vmem:[#allocation2 + $0xd0] sm:$0xff] %v3407
          %3474 = vst [vmem:[#allocation2 + $0x118] sm:$0xff] %v3410
          %3475 = vst [vmem:[#allocation2 + $0x160] sm:$0xff] %v3413
          %3476 = vst [vmem:[#allocation2 + $0x1a8] sm:$0xff] %v3416
          %3477 = vst [vmem:[#allocation2 + $0x1f0] sm:$0xff] %v3419
          %3478 = vst [vmem:[#allocation2 + $0x238] sm:$0xff] %v3422
          %3479 = vst [vmem:[#allocation2 + $0x280] sm:$0xff] %v3425
          %3480 = vst [vmem:[#allocation2 + $0x2c8] sm:$0xff] %v3428
          %3481 = vst [vmem:[#allocation2 + $0x310] sm:$0xff] %v3431
          %3482 = vst [vmem:[#allocation2 + $0x358] sm:$0xff] %v3434
          %3483 = vst [vmem:[#allocation2 + $0x3a0] sm:$0xff] %v3437
          %3484 = vst [vmem:[#allocation2 + $0x3e8] sm:$0xff] %v3440
          %3485 = vst [vmem:[#allocation2 + $0x430] sm:$0xff] %v3443
          %3486 = vst [vmem:[#allocation2 + $0x478] sm:$0xff] %v3446
          %3487 = vst [vmem:[#allocation2 + $0x4c0] sm:$0xff] %v3449
          %3488 = vst [vmem:[#allocation2 + $0x508] sm:$0xff] %v3452
          %3489 = vst [vmem:[#allocation2 + $0x550] sm:$0xff] %v3455
          %3490 = vst [vmem:[#allocation2 + $0x598] sm:$0xff] %v3458
          %3491 = vst [vmem:[#allocation2 + $0x5e0] sm:$0xff] %v3460
          %3492 = vst [vmem:[#allocation2 + $0x628] sm:$0xff] %v3463
          %3493 = vst [vmem:[#allocation2 + $0x670] sm:$0xff] %v3466
          %3494 = vst [vmem:[#allocation2 + $0x6b8] sm:$0xff] %v3469
        $region44: #{tpu_custom_call.1} parent=35 // pred_fallthru
          _
        %v3495 = vld [vmem:[#allocation2] sm:$0xff]
        %v3496 = vld [vmem:[#allocation2 + $0x8] sm:$0xff]
        %v3497 = vld [vmem:[#allocation2 + $0x10] sm:$0xff]
        %v3498 = vld [vmem:[#allocation2 + $0x18] sm:$0xff]
        %v3499 = vld [vmem:[#allocation2 + $0x20] sm:$0xff]
        %v3500 = vld [vmem:[#allocation2 + $0x28] sm:$0xff]
        %v3501 = vld [vmem:[#allocation2 + $0x30] sm:$0xff]
        %v3502 = vld [vmem:[#allocation2 + $0x38] sm:$0xff]
        %v3503 = vld [vmem:[#allocation2 + $0x40] sm:$0xff]
        %v3504 = vld [vmem:[#allocation2 + $0x48] sm:$0xff]
        %v3505 = vld [vmem:[#allocation2 + $0x50] sm:$0xff]
        %v3506 = vld [vmem:[#allocation2 + $0x58] sm:$0xff]
        %v3507 = vld [vmem:[#allocation2 + $0x60] sm:$0xff]
        %v3508 = vld [vmem:[#allocation2 + $0x68] sm:$0xff]
        %v3509 = vld [vmem:[#allocation2 + $0x70] sm:$0xff]
        %v3510 = vld [vmem:[#allocation2 + $0x78] sm:$0xff]
        %v3511 = vld [vmem:[#allocation2 + $0x80] sm:$0xff]
        %v3512 = vld [vmem:[#allocation2 + $0x88] sm:$0xff]
        %v3513 = vld [vmem:[#allocation2 + $0x90] sm:$0xff]
        %v3514 = vld [vmem:[#allocation2 + $0x98] sm:$0xff]
        %v3515 = vld [vmem:[#allocation2 + $0xa0] sm:$0xff]
        %v3516 = vld [vmem:[#allocation2 + $0xa8] sm:$0xff]
        %v3517 = vld [vmem:[#allocation2 + $0xb0] sm:$0xff]
        %v3518 = vld [vmem:[#allocation2 + $0xb8] sm:$0xff]
        %v3519 = vld [vmem:[#allocation2 + $0xc0] sm:$0xff]
        %v3520 = vld [vmem:[#allocation2 + $0xc8] sm:$0xff]
        %v3521 = vld [vmem:[#allocation2 + $0xd0] sm:$0xff]
        %v3522 = vld [vmem:[#allocation2 + $0xd8] sm:$0xff]
        %v3523 = vld [vmem:[#allocation2 + $0xe0] sm:$0xff]
        %v3524 = vld [vmem:[#allocation2 + $0xe8] sm:$0xff]
        %v3525 = vld [vmem:[#allocation2 + $0xf0] sm:$0xff]
        %v3526 = vld [vmem:[#allocation2 + $0xf8] sm:$0xff]
        %v3527 = vld [vmem:[#allocation2 + $0x100] sm:$0xff]
        %v3528 = vld [vmem:[#allocation2 + $0x108] sm:$0xff]
        %v3529 = vld [vmem:[#allocation2 + $0x110] sm:$0xff]
        %v3530 = vld [vmem:[#allocation2 + $0x118] sm:$0xff]
        %v3531 = vld [vmem:[#allocation2 + $0x120] sm:$0xff]
        %v3532 = vld [vmem:[#allocation2 + $0x128] sm:$0xff]
        %v3533 = vld [vmem:[#allocation2 + $0x130] sm:$0xff]
        %v3534 = vld [vmem:[#allocation2 + $0x138] sm:$0xff]
        %v3535 = vld [vmem:[#allocation2 + $0x140] sm:$0xff]
        %v3536 = vld [vmem:[#allocation2 + $0x148] sm:$0xff]
        %v3537 = vld [vmem:[#allocation2 + $0x150] sm:$0xff]
        %v3538 = vld [vmem:[#allocation2 + $0x158] sm:$0xff]
        %v3539 = vld [vmem:[#allocation2 + $0x160] sm:$0xff]
        %v3540 = vld [vmem:[#allocation2 + $0x168] sm:$0xff]
        %v3541 = vld [vmem:[#allocation2 + $0x170] sm:$0xff]
        %v3542 = vld [vmem:[#allocation2 + $0x178] sm:$0xff]
        %v3543 = vld [vmem:[#allocation2 + $0x180] sm:$0xff]
        %v3544 = vld [vmem:[#allocation2 + $0x188] sm:$0xff]
        %v3545 = vld [vmem:[#allocation2 + $0x190] sm:$0xff]
        %v3546 = vld [vmem:[#allocation2 + $0x198] sm:$0xff]
        %v3547 = vld [vmem:[#allocation2 + $0x1a0] sm:$0xff]
        %v3548 = vld [vmem:[#allocation2 + $0x1a8] sm:$0xff]
        %v3549 = vld [vmem:[#allocation2 + $0x1b0] sm:$0xff]
        %v3550 = vld [vmem:[#allocation2 + $0x1b8] sm:$0xff]
        %v3551 = vld [vmem:[#allocation2 + $0x1c0] sm:$0xff]
        %v3552 = vld [vmem:[#allocation2 + $0x1c8] sm:$0xff]
        %v3553 = vld [vmem:[#allocation2 + $0x1d0] sm:$0xff]
        %v3554 = vld [vmem:[#allocation2 + $0x1d8] sm:$0xff]
        %v3555 = vld [vmem:[#allocation2 + $0x1e0] sm:$0xff]
        %v3556 = vld [vmem:[#allocation2 + $0x1e8] sm:$0xff]
        %v3557 = vld [vmem:[#allocation2 + $0x1f0] sm:$0xff]
        %v3558 = vld [vmem:[#allocation2 + $0x1f8] sm:$0xff]
        %v3559 = vld [vmem:[#allocation2 + $0x200] sm:$0xff]
        %v3560 = vld [vmem:[#allocation2 + $0x208] sm:$0xff]
        %v3561 = vld [vmem:[#allocation2 + $0x210] sm:$0xff]
        %v3562 = vld [vmem:[#allocation2 + $0x218] sm:$0xff]
        %v3563 = vld [vmem:[#allocation2 + $0x220] sm:$0xff]
        %v3564 = vld [vmem:[#allocation2 + $0x228] sm:$0xff]
        %v3565 = vld [vmem:[#allocation2 + $0x230] sm:$0xff]
        %v3566 = vld [vmem:[#allocation2 + $0x238] sm:$0xff]
        %v3567 = vld [vmem:[#allocation2 + $0x240] sm:$0xff]
        %v3568 = vld [vmem:[#allocation2 + $0x248] sm:$0xff]
        %v3569 = vld [vmem:[#allocation2 + $0x250] sm:$0xff]
        %v3570 = vld [vmem:[#allocation2 + $0x258] sm:$0xff]
        %v3571 = vld [vmem:[#allocation2 + $0x260] sm:$0xff]
        %v3572 = vld [vmem:[#allocation2 + $0x268] sm:$0xff]
        %v3573 = vld [vmem:[#allocation2 + $0x270] sm:$0xff]
        %v3574 = vld [vmem:[#allocation2 + $0x278] sm:$0xff]
        %v3575 = vld [vmem:[#allocation2 + $0x280] sm:$0xff]
        %v3576 = vld [vmem:[#allocation2 + $0x288] sm:$0xff]
        %v3577 = vld [vmem:[#allocation2 + $0x290] sm:$0xff]
        %v3578 = vld [vmem:[#allocation2 + $0x298] sm:$0xff]
        %v3579 = vld [vmem:[#allocation2 + $0x2a0] sm:$0xff]
        %v3580 = vld [vmem:[#allocation2 + $0x2a8] sm:$0xff]
        %v3581 = vld [vmem:[#allocation2 + $0x2b0] sm:$0xff]
        %v3582 = vld [vmem:[#allocation2 + $0x2b8] sm:$0xff]
        %v3583 = vld [vmem:[#allocation2 + $0x2c0] sm:$0xff]
        %v3584 = vld [vmem:[#allocation2 + $0x2c8] sm:$0xff]
        %v3585 = vld [vmem:[#allocation2 + $0x2d0] sm:$0xff]
        %v3586 = vld [vmem:[#allocation2 + $0x2d8] sm:$0xff]
        %v3587 = vld [vmem:[#allocation2 + $0x2e0] sm:$0xff]
        %v3588 = vld [vmem:[#allocation2 + $0x2e8] sm:$0xff]
        %v3589 = vld [vmem:[#allocation2 + $0x2f0] sm:$0xff]
        %v3590 = vld [vmem:[#allocation2 + $0x2f8] sm:$0xff]
        %v3591 = vld [vmem:[#allocation2 + $0x300] sm:$0xff]
        %v3592 = vld [vmem:[#allocation2 + $0x308] sm:$0xff]
        %v3593 = vld [vmem:[#allocation2 + $0x310] sm:$0xff]
        %v3594 = vld [vmem:[#allocation2 + $0x318] sm:$0xff]
        %v3595 = vld [vmem:[#allocation2 + $0x320] sm:$0xff]
        %v3596 = vld [vmem:[#allocation2 + $0x328] sm:$0xff]
        %v3597 = vld [vmem:[#allocation2 + $0x330] sm:$0xff]
        %v3598 = vld [vmem:[#allocation2 + $0x338] sm:$0xff]
        %v3599 = vld [vmem:[#allocation2 + $0x340] sm:$0xff]
        %v3600 = vld [vmem:[#allocation2 + $0x348] sm:$0xff]
        %v3601 = vld [vmem:[#allocation2 + $0x350] sm:$0xff]
        %v3602 = vld [vmem:[#allocation2 + $0x358] sm:$0xff]
        %v3603 = vld [vmem:[#allocation2 + $0x360] sm:$0xff]
        %v3604 = vld [vmem:[#allocation2 + $0x368] sm:$0xff]
        %v3605 = vld [vmem:[#allocation2 + $0x370] sm:$0xff]
        %v3606 = vld [vmem:[#allocation2 + $0x378] sm:$0xff]
        %v3607 = vld [vmem:[#allocation2 + $0x380] sm:$0xff]
        %v3608 = vld [vmem:[#allocation2 + $0x388] sm:$0xff]
        %v3609 = vld [vmem:[#allocation2 + $0x390] sm:$0xff]
        %v3610 = vld [vmem:[#allocation2 + $0x398] sm:$0xff]
        %v3611 = vld [vmem:[#allocation2 + $0x3a0] sm:$0xff]
        %v3612 = vld [vmem:[#allocation2 + $0x3a8] sm:$0xff]
        %v3613 = vld [vmem:[#allocation2 + $0x3b0] sm:$0xff]
        %v3614 = vld [vmem:[#allocation2 + $0x3b8] sm:$0xff]
        %v3615 = vld [vmem:[#allocation2 + $0x3c0] sm:$0xff]
        %v3616 = vld [vmem:[#allocation2 + $0x3c8] sm:$0xff]
        %v3617 = vld [vmem:[#allocation2 + $0x3d0] sm:$0xff]
        %v3618 = vld [vmem:[#allocation2 + $0x3d8] sm:$0xff]
        %v3619 = vld [vmem:[#allocation2 + $0x3e0] sm:$0xff]
        %v3620 = vld [vmem:[#allocation2 + $0x3e8] sm:$0xff]
        %v3621 = vld [vmem:[#allocation2 + $0x3f0] sm:$0xff]
        %v3622 = vld [vmem:[#allocation2 + $0x3f8] sm:$0xff]
        %v3623 = vld [vmem:[#allocation2 + $0x400] sm:$0xff]
        %v3624 = vld [vmem:[#allocation2 + $0x408] sm:$0xff]
        %v3625 = vld [vmem:[#allocation2 + $0x410] sm:$0xff]
        %v3626 = vld [vmem:[#allocation2 + $0x418] sm:$0xff]
        %v3627 = vld [vmem:[#allocation2 + $0x420] sm:$0xff]
        %v3628 = vld [vmem:[#allocation2 + $0x428] sm:$0xff]
        %v3629 = vld [vmem:[#allocation2 + $0x430] sm:$0xff]
        %v3630 = vld [vmem:[#allocation2 + $0x438] sm:$0xff]
        %v3631 = vld [vmem:[#allocation2 + $0x440] sm:$0xff]
        %v3632 = vld [vmem:[#allocation2 + $0x448] sm:$0xff]
        %v3633 = vld [vmem:[#allocation2 + $0x450] sm:$0xff]
        %v3634 = vld [vmem:[#allocation2 + $0x458] sm:$0xff]
        %v3635 = vld [vmem:[#allocation2 + $0x460] sm:$0xff]
        %v3636 = vld [vmem:[#allocation2 + $0x468] sm:$0xff]
        %v3637 = vld [vmem:[#allocation2 + $0x470] sm:$0xff]
        %v3638 = vld [vmem:[#allocation2 + $0x478] sm:$0xff]
        %v3639 = vld [vmem:[#allocation2 + $0x480] sm:$0xff]
        %v3640 = vld [vmem:[#allocation2 + $0x488] sm:$0xff]
        %v3641 = vld [vmem:[#allocation2 + $0x490] sm:$0xff]
        %v3642 = vld [vmem:[#allocation2 + $0x498] sm:$0xff]
        %v3643 = vld [vmem:[#allocation2 + $0x4a0] sm:$0xff]
        %v3644 = vld [vmem:[#allocation2 + $0x4a8] sm:$0xff]
        %v3645 = vld [vmem:[#allocation2 + $0x4b0] sm:$0xff]
        %v3646 = vld [vmem:[#allocation2 + $0x4b8] sm:$0xff]
        %v3647 = vld [vmem:[#allocation2 + $0x4c0] sm:$0xff]
        %v3648 = vld [vmem:[#allocation2 + $0x4c8] sm:$0xff]
        %v3649 = vld [vmem:[#allocation2 + $0x4d0] sm:$0xff]
        %v3650 = vld [vmem:[#allocation2 + $0x4d8] sm:$0xff]
        %v3651 = vld [vmem:[#allocation2 + $0x4e0] sm:$0xff]
        %v3652 = vld [vmem:[#allocation2 + $0x4e8] sm:$0xff]
        %v3653 = vld [vmem:[#allocation2 + $0x4f0] sm:$0xff]
        %v3654 = vld [vmem:[#allocation2 + $0x4f8] sm:$0xff]
        %v3655 = vld [vmem:[#allocation2 + $0x500] sm:$0xff]
        %v3656 = vld [vmem:[#allocation2 + $0x508] sm:$0xff]
        %v3657 = vld [vmem:[#allocation2 + $0x510] sm:$0xff]
        %v3658 = vld [vmem:[#allocation2 + $0x518] sm:$0xff]
        %v3659 = vld [vmem:[#allocation2 + $0x520] sm:$0xff]
        %v3660 = vld [vmem:[#allocation2 + $0x528] sm:$0xff]
        %v3661 = vld [vmem:[#allocation2 + $0x530] sm:$0xff]
        %v3662 = vld [vmem:[#allocation2 + $0x538] sm:$0xff]
        %v3663 = vld [vmem:[#allocation2 + $0x540] sm:$0xff]
        %v3664 = vld [vmem:[#allocation2 + $0x548] sm:$0xff]
        %v3665 = vld [vmem:[#allocation2 + $0x550] sm:$0xff]
        %v3666 = vld [vmem:[#allocation2 + $0x558] sm:$0xff]
        %v3667 = vld [vmem:[#allocation2 + $0x560] sm:$0xff]
        %v3668 = vld [vmem:[#allocation2 + $0x568] sm:$0xff]
        %v3669 = vld [vmem:[#allocation2 + $0x570] sm:$0xff]
        %v3670 = vld [vmem:[#allocation2 + $0x578] sm:$0xff]
        %v3671 = vld [vmem:[#allocation2 + $0x580] sm:$0xff]
        %v3672 = vld [vmem:[#allocation2 + $0x588] sm:$0xff]
        %v3673 = vld [vmem:[#allocation2 + $0x590] sm:$0xff]
        %v3674 = vld [vmem:[#allocation2 + $0x598] sm:$0xff]
        %v3675 = vld [vmem:[#allocation2 + $0x5a0] sm:$0xff]
        %v3676 = vld [vmem:[#allocation2 + $0x5a8] sm:$0xff]
        %v3677 = vld [vmem:[#allocation2 + $0x5b0] sm:$0xff]
        %v3678 = vld [vmem:[#allocation2 + $0x5b8] sm:$0xff]
        %v3679 = vld [vmem:[#allocation2 + $0x5c0] sm:$0xff]
        %v3680 = vld [vmem:[#allocation2 + $0x5c8] sm:$0xff]
        %v3681 = vld [vmem:[#allocation2 + $0x5d0] sm:$0xff]
        %v3682 = vld [vmem:[#allocation2 + $0x5d8] sm:$0xff]
        %v3683 = vld [vmem:[#allocation2 + $0x5e0] sm:$0xff]
        %v3684 = vld [vmem:[#allocation2 + $0x5e8] sm:$0xff]
        %v3685 = vld [vmem:[#allocation2 + $0x5f0] sm:$0xff]
        %v3686 = vld [vmem:[#allocation2 + $0x5f8] sm:$0xff]
        %v3687 = vld [vmem:[#allocation2 + $0x600] sm:$0xff]
        %v3688 = vld [vmem:[#allocation2 + $0x608] sm:$0xff]
        %v3689 = vld [vmem:[#allocation2 + $0x610] sm:$0xff]
        %v3690 = vld [vmem:[#allocation2 + $0x618] sm:$0xff]
        %v3691 = vld [vmem:[#allocation2 + $0x620] sm:$0xff]
        %v3692 = vld [vmem:[#allocation2 + $0x628] sm:$0xff]
        %v3693 = vld [vmem:[#allocation2 + $0x630] sm:$0xff]
        %v3694 = vld [vmem:[#allocation2 + $0x638] sm:$0xff]
        %v3695 = vld [vmem:[#allocation2 + $0x640] sm:$0xff]
        %v3696 = vld [vmem:[#allocation2 + $0x648] sm:$0xff]
        %v3697 = vld [vmem:[#allocation2 + $0x650] sm:$0xff]
        %v3698 = vld [vmem:[#allocation2 + $0x658] sm:$0xff]
        %v3699 = vld [vmem:[#allocation2 + $0x660] sm:$0xff]
        %v3700 = vld [vmem:[#allocation2 + $0x668] sm:$0xff]
        %v3701 = vld [vmem:[#allocation2 + $0x670] sm:$0xff]
        %v3702 = vld [vmem:[#allocation2 + $0x678] sm:$0xff]
        %v3703 = vld [vmem:[#allocation2 + $0x680] sm:$0xff]
        %v3704 = vld [vmem:[#allocation2 + $0x688] sm:$0xff]
        %v3705 = vld [vmem:[#allocation2 + $0x690] sm:$0xff]
        %v3706 = vld [vmem:[#allocation2 + $0x698] sm:$0xff]
        %v3707 = vld [vmem:[#allocation2 + $0x6a0] sm:$0xff]
        %v3708 = vld [vmem:[#allocation2 + $0x6a8] sm:$0xff]
        %v3709 = vld [vmem:[#allocation2 + $0x6b0] sm:$0xff]
        %v3710 = vld [vmem:[#allocation2 + $0x6b8] sm:$0xff]
        %v3711 = vld [vmem:[#allocation3] sm:$0xf]
        %v3712 = vld [vmem:[#allocation3 + $0x4] sm:$0xf]
        %v3713 = vld [vmem:[#allocation3 + $0x8] sm:$0xf]
        %v3714 = vld [vmem:[#allocation3 + $0xc] sm:$0xf]
        %v3715 = vld [vmem:[#allocation3 + $0x10] sm:$0xf]
        %v3716 = vld [vmem:[#allocation3 + $0x14] sm:$0xf]
        %v3717 = vld [vmem:[#allocation3 + $0x18] sm:$0xf]
        %v3718 = vld [vmem:[#allocation3 + $0x1c] sm:$0xf]
        %v3719 = vld [vmem:[#allocation3 + $0x20] sm:$0xf]
        %v3720 = vld [vmem:[#allocation3 + $0x24] sm:$0xf]
        %v3721 = vld [vmem:[#allocation3 + $0x28] sm:$0xf]
        %v3722 = vld [vmem:[#allocation3 + $0x2c] sm:$0xf]
        %v3723 = vld [vmem:[#allocation3 + $0x30] sm:$0xf]
        %v3724 = vld [vmem:[#allocation3 + $0x34] sm:$0xf]
        %v3725 = vld [vmem:[#allocation3 + $0x38] sm:$0xf]
        %v3726 = vld [vmem:[#allocation3 + $0x3c] sm:$0xf]
        %v3727 = vld [vmem:[#allocation3 + $0x40] sm:$0xf]
        %v3728 = vld [vmem:[#allocation3 + $0x44] sm:$0xf]
        %v3729 = vld [vmem:[#allocation3 + $0x48] sm:$0xf]
        %v3730 = vld [vmem:[#allocation3 + $0x4c] sm:$0xf]
        %v3731 = vld [vmem:[#allocation3 + $0x50] sm:$0xf]
        %v3732 = vld [vmem:[#allocation3 + $0x54] sm:$0xf]
        %v3733 = vld [vmem:[#allocation3 + $0x58] sm:$0xf]
        %v3734 = vld [vmem:[#allocation3 + $0x5c] sm:$0xf]
        %v3735 = vld [vmem:[#allocation3 + $0x60] sm:$0xf]
        %v3736 = vld [vmem:[#allocation3 + $0x64] sm:$0xf]
        %v3737 = vld [vmem:[#allocation3 + $0x68] sm:$0xf]
        %v3738 = vld [vmem:[#allocation3 + $0x6c] sm:$0xf]
        %v3739 = vld [vmem:[#allocation3 + $0x70] sm:$0xf]
        %v3740 = vld [vmem:[#allocation3 + $0x74] sm:$0xf]
        %v3741 = vld [vmem:[#allocation3 + $0x78] sm:$0xf]
        %v3742 = vld [vmem:[#allocation3 + $0x7c] sm:$0xf]
        %v3743 = vld [vmem:[#allocation3 + $0x80] sm:$0xf]
        %v3744 = vld [vmem:[#allocation3 + $0x84] sm:$0xf]
        %v3745 = vld [vmem:[#allocation3 + $0x88] sm:$0xf]
        %v3746 = vld [vmem:[#allocation3 + $0x8c] sm:$0xf]
        %v3747 = vld [vmem:[#allocation3 + $0x90] sm:$0xf]
        %v3748 = vld [vmem:[#allocation3 + $0x94] sm:$0xf]
        %v3749 = vld [vmem:[#allocation3 + $0x98] sm:$0xf]
        %v3750 = vld [vmem:[#allocation3 + $0x9c] sm:$0xf]
        %v3751 = vld [vmem:[#allocation3 + $0xa0] sm:$0xf]
        %v3752 = vld [vmem:[#allocation3 + $0xa4] sm:$0xf]
        %v3753 = vld [vmem:[#allocation3 + $0xa8] sm:$0xf]
        %v3754 = vld [vmem:[#allocation3 + $0xac] sm:$0xf]
        %v3755 = vld [vmem:[#allocation3 + $0xb0] sm:$0xf]
        %v3756 = vld [vmem:[#allocation3 + $0xb4] sm:$0xf]
        %v3757 = vld [vmem:[#allocation3 + $0xb8] sm:$0xf]
        %v3758 = vld [vmem:[#allocation3 + $0xbc] sm:$0xf]
        %v3759 = vld [vmem:[#allocation3 + $0xc0] sm:$0xf]
        %v3760 = vld [vmem:[#allocation3 + $0xc4] sm:$0xf]
        %v3761 = vld [vmem:[#allocation3 + $0xc8] sm:$0xf]
        %v3762 = vld [vmem:[#allocation3 + $0xcc] sm:$0xf]
        %v3763 = vld [vmem:[#allocation3 + $0xd0] sm:$0xf]
        %v3764 = vld [vmem:[#allocation3 + $0xd4] sm:$0xf]
        %v3765 = vld [vmem:[#allocation3 + $0xd8] sm:$0xf]
        %v3766 = vld [vmem:[#allocation3 + $0xdc] sm:$0xf]
        %v3767 = vld [vmem:[#allocation3 + $0xe0] sm:$0xf]
        %v3768 = vld [vmem:[#allocation3 + $0xe4] sm:$0xf]
        %v3769 = vld [vmem:[#allocation3 + $0xe8] sm:$0xf]
        %v3770 = vld [vmem:[#allocation3 + $0xec] sm:$0xf]
        %v3771 = vld [vmem:[#allocation3 + $0xf0] sm:$0xf]
        %v3772 = vld [vmem:[#allocation3 + $0xf4] sm:$0xf]
        %v3773 = vld [vmem:[#allocation3 + $0xf8] sm:$0xf]
        %v3774 = vld [vmem:[#allocation3 + $0xfc] sm:$0xf]
        %v3775 = vld [vmem:[#allocation3 + $0x100] sm:$0xf]
        %v3776 = vld [vmem:[#allocation3 + $0x104] sm:$0xf]
        %v3777 = vld [vmem:[#allocation3 + $0x108] sm:$0xf]
        %v3778 = vld [vmem:[#allocation3 + $0x10c] sm:$0xf]
        %v3779 = vld [vmem:[#allocation3 + $0x110] sm:$0xf]
        %v3780 = vld [vmem:[#allocation3 + $0x114] sm:$0xf]
        %v3781 = vld [vmem:[#allocation3 + $0x118] sm:$0xf]
        %v3782 = vld [vmem:[#allocation3 + $0x11c] sm:$0xf]
        %v3783 = vld [vmem:[#allocation3 + $0x120] sm:$0xf]
        %v3784 = vld [vmem:[#allocation3 + $0x124] sm:$0xf]
        %v3785 = vld [vmem:[#allocation3 + $0x128] sm:$0xf]
        %v3786 = vld [vmem:[#allocation3 + $0x12c] sm:$0xf]
        %v3787 = vld [vmem:[#allocation3 + $0x130] sm:$0xf]
        %v3788 = vld [vmem:[#allocation3 + $0x134] sm:$0xf]
        %v3789 = vld [vmem:[#allocation3 + $0x138] sm:$0xf]
        %v3790 = vld [vmem:[#allocation3 + $0x13c] sm:$0xf]
        %v3791 = vld [vmem:[#allocation3 + $0x140] sm:$0xf]
        %v3792 = vld [vmem:[#allocation3 + $0x144] sm:$0xf]
        %v3793 = vld [vmem:[#allocation3 + $0x148] sm:$0xf]
        %v3794 = vld [vmem:[#allocation3 + $0x14c] sm:$0xf]
        %v3795 = vld [vmem:[#allocation3 + $0x150] sm:$0xf]
        %v3796 = vld [vmem:[#allocation3 + $0x154] sm:$0xf]
        %v3797 = vld [vmem:[#allocation3 + $0x158] sm:$0xf]
        %v3798 = vld [vmem:[#allocation3 + $0x15c] sm:$0xf]
        %v3799 = vld [vmem:[#allocation3 + $0x160] sm:$0xf]
        %v3800 = vld [vmem:[#allocation3 + $0x164] sm:$0xf]
        %v3801 = vld [vmem:[#allocation3 + $0x168] sm:$0xf]
        %v3802 = vld [vmem:[#allocation3 + $0x16c] sm:$0xf]
        %v3803 = vld [vmem:[#allocation3 + $0x170] sm:$0xf]
        %v3804 = vld [vmem:[#allocation3 + $0x174] sm:$0xf]
        %v3805 = vld [vmem:[#allocation3 + $0x178] sm:$0xf]
        %v3806 = vld [vmem:[#allocation3 + $0x17c] sm:$0xf]
        %v3807 = vld [vmem:[#allocation3 + $0x180] sm:$0xf]
        %v3808 = vld [vmem:[#allocation3 + $0x184] sm:$0xf]
        %v3809 = vld [vmem:[#allocation3 + $0x188] sm:$0xf]
        %v3810 = vld [vmem:[#allocation3 + $0x18c] sm:$0xf]
        %v3811 = vld [vmem:[#allocation3 + $0x190] sm:$0xf]
        %v3812 = vld [vmem:[#allocation3 + $0x194] sm:$0xf]
        %v3813 = vld [vmem:[#allocation3 + $0x198] sm:$0xf]
        %v3814 = vld [vmem:[#allocation3 + $0x19c] sm:$0xf]
        %v3815 = vld [vmem:[#allocation3 + $0x1a0] sm:$0xf]
        %v3816 = vld [vmem:[#allocation3 + $0x1a4] sm:$0xf]
        %v3817 = vld [vmem:[#allocation3 + $0x1a8] sm:$0xf]
        %v3818 = vld [vmem:[#allocation3 + $0x1ac] sm:$0xf]
        %v3819 = vld [vmem:[#allocation3 + $0x1b0] sm:$0xf]
        %v3820 = vld [vmem:[#allocation3 + $0x1b4] sm:$0xf]
        %v3821 = vld [vmem:[#allocation3 + $0x1b8] sm:$0xf]
        %v3822 = vld [vmem:[#allocation3 + $0x1bc] sm:$0xf]
        %v3823 = vld [vmem:[#allocation3 + $0x1c0] sm:$0xf]
        %v3824 = vld [vmem:[#allocation3 + $0x1c4] sm:$0xf]
        %v3825 = vld [vmem:[#allocation3 + $0x1c8] sm:$0xf]
        %v3826 = vld [vmem:[#allocation3 + $0x1cc] sm:$0xf]
        %v3827 = vld [vmem:[#allocation3 + $0x1d0] sm:$0xf]
        %v3828 = vld [vmem:[#allocation3 + $0x1d4] sm:$0xf]
        %v3829 = vld [vmem:[#allocation3 + $0x1d8] sm:$0xf]
        %v3830 = vld [vmem:[#allocation3 + $0x1dc] sm:$0xf]
        %v3831 = vld [vmem:[#allocation3 + $0x1e0] sm:$0xf]
        %v3832 = vld [vmem:[#allocation3 + $0x1e4] sm:$0xf]
        %v3833 = vld [vmem:[#allocation3 + $0x1e8] sm:$0xf]
        %v3834 = vld [vmem:[#allocation3 + $0x1ec] sm:$0xf]
        %v3835 = vld [vmem:[#allocation3 + $0x1f0] sm:$0xf]
        %v3836 = vld [vmem:[#allocation3 + $0x1f4] sm:$0xf]
        %v3837 = vld [vmem:[#allocation3 + $0x1f8] sm:$0xf]
        %v3838 = vld [vmem:[#allocation3 + $0x1fc] sm:$0xf]
        %v3839 = vld [vmem:[#allocation3 + $0x200] sm:$0xf]
        %v3840 = vld [vmem:[#allocation3 + $0x204] sm:$0xf]
        %v3841 = vld [vmem:[#allocation3 + $0x208] sm:$0xf]
        %v3842 = vld [vmem:[#allocation3 + $0x20c] sm:$0xf]
        %v3843 = vld [vmem:[#allocation3 + $0x210] sm:$0xf]
        %v3844 = vld [vmem:[#allocation3 + $0x214] sm:$0xf]
        %v3845 = vld [vmem:[#allocation3 + $0x218] sm:$0xf]
        %v3846 = vld [vmem:[#allocation3 + $0x21c] sm:$0xf]
        %v3847 = vld [vmem:[#allocation3 + $0x220] sm:$0xf]
        %v3848 = vld [vmem:[#allocation3 + $0x224] sm:$0xf]
        %v3849 = vld [vmem:[#allocation3 + $0x228] sm:$0xf]
        %v3850 = vld [vmem:[#allocation3 + $0x22c] sm:$0xf]
        %v3851 = vld [vmem:[#allocation3 + $0x230] sm:$0xf]
        %v3852 = vld [vmem:[#allocation3 + $0x234] sm:$0xf]
        %v3853 = vld [vmem:[#allocation3 + $0x238] sm:$0xf]
        %v3854 = vld [vmem:[#allocation3 + $0x23c] sm:$0xf]
        %v3855 = vld [vmem:[%s324] sm:$0x1]
        %v3857 = vlaneseq
        %v3858 = vshrl.u32 %v3857, 7
        %v3859 = vsub.s32 0, %v3858
        %v3860 = vrot.slane %v3855, %v3859
        %v4006 = vunpack.c.l.b16 %v3711
        %v4007 = vunpack.c.l.b16 %v3712
        %v4008 = vunpack.c.l.b16 %v3713
        %v4009 = vunpack.c.l.b16 %v3714
        %v4010 = vunpack.c.l.b16 %v3715
        %v4011 = vunpack.c.l.b16 %v3716
        %v4012 = vunpack.c.l.b16 %v3717
        %v4013 = vunpack.c.l.b16 %v3718
        %v4014 = vunpack.c.l.b16 %v3719
        %v4015 = vunpack.c.l.b16 %v3720
        %v4016 = vunpack.c.l.b16 %v3721
        %v4017 = vunpack.c.l.b16 %v3722
        %v4018 = vunpack.c.l.b16 %v3723
        %v4019 = vunpack.c.l.b16 %v3724
        %v4020 = vunpack.c.l.b16 %v3725
        %v4021 = vunpack.c.l.b16 %v3726
        %v4022 = vunpack.c.l.b16 %v3727
        %v4023 = vunpack.c.l.b16 %v3728
        %v4024 = vunpack.c.l.b16 %v3729
        %v4025 = vunpack.c.l.b16 %v3730
        %v4026 = vunpack.c.l.b16 %v3731
        %v4027 = vunpack.c.l.b16 %v3732
        %v4028 = vunpack.c.l.b16 %v3733
        %v4029 = vunpack.c.l.b16 %v3734
        %v4030 = vunpack.c.l.b16 %v3735
        %v4031 = vunpack.c.l.b16 %v3736
        %v4032 = vunpack.c.l.b16 %v3737
        %v4033 = vunpack.c.l.b16 %v3738
        %v4034 = vunpack.c.l.b16 %v3739
        %v4035 = vunpack.c.l.b16 %v3740
        %v4036 = vunpack.c.l.b16 %v3741
        %v4037 = vunpack.c.l.b16 %v3742
        %v4038 = vunpack.c.l.b16 %v3743
        %v4039 = vunpack.c.l.b16 %v3744
        %v4040 = vunpack.c.l.b16 %v3745
        %v4041 = vunpack.c.l.b16 %v3746
        %v4042 = vunpack.c.l.b16 %v3747
        %v4043 = vunpack.c.l.b16 %v3748
        %v4044 = vunpack.c.l.b16 %v3749
        %v4045 = vunpack.c.l.b16 %v3750
        %v4046 = vunpack.c.l.b16 %v3751
        %v4047 = vunpack.c.l.b16 %v3752
        %v4048 = vunpack.c.l.b16 %v3753
        %v4049 = vunpack.c.l.b16 %v3754
        %v4050 = vunpack.c.l.b16 %v3755
        %v4051 = vunpack.c.l.b16 %v3756
        %v4052 = vunpack.c.l.b16 %v3757
        %v4053 = vunpack.c.l.b16 %v3758
        %v4054 = vunpack.c.l.b16 %v3759
        %v4055 = vunpack.c.l.b16 %v3760
        %v4056 = vunpack.c.l.b16 %v3761
        %v4057 = vunpack.c.l.b16 %v3762
        %v4058 = vunpack.c.l.b16 %v3763
        %v4059 = vunpack.c.l.b16 %v3764
        %v4060 = vunpack.c.l.b16 %v3765
        %v4061 = vunpack.c.l.b16 %v3766
        %v4062 = vunpack.c.l.b16 %v3767
        %v4063 = vunpack.c.l.b16 %v3768
        %v4064 = vunpack.c.l.b16 %v3769
        %v4065 = vunpack.c.l.b16 %v3770
        %v4066 = vunpack.c.l.b16 %v3771
        %v4067 = vunpack.c.l.b16 %v3772
        %v4068 = vunpack.c.l.b16 %v3773
        %v4069 = vunpack.c.l.b16 %v3774
        %v4070 = vunpack.c.l.b16 %v3775
        %v4071 = vunpack.c.l.b16 %v3776
        %v4072 = vunpack.c.l.b16 %v3777
        %v4073 = vunpack.c.l.b16 %v3778
        %v4074 = vunpack.c.l.b16 %v3779
        %v4075 = vunpack.c.l.b16 %v3780
        %v4076 = vunpack.c.l.b16 %v3781
        %v4077 = vunpack.c.l.b16 %v3782
        %v4078 = vunpack.c.l.b16 %v3783
        %v4079 = vunpack.c.l.b16 %v3784
        %v4080 = vunpack.c.l.b16 %v3785
        %v4081 = vunpack.c.l.b16 %v3786
        %v4082 = vunpack.c.l.b16 %v3787
        %v4083 = vunpack.c.l.b16 %v3788
        %v4084 = vunpack.c.l.b16 %v3789
        %v4085 = vunpack.c.l.b16 %v3790
        %v4086 = vunpack.c.l.b16 %v3791
        %v4087 = vunpack.c.l.b16 %v3792
        %v4088 = vunpack.c.l.b16 %v3793
        %v4089 = vunpack.c.l.b16 %v3794
        %v4090 = vunpack.c.l.b16 %v3795
        %v4091 = vunpack.c.l.b16 %v3796
        %v4092 = vunpack.c.l.b16 %v3797
        %v4093 = vunpack.c.l.b16 %v3798
        %v4094 = vunpack.c.l.b16 %v3799
        %v4095 = vunpack.c.l.b16 %v3800
        %v4096 = vunpack.c.l.b16 %v3801
        %v4097 = vunpack.c.l.b16 %v3802
        %v4098 = vunpack.c.l.b16 %v3803
        %v4099 = vunpack.c.l.b16 %v3804
        %v4100 = vunpack.c.l.b16 %v3805
        %v4101 = vunpack.c.l.b16 %v3806
        %v4102 = vunpack.c.l.b16 %v3807
        %v4103 = vunpack.c.l.b16 %v3808
        %v4104 = vunpack.c.l.b16 %v3809
        %v4105 = vunpack.c.l.b16 %v3810
        %v4106 = vunpack.c.l.b16 %v3811
        %v4107 = vunpack.c.l.b16 %v3812
        %v4108 = vunpack.c.l.b16 %v3813
        %v4109 = vunpack.c.l.b16 %v3814
        %v4110 = vunpack.c.l.b16 %v3815
        %v4111 = vunpack.c.l.b16 %v3816
        %v4112 = vunpack.c.l.b16 %v3817
        %v4113 = vunpack.c.l.b16 %v3818
        %v4114 = vunpack.c.l.b16 %v3819
        %v4115 = vunpack.c.l.b16 %v3820
        %v4116 = vunpack.c.l.b16 %v3821
        %v4117 = vunpack.c.l.b16 %v3822
        %v4118 = vunpack.c.l.b16 %v3823
        %v4119 = vunpack.c.l.b16 %v3824
        %v4120 = vunpack.c.l.b16 %v3825
        %v4121 = vunpack.c.l.b16 %v3826
        %v4122 = vunpack.c.l.b16 %v3827
        %v4123 = vunpack.c.l.b16 %v3828
        %v4124 = vunpack.c.l.b16 %v3829
        %v4125 = vunpack.c.l.b16 %v3830
        %v4126 = vunpack.c.l.b16 %v3831
        %v4127 = vunpack.c.l.b16 %v3832
        %v4128 = vunpack.c.l.b16 %v3833
        %v4129 = vunpack.c.l.b16 %v3834
        %v4130 = vunpack.c.l.b16 %v3835
        %v4131 = vunpack.c.l.b16 %v3836
        %v4132 = vunpack.c.l.b16 %v3837
        %v4133 = vunpack.c.l.b16 %v3838
        %v4134 = vunpack.c.l.b16 %v3839
        %v4135 = vunpack.c.l.b16 %v3840
        %v4136 = vunpack.c.l.b16 %v3841
        %v4137 = vunpack.c.l.b16 %v3842
        %v4138 = vunpack.c.l.b16 %v3843
        %v4139 = vunpack.c.l.b16 %v3844
        %v4140 = vunpack.c.l.b16 %v3845
        %v4141 = vunpack.c.l.b16 %v3846
        %v4142 = vunpack.c.l.b16 %v3847
        %v4143 = vunpack.c.l.b16 %v3848
        %v4144 = vunpack.c.l.b16 %v3849
        %v4145 = vunpack.c.l.b16 %v3850
        %v4146 = vunpack.c.l.b16 %v3851
        %v4147 = vunpack.c.l.b16 %v3852
        %v4148 = vunpack.c.l.b16 %v3853
        %v4149 = vunpack.c.l.b16 %v3854
        %v4150 = vpack.c.b16 %v4007, %v4006
        %v4151 = vpack.c.b16 %v4009, %v4008
        %v4152 = vpack.c.b16 %v4011, %v4010
        %v4153 = vpack.c.b16 %v4013, %v4012
        %v4154 = vpack.c.b16 %v4015, %v4014
        %v4155 = vpack.c.b16 %v4017, %v4016
        %v4156 = vpack.c.b16 %v4019, %v4018
        %v4157 = vpack.c.b16 %v4021, %v4020
        %v4158 = vpack.c.b16 %v4023, %v4022
        %v4159 = vpack.c.b16 %v4025, %v4024
        %v4160 = vpack.c.b16 %v4027, %v4026
        %v4161 = vpack.c.b16 %v4029, %v4028
        %v4162 = vpack.c.b16 %v4031, %v4030
        %v4163 = vpack.c.b16 %v4033, %v4032
        %v4164 = vpack.c.b16 %v4035, %v4034
        %v4165 = vpack.c.b16 %v4037, %v4036
        %v4166 = vpack.c.b16 %v4039, %v4038
        %v4167 = vpack.c.b16 %v4041, %v4040
        %v4168 = vpack.c.b16 %v4043, %v4042
        %v4169 = vpack.c.b16 %v4045, %v4044
        %v4170 = vpack.c.b16 %v4047, %v4046
        %v4171 = vpack.c.b16 %v4049, %v4048
        %v4172 = vpack.c.b16 %v4051, %v4050
        %v4173 = vpack.c.b16 %v4053, %v4052
        %v4174 = vpack.c.b16 %v4055, %v4054
        %v4175 = vpack.c.b16 %v4057, %v4056
        %v4176 = vpack.c.b16 %v4059, %v4058
        %v4177 = vpack.c.b16 %v4061, %v4060
        %v4178 = vpack.c.b16 %v4063, %v4062
        %v4179 = vpack.c.b16 %v4065, %v4064
        %v4180 = vpack.c.b16 %v4067, %v4066
        %v4181 = vpack.c.b16 %v4069, %v4068
        %v4182 = vpack.c.b16 %v4071, %v4070
        %v4183 = vpack.c.b16 %v4073, %v4072
        %v4184 = vpack.c.b16 %v4075, %v4074
        %v4185 = vpack.c.b16 %v4077, %v4076
        %v4186 = vpack.c.b16 %v4079, %v4078
        %v4187 = vpack.c.b16 %v4081, %v4080
        %v4188 = vpack.c.b16 %v4083, %v4082
        %v4189 = vpack.c.b16 %v4085, %v4084
        %v4190 = vpack.c.b16 %v4087, %v4086
        %v4191 = vpack.c.b16 %v4089, %v4088
        %v4192 = vpack.c.b16 %v4091, %v4090
        %v4193 = vpack.c.b16 %v4093, %v4092
        %v4194 = vpack.c.b16 %v4095, %v4094
        %v4195 = vpack.c.b16 %v4097, %v4096
        %v4196 = vpack.c.b16 %v4099, %v4098
        %v4197 = vpack.c.b16 %v4101, %v4100
        %v4198 = vpack.c.b16 %v4103, %v4102
        %v4199 = vpack.c.b16 %v4105, %v4104
        %v4200 = vpack.c.b16 %v4107, %v4106
        %v4201 = vpack.c.b16 %v4109, %v4108
        %v4202 = vpack.c.b16 %v4111, %v4110
        %v4203 = vpack.c.b16 %v4113, %v4112
        %v4204 = vpack.c.b16 %v4115, %v4114
        %v4205 = vpack.c.b16 %v4117, %v4116
        %v4206 = vpack.c.b16 %v4119, %v4118
        %v4207 = vpack.c.b16 %v4121, %v4120
        %v4208 = vpack.c.b16 %v4123, %v4122
        %v4209 = vpack.c.b16 %v4125, %v4124
        %v4210 = vpack.c.b16 %v4127, %v4126
        %v4211 = vpack.c.b16 %v4129, %v4128
        %v4212 = vpack.c.b16 %v4131, %v4130
        %v4213 = vpack.c.b16 %v4133, %v4132
        %v4214 = vpack.c.b16 %v4135, %v4134
        %v4215 = vpack.c.b16 %v4137, %v4136
        %v4216 = vpack.c.b16 %v4139, %v4138
        %v4217 = vpack.c.b16 %v4141, %v4140
        %v4218 = vpack.c.b16 %v4143, %v4142
        %v4219 = vpack.c.b16 %v4145, %v4144
        %v4220 = vpack.c.b16 %v4147, %v4146
        %v4221 = vpack.c.b16 %v4149, %v4148
        %4294 = vmatprep.subr.bf16.mxu0 0
        %4295 = vmatpush1.bf16.msra.mxu0 %v4150
        %4296 = vmatprep.subr.bf16.mxu0 0
        %4297 = vmatpush1.bf16.msra.mxu0 %v4151
        %4298 = vmatprep.subr.bf16.mxu0 0
        %4299 = vmatpush1.bf16.msra.mxu0 %v4152
        %4300 = vmatprep.subr.bf16.mxu0 0
        %4301 = vmatpush1.bf16.msra.mxu0 %v4153
        %4302 = vmatprep.subr.bf16.mxu0 0
        %4303 = vmatpush1.bf16.msra.mxu0 %v4154
        %4304 = vmatprep.subr.bf16.mxu0 0
        %4305 = vmatpush1.bf16.msra.mxu0 %v4155
        %4306 = vmatprep.subr.bf16.mxu0 0
        %4307 = vmatpush1.bf16.msra.mxu0 %v4156
        %4308 = vmatprep.subr.bf16.mxu0 0
        %4309 = vmatpush1.bf16.msra.mxu0 %v4157
        %4310 = vmatprep.subr.bf16.mxu0 0
        %4311 = vmatpush1.bf16.msra.mxu0 %v4158
        %4312 = vmatprep.subr.bf16.mxu0 0
        %4313 = vmatpush1.bf16.msra.mxu0 %v4159
        %4314 = vmatprep.subr.bf16.mxu0 0
        %4315 = vmatpush1.bf16.msra.mxu0 %v4160
        %4316 = vmatprep.subr.bf16.mxu0 0
        %4317 = vmatpush1.bf16.msra.mxu0 %v4161
        %4318 = vmatprep.subr.bf16.mxu0 0
        %4319 = vmatpush1.bf16.msra.mxu0 %v4162
        %4320 = vmatprep.subr.bf16.mxu0 0
        %4321 = vmatpush1.bf16.msra.mxu0 %v4163
        %4322 = vmatprep.subr.bf16.mxu0 0
        %4323 = vmatpush1.bf16.msra.mxu0 %v4164
        %4324 = vmatprep.subr.bf16.mxu0 0
        %4325 = vmatpush1.bf16.msra.mxu0 %v4165
        %4326 = vmatprep.mubr.bf16.mxu0 %v3496
        %4327 = vmatmul.mubr.bf16.gmra.mrb[0].mxu0 %v3495
        %v4328 = vpop.f32.mrb[0].mxu0
        %v4329 = vadd.f32 %v3860, %v4328
        %v4330 = vpop.f32.mrb[0].mxu0
        %v4331 = vpop.f32.mrb[0].mxu0
        %v4332 = vadd.f32 %v3860, %v4331
        %v4333 = vpop.f32.mrb[0].mxu0
        %4334 = vmatprep.mubr.bf16.mxu0 %v3505
        %4335 = vmatmul.mubr.bf16.gmra.mrb[0].mxu0 %v3504
        %v4336 = vpop.f32.mrb[0].mxu0
        %v4337 = vadd.f32 %v3860, %v4336
        %v4338 = vpop.f32.mrb[0].mxu0
        %v4339 = vpop.f32.mrb[0].mxu0
        %v4340 = vadd.f32 %v3860, %v4339
        %v4341 = vpop.f32.mrb[0].mxu0
        %4342 = vmatprep.mubr.bf16.mxu0 %v3514
        %4343 = vmatmul.mubr.bf16.gmra.mrb[0].mxu0 %v3513
        %v4344 = vpop.f32.mrb[0].mxu0
        %v4345 = vadd.f32 %v3860, %v4344
        %v4346 = vpop.f32.mrb[0].mxu0
        %v4347 = vpop.f32.mrb[0].mxu0
        %v4348 = vadd.f32 %v3860, %v4347
        %v4349 = vpop.f32.mrb[0].mxu0
        %4350 = vmatprep.mubr.bf16.mxu0 %v3523
        %4351 = vmatmul.mubr.bf16.gmra.mrb[0].mxu0 %v3522
        %v4352 = vpop.f32.mrb[0].mxu0
        %v4353 = vadd.f32 %v3860, %v4352
        %v4354 = vpop.f32.mrb[0].mxu0
        %v4355 = vpop.f32.mrb[0].mxu0
        %v4356 = vadd.f32 %v3860, %v4355
        %v4357 = vpop.f32.mrb[0].mxu0
        %4358 = vmatprep.mubr.bf16.mxu0 %v3532
        %4359 = vmatmul.mubr.bf16.gmra.mrb[0].mxu0 %v3531
        %v4360 = vpop.f32.mrb[0].mxu0
        %v4361 = vadd.f32 %v3860, %v4360
        %v4362 = vpop.f32.mrb[0].mxu0
        %v4363 = vpop.f32.mrb[0].mxu0
        %v4364 = vadd.f32 %v3860, %v4363
        %v4365 = vpop.f32.mrb[0].mxu0
        %4366 = vmatprep.mubr.bf16.mxu0 %v3541
        %4367 = vmatmul.mubr.bf16.gmra.mrb[0].mxu0 %v3540
        %v4368 = vpop.f32.mrb[0].mxu0
        %v4369 = vadd.f32 %v3860, %v4368
        %v4370 = vpop.f32.mrb[0].mxu0
        %v4371 = vpop.f32.mrb[0].mxu0
        %v4372 = vadd.f32 %v3860, %v4371
        %v4373 = vpop.f32.mrb[0].mxu0
        %4374 = vmatprep.mubr.bf16.mxu0 %v3550
        %4375 = vmatmul.mubr.bf16.gmra.mrb[0].mxu0 %v3549
        %v4376 = vpop.f32.mrb[0].mxu0
        %v4377 = vadd.f32 %v3860, %v4376
        %v4378 = vpop.f32.mrb[0].mxu0
        %v4379 = vpop.f32.mrb[0].mxu0
        %v4380 = vadd.f32 %v3860, %v4379
        %v4381 = vpop.f32.mrb[0].mxu0
        %4382 = vmatprep.mubr.bf16.mxu0 %v3559
        %4383 = vmatmul.mubr.bf16.gmra.mrb[0].mxu0 %v3558
        %v4384 = vpop.f32.mrb[0].mxu0
        %v4385 = vadd.f32 %v3860, %v4384
        %v4386 = vpop.f32.mrb[0].mxu0
        %v4387 = vpop.f32.mrb[0].mxu0
        %v4388 = vadd.f32 %v3860, %v4387
        %v4389 = vpop.f32.mrb[0].mxu0
        %4390 = vmatprep.mubr.bf16.mxu0 %v3568
        %4391 = vmatmul.mubr.bf16.gmra.mrb[0].mxu0 %v3567
        %v4392 = vpop.f32.mrb[0].mxu0
        %v4393 = vadd.f32 %v3860, %v4392
        %v4394 = vpop.f32.mrb[0].mxu0
        %v4395 = vpop.f32.mrb[0].mxu0
        %v4396 = vadd.f32 %v3860, %v4395
        %v4397 = vpop.f32.mrb[0].mxu0
        %4398 = vmatprep.mubr.bf16.mxu0 %v3577
        %4399 = vmatmul.mubr.bf16.gmra.mrb[0].mxu0 %v3576
        %v4400 = vpop.f32.mrb[0].mxu0
        %v4401 = vadd.f32 %v3860, %v4400
        %v4402 = vpop.f32.mrb[0].mxu0
        %v4403 = vpop.f32.mrb[0].mxu0
        %v4404 = vadd.f32 %v3860, %v4403
        %v4405 = vpop.f32.mrb[0].mxu0
        %4406 = vmatprep.mubr.bf16.mxu0 %v3586
        %4407 = vmatmul.mubr.bf16.gmra.mrb[0].mxu0 %v3585
        %v4408 = vpop.f32.mrb[0].mxu0
        %v4409 = vadd.f32 %v3860, %v4408
        %v4410 = vpop.f32.mrb[0].mxu0
        %v4411 = vpop.f32.mrb[0].mxu0
        %v4412 = vadd.f32 %v3860, %v4411
        %v4413 = vpop.f32.mrb[0].mxu0
        %4414 = vmatprep.mubr.bf16.mxu0 %v3595
        %4415 = vmatmul.mubr.bf16.gmra.mrb[0].mxu0 %v3594
        %v4416 = vpop.f32.mrb[0].mxu0
        %v4417 = vadd.f32 %v3860, %v4416
        %v4418 = vpop.f32.mrb[0].mxu0
        %v4419 = vpop.f32.mrb[0].mxu0
        %v4420 = vadd.f32 %v3860, %v4419
        %v4421 = vpop.f32.mrb[0].mxu0
        %4422 = vmatprep.mubr.bf16.mxu0 %v3604
        %4423 = vmatmul.mubr.bf16.gmra.mrb[0].mxu0 %v3603
        %v4424 = vpop.f32.mrb[0].mxu0
        %v4425 = vadd.f32 %v3860, %v4424
        %v4426 = vpop.f32.mrb[0].mxu0
        %v4427 = vpop.f32.mrb[0].mxu0
        %v4428 = vadd.f32 %v3860, %v4427
        %v4429 = vpop.f32.mrb[0].mxu0
        %4430 = vmatprep.mubr.bf16.mxu0 %v3613
        %4431 = vmatmul.mubr.bf16.gmra.mrb[0].mxu0 %v3612
        %v4432 = vpop.f32.mrb[0].mxu0
        %v4433 = vadd.f32 %v3860, %v4432
        %v4434 = vpop.f32.mrb[0].mxu0
        %v4435 = vpop.f32.mrb[0].mxu0
        %v4436 = vadd.f32 %v3860, %v4435
        %v4437 = vpop.f32.mrb[0].mxu0
        %4438 = vmatprep.mubr.bf16.mxu0 %v3622
        %4439 = vmatmul.mubr.bf16.gmra.mrb[0].mxu0 %v3621
        %v4440 = vpop.f32.mrb[0].mxu0
        %v4441 = vadd.f32 %v3860, %v4440
        %v4442 = vpop.f32.mrb[0].mxu0
        %v4443 = vpop.f32.mrb[0].mxu0
        %v4444 = vadd.f32 %v3860, %v4443
        %v4445 = vpop.f32.mrb[0].mxu0
        %4446 = vmatprep.mubr.bf16.mxu0 %v3631
        %4447 = vmatmul.mubr.bf16.gmra.mrb[0].mxu0 %v3630
        %v4448 = vpop.f32.mrb[0].mxu0
        %v4449 = vadd.f32 %v3860, %v4448
        %v4450 = vpop.f32.mrb[0].mxu0
        %v4451 = vpop.f32.mrb[0].mxu0
        %v4452 = vadd.f32 %v3860, %v4451
        %v4453 = vpop.f32.mrb[0].mxu0
        %4454 = vmatprep.mubr.bf16.mxu0 %v3640
        %4455 = vmatmul.mubr.bf16.gmra.mrb[0].mxu0 %v3639
        %v4456 = vpop.f32.mrb[0].mxu0
        %v4457 = vadd.f32 %v3860, %v4456
        %v4458 = vpop.f32.mrb[0].mxu0
        %v4459 = vpop.f32.mrb[0].mxu0
        %v4460 = vadd.f32 %v3860, %v4459
        %v4461 = vpop.f32.mrb[0].mxu0
        %4462 = vmatprep.mubr.bf16.mxu0 %v3649
        %4463 = vmatmul.mubr.bf16.gmra.mrb[0].mxu0 %v3648
        %v4464 = vpop.f32.mrb[0].mxu0
        %v4465 = vadd.f32 %v3860, %v4464
        %v4466 = vpop.f32.mrb[0].mxu0
        %v4467 = vpop.f32.mrb[0].mxu0
        %v4468 = vadd.f32 %v3860, %v4467
        %v4469 = vpop.f32.mrb[0].mxu0
        %4470 = vmatprep.mubr.bf16.mxu0 %v3658
        %4471 = vmatmul.mubr.bf16.gmra.mrb[0].mxu0 %v3657
        %v4472 = vpop.f32.mrb[0].mxu0
        %v4473 = vadd.f32 %v3860, %v4472
        %v4474 = vpop.f32.mrb[0].mxu0
        %v4475 = vpop.f32.mrb[0].mxu0
        %v4476 = vadd.f32 %v3860, %v4475
        %v4477 = vpop.f32.mrb[0].mxu0
        %4478 = vmatprep.mubr.bf16.mxu0 %v3667
        %4479 = vmatmul.mubr.bf16.gmra.mrb[0].mxu0 %v3666
        %v4480 = vpop.f32.mrb[0].mxu0
        %v4481 = vadd.f32 %v3860, %v4480
        %v4482 = vpop.f32.mrb[0].mxu0
        %v4483 = vpop.f32.mrb[0].mxu0
        %v4484 = vadd.f32 %v3860, %v4483
        %v4485 = vpop.f32.mrb[0].mxu0
        %4486 = vmatprep.mubr.bf16.mxu0 %v3676
        %4487 = vmatmul.mubr.bf16.gmra.mrb[0].mxu0 %v3675
        %v4488 = vpop.f32.mrb[0].mxu0
        %v4489 = vadd.f32 %v3860, %v4488
        %v4490 = vpop.f32.mrb[0].mxu0
        %v4491 = vpop.f32.mrb[0].mxu0
        %v4492 = vadd.f32 %v3860, %v4491
        %v4493 = vpop.f32.mrb[0].mxu0
        %4494 = vmatprep.mubr.bf16.mxu0 %v3685
        %4495 = vmatmul.mubr.bf16.gmra.mrb[0].mxu0 %v3684
        %v4496 = vpop.f32.mrb[0].mxu0
        %v4497 = vadd.f32 %v3860, %v4496
        %v4498 = vpop.f32.mrb[0].mxu0
        %v4499 = vpop.f32.mrb[0].mxu0
        %v4500 = vadd.f32 %v3860, %v4499
        %v4501 = vpop.f32.mrb[0].mxu0
        %4502 = vmatprep.mubr.bf16.mxu0 %v3694
        %4503 = vmatmul.mubr.bf16.gmra.mrb[0].mxu0 %v3693
        %v4504 = vpop.f32.mrb[0].mxu0
        %v4505 = vadd.f32 %v3860, %v4504
        %v4506 = vpop.f32.mrb[0].mxu0
        %v4507 = vpop.f32.mrb[0].mxu0
        %v4508 = vadd.f32 %v3860, %v4507
        %v4509 = vpop.f32.mrb[0].mxu0
        %4510 = vmatprep.mubr.bf16.mxu0 %v3703
        %4511 = vmatmul.mubr.bf16.gmra.mrb[0].mxu0 %v3702
        %v4512 = vpop.f32.mrb[0].mxu0
        %v4513 = vadd.f32 %v3860, %v4512
        %v4514 = vpop.f32.mrb[0].mxu0
        %v4515 = vpop.f32.mrb[0].mxu0
        %v4516 = vadd.f32 %v3860, %v4515
        %v4517 = vpop.f32.mrb[0].mxu0
        %4518 = vdwg.mxu0
        %4519 = vmatprep.subr.bf16.mxu0 0
        %4520 = vmatpush1.bf16.msra.mxu0 %v4166
        %4521 = vmatprep.subr.bf16.mxu0 0
        %4522 = vmatpush1.bf16.msra.mxu0 %v4167
        %4523 = vmatprep.subr.bf16.mxu0 0
        %4524 = vmatpush1.bf16.msra.mxu0 %v4168
        %4525 = vmatprep.subr.bf16.mxu0 0
        %4526 = vmatpush1.bf16.msra.mxu0 %v4169
        %4527 = vmatprep.subr.bf16.mxu0 0
        %4528 = vmatpush1.bf16.msra.mxu0 %v4170
        %4529 = vmatprep.subr.bf16.mxu0 0
        %4530 = vmatpush1.bf16.msra.mxu0 %v4171
        %4531 = vmatprep.subr.bf16.mxu0 0
        %4532 = vmatpush1.bf16.msra.mxu0 %v4172
        %4533 = vmatprep.subr.bf16.mxu0 0
        %4534 = vmatpush1.bf16.msra.mxu0 %v4173
        %4535 = vmatprep.subr.bf16.mxu0 0
        %4536 = vmatpush1.bf16.msra.mxu0 %v4174
        %4537 = vmatprep.subr.bf16.mxu0 0
        %4538 = vmatpush1.bf16.msra.mxu0 %v4175
        %4539 = vmatprep.subr.bf16.mxu0 0
        %4540 = vmatpush1.bf16.msra.mxu0 %v4176
        %4541 = vmatprep.subr.bf16.mxu0 0
        %4542 = vmatpush1.bf16.msra.mxu0 %v4177
        %4543 = vmatprep.subr.bf16.mxu0 0
        %4544 = vmatpush1.bf16.msra.mxu0 %v4178
        %4545 = vmatprep.subr.bf16.mxu0 0
        %4546 = vmatpush1.bf16.msra.mxu0 %v4179
        %4547 = vmatprep.subr.bf16.mxu0 0
        %4548 = vmatpush1.bf16.msra.mxu0 %v4180
        %4549 = vmatprep.subr.bf16.mxu0 0
        %4550 = vmatpush1.bf16.msra.mxu0 %v4181
        %4551 = vmatprep.mubr.bf16.mxu0 %v3498
        %4552 = vmatmul.mubr.bf16.gmra.mrb[0].mxu0 %v3497
        %v4553 = vpop.f32.mrb[0].mxu0
        %v4554 = vadd.f32 %v4329, %v4553
        %v4555 = vpop.f32.mrb[0].mxu0
        %v4556 = vpop.f32.mrb[0].mxu0
        %v4557 = vadd.f32 %v4332, %v4556
        %v4558 = vpop.f32.mrb[0].mxu0
        %4559 = vmatprep.mubr.bf16.mxu0 %v3507
        %4560 = vmatmul.mubr.bf16.gmra.mrb[0].mxu0 %v3506
        %v4561 = vpop.f32.mrb[0].mxu0
        %v4562 = vadd.f32 %v4337, %v4561
        %v4563 = vpop.f32.mrb[0].mxu0
        %v4564 = vpop.f32.mrb[0].mxu0
        %v4565 = vadd.f32 %v4340, %v4564
        %v4566 = vpop.f32.mrb[0].mxu0
        %4567 = vmatprep.mubr.bf16.mxu0 %v3516
        %4568 = vmatmul.mubr.bf16.gmra.mrb[0].mxu0 %v3515
        %v4569 = vpop.f32.mrb[0].mxu0
        %v4570 = vadd.f32 %v4345, %v4569
        %v4571 = vpop.f32.mrb[0].mxu0
        %v4572 = vpop.f32.mrb[0].mxu0
        %v4573 = vadd.f32 %v4348, %v4572
        %v4574 = vpop.f32.mrb[0].mxu0
        %4575 = vmatprep.mubr.bf16.mxu0 %v3525
        %4576 = vmatmul.mubr.bf16.gmra.mrb[0].mxu0 %v3524
        %v4577 = vpop.f32.mrb[0].mxu0
        %v4578 = vadd.f32 %v4353, %v4577
        %v4579 = vpop.f32.mrb[0].mxu0
        %v4580 = vpop.f32.mrb[0].mxu0
        %v4581 = vadd.f32 %v4356, %v4580
        %v4582 = vpop.f32.mrb[0].mxu0
        %4583 = vmatprep.mubr.bf16.mxu0 %v3534
        %4584 = vmatmul.mubr.bf16.gmra.mrb[0].mxu0 %v3533
        %v4585 = vpop.f32.mrb[0].mxu0
        %v4586 = vadd.f32 %v4361, %v4585
        %v4587 = vpop.f32.mrb[0].mxu0
        %v4588 = vpop.f32.mrb[0].mxu0
        %v4589 = vadd.f32 %v4364, %v4588
        %v4590 = vpop.f32.mrb[0].mxu0
        %4591 = vmatprep.mubr.bf16.mxu0 %v3543
        %4592 = vmatmul.mubr.bf16.gmra.mrb[0].mxu0 %v3542
        %v4593 = vpop.f32.mrb[0].mxu0
        %v4594 = vadd.f32 %v4369, %v4593
        %v4595 = vpop.f32.mrb[0].mxu0
        %v4596 = vpop.f32.mrb[0].mxu0
        %v4597 = vadd.f32 %v4372, %v4596
        %v4598 = vpop.f32.mrb[0].mxu0
        %4599 = vmatprep.mubr.bf16.mxu0 %v3552
        %4600 = vmatmul.mubr.bf16.gmra.mrb[0].mxu0 %v3551
        %v4601 = vpop.f32.mrb[0].mxu0
        %v4602 = vadd.f32 %v4377, %v4601
        %v4603 = vpop.f32.mrb[0].mxu0
        %v4604 = vpop.f32.mrb[0].mxu0
        %v4605 = vadd.f32 %v4380, %v4604
        %v4606 = vpop.f32.mrb[0].mxu0
        %4607 = vmatprep.mubr.bf16.mxu0 %v3561
        %4608 = vmatmul.mubr.bf16.gmra.mrb[0].mxu0 %v3560
        %v4609 = vpop.f32.mrb[0].mxu0
        %v4610 = vadd.f32 %v4385, %v4609
        %v4611 = vpop.f32.mrb[0].mxu0
        %v4612 = vpop.f32.mrb[0].mxu0
        %v4613 = vadd.f32 %v4388, %v4612
        %v4614 = vpop.f32.mrb[0].mxu0
        %4615 = vmatprep.mubr.bf16.mxu0 %v3570
        %4616 = vmatmul.mubr.bf16.gmra.mrb[0].mxu0 %v3569
        %v4617 = vpop.f32.mrb[0].mxu0
        %v4618 = vadd.f32 %v4393, %v4617
        %v4619 = vpop.f32.mrb[0].mxu0
        %v4620 = vpop.f32.mrb[0].mxu0
        %v4621 = vadd.f32 %v4396, %v4620
        %v4622 = vpop.f32.mrb[0].mxu0
        %4623 = vmatprep.mubr.bf16.mxu0 %v3579
        %4624 = vmatmul.mubr.bf16.gmra.mrb[0].mxu0 %v3578
        %v4625 = vpop.f32.mrb[0].mxu0
        %v4626 = vadd.f32 %v4401, %v4625
        %v4627 = vpop.f32.mrb[0].mxu0
        %v4628 = vpop.f32.mrb[0].mxu0
        %v4629 = vadd.f32 %v4404, %v4628
        %v4630 = vpop.f32.mrb[0].mxu0
        %4631 = vmatprep.mubr.bf16.mxu0 %v3588
        %4632 = vmatmul.mubr.bf16.gmra.mrb[0].mxu0 %v3587
        %v4633 = vpop.f32.mrb[0].mxu0
        %v4634 = vadd.f32 %v4409, %v4633
        %v4635 = vpop.f32.mrb[0].mxu0
        %v4636 = vpop.f32.mrb[0].mxu0
        %v4637 = vadd.f32 %v4412, %v4636
        %v4638 = vpop.f32.mrb[0].mxu0
        %4639 = vmatprep.mubr.bf16.mxu0 %v3597
        %4640 = vmatmul.mubr.bf16.gmra.mrb[0].mxu0 %v3596
        %v4641 = vpop.f32.mrb[0].mxu0
        %v4642 = vadd.f32 %v4417, %v4641
        %v4643 = vpop.f32.mrb[0].mxu0
        %v4644 = vpop.f32.mrb[0].mxu0
        %v4645 = vadd.f32 %v4420, %v4644
        %v4646 = vpop.f32.mrb[0].mxu0
        %4647 = vmatprep.mubr.bf16.mxu0 %v3606
        %4648 = vmatmul.mubr.bf16.gmra.mrb[0].mxu0 %v3605
        %v4649 = vpop.f32.mrb[0].mxu0
        %v4650 = vadd.f32 %v4425, %v4649
        %v4651 = vpop.f32.mrb[0].mxu0
        %v4652 = vpop.f32.mrb[0].mxu0
        %v4653 = vadd.f32 %v4428, %v4652
        %v4654 = vpop.f32.mrb[0].mxu0
        %4655 = vmatprep.mubr.bf16.mxu0 %v3615
        %4656 = vmatmul.mubr.bf16.gmra.mrb[0].mxu0 %v3614
        %v4657 = vpop.f32.mrb[0].mxu0
        %v4658 = vadd.f32 %v4433, %v4657
        %v4659 = vpop.f32.mrb[0].mxu0
        %v4660 = vpop.f32.mrb[0].mxu0
        %v4661 = vadd.f32 %v4436, %v4660
        %v4662 = vpop.f32.mrb[0].mxu0
        %4663 = vmatprep.mubr.bf16.mxu0 %v3624
        %4664 = vmatmul.mubr.bf16.gmra.mrb[0].mxu0 %v3623
        %v4665 = vpop.f32.mrb[0].mxu0
        %v4666 = vadd.f32 %v4441, %v4665
        %v4667 = vpop.f32.mrb[0].mxu0
        %v4668 = vpop.f32.mrb[0].mxu0
        %v4669 = vadd.f32 %v4444, %v4668
        %v4670 = vpop.f32.mrb[0].mxu0
        %4671 = vmatprep.mubr.bf16.mxu0 %v3633
        %4672 = vmatmul.mubr.bf16.gmra.mrb[0].mxu0 %v3632
        %v4673 = vpop.f32.mrb[0].mxu0
        %v4674 = vadd.f32 %v4449, %v4673
        %v4675 = vpop.f32.mrb[0].mxu0
        %v4676 = vpop.f32.mrb[0].mxu0
        %v4677 = vadd.f32 %v4452, %v4676
        %v4678 = vpop.f32.mrb[0].mxu0
        %4679 = vmatprep.mubr.bf16.mxu0 %v3642
        %4680 = vmatmul.mubr.bf16.gmra.mrb[0].mxu0 %v3641
        %v4681 = vpop.f32.mrb[0].mxu0
        %v4682 = vadd.f32 %v4457, %v4681
        %v4683 = vpop.f32.mrb[0].mxu0
        %v4684 = vpop.f32.mrb[0].mxu0
        %v4685 = vadd.f32 %v4460, %v4684
        %v4686 = vpop.f32.mrb[0].mxu0
        %4687 = vmatprep.mubr.bf16.mxu0 %v3651
        %4688 = vmatmul.mubr.bf16.gmra.mrb[0].mxu0 %v3650
        %v4689 = vpop.f32.mrb[0].mxu0
        %v4690 = vadd.f32 %v4465, %v4689
        %v4691 = vpop.f32.mrb[0].mxu0
        %v4692 = vpop.f32.mrb[0].mxu0
        %v4693 = vadd.f32 %v4468, %v4692
        %v4694 = vpop.f32.mrb[0].mxu0
        %4695 = vmatprep.mubr.bf16.mxu0 %v3660
        %4696 = vmatmul.mubr.bf16.gmra.mrb[0].mxu0 %v3659
        %v4697 = vpop.f32.mrb[0].mxu0
        %v4698 = vadd.f32 %v4473, %v4697
        %v4699 = vpop.f32.mrb[0].mxu0
        %v4700 = vpop.f32.mrb[0].mxu0
        %v4701 = vadd.f32 %v4476, %v4700
        %v4702 = vpop.f32.mrb[0].mxu0
        %4703 = vmatprep.mubr.bf16.mxu0 %v3669
        %4704 = vmatmul.mubr.bf16.gmra.mrb[0].mxu0 %v3668
        %v4705 = vpop.f32.mrb[0].mxu0
        %v4706 = vadd.f32 %v4481, %v4705
        %v4707 = vpop.f32.mrb[0].mxu0
        %v4708 = vpop.f32.mrb[0].mxu0
        %v4709 = vadd.f32 %v4484, %v4708
        %v4710 = vpop.f32.mrb[0].mxu0
        %4711 = vmatprep.mubr.bf16.mxu0 %v3678
        %4712 = vmatmul.mubr.bf16.gmra.mrb[0].mxu0 %v3677
        %v4713 = vpop.f32.mrb[0].mxu0
        %v4714 = vadd.f32 %v4489, %v4713
        %v4715 = vpop.f32.mrb[0].mxu0
        %v4716 = vpop.f32.mrb[0].mxu0
        %v4717 = vadd.f32 %v4492, %v4716
        %v4718 = vpop.f32.mrb[0].mxu0
        %4719 = vmatprep.mubr.bf16.mxu0 %v3687
        %4720 = vmatmul.mubr.bf16.gmra.mrb[0].mxu0 %v3686
        %v4721 = vpop.f32.mrb[0].mxu0
        %v4722 = vadd.f32 %v4497, %v4721
        %v4723 = vpop.f32.mrb[0].mxu0
        %v4724 = vpop.f32.mrb[0].mxu0
        %v4725 = vadd.f32 %v4500, %v4724
        %v4726 = vpop.f32.mrb[0].mxu0
        %4727 = vmatprep.mubr.bf16.mxu0 %v3696
        %4728 = vmatmul.mubr.bf16.gmra.mrb[0].mxu0 %v3695
        %v4729 = vpop.f32.mrb[0].mxu0
        %v4730 = vadd.f32 %v4505, %v4729
        %v4731 = vpop.f32.mrb[0].mxu0
        %v4732 = vpop.f32.mrb[0].mxu0
        %v4733 = vadd.f32 %v4508, %v4732
        %v4734 = vpop.f32.mrb[0].mxu0
        %4735 = vmatprep.mubr.bf16.mxu0 %v3705
        %4736 = vmatmul.mubr.bf16.gmra.mrb[0].mxu0 %v3704
        %v4737 = vpop.f32.mrb[0].mxu0
        %v4738 = vadd.f32 %v4513, %v4737
        %v4739 = vpop.f32.mrb[0].mxu0
        %v4740 = vpop.f32.mrb[0].mxu0
        %v4741 = vadd.f32 %v4516, %v4740
        %v4742 = vpop.f32.mrb[0].mxu0
        %4743 = vdwg.mxu0
        %4744 = vmatprep.subr.bf16.mxu0 0
        %4745 = vmatpush1.bf16.msra.mxu0 %v4182
        %4746 = vmatprep.subr.bf16.mxu0 0
        %4747 = vmatpush1.bf16.msra.mxu0 %v4183
        %4748 = vmatprep.subr.bf16.mxu0 0
        %4749 = vmatpush1.bf16.msra.mxu0 %v4184
        %4750 = vmatprep.subr.bf16.mxu0 0
        %4751 = vmatpush1.bf16.msra.mxu0 %v4185
        %4752 = vmatprep.subr.bf16.mxu0 0
        %4753 = vmatpush1.bf16.msra.mxu0 %v4186
        %4754 = vmatprep.subr.bf16.mxu0 0
        %4755 = vmatpush1.bf16.msra.mxu0 %v4187
        %4756 = vmatprep.subr.bf16.mxu0 0
        %4757 = vmatpush1.bf16.msra.mxu0 %v4188
        %4758 = vmatprep.subr.bf16.mxu0 0
        %4759 = vmatpush1.bf16.msra.mxu0 %v4189
        %4760 = vmatprep.subr.bf16.mxu0 0
        %4761 = vmatpush1.bf16.msra.mxu0 %v4190
        %4762 = vmatprep.subr.bf16.mxu0 0
        %4763 = vmatpush1.bf16.msra.mxu0 %v4191
        %4764 = vmatprep.subr.bf16.mxu0 0
        %4765 = vmatpush1.bf16.msra.mxu0 %v4192
        %4766 = vmatprep.subr.bf16.mxu0 0
        %4767 = vmatpush1.bf16.msra.mxu0 %v4193
        %4768 = vmatprep.subr.bf16.mxu0 0
        %4769 = vmatpush1.bf16.msra.mxu0 %v4194
        %4770 = vmatprep.subr.bf16.mxu0 0
        %4771 = vmatpush1.bf16.msra.mxu0 %v4195
        %4772 = vmatprep.subr.bf16.mxu0 0
        %4773 = vmatpush1.bf16.msra.mxu0 %v4196
        %4774 = vmatprep.subr.bf16.mxu0 0
        %4775 = vmatpush1.bf16.msra.mxu0 %v4197
        %4776 = vmatprep.mubr.bf16.mxu0 %v3500
        %4777 = vmatmul.mubr.bf16.gmra.mrb[0].mxu0 %v3499
        %v4778 = vpop.f32.mrb[0].mxu0
        %v4779 = vadd.f32 %v4554, %v4778
        %v4780 = vpop.f32.mrb[0].mxu0
        %v4781 = vpop.f32.mrb[0].mxu0
        %v4782 = vadd.f32 %v4557, %v4781
        %v4783 = vpop.f32.mrb[0].mxu0
        %4784 = vmatprep.mubr.bf16.mxu0 %v3509
        %4785 = vmatmul.mubr.bf16.gmra.mrb[0].mxu0 %v3508
        %v4786 = vpop.f32.mrb[0].mxu0
        %v4787 = vadd.f32 %v4562, %v4786
        %v4788 = vpop.f32.mrb[0].mxu0
        %v4789 = vpop.f32.mrb[0].mxu0
        %v4790 = vadd.f32 %v4565, %v4789
        %v4791 = vpop.f32.mrb[0].mxu0
        %4792 = vmatprep.mubr.bf16.mxu0 %v3518
        %4793 = vmatmul.mubr.bf16.gmra.mrb[0].mxu0 %v3517
        %v4794 = vpop.f32.mrb[0].mxu0
        %v4795 = vadd.f32 %v4570, %v4794
        %v4796 = vpop.f32.mrb[0].mxu0
        %v4797 = vpop.f32.mrb[0].mxu0
        %v4798 = vadd.f32 %v4573, %v4797
        %v4799 = vpop.f32.mrb[0].mxu0
        %4800 = vmatprep.mubr.bf16.mxu0 %v3527
        %4801 = vmatmul.mubr.bf16.gmra.mrb[0].mxu0 %v3526
        %v4802 = vpop.f32.mrb[0].mxu0
        %v4803 = vadd.f32 %v4578, %v4802
        %v4804 = vpop.f32.mrb[0].mxu0
        %v4805 = vpop.f32.mrb[0].mxu0
        %v4806 = vadd.f32 %v4581, %v4805
        %v4807 = vpop.f32.mrb[0].mxu0
        %4808 = vmatprep.mubr.bf16.mxu0 %v3536
        %4809 = vmatmul.mubr.bf16.gmra.mrb[0].mxu0 %v3535
        %v4810 = vpop.f32.mrb[0].mxu0
        %v4811 = vadd.f32 %v4586, %v4810
        %v4812 = vpop.f32.mrb[0].mxu0
        %v4813 = vpop.f32.mrb[0].mxu0
        %v4814 = vadd.f32 %v4589, %v4813
        %v4815 = vpop.f32.mrb[0].mxu0
        %4816 = vmatprep.mubr.bf16.mxu0 %v3545
        %4817 = vmatmul.mubr.bf16.gmra.mrb[0].mxu0 %v3544
        %v4818 = vpop.f32.mrb[0].mxu0
        %v4819 = vadd.f32 %v4594, %v4818
        %v4820 = vpop.f32.mrb[0].mxu0
        %v4821 = vpop.f32.mrb[0].mxu0
        %v4822 = vadd.f32 %v4597, %v4821
        %v4823 = vpop.f32.mrb[0].mxu0
        %4824 = vmatprep.mubr.bf16.mxu0 %v3554
        %4825 = vmatmul.mubr.bf16.gmra.mrb[0].mxu0 %v3553
        %v4826 = vpop.f32.mrb[0].mxu0
        %v4827 = vadd.f32 %v4602, %v4826
        %v4828 = vpop.f32.mrb[0].mxu0
        %v4829 = vpop.f32.mrb[0].mxu0
        %v4830 = vadd.f32 %v4605, %v4829
        %v4831 = vpop.f32.mrb[0].mxu0
        %4832 = vmatprep.mubr.bf16.mxu0 %v3563
        %4833 = vmatmul.mubr.bf16.gmra.mrb[0].mxu0 %v3562
        %v4834 = vpop.f32.mrb[0].mxu0
        %v4835 = vadd.f32 %v4610, %v4834
        %v4836 = vpop.f32.mrb[0].mxu0
        %v4837 = vpop.f32.mrb[0].mxu0
        %v4838 = vadd.f32 %v4613, %v4837
        %v4839 = vpop.f32.mrb[0].mxu0
        %4840 = vmatprep.mubr.bf16.mxu0 %v3572
        %4841 = vmatmul.mubr.bf16.gmra.mrb[0].mxu0 %v3571
        %v4842 = vpop.f32.mrb[0].mxu0
        %v4843 = vadd.f32 %v4618, %v4842
        %v4844 = vpop.f32.mrb[0].mxu0
        %v4845 = vpop.f32.mrb[0].mxu0
        %v4846 = vadd.f32 %v4621, %v4845
        %v4847 = vpop.f32.mrb[0].mxu0
        %4848 = vmatprep.mubr.bf16.mxu0 %v3581
        %4849 = vmatmul.mubr.bf16.gmra.mrb[0].mxu0 %v3580
        %v4850 = vpop.f32.mrb[0].mxu0
        %v4851 = vadd.f32 %v4626, %v4850
        %v4852 = vpop.f32.mrb[0].mxu0
        %v4853 = vpop.f32.mrb[0].mxu0
        %v4854 = vadd.f32 %v4629, %v4853
        %v4855 = vpop.f32.mrb[0].mxu0
        %4856 = vmatprep.mubr.bf16.mxu0 %v3590
        %4857 = vmatmul.mubr.bf16.gmra.mrb[0].mxu0 %v3589
        %v4858 = vpop.f32.mrb[0].mxu0
        %v4859 = vadd.f32 %v4634, %v4858
        %v4860 = vpop.f32.mrb[0].mxu0
        %v4861 = vpop.f32.mrb[0].mxu0
        %v4862 = vadd.f32 %v4637, %v4861
        %v4863 = vpop.f32.mrb[0].mxu0
        %4864 = vmatprep.mubr.bf16.mxu0 %v3599
        %4865 = vmatmul.mubr.bf16.gmra.mrb[0].mxu0 %v3598
        %v4866 = vpop.f32.mrb[0].mxu0
        %v4867 = vadd.f32 %v4642, %v4866
        %v4868 = vpop.f32.mrb[0].mxu0
        %v4869 = vpop.f32.mrb[0].mxu0
        %v4870 = vadd.f32 %v4645, %v4869
        %v4871 = vpop.f32.mrb[0].mxu0
        %4872 = vmatprep.mubr.bf16.mxu0 %v3608
        %4873 = vmatmul.mubr.bf16.gmra.mrb[0].mxu0 %v3607
        %v4874 = vpop.f32.mrb[0].mxu0
        %v4875 = vadd.f32 %v4650, %v4874
        %v4876 = vpop.f32.mrb[0].mxu0
        %v4877 = vpop.f32.mrb[0].mxu0
        %v4878 = vadd.f32 %v4653, %v4877
        %v4879 = vpop.f32.mrb[0].mxu0
        %4880 = vmatprep.mubr.bf16.mxu0 %v3617
        %4881 = vmatmul.mubr.bf16.gmra.mrb[0].mxu0 %v3616
        %v4882 = vpop.f32.mrb[0].mxu0
        %v4883 = vadd.f32 %v4658, %v4882
        %v4884 = vpop.f32.mrb[0].mxu0
        %v4885 = vpop.f32.mrb[0].mxu0
        %v4886 = vadd.f32 %v4661, %v4885
        %v4887 = vpop.f32.mrb[0].mxu0
        %4888 = vmatprep.mubr.bf16.mxu0 %v3626
        %4889 = vmatmul.mubr.bf16.gmra.mrb[0].mxu0 %v3625
        %v4890 = vpop.f32.mrb[0].mxu0
        %v4891 = vadd.f32 %v4666, %v4890
        %v4892 = vpop.f32.mrb[0].mxu0
        %v4893 = vpop.f32.mrb[0].mxu0
        %v4894 = vadd.f32 %v4669, %v4893
        %v4895 = vpop.f32.mrb[0].mxu0
        %4896 = vmatprep.mubr.bf16.mxu0 %v3635
        %4897 = vmatmul.mubr.bf16.gmra.mrb[0].mxu0 %v3634
        %v4898 = vpop.f32.mrb[0].mxu0
        %v4899 = vadd.f32 %v4674, %v4898
        %v4900 = vpop.f32.mrb[0].mxu0
        %v4901 = vpop.f32.mrb[0].mxu0
        %v4902 = vadd.f32 %v4677, %v4901
        %v4903 = vpop.f32.mrb[0].mxu0
        %4904 = vmatprep.mubr.bf16.mxu0 %v3644
        %4905 = vmatmul.mubr.bf16.gmra.mrb[0].mxu0 %v3643
        %v4906 = vpop.f32.mrb[0].mxu0
        %v4907 = vadd.f32 %v4682, %v4906
        %v4908 = vpop.f32.mrb[0].mxu0
        %v4909 = vpop.f32.mrb[0].mxu0
        %v4910 = vadd.f32 %v4685, %v4909
        %v4911 = vpop.f32.mrb[0].mxu0
        %4912 = vmatprep.mubr.bf16.mxu0 %v3653
        %4913 = vmatmul.mubr.bf16.gmra.mrb[0].mxu0 %v3652
        %v4914 = vpop.f32.mrb[0].mxu0
        %v4915 = vadd.f32 %v4690, %v4914
        %v4916 = vpop.f32.mrb[0].mxu0
        %v4917 = vpop.f32.mrb[0].mxu0
        %v4918 = vadd.f32 %v4693, %v4917
        %v4919 = vpop.f32.mrb[0].mxu0
        %4920 = vmatprep.mubr.bf16.mxu0 %v3662
        %4921 = vmatmul.mubr.bf16.gmra.mrb[0].mxu0 %v3661
        %v4922 = vpop.f32.mrb[0].mxu0
        %v4923 = vadd.f32 %v4698, %v4922
        %v4924 = vpop.f32.mrb[0].mxu0
        %v4925 = vpop.f32.mrb[0].mxu0
        %v4926 = vadd.f32 %v4701, %v4925
        %v4927 = vpop.f32.mrb[0].mxu0
        %4928 = vmatprep.mubr.bf16.mxu0 %v3671
        %4929 = vmatmul.mubr.bf16.gmra.mrb[0].mxu0 %v3670
        %v4930 = vpop.f32.mrb[0].mxu0
        %v4931 = vadd.f32 %v4706, %v4930
        %v4932 = vpop.f32.mrb[0].mxu0
        %v4933 = vpop.f32.mrb[0].mxu0
        %v4934 = vadd.f32 %v4709, %v4933
        %v4935 = vpop.f32.mrb[0].mxu0
        %4936 = vmatprep.mubr.bf16.mxu0 %v3680
        %4937 = vmatmul.mubr.bf16.gmra.mrb[0].mxu0 %v3679
        %v4938 = vpop.f32.mrb[0].mxu0
        %v4939 = vadd.f32 %v4714, %v4938
        %v4940 = vpop.f32.mrb[0].mxu0
        %v4941 = vpop.f32.mrb[0].mxu0
        %v4942 = vadd.f32 %v4717, %v4941
        %v4943 = vpop.f32.mrb[0].mxu0
        %4944 = vmatprep.mubr.bf16.mxu0 %v3689
        %4945 = vmatmul.mubr.bf16.gmra.mrb[0].mxu0 %v3688
        %v4946 = vpop.f32.mrb[0].mxu0
        %v4947 = vadd.f32 %v4722, %v4946
        %v4948 = vpop.f32.mrb[0].mxu0
        %v4949 = vpop.f32.mrb[0].mxu0
        %v4950 = vadd.f32 %v4725, %v4949
        %v4951 = vpop.f32.mrb[0].mxu0
        %4952 = vmatprep.mubr.bf16.mxu0 %v3698
        %4953 = vmatmul.mubr.bf16.gmra.mrb[0].mxu0 %v3697
        %v4954 = vpop.f32.mrb[0].mxu0
        %v4955 = vadd.f32 %v4730, %v4954
        %v4956 = vpop.f32.mrb[0].mxu0
        %v4957 = vpop.f32.mrb[0].mxu0
        %v4958 = vadd.f32 %v4733, %v4957
        %v4959 = vpop.f32.mrb[0].mxu0
        %4960 = vmatprep.mubr.bf16.mxu0 %v3707
        %4961 = vmatmul.mubr.bf16.gmra.mrb[0].mxu0 %v3706
        %v4962 = vpop.f32.mrb[0].mxu0
        %v4963 = vadd.f32 %v4738, %v4962
        %v4964 = vpop.f32.mrb[0].mxu0
        %v4965 = vpop.f32.mrb[0].mxu0
        %v4966 = vadd.f32 %v4741, %v4965
        %v4967 = vpop.f32.mrb[0].mxu0
        %4968 = vdwg.mxu0
        %4969 = vmatprep.subr.bf16.mxu0 0
        %4970 = vmatpush1.bf16.msra.mxu0 %v4198
        %4971 = vmatprep.subr.bf16.mxu0 0
        %4972 = vmatpush1.bf16.msra.mxu0 %v4199
        %4973 = vmatprep.subr.bf16.mxu0 0
        %4974 = vmatpush1.bf16.msra.mxu0 %v4200
        %4975 = vmatprep.subr.bf16.mxu0 0
        %4976 = vmatpush1.bf16.msra.mxu0 %v4201
        %4977 = vmatprep.subr.bf16.mxu0 0
        %4978 = vmatpush1.bf16.msra.mxu0 %v4202
        %4979 = vmatprep.subr.bf16.mxu0 0
        %4980 = vmatpush1.bf16.msra.mxu0 %v4203
        %4981 = vmatprep.subr.bf16.mxu0 0
        %4982 = vmatpush1.bf16.msra.mxu0 %v4204
        %4983 = vmatprep.subr.bf16.mxu0 0
        %4984 = vmatpush1.bf16.msra.mxu0 %v4205
        %4985 = vmatprep.subr.bf16.mxu0 0
        %4986 = vmatpush1.bf16.msra.mxu0 %v4206
        %4987 = vmatprep.subr.bf16.mxu0 0
        %4988 = vmatpush1.bf16.msra.mxu0 %v4207
        %4989 = vmatprep.subr.bf16.mxu0 0
        %4990 = vmatpush1.bf16.msra.mxu0 %v4208
        %4991 = vmatprep.subr.bf16.mxu0 0
        %4992 = vmatpush1.bf16.msra.mxu0 %v4209
        %4993 = vmatprep.subr.bf16.mxu0 0
        %4994 = vmatpush1.bf16.msra.mxu0 %v4210
        %4995 = vmatprep.subr.bf16.mxu0 0
        %4996 = vmatpush1.bf16.msra.mxu0 %v4211
        %4997 = vmatprep.subr.bf16.mxu0 0
        %4998 = vmatpush1.bf16.msra.mxu0 %v4212
        %4999 = vmatprep.subr.bf16.mxu0 0
        %5000 = vmatpush1.bf16.msra.mxu0 %v4213
        %5001 = vmatprep.mubr.bf16.mxu0 %v3502
        %5002 = vmatmul.mubr.bf16.gmra.mrb[0].mxu0 %v3501
        %v5003 = vpop.f32.mrb[0].mxu0
        %v5004 = vadd.f32 %v4779, %v5003
        %v5005 = vpop.f32.mrb[0].mxu0
        %v5006 = vpop.f32.mrb[0].mxu0
        %v5007 = vadd.f32 %v4782, %v5006
        %v5008 = vpop.f32.mrb[0].mxu0
        %5009 = vmatprep.mubr.bf16.mxu0 %v3511
        %5010 = vmatmul.mubr.bf16.gmra.mrb[0].mxu0 %v3510
        %v5011 = vpop.f32.mrb[0].mxu0
        %v5012 = vadd.f32 %v4787, %v5011
        %v5013 = vpop.f32.mrb[0].mxu0
        %v5014 = vpop.f32.mrb[0].mxu0
        %v5015 = vadd.f32 %v4790, %v5014
        %v5016 = vpop.f32.mrb[0].mxu0
        %5017 = vmatprep.mubr.bf16.mxu0 %v3520
        %5018 = vmatmul.mubr.bf16.gmra.mrb[0].mxu0 %v3519
        %v5019 = vpop.f32.mrb[0].mxu0
        %v5020 = vadd.f32 %v4795, %v5019
        %v5021 = vpop.f32.mrb[0].mxu0
        %v5022 = vpop.f32.mrb[0].mxu0
        %v5023 = vadd.f32 %v4798, %v5022
        %v5024 = vpop.f32.mrb[0].mxu0
        %5025 = vmatprep.mubr.bf16.mxu0 %v3529
        %5026 = vmatmul.mubr.bf16.gmra.mrb[0].mxu0 %v3528
        %v5027 = vpop.f32.mrb[0].mxu0
        %v5028 = vadd.f32 %v4803, %v5027
        %v5029 = vpop.f32.mrb[0].mxu0
        %v5030 = vpop.f32.mrb[0].mxu0
        %v5031 = vadd.f32 %v4806, %v5030
        %v5032 = vpop.f32.mrb[0].mxu0
        %5033 = vmatprep.mubr.bf16.mxu0 %v3538
        %5034 = vmatmul.mubr.bf16.gmra.mrb[0].mxu0 %v3537
        %v5035 = vpop.f32.mrb[0].mxu0
        %v5036 = vadd.f32 %v4811, %v5035
        %v5037 = vpop.f32.mrb[0].mxu0
        %v5038 = vpop.f32.mrb[0].mxu0
        %v5039 = vadd.f32 %v4814, %v5038
        %v5040 = vpop.f32.mrb[0].mxu0
        %5041 = vmatprep.mubr.bf16.mxu0 %v3547
        %5042 = vmatmul.mubr.bf16.gmra.mrb[0].mxu0 %v3546
        %v5043 = vpop.f32.mrb[0].mxu0
        %v5044 = vadd.f32 %v4819, %v5043
        %v5045 = vpop.f32.mrb[0].mxu0
        %v5046 = vpop.f32.mrb[0].mxu0
        %v5047 = vadd.f32 %v4822, %v5046
        %v5048 = vpop.f32.mrb[0].mxu0
        %5049 = vmatprep.mubr.bf16.mxu0 %v3556
        %5050 = vmatmul.mubr.bf16.gmra.mrb[0].mxu0 %v3555
        %v5051 = vpop.f32.mrb[0].mxu0
        %v5052 = vadd.f32 %v4827, %v5051
        %v5053 = vpop.f32.mrb[0].mxu0
        %v5054 = vpop.f32.mrb[0].mxu0
        %v5055 = vadd.f32 %v4830, %v5054
        %v5056 = vpop.f32.mrb[0].mxu0
        %5057 = vmatprep.mubr.bf16.mxu0 %v3565
        %5058 = vmatmul.mubr.bf16.gmra.mrb[0].mxu0 %v3564
        %v5059 = vpop.f32.mrb[0].mxu0
        %v5060 = vadd.f32 %v4835, %v5059
        %v5061 = vpop.f32.mrb[0].mxu0
        %v5062 = vpop.f32.mrb[0].mxu0
        %v5063 = vadd.f32 %v4838, %v5062
        %v5064 = vpop.f32.mrb[0].mxu0
        %5065 = vmatprep.mubr.bf16.mxu0 %v3574
        %5066 = vmatmul.mubr.bf16.gmra.mrb[0].mxu0 %v3573
        %v5067 = vpop.f32.mrb[0].mxu0
        %v5068 = vadd.f32 %v4843, %v5067
        %v5069 = vpop.f32.mrb[0].mxu0
        %v5070 = vpop.f32.mrb[0].mxu0
        %v5071 = vadd.f32 %v4846, %v5070
        %v5072 = vpop.f32.mrb[0].mxu0
        %5073 = vmatprep.mubr.bf16.mxu0 %v3583
        %5074 = vmatmul.mubr.bf16.gmra.mrb[0].mxu0 %v3582
        %v5075 = vpop.f32.mrb[0].mxu0
        %v5076 = vadd.f32 %v4851, %v5075
        %v5077 = vpop.f32.mrb[0].mxu0
        %v5078 = vpop.f32.mrb[0].mxu0
        %v5079 = vadd.f32 %v4854, %v5078
        %v5080 = vpop.f32.mrb[0].mxu0
        %5081 = vmatprep.mubr.bf16.mxu0 %v3592
        %5082 = vmatmul.mubr.bf16.gmra.mrb[0].mxu0 %v3591
        %v5083 = vpop.f32.mrb[0].mxu0
        %v5084 = vadd.f32 %v4859, %v5083
        %v5085 = vpop.f32.mrb[0].mxu0
        %v5086 = vpop.f32.mrb[0].mxu0
        %v5087 = vadd.f32 %v4862, %v5086
        %v5088 = vpop.f32.mrb[0].mxu0
        %5089 = vmatprep.mubr.bf16.mxu0 %v3601
        %5090 = vmatmul.mubr.bf16.gmra.mrb[0].mxu0 %v3600
        %v5091 = vpop.f32.mrb[0].mxu0
        %v5092 = vadd.f32 %v4867, %v5091
        %v5093 = vpop.f32.mrb[0].mxu0
        %v5094 = vpop.f32.mrb[0].mxu0
        %v5095 = vadd.f32 %v4870, %v5094
        %v5096 = vpop.f32.mrb[0].mxu0
        %5097 = vmatprep.mubr.bf16.mxu0 %v3610
        %5098 = vmatmul.mubr.bf16.gmra.mrb[0].mxu0 %v3609
        %v5099 = vpop.f32.mrb[0].mxu0
        %v5100 = vadd.f32 %v4875, %v5099
        %v5101 = vpop.f32.mrb[0].mxu0
        %v5102 = vpop.f32.mrb[0].mxu0
        %v5103 = vadd.f32 %v4878, %v5102
        %v5104 = vpop.f32.mrb[0].mxu0
        %5105 = vmatprep.mubr.bf16.mxu0 %v3619
        %5106 = vmatmul.mubr.bf16.gmra.mrb[0].mxu0 %v3618
        %v5107 = vpop.f32.mrb[0].mxu0
        %v5108 = vadd.f32 %v4883, %v5107
        %v5109 = vpop.f32.mrb[0].mxu0
        %v5110 = vpop.f32.mrb[0].mxu0
        %v5111 = vadd.f32 %v4886, %v5110
        %v5112 = vpop.f32.mrb[0].mxu0
        %5113 = vmatprep.mubr.bf16.mxu0 %v3628
        %5114 = vmatmul.mubr.bf16.gmra.mrb[0].mxu0 %v3627
        %v5115 = vpop.f32.mrb[0].mxu0
        %v5116 = vadd.f32 %v4891, %v5115
        %v5117 = vpop.f32.mrb[0].mxu0
        %v5118 = vpop.f32.mrb[0].mxu0
        %v5119 = vadd.f32 %v4894, %v5118
        %v5120 = vpop.f32.mrb[0].mxu0
        %5121 = vmatprep.mubr.bf16.mxu0 %v3637
        %5122 = vmatmul.mubr.bf16.gmra.mrb[0].mxu0 %v3636
        %v5123 = vpop.f32.mrb[0].mxu0
        %v5124 = vadd.f32 %v4899, %v5123
        %v5125 = vpop.f32.mrb[0].mxu0
        %v5126 = vpop.f32.mrb[0].mxu0
        %v5127 = vadd.f32 %v4902, %v5126
        %v5128 = vpop.f32.mrb[0].mxu0
        %5129 = vmatprep.mubr.bf16.mxu0 %v3646
        %5130 = vmatmul.mubr.bf16.gmra.mrb[0].mxu0 %v3645
        %v5131 = vpop.f32.mrb[0].mxu0
        %v5132 = vadd.f32 %v4907, %v5131
        %v5133 = vpop.f32.mrb[0].mxu0
        %v5134 = vpop.f32.mrb[0].mxu0
        %v5135 = vadd.f32 %v4910, %v5134
        %v5136 = vpop.f32.mrb[0].mxu0
        %5137 = vmatprep.mubr.bf16.mxu0 %v3655
        %5138 = vmatmul.mubr.bf16.gmra.mrb[0].mxu0 %v3654
        %v5139 = vpop.f32.mrb[0].mxu0
        %v5140 = vadd.f32 %v4915, %v5139
        %v5141 = vpop.f32.mrb[0].mxu0
        %v5142 = vpop.f32.mrb[0].mxu0
        %v5143 = vadd.f32 %v4918, %v5142
        %v5144 = vpop.f32.mrb[0].mxu0
        %5145 = vmatprep.mubr.bf16.mxu0 %v3664
        %5146 = vmatmul.mubr.bf16.gmra.mrb[0].mxu0 %v3663
        %v5147 = vpop.f32.mrb[0].mxu0
        %v5148 = vadd.f32 %v4923, %v5147
        %v5149 = vpop.f32.mrb[0].mxu0
        %v5150 = vpop.f32.mrb[0].mxu0
        %v5151 = vadd.f32 %v4926, %v5150
        %v5152 = vpop.f32.mrb[0].mxu0
        %5153 = vmatprep.mubr.bf16.mxu0 %v3673
        %5154 = vmatmul.mubr.bf16.gmra.mrb[0].mxu0 %v3672
        %v5155 = vpop.f32.mrb[0].mxu0
        %v5156 = vadd.f32 %v4931, %v5155
        %v5157 = vpop.f32.mrb[0].mxu0
        %v5158 = vpop.f32.mrb[0].mxu0
        %v5159 = vadd.f32 %v4934, %v5158
        %v5160 = vpop.f32.mrb[0].mxu0
        %5161 = vmatprep.mubr.bf16.mxu0 %v3682
        %5162 = vmatmul.mubr.bf16.gmra.mrb[0].mxu0 %v3681
        %v5163 = vpop.f32.mrb[0].mxu0
        %v5164 = vadd.f32 %v4939, %v5163
        %v5165 = vpop.f32.mrb[0].mxu0
        %v5166 = vpop.f32.mrb[0].mxu0
        %v5167 = vadd.f32 %v4942, %v5166
        %v5168 = vpop.f32.mrb[0].mxu0
        %5169 = vmatprep.mubr.bf16.mxu0 %v3691
        %5170 = vmatmul.mubr.bf16.gmra.mrb[0].mxu0 %v3690
        %v5171 = vpop.f32.mrb[0].mxu0
        %v5172 = vadd.f32 %v4947, %v5171
        %v5173 = vpop.f32.mrb[0].mxu0
        %v5174 = vpop.f32.mrb[0].mxu0
        %v5175 = vadd.f32 %v4950, %v5174
        %v5176 = vpop.f32.mrb[0].mxu0
        %5177 = vmatprep.mubr.bf16.mxu0 %v3700
        %5178 = vmatmul.mubr.bf16.gmra.mrb[0].mxu0 %v3699
        %v5179 = vpop.f32.mrb[0].mxu0
        %v5180 = vadd.f32 %v4955, %v5179
        %v5181 = vpop.f32.mrb[0].mxu0
        %v5182 = vpop.f32.mrb[0].mxu0
        %v5183 = vadd.f32 %v4958, %v5182
        %v5184 = vpop.f32.mrb[0].mxu0
        %5185 = vmatprep.mubr.bf16.mxu0 %v3709
        %5186 = vmatmul.mubr.bf16.gmra.mrb[0].mxu0 %v3708
        %v5187 = vpop.f32.mrb[0].mxu0
        %v5188 = vadd.f32 %v4963, %v5187
        %v5189 = vpop.f32.mrb[0].mxu0
        %v5190 = vpop.f32.mrb[0].mxu0
        %v5191 = vadd.f32 %v4966, %v5190
        %v5192 = vpop.f32.mrb[0].mxu0
        %5193 = vdwg.mxu0
        %5194 = vmatprep.subr.bf16.mxu0 0
        %5195 = vmatpush1.bf16.msra.mxu0 %v4214
        %5196 = vmatprep.subr.bf16.mxu0 0
        %5197 = vmatpush1.bf16.msra.mxu0 %v4215
        %5198 = vmatprep.subr.bf16.mxu0 0
        %5199 = vmatpush1.bf16.msra.mxu0 %v4216
        %5200 = vmatprep.subr.bf16.mxu0 0
        %5201 = vmatpush1.bf16.msra.mxu0 %v4217
        %5202 = vmatprep.subr.bf16.mxu0 0
        %5203 = vmatpush1.bf16.msra.mxu0 %v4218
        %5204 = vmatprep.subr.bf16.mxu0 0
        %5205 = vmatpush1.bf16.msra.mxu0 %v4219
        %5206 = vmatprep.subr.bf16.mxu0 0
        %5207 = vmatpush1.bf16.msra.mxu0 %v4220
        %5208 = vmatprep.subr.bf16.mxu0 0
        %5209 = vmatpush1.bf16.msra.mxu0 %v4221
        %5210 = vmatprep.subr.bf16.mxu0 0
        %5211 = vmatpush1.bf16.msra.mxu0 0
        %5212 = vmatprep.subr.bf16.mxu0 0
        %5213 = vmatpush1.bf16.msra.mxu0 0
        %5214 = vmatprep.subr.bf16.mxu0 0
        %5215 = vmatpush1.bf16.msra.mxu0 0
        %5216 = vmatprep.subr.bf16.mxu0 0
        %5217 = vmatpush1.bf16.msra.mxu0 0
        %5218 = vmatprep.subr.bf16.mxu0 0
        %5219 = vmatpush1.bf16.msra.mxu0 0
        %5220 = vmatprep.subr.bf16.mxu0 0
        %5221 = vmatpush1.bf16.msra.mxu0 0
        %5222 = vmatprep.subr.bf16.mxu0 0
        %5223 = vmatpush1.bf16.msra.mxu0 0
        %5224 = vmatprep.subr.bf16.mxu0 0
        %5225 = vmatpush1.bf16.msra.mxu0 0
        %5226 = vmatprep.mubr.bf16.mxu0 0
        %5227 = vmatmul.mubr.bf16.gmra.mrb[0].mxu0 %v3503
        %v5228 = vpop.f32.mrb[0].mxu0
        %v5229 = vadd.f32 %v5004, %v5228
        %v5230 = vpop.f32.mrb[0].mxu0
        %v5231 = vpop.f32.mrb[0].mxu0
        %v5232 = vadd.f32 %v5007, %v5231
        %v5233 = vpop.f32.mrb[0].mxu0
        %5234 = vmatprep.mubr.bf16.mxu0 0
        %5235 = vmatmul.mubr.bf16.gmra.mrb[0].mxu0 %v3512
        %v5236 = vpop.f32.mrb[0].mxu0
        %v5237 = vadd.f32 %v5012, %v5236
        %v5238 = vpop.f32.mrb[0].mxu0
        %v5239 = vpop.f32.mrb[0].mxu0
        %v5240 = vadd.f32 %v5015, %v5239
        %v5241 = vpop.f32.mrb[0].mxu0
        %5242 = vmatprep.mubr.bf16.mxu0 0
        %5243 = vmatmul.mubr.bf16.gmra.mrb[0].mxu0 %v3521
        %v5244 = vpop.f32.mrb[0].mxu0
        %v5245 = vadd.f32 %v5020, %v5244
        %v5246 = vpop.f32.mrb[0].mxu0
        %v5247 = vpop.f32.mrb[0].mxu0
        %v5248 = vadd.f32 %v5023, %v5247
        %v5249 = vpop.f32.mrb[0].mxu0
        %5250 = vmatprep.mubr.bf16.mxu0 0
        %5251 = vmatmul.mubr.bf16.gmra.mrb[0].mxu0 %v3530
        %v5252 = vpop.f32.mrb[0].mxu0
        %v5253 = vadd.f32 %v5028, %v5252
        %v5254 = vpop.f32.mrb[0].mxu0
        %v5255 = vpop.f32.mrb[0].mxu0
        %v5256 = vadd.f32 %v5031, %v5255
        %v5257 = vpop.f32.mrb[0].mxu0
        %5258 = vmatprep.mubr.bf16.mxu0 0
        %5259 = vmatmul.mubr.bf16.gmra.mrb[0].mxu0 %v3539
        %v5260 = vpop.f32.mrb[0].mxu0
        %v5261 = vadd.f32 %v5036, %v5260
        %v5262 = vpop.f32.mrb[0].mxu0
        %v5263 = vpop.f32.mrb[0].mxu0
        %v5264 = vadd.f32 %v5039, %v5263
        %v5265 = vpop.f32.mrb[0].mxu0
        %5266 = vmatprep.mubr.bf16.mxu0 0
        %5267 = vmatmul.mubr.bf16.gmra.mrb[0].mxu0 %v3548
        %v5268 = vpop.f32.mrb[0].mxu0
        %v5269 = vadd.f32 %v5044, %v5268
        %v5270 = vpop.f32.mrb[0].mxu0
        %v5271 = vpop.f32.mrb[0].mxu0
        %v5272 = vadd.f32 %v5047, %v5271
        %v5273 = vpop.f32.mrb[0].mxu0
        %5274 = vmatprep.mubr.bf16.mxu0 0
        %5275 = vmatmul.mubr.bf16.gmra.mrb[0].mxu0 %v3557
        %v5276 = vpop.f32.mrb[0].mxu0
        %v5277 = vadd.f32 %v5052, %v5276
        %v5278 = vpop.f32.mrb[0].mxu0
        %v5279 = vpop.f32.mrb[0].mxu0
        %v5280 = vadd.f32 %v5055, %v5279
        %v5281 = vpop.f32.mrb[0].mxu0
        %5282 = vmatprep.mubr.bf16.mxu0 0
        %5283 = vmatmul.mubr.bf16.gmra.mrb[0].mxu0 %v3566
        %v5284 = vpop.f32.mrb[0].mxu0
        %v5285 = vadd.f32 %v5060, %v5284
        %v5286 = vpop.f32.mrb[0].mxu0
        %v5287 = vpop.f32.mrb[0].mxu0
        %v5288 = vadd.f32 %v5063, %v5287
        %v5289 = vpop.f32.mrb[0].mxu0
        %5290 = vmatprep.mubr.bf16.mxu0 0
        %5291 = vmatmul.mubr.bf16.gmra.mrb[0].mxu0 %v3575
        %v5292 = vpop.f32.mrb[0].mxu0
        %v5293 = vadd.f32 %v5068, %v5292
        %v5294 = vpop.f32.mrb[0].mxu0
        %v5295 = vpop.f32.mrb[0].mxu0
        %v5296 = vadd.f32 %v5071, %v5295
        %v5297 = vpop.f32.mrb[0].mxu0
        %5298 = vmatprep.mubr.bf16.mxu0 0
        %5299 = vmatmul.mubr.bf16.gmra.mrb[0].mxu0 %v3584
        %v5300 = vpop.f32.mrb[0].mxu0
        %v5301 = vadd.f32 %v5076, %v5300
        %v5302 = vpop.f32.mrb[0].mxu0
        %v5303 = vpop.f32.mrb[0].mxu0
        %v5304 = vadd.f32 %v5079, %v5303
        %v5305 = vpop.f32.mrb[0].mxu0
        %5306 = vmatprep.mubr.bf16.mxu0 0
        %5307 = vmatmul.mubr.bf16.gmra.mrb[0].mxu0 %v3593
        %v5308 = vpop.f32.mrb[0].mxu0
        %v5309 = vadd.f32 %v5084, %v5308
        %v5310 = vpop.f32.mrb[0].mxu0
        %v5311 = vpop.f32.mrb[0].mxu0
        %v5312 = vadd.f32 %v5087, %v5311
        %v5313 = vpop.f32.mrb[0].mxu0
        %5314 = vmatprep.mubr.bf16.mxu0 0
        %5315 = vmatmul.mubr.bf16.gmra.mrb[0].mxu0 %v3602
        %v5316 = vpop.f32.mrb[0].mxu0
        %v5317 = vadd.f32 %v5092, %v5316
        %v5318 = vpop.f32.mrb[0].mxu0
        %v5319 = vpop.f32.mrb[0].mxu0
        %v5320 = vadd.f32 %v5095, %v5319
        %v5321 = vpop.f32.mrb[0].mxu0
        %5322 = vmatprep.mubr.bf16.mxu0 0
        %5323 = vmatmul.mubr.bf16.gmra.mrb[0].mxu0 %v3611
        %v5324 = vpop.f32.mrb[0].mxu0
        %v5325 = vadd.f32 %v5100, %v5324
        %v5326 = vpop.f32.mrb[0].mxu0
        %v5327 = vpop.f32.mrb[0].mxu0
        %v5328 = vadd.f32 %v5103, %v5327
        %v5329 = vpop.f32.mrb[0].mxu0
        %5330 = vmatprep.mubr.bf16.mxu0 0
        %5331 = vmatmul.mubr.bf16.gmra.mrb[0].mxu0 %v3620
        %v5332 = vpop.f32.mrb[0].mxu0
        %v5333 = vadd.f32 %v5108, %v5332
        %v5334 = vpop.f32.mrb[0].mxu0
        %v5335 = vpop.f32.mrb[0].mxu0
        %v5336 = vadd.f32 %v5111, %v5335
        %v5337 = vpop.f32.mrb[0].mxu0
        %5338 = vmatprep.mubr.bf16.mxu0 0
        %5339 = vmatmul.mubr.bf16.gmra.mrb[0].mxu0 %v3629
        %v5340 = vpop.f32.mrb[0].mxu0
        %v5341 = vadd.f32 %v5116, %v5340
        %v5342 = vpop.f32.mrb[0].mxu0
        %v5343 = vpop.f32.mrb[0].mxu0
        %v5344 = vadd.f32 %v5119, %v5343
        %v5345 = vpop.f32.mrb[0].mxu0
        %5346 = vmatprep.mubr.bf16.mxu0 0
        %5347 = vmatmul.mubr.bf16.gmra.mrb[0].mxu0 %v3638
        %v5348 = vpop.f32.mrb[0].mxu0
        %v5349 = vadd.f32 %v5124, %v5348
        %v5350 = vpop.f32.mrb[0].mxu0
        %v5351 = vpop.f32.mrb[0].mxu0
        %v5352 = vadd.f32 %v5127, %v5351
        %v5353 = vpop.f32.mrb[0].mxu0
        %5354 = vmatprep.mubr.bf16.mxu0 0
        %5355 = vmatmul.mubr.bf16.gmra.mrb[0].mxu0 %v3647
        %v5356 = vpop.f32.mrb[0].mxu0
        %v5357 = vadd.f32 %v5132, %v5356
        %v5358 = vpop.f32.mrb[0].mxu0
        %v5359 = vpop.f32.mrb[0].mxu0
        %v5360 = vadd.f32 %v5135, %v5359
        %v5361 = vpop.f32.mrb[0].mxu0
        %5362 = vmatprep.mubr.bf16.mxu0 0
        %5363 = vmatmul.mubr.bf16.gmra.mrb[0].mxu0 %v3656
        %v5364 = vpop.f32.mrb[0].mxu0
        %v5365 = vadd.f32 %v5140, %v5364
        %v5366 = vpop.f32.mrb[0].mxu0
        %v5367 = vpop.f32.mrb[0].mxu0
        %v5368 = vadd.f32 %v5143, %v5367
        %v5369 = vpop.f32.mrb[0].mxu0
        %5370 = vmatprep.mubr.bf16.mxu0 0
        %5371 = vmatmul.mubr.bf16.gmra.mrb[0].mxu0 %v3665
        %v5372 = vpop.f32.mrb[0].mxu0
        %v5373 = vadd.f32 %v5148, %v5372
        %v5374 = vpop.f32.mrb[0].mxu0
        %v5375 = vpop.f32.mrb[0].mxu0
        %v5376 = vadd.f32 %v5151, %v5375
        %v5377 = vpop.f32.mrb[0].mxu0
        %5378 = vmatprep.mubr.bf16.mxu0 0
        %5379 = vmatmul.mubr.bf16.gmra.mrb[0].mxu0 %v3674
        %v5380 = vpop.f32.mrb[0].mxu0
        %v5381 = vadd.f32 %v5156, %v5380
        %v5382 = vpop.f32.mrb[0].mxu0
        %v5383 = vpop.f32.mrb[0].mxu0
        %v5384 = vadd.f32 %v5159, %v5383
        %v5385 = vpop.f32.mrb[0].mxu0
        %5386 = vmatprep.mubr.bf16.mxu0 0
        %5387 = vmatmul.mubr.bf16.gmra.mrb[0].mxu0 %v3683
        %v5388 = vpop.f32.mrb[0].mxu0
        %v5389 = vadd.f32 %v5164, %v5388
        %v5390 = vpop.f32.mrb[0].mxu0
        %v5391 = vpop.f32.mrb[0].mxu0
        %v5392 = vadd.f32 %v5167, %v5391
        %v5393 = vpop.f32.mrb[0].mxu0
        %5394 = vmatprep.mubr.bf16.mxu0 0
        %5395 = vmatmul.mubr.bf16.gmra.mrb[0].mxu0 %v3692
        %v5396 = vpop.f32.mrb[0].mxu0
        %v5397 = vadd.f32 %v5172, %v5396
        %v5398 = vpop.f32.mrb[0].mxu0
        %v5399 = vpop.f32.mrb[0].mxu0
        %v5400 = vadd.f32 %v5175, %v5399
        %v5401 = vpop.f32.mrb[0].mxu0
        %5402 = vmatprep.mubr.bf16.mxu0 0
        %5403 = vmatmul.mubr.bf16.gmra.mrb[0].mxu0 %v3701
        %v5404 = vpop.f32.mrb[0].mxu0
        %v5405 = vadd.f32 %v5180, %v5404
        %v5406 = vpop.f32.mrb[0].mxu0
        %v5407 = vpop.f32.mrb[0].mxu0
        %v5408 = vadd.f32 %v5183, %v5407
        %v5409 = vpop.f32.mrb[0].mxu0
        %5410 = vmatprep.mubr.bf16.mxu0 0
        %5411 = vmatmul.mubr.bf16.gmra.mrb[0].mxu0 %v3710
        %v5412 = vpop.f32.mrb[0].mxu0
        %v5413 = vadd.f32 %v5188, %v5412
        %v5414 = vpop.f32.mrb[0].mxu0
        %v5415 = vpop.f32.mrb[0].mxu0
        %v5416 = vadd.f32 %v5191, %v5415
        %v5417 = vpop.f32.mrb[0].mxu0
        %5418 = vdwg.mxu0
        %v5419 = vmul.f32 %v5229, 0.5
        %v5420 = vmul.f32 %v5232, 0.5
        %v5421 = vmul.f32 %v5237, 0.5
        %v5422 = vmul.f32 %v5240, 0.5
        %v5423 = vmul.f32 %v5245, 0.5
        %v5424 = vmul.f32 %v5248, 0.5
        %v5425 = vmul.f32 %v5253, 0.5
        %v5426 = vmul.f32 %v5256, 0.5
        %v5427 = vmul.f32 %v5261, 0.5
        %v5428 = vmul.f32 %v5264, 0.5
        %v5429 = vmul.f32 %v5269, 0.5
        %v5430 = vmul.f32 %v5272, 0.5
        %v5431 = vmul.f32 %v5277, 0.5
        %v5432 = vmul.f32 %v5280, 0.5
        %v5433 = vmul.f32 %v5285, 0.5
        %v5434 = vmul.f32 %v5288, 0.5
        %v5435 = vmul.f32 %v5293, 0.5
        %v5436 = vmul.f32 %v5296, 0.5
        %v5437 = vmul.f32 %v5301, 0.5
        %v5438 = vmul.f32 %v5304, 0.5
        %v5439 = vmul.f32 %v5309, 0.5
        %v5440 = vmul.f32 %v5312, 0.5
        %v5441 = vmul.f32 %v5317, 0.5
        %v5442 = vmul.f32 %v5320, 0.5
        %v5443 = vmul.f32 %v5325, 0.5
        %v5444 = vmul.f32 %v5328, 0.5
        %v5445 = vmul.f32 %v5333, 0.5
        %v5446 = vmul.f32 %v5336, 0.5
        %v5447 = vmul.f32 %v5341, 0.5
        %v5448 = vmul.f32 %v5344, 0.5
        %v5449 = vmul.f32 %v5349, 0.5
        %v5450 = vmul.f32 %v5352, 0.5
        %v5451 = vmul.f32 %v5357, 0.5
        %v5452 = vmul.f32 %v5360, 0.5
        %v5453 = vmul.f32 %v5365, 0.5
        %v5454 = vmul.f32 %v5368, 0.5
        %v5455 = vmul.f32 %v5373, 0.5
        %v5456 = vmul.f32 %v5376, 0.5
        %v5457 = vmul.f32 %v5381, 0.5
        %v5458 = vmul.f32 %v5384, 0.5
        %v5459 = vmul.f32 %v5389, 0.5
        %v5460 = vmul.f32 %v5392, 0.5
        %v5461 = vmul.f32 %v5397, 0.5
        %v5462 = vmul.f32 %v5400, 0.5
        %v5463 = vmul.f32 %v5405, 0.5
        %v5464 = vmul.f32 %v5408, 0.5
        %v5465 = vmul.f32 %v5413, 0.5
        %v5466 = vmul.f32 %v5416, 0.5
        %v5467 = vtanh.pop %v5419
        %v5468 = vtanh.pop %v5420
        %v5469 = vtanh.pop %v5421
        %v5470 = vtanh.pop %v5422
        %v5471 = vtanh.pop %v5423
        %v5472 = vtanh.pop %v5424
        %v5473 = vtanh.pop %v5425
        %v5474 = vtanh.pop %v5426
        %v5475 = vtanh.pop %v5427
        %v5476 = vtanh.pop %v5428
        %v5477 = vtanh.pop %v5429
        %v5478 = vtanh.pop %v5430
        %v5479 = vtanh.pop %v5431
        %v5480 = vtanh.pop %v5432
        %v5481 = vtanh.pop %v5433
        %v5482 = vtanh.pop %v5434
        %v5483 = vtanh.pop %v5435
        %v5484 = vtanh.pop %v5436
        %v5485 = vtanh.pop %v5437
        %v5486 = vtanh.pop %v5438
        %v5487 = vtanh.pop %v5439
        %v5488 = vtanh.pop %v5440
        %v5489 = vtanh.pop %v5441
        %v5490 = vtanh.pop %v5442
        %v5491 = vtanh.pop %v5443
        %v5492 = vtanh.pop %v5444
        %v5493 = vtanh.pop %v5445
        %v5494 = vtanh.pop %v5446
        %v5495 = vtanh.pop %v5447
        %v5496 = vtanh.pop %v5448
        %v5497 = vtanh.pop %v5449
        %v5498 = vtanh.pop %v5450
        %v5499 = vtanh.pop %v5451
        %v5500 = vtanh.pop %v5452
        %v5501 = vtanh.pop %v5453
        %v5502 = vtanh.pop %v5454
        %v5503 = vtanh.pop %v5455
        %v5504 = vtanh.pop %v5456
        %v5505 = vtanh.pop %v5457
        %v5506 = vtanh.pop %v5458
        %v5507 = vtanh.pop %v5459
        %v5508 = vtanh.pop %v5460
        %v5509 = vtanh.pop %v5461
        %v5510 = vtanh.pop %v5462
        %v5511 = vtanh.pop %v5463
        %v5512 = vtanh.pop %v5464
        %v5513 = vtanh.pop %v5465
        %v5514 = vtanh.pop %v5466
        %v5515 = vadd.f32 %v5467, 1.0
        %v5516 = vadd.f32 %v5468, 1.0
        %v5517 = vadd.f32 %v5469, 1.0
        %v5518 = vadd.f32 %v5470, 1.0
        %v5519 = vadd.f32 %v5471, 1.0
        %v5520 = vadd.f32 %v5472, 1.0
        %v5521 = vadd.f32 %v5473, 1.0
        %v5522 = vadd.f32 %v5474, 1.0
        %v5523 = vadd.f32 %v5475, 1.0
        %v5524 = vadd.f32 %v5476, 1.0
        %v5525 = vadd.f32 %v5477, 1.0
        %v5526 = vadd.f32 %v5478, 1.0
        %v5527 = vadd.f32 %v5479, 1.0
        %v5528 = vadd.f32 %v5480, 1.0
        %v5529 = vadd.f32 %v5481, 1.0
        %v5530 = vadd.f32 %v5482, 1.0
        %v5531 = vadd.f32 %v5483, 1.0
        %v5532 = vadd.f32 %v5484, 1.0
        %v5533 = vadd.f32 %v5485, 1.0
        %v5534 = vadd.f32 %v5486, 1.0
        %v5535 = vadd.f32 %v5487, 1.0
        %v5536 = vadd.f32 %v5488, 1.0
        %v5537 = vadd.f32 %v5489, 1.0
        %v5538 = vadd.f32 %v5490, 1.0
        %v5539 = vadd.f32 %v5491, 1.0
        %v5540 = vadd.f32 %v5492, 1.0
        %v5541 = vadd.f32 %v5493, 1.0
        %v5542 = vadd.f32 %v5494, 1.0
        %v5543 = vadd.f32 %v5495, 1.0
        %v5544 = vadd.f32 %v5496, 1.0
        %v5545 = vadd.f32 %v5497, 1.0
        %v5546 = vadd.f32 %v5498, 1.0
        %v5547 = vadd.f32 %v5499, 1.0
        %v5548 = vadd.f32 %v5500, 1.0
        %v5549 = vadd.f32 %v5501, 1.0
        %v5550 = vadd.f32 %v5502, 1.0
        %v5551 = vadd.f32 %v5503, 1.0
        %v5552 = vadd.f32 %v5504, 1.0
        %v5553 = vadd.f32 %v5505, 1.0
        %v5554 = vadd.f32 %v5506, 1.0
        %v5555 = vadd.f32 %v5507, 1.0
        %v5556 = vadd.f32 %v5508, 1.0
        %v5557 = vadd.f32 %v5509, 1.0
        %v5558 = vadd.f32 %v5510, 1.0
        %v5559 = vadd.f32 %v5511, 1.0
        %v5560 = vadd.f32 %v5512, 1.0
        %v5561 = vadd.f32 %v5513, 1.0
        %v5562 = vadd.f32 %v5514, 1.0
        %v5563 = vmul.f32 %v5515, 0.5
        %v5564 = vmul.f32 %v5516, 0.5
        %v5565 = vmul.f32 %v5517, 0.5
        %v5566 = vmul.f32 %v5518, 0.5
        %v5567 = vmul.f32 %v5519, 0.5
        %v5568 = vmul.f32 %v5520, 0.5
        %v5569 = vmul.f32 %v5521, 0.5
        %v5570 = vmul.f32 %v5522, 0.5
        %v5571 = vmul.f32 %v5523, 0.5
        %v5572 = vmul.f32 %v5524, 0.5
        %v5573 = vmul.f32 %v5525, 0.5
        %v5574 = vmul.f32 %v5526, 0.5
        %v5575 = vmul.f32 %v5527, 0.5
        %v5576 = vmul.f32 %v5528, 0.5
        %v5577 = vmul.f32 %v5529, 0.5
        %v5578 = vmul.f32 %v5530, 0.5
        %v5579 = vmul.f32 %v5531, 0.5
        %v5580 = vmul.f32 %v5532, 0.5
        %v5581 = vmul.f32 %v5533, 0.5
        %v5582 = vmul.f32 %v5534, 0.5
        %v5583 = vmul.f32 %v5535, 0.5
        %v5584 = vmul.f32 %v5536, 0.5
        %v5585 = vmul.f32 %v5537, 0.5
        %v5586 = vmul.f32 %v5538, 0.5
        %v5587 = vmul.f32 %v5539, 0.5
        %v5588 = vmul.f32 %v5540, 0.5
        %v5589 = vmul.f32 %v5541, 0.5
        %v5590 = vmul.f32 %v5542, 0.5
        %v5591 = vmul.f32 %v5543, 0.5
        %v5592 = vmul.f32 %v5544, 0.5
        %v5593 = vmul.f32 %v5545, 0.5
        %v5594 = vmul.f32 %v5546, 0.5
        %v5595 = vmul.f32 %v5547, 0.5
        %v5596 = vmul.f32 %v5548, 0.5
        %v5597 = vmul.f32 %v5549, 0.5
        %v5598 = vmul.f32 %v5550, 0.5
        %v5599 = vmul.f32 %v5551, 0.5
        %v5600 = vmul.f32 %v5552, 0.5
        %v5601 = vmul.f32 %v5553, 0.5
        %v5602 = vmul.f32 %v5554, 0.5
        %v5603 = vmul.f32 %v5555, 0.5
        %v5604 = vmul.f32 %v5556, 0.5
        %v5605 = vmul.f32 %v5557, 0.5
        %v5606 = vmul.f32 %v5558, 0.5
        %v5607 = vmul.f32 %v5559, 0.5
        %v5608 = vmul.f32 %v5560, 0.5
        %v5609 = vmul.f32 %v5561, 0.5
        %v5610 = vmul.f32 %v5562, 0.5
        %v5611 = vmul.f32 %v5229, %v5563
        %v5612 = vmul.f32 %v5232, %v5564
        %v5613 = vmul.f32 %v5237, %v5565
        %v5614 = vmul.f32 %v5240, %v5566
        %v5615 = vmul.f32 %v5245, %v5567
        %v5616 = vmul.f32 %v5248, %v5568
        %v5617 = vmul.f32 %v5253, %v5569
        %v5618 = vmul.f32 %v5256, %v5570
        %v5619 = vmul.f32 %v5261, %v5571
        %v5620 = vmul.f32 %v5264, %v5572
        %v5621 = vmul.f32 %v5269, %v5573
        %v5622 = vmul.f32 %v5272, %v5574
        %v5623 = vmul.f32 %v5277, %v5575
        %v5624 = vmul.f32 %v5280, %v5576
        %v5625 = vmul.f32 %v5285, %v5577
        %v5626 = vmul.f32 %v5288, %v5578
        %v5627 = vmul.f32 %v5293, %v5579
        %v5628 = vmul.f32 %v5296, %v5580
        %v5629 = vmul.f32 %v5301, %v5581
        %v5630 = vmul.f32 %v5304, %v5582
        %v5631 = vmul.f32 %v5309, %v5583
        %v5632 = vmul.f32 %v5312, %v5584
        %v5633 = vmul.f32 %v5317, %v5585
        %v5634 = vmul.f32 %v5320, %v5586
        %v5635 = vmul.f32 %v5325, %v5587
        %v5636 = vmul.f32 %v5328, %v5588
        %v5637 = vmul.f32 %v5333, %v5589
        %v5638 = vmul.f32 %v5336, %v5590
        %v5639 = vmul.f32 %v5341, %v5591
        %v5640 = vmul.f32 %v5344, %v5592
        %v5641 = vmul.f32 %v5349, %v5593
        %v5642 = vmul.f32 %v5352, %v5594
        %v5643 = vmul.f32 %v5357, %v5595
        %v5644 = vmul.f32 %v5360, %v5596
        %v5645 = vmul.f32 %v5365, %v5597
        %v5646 = vmul.f32 %v5368, %v5598
        %v5647 = vmul.f32 %v5373, %v5599
        %v5648 = vmul.f32 %v5376, %v5600
        %v5649 = vmul.f32 %v5381, %v5601
        %v5650 = vmul.f32 %v5384, %v5602
        %v5651 = vmul.f32 %v5389, %v5603
        %v5652 = vmul.f32 %v5392, %v5604
        %v5653 = vmul.f32 %v5397, %v5605
        %v5654 = vmul.f32 %v5400, %v5606
        %v5655 = vmul.f32 %v5405, %v5607
        %v5656 = vmul.f32 %v5408, %v5608
        %v5657 = vmul.f32 %v5413, %v5609
        %v5658 = vmul.f32 %v5416, %v5610
        %v5659 = vpack.c.bf16 %v5612, %v5611
        %v5660 = vpack.c.bf16 %v5614, %v5613
        %v5661 = vpack.c.bf16 %v5616, %v5615
        %v5662 = vpack.c.bf16 %v5618, %v5617
        %v5663 = vpack.c.bf16 %v5620, %v5619
        %v5664 = vpack.c.bf16 %v5622, %v5621
        %v5665 = vpack.c.bf16 %v5624, %v5623
        %v5666 = vpack.c.bf16 %v5626, %v5625
        %v5667 = vpack.c.bf16 %v5628, %v5627
        %v5668 = vpack.c.bf16 %v5630, %v5629
        %v5669 = vpack.c.bf16 %v5632, %v5631
        %v5670 = vpack.c.bf16 %v5634, %v5633
        %v5671 = vpack.c.bf16 %v5636, %v5635
        %v5672 = vpack.c.bf16 %v5638, %v5637
        %v5673 = vpack.c.bf16 %v5640, %v5639
        %v5674 = vpack.c.bf16 %v5642, %v5641
        %v5675 = vpack.c.bf16 %v5644, %v5643
        %v5676 = vpack.c.bf16 %v5646, %v5645
        %v5677 = vpack.c.bf16 %v5648, %v5647
        %v5678 = vpack.c.bf16 %v5650, %v5649
        %v5679 = vpack.c.bf16 %v5652, %v5651
        %v5680 = vpack.c.bf16 %v5654, %v5653
        %v5681 = vpack.c.bf16 %v5656, %v5655
        %v5682 = vpack.c.bf16 %v5658, %v5657
        %v5707 = vunpack.c.l.b16 %v5659
        %v5708 = vunpack.c.h.b16 %v5659
        %v5709 = vunpack.c.l.b16 %v5660
        %v5710 = vunpack.c.h.b16 %v5660
        %v5711 = vunpack.c.l.b16 %v5661
        %v5712 = vunpack.c.h.b16 %v5661
        %v5713 = vunpack.c.l.b16 %v5662
        %v5714 = vunpack.c.h.b16 %v5662
        %v5715 = vunpack.c.l.b16 %v5663
        %v5716 = vunpack.c.h.b16 %v5663
        %v5717 = vunpack.c.l.b16 %v5664
        %v5718 = vunpack.c.h.b16 %v5664
        %v5719 = vunpack.c.l.b16 %v5665
        %v5720 = vunpack.c.h.b16 %v5665
        %v5721 = vunpack.c.l.b16 %v5666
        %v5722 = vunpack.c.h.b16 %v5666
        %v5723 = vunpack.c.l.b16 %v5667
        %v5724 = vunpack.c.h.b16 %v5667
        %v5725 = vunpack.c.l.b16 %v5668
        %v5726 = vunpack.c.h.b16 %v5668
        %v5727 = vunpack.c.l.b16 %v5669
        %v5728 = vunpack.c.h.b16 %v5669
        %v5729 = vunpack.c.l.b16 %v5670
        %v5730 = vunpack.c.h.b16 %v5670
        %v5731 = vunpack.c.l.b16 %v5671
        %v5732 = vunpack.c.h.b16 %v5671
        %v5733 = vunpack.c.l.b16 %v5672
        %v5734 = vunpack.c.h.b16 %v5672
        %v5735 = vunpack.c.l.b16 %v5673
        %v5736 = vunpack.c.h.b16 %v5673
        %v5737 = vunpack.c.l.b16 %v5674
        %v5738 = vunpack.c.h.b16 %v5674
        %v5739 = vunpack.c.l.b16 %v5675
        %v5740 = vunpack.c.h.b16 %v5675
        %v5741 = vunpack.c.l.b16 %v5676
        %v5742 = vunpack.c.h.b16 %v5676
        %v5743 = vunpack.c.l.b16 %v5677
        %v5744 = vunpack.c.h.b16 %v5677
        %v5745 = vunpack.c.l.b16 %v5678
        %v5746 = vunpack.c.h.b16 %v5678
        %v5747 = vunpack.c.l.b16 %v5679
        %v5748 = vunpack.c.h.b16 %v5679
        %v5749 = vunpack.c.l.b16 %v5680
        %v5750 = vunpack.c.h.b16 %v5680
        %v5751 = vunpack.c.l.b16 %v5681
        %v5752 = vunpack.c.h.b16 %v5681
        %v5753 = vunpack.c.l.b16 %v5682
        %v5754 = vunpack.c.h.b16 %v5682
        %v5755 = vpack.c.b16 %v5707, %v5707
        %v5756 = vpack.c.b16 %v5708, %v5708
        %v5757 = vpack.c.b16 %v5709, %v5709
        %v5758 = vpack.c.b16 %v5710, %v5710
        %v5759 = vpack.c.b16 %v5711, %v5711
        %v5760 = vpack.c.b16 %v5712, %v5712
        %v5761 = vpack.c.b16 %v5713, %v5713
        %v5762 = vpack.c.b16 %v5714, %v5714
        %v5763 = vpack.c.b16 %v5715, %v5715
        %v5764 = vpack.c.b16 %v5716, %v5716
        %v5765 = vpack.c.b16 %v5717, %v5717
        %v5766 = vpack.c.b16 %v5718, %v5718
        %v5767 = vpack.c.b16 %v5719, %v5719
        %v5768 = vpack.c.b16 %v5720, %v5720
        %v5769 = vpack.c.b16 %v5721, %v5721
        %v5770 = vpack.c.b16 %v5722, %v5722
        %v5771 = vpack.c.b16 %v5723, %v5723
        %v5772 = vpack.c.b16 %v5724, %v5724
        %v5773 = vpack.c.b16 %v5725, %v5725
        %v5774 = vpack.c.b16 %v5726, %v5726
        %v5775 = vpack.c.b16 %v5727, %v5727
        %v5776 = vpack.c.b16 %v5728, %v5728
        %v5777 = vpack.c.b16 %v5729, %v5729
        %v5778 = vpack.c.b16 %v5730, %v5730
        %v5779 = vpack.c.b16 %v5731, %v5731
        %v5780 = vpack.c.b16 %v5732, %v5732
        %v5781 = vpack.c.b16 %v5733, %v5733
        %v5782 = vpack.c.b16 %v5734, %v5734
        %v5783 = vpack.c.b16 %v5735, %v5735
        %v5784 = vpack.c.b16 %v5736, %v5736
        %v5785 = vpack.c.b16 %v5737, %v5737
        %v5786 = vpack.c.b16 %v5738, %v5738
        %v5787 = vpack.c.b16 %v5739, %v5739
        %v5788 = vpack.c.b16 %v5740, %v5740
        %v5789 = vpack.c.b16 %v5741, %v5741
        %v5790 = vpack.c.b16 %v5742, %v5742
        %v5791 = vpack.c.b16 %v5743, %v5743
        %v5792 = vpack.c.b16 %v5744, %v5744
        %v5793 = vpack.c.b16 %v5745, %v5745
        %v5794 = vpack.c.b16 %v5746, %v5746
        %v5795 = vpack.c.b16 %v5747, %v5747
        %v5796 = vpack.c.b16 %v5748, %v5748
        %v5797 = vpack.c.b16 %v5749, %v5749
        %v5798 = vpack.c.b16 %v5750, %v5750
        %v5799 = vpack.c.b16 %v5751, %v5751
        %v5800 = vpack.c.b16 %v5752, %v5752
        %v5801 = vpack.c.b16 %v5753, %v5753
        %v5802 = vpack.c.b16 %v5754, %v5754
        %5851 = vst [vmem:[%s294] sm:$0xf] %v5755
        %5852 = vst [vmem:[%s294 + $0x4] sm:$0xf] %v5756
        %5853 = vst [vmem:[%s294 + $0x8] sm:$0xf] %v5757
        %5854 = vst [vmem:[%s294 + $0xc] sm:$0xf] %v5758
        %5855 = vst [vmem:[%s294 + $0x10] sm:$0xf] %v5759
        %5856 = vst [vmem:[%s294 + $0x14] sm:$0xf] %v5760
        %5857 = vst [vmem:[%s294 + $0x18] sm:$0xf] %v5761
        %5858 = vst [vmem:[%s294 + $0x1c] sm:$0xf] %v5762
        %5859 = vst [vmem:[%s294 + $0x20] sm:$0xf] %v5763
        %5860 = vst [vmem:[%s294 + $0x24] sm:$0xf] %v5764
        %5861 = vst [vmem:[%s294 + $0x28] sm:$0xf] %v5765
        %5862 = vst [vmem:[%s294 + $0x2c] sm:$0xf] %v5766
        %5863 = vst [vmem:[%s294 + $0x30] sm:$0xf] %v5767
        %5864 = vst [vmem:[%s294 + $0x34] sm:$0xf] %v5768
        %5865 = vst [vmem:[%s294 + $0x38] sm:$0xf] %v5769
        %5866 = vst [vmem:[%s294 + $0x3c] sm:$0xf] %v5770
        %5867 = vst [vmem:[%s294 + $0x40] sm:$0xf] %v5771
        %5868 = vst [vmem:[%s294 + $0x44] sm:$0xf] %v5772
        %5869 = vst [vmem:[%s294 + $0x48] sm:$0xf] %v5773
        %5870 = vst [vmem:[%s294 + $0x4c] sm:$0xf] %v5774
        %5871 = vst [vmem:[%s294 + $0x50] sm:$0xf] %v5775
        %5872 = vst [vmem:[%s294 + $0x54] sm:$0xf] %v5776
        %5873 = vst [vmem:[%s294 + $0x58] sm:$0xf] %v5777
        %5874 = vst [vmem:[%s294 + $0x5c] sm:$0xf] %v5778
        %5875 = vst [vmem:[%s294 + $0x60] sm:$0xf] %v5779
        %5876 = vst [vmem:[%s294 + $0x64] sm:$0xf] %v5780
        %5877 = vst [vmem:[%s294 + $0x68] sm:$0xf] %v5781
        %5878 = vst [vmem:[%s294 + $0x6c] sm:$0xf] %v5782
        %5879 = vst [vmem:[%s294 + $0x70] sm:$0xf] %v5783
        %5880 = vst [vmem:[%s294 + $0x74] sm:$0xf] %v5784
        %5881 = vst [vmem:[%s294 + $0x78] sm:$0xf] %v5785
        %5882 = vst [vmem:[%s294 + $0x7c] sm:$0xf] %v5786
        %5883 = vst [vmem:[%s294 + $0x80] sm:$0xf] %v5787
        %5884 = vst [vmem:[%s294 + $0x84] sm:$0xf] %v5788
        %5885 = vst [vmem:[%s294 + $0x88] sm:$0xf] %v5789
        %5886 = vst [vmem:[%s294 + $0x8c] sm:$0xf] %v5790
        %5887 = vst [vmem:[%s294 + $0x90] sm:$0xf] %v5791
        %5888 = vst [vmem:[%s294 + $0x94] sm:$0xf] %v5792
        %5889 = vst [vmem:[%s294 + $0x98] sm:$0xf] %v5793
        %5890 = vst [vmem:[%s294 + $0x9c] sm:$0xf] %v5794
        %5891 = vst [vmem:[%s294 + $0xa0] sm:$0xf] %v5795
        %5892 = vst [vmem:[%s294 + $0xa4] sm:$0xf] %v5796
        %5893 = vst [vmem:[%s294 + $0xa8] sm:$0xf] %v5797
        %5894 = vst [vmem:[%s294 + $0xac] sm:$0xf] %v5798
        %5895 = vst [vmem:[%s294 + $0xb0] sm:$0xf] %v5799
        %5896 = vst [vmem:[%s294 + $0xb4] sm:$0xf] %v5800
        %5897 = vst [vmem:[%s294 + $0xb8] sm:$0xf] %v5801
        %5898 = vst [vmem:[%s294 + $0xbc] sm:$0xf] %v5802
        %s5899 = sand.u32 %s158, 1
        %s5900 = scalar_lea.sflag [#allocation5], %s5899
        %s5901 = sand.u32 %s158, 1
        %s5902 = smul.addr %s5901, 192
        %s5903 = scalar_lea.vmem [#allocation6], %s5902
        // Predicated region
        $region45: #{tpu_custom_call.1} parent=35 // pred_check
          %p5904 = pneg %p168
        $region46: #{tpu_custom_call.1} parent=35 // pred_check_branch
          %5906 = sbr.rel (%p5904) target = $region48
        $region47: #{tpu_custom_call.1} parent=35 // pred_region
          %s5908 = ssub.s32 3072, 3072
          %5909 = vsyncadd %s5900, %s5908
          %s5910 = smul.addr %s25, 48
          %s5911 = sadd.s32 %s26, %s5910
          %s5912 = smul.addr %s24, 48
          %s5913 = sadd.s32 %s5911, %s5912
          %s5914 = smul.addr %s5913, 64
          %s5915 = scalar_lea.hbm %s4, %s5914
          %s5916 = sshll.u32 %s5903, 4
          %s5917 = int_to_ptr.vmem [resolvable:$true] %s5916
          %5922 = dma.vmem_to_hbm [thread:$0]  %s5917, 3072, %s5915, %s5900, 64, 64, 4
        $region48: #{tpu_custom_call.1} parent=35 // pred_fallthru
          _
      $region36: #{tpu_custom_call.1} parent=5 // pred_fallthru
        _
      %p5923 = scmp.le.s32.totalorder 2, %s14
      // Predicated region
      $region49: #{tpu_custom_call.1} parent=5 // pred_check
        %p5924 = pneg %p5923
      $region50: #{tpu_custom_call.1} parent=5 // pred_check_branch
        %5926 = sbr.rel (%p5924) target = $region52
      $region51: #{tpu_custom_call.1} parent=5 // pred_region
        %s5927 = ssub.s32 %s14, 2
        // Predicated region
        $region53: #{tpu_custom_call.1} parent=51 // pred_check
          %p5928 = pneg %p174
        $region54: #{tpu_custom_call.1} parent=51 // pred_check_branch
          %5930 = sbr.rel (%p5928) target = $region56
        $region55: #{tpu_custom_call.1} parent=51 // pred_region
          %s5931 = sand.u32 %s159, 1
          %s5932 = scalar_lea.sflag [#allocation5], %s5931
          %s5933 = sand.u32 %s159, 1
          %s5934 = smul.addr %s5933, 192
          %s5935 = scalar_lea.vmem [#allocation6], %s5934
          %5936 = dma.done %s5932, 3072
        $region56: #{tpu_custom_call.1} parent=51 // pred_fallthru
          _
      $region52: #{tpu_custom_call.1} parent=5 // pred_fallthru
        _
    $region6: #{tpu_custom_call.1} parent=1 // loop_footer
      %s18 = sadd.s32 1, %s14
    $region7: #{tpu_custom_call.1} parent=1 // loop_footer_branch
      %13 = sbr.rel target = $region3
    $region8: #{tpu_custom_call.1} parent=1 // loop_exit
      _
    %5937 = vsyncpa [#allocation4], 1
    %s5938 = scalar_lea.sflag [#allocation4], 1
    %5939 = vsyncpa %s5938, 1
    %5940 = vsyncpa [#allocation5], 1
    %s5941 = scalar_lea.sflag [#allocation5], 1
    %5942 = vsyncpa %s5941, 1

</llo_original>
